<compile_context>
chip_gen: v7x
topology: tpu7x:2x2x1
jax: 0.10.0
libtpu: 0.0.40
codegen_flags: <defaults>
</compile_context>

<pallas_src>
import jax
import jax.numpy as jnp
import numpy as np
from jax import lax
from jax.experimental import pallas as pl
from jax.experimental.pallas import tpu as pltpu

_VMEM_LIMIT = 32 * 1024 * 1024   # << v7x's 64 MiB physical; 128 MiB on v5e/v6e


def _round_up(x, m):
    return (x + m - 1) // m * m


# ---------------------------------------------------------------------------
# Kernel A: conv1 (5x5, C_in=1) + bias + 2x2/2 maxpool + ReLU.
#   a_ref : (4, tm, 25)  parity-grouped im2col (pool parity, pooled pixel, tap)
#   w_ref : (25, 64),  b_ref : (1, 64),  o_ref : (tm, 64)
# All four pool parities go through ONE MXU push; the pool is the max over
# the four parity planes of the result (bias/ReLU commute with the max).
# ---------------------------------------------------------------------------
def _conv1_pool_relu_kernel(a_ref, w_ref, b_ref, o_ref):
    tm = o_ref.shape[0]
    a = a_ref[...]                                    # (4, tm, 25) bf16
    m = jnp.dot(a.reshape(4 * tm, 25), w_ref[...],
                preferred_element_type=jnp.float32)   # (4*tm, 64) f32
    m = jnp.max(m.reshape(4, tm, 64), axis=0)         # 2x2 max-pool
    o_ref[...] = jnp.maximum(m + b_ref[...], 0.0).astype(o_ref.dtype)


def _conv1_im2col(x, k=5):
    """Parity-grouped im2col for conv1, built from strided slices only.

    x: (N, 28, 28).  Returns (4, N*144, 25): plane p = 2*ph + pw holds, for
    every pooled output pixel (n, hp, wp), the 25-tap patch feeding the
    pre-pool conv output at (2*hp + ph, 2*wp + pw).
    """
    N, H, W = x.shape
    Hp, Wp = (H - k + 1) // 2, (W - k + 1) // 2        # 12, 12
    planes = []
    for ph in range(2):
        for pw in range(2):
            taps = []
            for i in range(k):
                for j in range(k):
                    sl = x[:, ph + i: ph + i + 2 * Hp: 2,
                           pw + j: pw + j + 2 * Wp: 2]            # (N, 12, 12)
                    taps.append(sl.reshape(N * Hp * Wp))
            planes.append(jnp.stack(taps, axis=-1))               # (N*144, 25)
    return jnp.stack(planes, axis=0)                              # (4, N*144, 25)


def conv1_pool_relu(x_nhw, w1, b1):
    """x_nhw: (N, 28, 28) bf16 -> pooled/ReLU'd activation (N, 12, 12, 64) bf16."""
    N = x_nhw.shape[0]
    cols = _conv1_im2col(x_nhw)                        # (4, N*144, 25) bf16
    _, M, K = cols.shape
    C = w1.shape[1]

    spt = N if N <= 8 else 8                           # samples per grid step
    tm = spt * 144                                     # multiple of 144 (and 8)
    Mp = _round_up(M, tm)
    if Mp != M:
        cols = jnp.pad(cols, ((0, 0), (0, Mp - M), (0, 0)))

    flops = 2 * 4 * Mp * K * C
    bytes_accessed = 4 * Mp * K * 2 + K * C * 2 + C * 4 + Mp * C * 2

    out = pl.pallas_call(
        _conv1_pool_relu_kernel,
        grid=(Mp // tm,),
        in_specs=[
            pl.BlockSpec((4, tm, K), lambda i: (0, i, 0)),
            pl.BlockSpec((K, C), lambda i: (0, 0)),
            pl.BlockSpec((1, C), lambda i: (0, 0)),
        ],
        out_specs=pl.BlockSpec((tm, C), lambda i: (i, 0)),
        out_shape=jax.ShapeDtypeStruct((Mp, C), jnp.bfloat16),
        compiler_params=pltpu.CompilerParams(
            dimension_semantics=("parallel",),
            vmem_limit_bytes=_VMEM_LIMIT),
        cost_estimate=pl.CostEstimate(flops=flops, transcendentals=0,
                                      bytes_accessed=bytes_accessed),
    )(cols, w1, b1)
    return out[:M].reshape(N, 12, 12, 64)


# ---------------------------------------------------------------------------
# Kernel B: conv2 (5x5, 64->128) + bias + 2x2/2 maxpool + ReLU + fc, fused.
# The layer-1 activation arrives split by spatial parity (a_pq[n,u,v,:] =
# act1[n, 2u+p, 2v+q, :], each (tb, 6, 6, 64)), so every tap window used by
# the pool-parity accumulation is a CONTIGUOUS slice -> no im2col in HBM.
# ---------------------------------------------------------------------------
def _conv2_pool_relu_fc_kernel(a00_ref, a01_ref, a10_ref, a11_ref,
                               w2_ref, b2_ref, fcw_ref, fcb_ref, o_ref):
    tb = o_ref.shape[0]
    rows = tb * 16                                     # pooled pixels per block

    aps = [a00_ref[...], a01_ref[...], a10_ref[...], a11_ref[...]]

    # Hoist the 36 distinct shifted windows once (contiguous slices only).
    win = {}
    for pq in range(4):
        for r2 in range(3):
            for s2 in range(3):
                v = aps[pq][:, r2:r2 + 4, s2:s2 + 4, :]        # (tb, 4, 4, 64)
                win[(pq, r2, s2)] = v.reshape(rows, 64)

    # conv2 + 2x2 max-pool: accumulate 25 taps; the four pool parities are
    # stacked along rows so each tap is a single MXU dot.
    acc = jnp.zeros((4 * rows, 128), jnp.float32)
    for i in range(5):
        for j in range(5):
            pieces = []
            for ph in range(2):
                for pw in range(2):
                    r, s = ph + i, pw + j
                    pieces.append(win[((r & 1) * 2 + (s & 1), r >> 1, s >> 1)])
            a_t = jnp.concatenate(pieces, axis=0)              # (4*rows, 64)
            acc = acc + jnp.dot(a_t, w2_ref[i * 5 + j],
                                preferred_element_type=jnp.float32)

    pooled = jnp.max(acc.reshape(4, rows, 128), axis=0)        # (rows, 128)
    act = jnp.maximum(pooled + b2_ref[...], 0.0).astype(jnp.bfloat16)
    act = act.reshape(tb, 16, 128)                             # (b, h*4+w, c)

    # Fully-connected layer: 16 position dots, f32 accumulation, lane-dense
    # 128-wide output (zero columns sliced off in the wrapper).
    out = jnp.zeros((tb, 128), jnp.float32)
    for p in range(16):
        out = out + jnp.dot(act[:, p, :], fcw_ref[p],
                            preferred_element_type=jnp.float32)
    o_ref[...] = out + fcb_ref[...]


def conv2_pool_relu_fc(act1, w2, b2, fcw, fcb):
    """act1: (N, 12, 12, 64) bf16 -> logits (N, 128) f32 (cols >= 10 are padding)."""
    N = act1.shape[0]
    # Spatial-parity split so every in-kernel tap window is a contiguous slice.
    a_par = [act1[:, p::2, q::2, :] for p in range(2) for q in range(2)]

    tb = N if N <= 8 else 8
    Np = _round_up(N, tb)
    if Np != N:
        a_par = [jnp.pad(a, ((0, Np - N), (0, 0), (0, 0), (0, 0))) for a in a_par]

    flops = 2 * 4 * 16 * Np * 1600 * 128 + 2 * Np * 2048 * 128
    bytes_accessed = (4 * Np * 36 * 64 * 2 + 25 * 64 * 128 * 2
                      + 16 * 128 * 128 * 2 + 2 * 128 * 4 + Np * 128 * 4)

    act_spec = pl.BlockSpec((tb, 6, 6, 64), lambda b: (b, 0, 0, 0))
    out = pl.pallas_call(
        _conv2_pool_relu_fc_kernel,
        grid=(Np // tb,),
        in_specs=[act_spec, act_spec, act_spec, act_spec,
                  pl.BlockSpec((25, 64, 128), lambda b: (0, 0, 0)),
                  pl.BlockSpec((1, 128), lambda b: (0, 0)),
                  pl.BlockSpec((16, 128, 128), lambda b: (0, 0, 0)),
                  pl.BlockSpec((1, 128), lambda b: (0, 0))],
        out_specs=pl.BlockSpec((tb, 128), lambda b: (b, 0)),
        out_shape=jax.ShapeDtypeStruct((Np, 128), jnp.float32),
        compiler_params=pltpu.CompilerParams(
            dimension_semantics=("parallel",),
            vmem_limit_bytes=_VMEM_LIMIT),
        cost_estimate=pl.CostEstimate(flops=flops, transcendentals=0,
                                      bytes_accessed=bytes_accessed),
    )(*a_par, w2, b2, fcw, fcb)
    return out[:N]


# ---------------------------------------------------------------------------
# One-time parameter conversion (PyTorch layouts -> kernel layouts, bf16 MXU).
# ---------------------------------------------------------------------------
def convert_params(params):
    w1 = jnp.transpose(params["w1"], (2, 3, 1, 0)).reshape(25, 64)        # tap-major
    w2 = jnp.transpose(params["w2"], (2, 3, 1, 0)).reshape(25, 64, 128)   # (tap, ci, co)
    # fc weight: PyTorch flattens NCHW (c, h, w); our activation is NHWC
    # (h, w, c).  Pre-permute once and pad the 10 outputs to 128 lanes.
    fcw = (params["fc_w"].reshape(10, 128, 4, 4)
           .transpose(2, 3, 1, 0).reshape(16, 128, 10))
    fcw = jnp.pad(fcw, ((0, 0), (0, 0), (0, 118)))
    fcb = jnp.pad(params["fc_b"], (0, 118)).reshape(1, 128)
    return {
        "w1": w1.astype(jnp.bfloat16),
        "b1": params["b1"].astype(jnp.float32).reshape(1, 64),
        "w2": w2.astype(jnp.bfloat16),
        "b2": params["b2"].astype(jnp.float32).reshape(1, 128),
        "fc_w": fcw.astype(jnp.bfloat16),
        "fc_b": fcb.astype(jnp.float32),
    }


# ---------------------------------------------------------------------------
# Full forward pass (matches the PyTorch CNN module).
# ---------------------------------------------------------------------------
@jax.jit
def cnn_forward(x_nchw, kp):
    N, _, H, W = x_nchw.shape
    x = x_nchw.reshape(N, H, W).astype(jnp.bfloat16)     # C_in == 1: pure reshape
    act1 = conv1_pool_relu(x, kp["w1"], kp["b1"])        # (N, 12, 12, 64) bf16
    logits = conv2_pool_relu_fc(act1, kp["w2"], kp["b2"],
                                kp["fc_w"], kp["fc_b"])  # (N, 128) f32
    return logits[:, :10]


# Pure-JAX f32 reference (NCHW, PyTorch-identical semantics) for verification.
def cnn_reference(x, params):
    def conv(x, w, b):
        dn = lax.conv_dimension_numbers(x.shape, w.shape,
                                        ("NCHW", "OIHW", "NCHW"))
        y = lax.conv_general_dilated(x, w, (1, 1), "VALID",
                                     dimension_numbers=dn,
                                     precision=lax.Precision.HIGHEST)
        return y + b[None, :, None, None]

    def pool_relu(x):
        y = lax.reduce_window(x, -jnp.inf, lax.max,
                              (1, 1, 2, 2), (1, 1, 2, 2), "VALID")
        return jnp.maximum(y, 0.0)

    x = pool_relu(conv(x, params["w1"], params["b1"]))
    x = pool_relu(conv(x, params["w2"], params["b2"]))
    x = x.reshape(x.shape[0], -1)
    return jnp.dot(x, params["fc_w"].T,
                   precision=lax.Precision.HIGHEST) + params["fc_b"]


if __name__ == "__main__":
    key = jax.random.PRNGKey(0)
    kx, k1, k2, k3, k4, k5, k6 = jax.random.split(key, 7)

    # Deterministic synthetic parameters (shapes from the PyTorch __init__).
    params = {
        "w1": 0.10 * jax.random.normal(k1, (64, 1, 5, 5), jnp.float32),
        "b1": 0.10 * jax.random.normal(k2, (64,), jnp.float32),
        "w2": 0.02 * jax.random.normal(k3, (128, 64, 5, 5), jnp.float32),
        "b2": 0.10 * jax.random.normal(k4, (128,), jnp.float32),
        "fc_w": 0.02 * jax.random.normal(k5, (10, 16 * 128), jnp.float32),
        "fc_b": 0.10 * jax.random.normal(k6, (10,), jnp.float32),
    }
    kparams = convert_params(params)   # one-time layout/dtype conversion

    # Input: batch=2, NCHW (1, 28, 28) — the size the fc layer (16*128) implies.
    x = jax.random.normal(kx, (2, 1, 28, 28), jnp.float32)

    out = jax.block_until_ready(cnn_forward(x, kparams))
    assert out.shape == (2, 10) and out.dtype == jnp.float32

    ref = jax.block_until_ready(cnn_reference(x, params))
    # bf16 MXU inputs with f32 accumulation -> bf16-class tolerance.
    np.testing.assert_allclose(np.asarray(out), np.asarray(ref),
                               rtol=2e-2, atol=2e-2)

    print("KERNEL_OK")
</pallas_src>

<mosaic_0001>
module attributes {stable_mosaic.version = 11 : i64} {
  func.func @_conv1_pool_relu_kernel(%arg0: i32, %arg1: memref<4x288x25xbf16, #tpu.memory_space<vmem>>, %arg2: memref<25x64xbf16, #tpu.memory_space<vmem>>, %arg3: memref<1x64xf32, #tpu.memory_space<vmem>>, %arg4: memref<288x64xbf16, #tpu.memory_space<vmem>>) attributes {dimension_semantics = [#tpu.dimension_semantics<parallel>], iteration_bounds = array<i64: 1>, scalar_prefetch = 0 : i64, scratch_operands = 0 : i64, tpu.core_type = #tpu.core_type<tc>, window_params = [{transform_indices = @transform_0, window_bounds = array<i64: 4, 288, 25>}, {pipeline_mode = #tpu.pipeline_mode<synchronous>, transform_indices = @transform_1, window_bounds = array<i64: 25, 64>}, {pipeline_mode = #tpu.pipeline_mode<synchronous>, transform_indices = @transform_2, window_bounds = array<i64: 1, 64>}, {transform_indices = @transform_3, window_bounds = array<i64: 288, 64>}]} {
    %c0 = arith.constant 0 : index
    %c0_0 = arith.constant 0 : index
    %c0_1 = arith.constant 0 : index
    %0 = vector.load %arg1[%c0, %c0_0, %c0_1] : memref<4x288x25xbf16, #tpu.memory_space<vmem>>, vector<4x288x25xbf16>
    %1 = vector.shape_cast %0 : vector<4x288x25xbf16> to vector<1152x25xbf16>
    %c0_2 = arith.constant 0 : index
    %c0_3 = arith.constant 0 : index
    %2 = vector.load %arg2[%c0_2, %c0_3] : memref<25x64xbf16, #tpu.memory_space<vmem>>, vector<25x64xbf16>
    %cst = arith.constant dense<0.000000e+00> : vector<1152x64xf32>
    %3 = tpu.matmul %1, %2, %cst {dimension_numbers = #tpu.dot_dimension_numbers<[1], [0], [0], [1], [0, 0, 1, 1], [], []>} : vector<1152x25xbf16>, vector<25x64xbf16>, vector<1152x64xf32> -> vector<1152x64xf32>
    %4 = vector.shape_cast %3 : vector<1152x64xf32> to vector<4x288x64xf32>
    %cst_4 = arith.constant dense<0xFF800000> : vector<288x64xf32>
    %5 = vector.multi_reduction <maximumf>, %4, %cst_4 [0] : vector<4x288x64xf32> to vector<288x64xf32>
    %c0_5 = arith.constant 0 : index
    %c0_6 = arith.constant 0 : index
    %6 = vector.load %arg3[%c0_5, %c0_6] : memref<1x64xf32, #tpu.memory_space<vmem>>, vector<1x64xf32>
    %7 = vector.broadcast %6 : vector<1x64xf32> to vector<288x64xf32>
    %8 = arith.addf %5, %7 : vector<288x64xf32>
    %cst_7 = arith.constant 0.000000e+00 : f32
    %9 = vector.broadcast %cst_7 : f32 to vector<288x64xf32>
    %10 = arith.maximumf %8, %9 : vector<288x64xf32>
    %11 = arith.truncf %10 : vector<288x64xf32> to vector<288x64xbf16>
    %c0_8 = arith.constant 0 : index
    %c0_9 = arith.constant 0 : index
    %12 = vector.load %arg4[%c0_8, %c0_9] : memref<288x64xbf16, #tpu.memory_space<vmem>>, vector<288x64xbf16>
    tpu.vector_store %arg4[%c0_8, %c0_9], %11 {strides = array<i32>} : memref<288x64xbf16, #tpu.memory_space<vmem>>, vector<288x64xbf16>,
    return
  }
  func.func @transform_0(%arg0: i32) -> (i32, i32, i32) {
    %c0_i32 = arith.constant 0 : i32
    %c0_i32_0 = arith.constant 0 : i32
    %c0_i32_1 = arith.constant 0 : i32
    return %c0_i32, %arg0, %c0_i32_0 : i32, i32, i32
  }
  func.func @transform_1(%arg0: i32) -> (i32, i32) {
    %c0_i32 = arith.constant 0 : i32
    %c0_i32_0 = arith.constant 0 : i32
    %c0_i32_1 = arith.constant 0 : i32
    return %c0_i32, %c0_i32_0 : i32, i32
  }
  func.func @transform_2(%arg0: i32) -> (i32, i32) {
    %c0_i32 = arith.constant 0 : i32
    %c0_i32_0 = arith.constant 0 : i32
    %c0_i32_1 = arith.constant 0 : i32
    return %c0_i32, %c0_i32_0 : i32, i32
  }
  func.func @transform_3(%arg0: i32) -> (i32, i32) {
    %c0_i32 = arith.constant 0 : i32
    %c0_i32_0 = arith.constant 0 : i32
    return %arg0, %c0_i32 : i32, i32
  }
}

module attributes {stable_mosaic.version = 11 : i64} {
  func.func @_conv2_pool_relu_fc_kernel(%arg0: i32, %arg1: memref<2x6x6x64xbf16, #tpu.memory_space<vmem>>, %arg2: memref<2x6x6x64xbf16, #tpu.memory_space<vmem>>, %arg3: memref<2x6x6x64xbf16, #tpu.memory_space<vmem>>, %arg4: memref<2x6x6x64xbf16, #tpu.memory_space<vmem>>, %arg5: memref<25x64x128xbf16, #tpu.memory_space<vmem>>, %arg6: memref<1x128xf32, #tpu.memory_space<vmem>>, %arg7: memref<16x128x128xbf16, #tpu.memory_space<vmem>>, %arg8: memref<1x128xf32, #tpu.memory_space<vmem>>, %arg9: memref<2x128xf32, #tpu.memory_space<vmem>>) attributes {dimension_semantics = [#tpu.dimension_semantics<parallel>], iteration_bounds = array<i64: 1>, scalar_prefetch = 0 : i64, scratch_operands = 0 : i64, tpu.core_type = #tpu.core_type<tc>, window_params = [{transform_indices = @transform_0, window_bounds = array<i64: 2, 6, 6, 64>}, {transform_indices = @transform_1, window_bounds = array<i64: 2, 6, 6, 64>}, {transform_indices = @transform_2, window_bounds = array<i64: 2, 6, 6, 64>}, {transform_indices = @transform_3, window_bounds = array<i64: 2, 6, 6, 64>}, {pipeline_mode = #tpu.pipeline_mode<synchronous>, transform_indices = @transform_4, window_bounds = array<i64: 25, 64, 128>}, {pipeline_mode = #tpu.pipeline_mode<synchronous>, transform_indices = @transform_5, window_bounds = array<i64: 1, 128>}, {pipeline_mode = #tpu.pipeline_mode<synchronous>, transform_indices = @transform_6, window_bounds = array<i64: 16, 128, 128>}, {pipeline_mode = #tpu.pipeline_mode<synchronous>, transform_indices = @transform_7, window_bounds = array<i64: 1, 128>}, {transform_indices = @transform_8, window_bounds = array<i64: 2, 128>}]} {
    %c0 = arith.constant 0 : index
    %c0_0 = arith.constant 0 : index
    %c0_1 = arith.constant 0 : index
    %c0_2 = arith.constant 0 : index
    %0 = vector.load %arg1[%c0, %c0_0, %c0_1, %c0_2] : memref<2x6x6x64xbf16, #tpu.memory_space<vmem>>, vector<2x6x6x64xbf16>
    %c0_3 = arith.constant 0 : index
    %c0_4 = arith.constant 0 : index
    %c0_5 = arith.constant 0 : index
    %c0_6 = arith.constant 0 : index
    %1 = vector.load %arg2[%c0_3, %c0_4, %c0_5, %c0_6] : memref<2x6x6x64xbf16, #tpu.memory_space<vmem>>, vector<2x6x6x64xbf16>
    %c0_7 = arith.constant 0 : index
    %c0_8 = arith.constant 0 : index
    %c0_9 = arith.constant 0 : index
    %c0_10 = arith.constant 0 : index
    %2 = vector.load %arg3[%c0_7, %c0_8, %c0_9, %c0_10] : memref<2x6x6x64xbf16, #tpu.memory_space<vmem>>, vector<2x6x6x64xbf16>
    %c0_11 = arith.constant 0 : index
    %c0_12 = arith.constant 0 : index
    %c0_13 = arith.constant 0 : index
    %c0_14 = arith.constant 0 : index
    %3 = vector.load %arg4[%c0_11, %c0_12, %c0_13, %c0_14] : memref<2x6x6x64xbf16, #tpu.memory_space<vmem>>, vector<2x6x6x64xbf16>
    %4 = vector.extract_strided_slice %0 {offsets = [0, 0, 0, 0], sizes = [2, 4, 4, 64], strides = [1, 1, 1, 1]} : vector<2x6x6x64xbf16> to vector<2x4x4x64xbf16>
    %5 = vector.shape_cast %4 : vector<2x4x4x64xbf16> to vector<32x64xbf16>
    %6 = vector.extract_strided_slice %0 {offsets = [0, 0, 1, 0], sizes = [2, 4, 4, 64], strides = [1, 1, 1, 1]} : vector<2x6x6x64xbf16> to vector<2x4x4x64xbf16>
    %7 = vector.shape_cast %6 : vector<2x4x4x64xbf16> to vector<32x64xbf16>
    %8 = vector.extract_strided_slice %0 {offsets = [0, 0, 2, 0], sizes = [2, 4, 4, 64], strides = [1, 1, 1, 1]} : vector<2x6x6x64xbf16> to vector<2x4x4x64xbf16>
    %9 = vector.shape_cast %8 : vector<2x4x4x64xbf16> to vector<32x64xbf16>
    %10 = vector.extract_strided_slice %0 {offsets = [0, 1, 0, 0], sizes = [2, 4, 4, 64], strides = [1, 1, 1, 1]} : vector<2x6x6x64xbf16> to vector<2x4x4x64xbf16>
    %11 = vector.shape_cast %10 : vector<2x4x4x64xbf16> to vector<32x64xbf16>
    %12 = vector.extract_strided_slice %0 {offsets = [0, 1, 1, 0], sizes = [2, 4, 4, 64], strides = [1, 1, 1, 1]} : vector<2x6x6x64xbf16> to vector<2x4x4x64xbf16>
    %13 = vector.shape_cast %12 : vector<2x4x4x64xbf16> to vector<32x64xbf16>
    %14 = vector.extract_strided_slice %0 {offsets = [0, 1, 2, 0], sizes = [2, 4, 4, 64], strides = [1, 1, 1, 1]} : vector<2x6x6x64xbf16> to vector<2x4x4x64xbf16>
    %15 = vector.shape_cast %14 : vector<2x4x4x64xbf16> to vector<32x64xbf16>
    %16 = vector.extract_strided_slice %0 {offsets = [0, 2, 0, 0], sizes = [2, 4, 4, 64], strides = [1, 1, 1, 1]} : vector<2x6x6x64xbf16> to vector<2x4x4x64xbf16>
    %17 = vector.shape_cast %16 : vector<2x4x4x64xbf16> to vector<32x64xbf16>
    %18 = vector.extract_strided_slice %0 {offsets = [0, 2, 1, 0], sizes = [2, 4, 4, 64], strides = [1, 1, 1, 1]} : vector<2x6x6x64xbf16> to vector<2x4x4x64xbf16>
    %19 = vector.shape_cast %18 : vector<2x4x4x64xbf16> to vector<32x64xbf16>
    %20 = vector.extract_strided_slice %0 {offsets = [0, 2, 2, 0], sizes = [2, 4, 4, 64], strides = [1, 1, 1, 1]} : vector<2x6x6x64xbf16> to vector<2x4x4x64xbf16>
    %21 = vector.shape_cast %20 : vector<2x4x4x64xbf16> to vector<32x64xbf16>
    %22 = vector.extract_strided_slice %1 {offsets = [0, 0, 0, 0], sizes = [2, 4, 4, 64], strides = [1, 1, 1, 1]} : vector<2x6x6x64xbf16> to vector<2x4x4x64xbf16>
    %23 = vector.shape_cast %22 : vector<2x4x4x64xbf16> to vector<32x64xbf16>
    %24 = vector.extract_strided_slice %1 {offsets = [0, 0, 1, 0], sizes = [2, 4, 4, 64], strides = [1, 1, 1, 1]} : vector<2x6x6x64xbf16> to vector<2x4x4x64xbf16>
    %25 = vector.shape_cast %24 : vector<2x4x4x64xbf16> to vector<32x64xbf16>
    %26 = vector.extract_strided_slice %1 {offsets = [0, 0, 2, 0], sizes = [2, 4, 4, 64], strides = [1, 1, 1, 1]} : vector<2x6x6x64xbf16> to vector<2x4x4x64xbf16>
    %27 = vector.shape_cast %26 : vector<2x4x4x64xbf16> to vector<32x64xbf16>
    %28 = vector.extract_strided_slice %1 {offsets = [0, 1, 0, 0], sizes = [2, 4, 4, 64], strides = [1, 1, 1, 1]} : vector<2x6x6x64xbf16> to vector<2x4x4x64xbf16>
    %29 = vector.shape_cast %28 : vector<2x4x4x64xbf16> to vector<32x64xbf16>
    %30 = vector.extract_strided_slice %1 {offsets = [0, 1, 1, 0], sizes = [2, 4, 4, 64], strides = [1, 1, 1, 1]} : vector<2x6x6x64xbf16> to vector<2x4x4x64xbf16>
    %31 = vector.shape_cast %30 : vector<2x4x4x64xbf16> to vector<32x64xbf16>
    %32 = vector.extract_strided_slice %1 {offsets = [0, 1, 2, 0], sizes = [2, 4, 4, 64], strides = [1, 1, 1, 1]} : vector<2x6x6x64xbf16> to vector<2x4x4x64xbf16>
    %33 = vector.shape_cast %32 : vector<2x4x4x64xbf16> to vector<32x64xbf16>
    %34 = vector.extract_strided_slice %1 {offsets = [0, 2, 0, 0], sizes = [2, 4, 4, 64], strides = [1, 1, 1, 1]} : vector<2x6x6x64xbf16> to vector<2x4x4x64xbf16>
    %35 = vector.shape_cast %34 : vector<2x4x4x64xbf16> to vector<32x64xbf16>
    %36 = vector.extract_strided_slice %1 {offsets = [0, 2, 1, 0], sizes = [2, 4, 4, 64], strides = [1, 1, 1, 1]} : vector<2x6x6x64xbf16> to vector<2x4x4x64xbf16>
    %37 = vector.shape_cast %36 : vector<2x4x4x64xbf16> to vector<32x64xbf16>
    %38 = vector.extract_strided_slice %1 {offsets = [0, 2, 2, 0], sizes = [2, 4, 4, 64], strides = [1, 1, 1, 1]} : vector<2x6x6x64xbf16> to vector<2x4x4x64xbf16>
    %39 = vector.shape_cast %38 : vector<2x4x4x64xbf16> to vector<32x64xbf16>
    %40 = vector.extract_strided_slice %2 {offsets = [0, 0, 0, 0], sizes = [2, 4, 4, 64], strides = [1, 1, 1, 1]} : vector<2x6x6x64xbf16> to vector<2x4x4x64xbf16>
    %41 = vector.shape_cast %40 : vector<2x4x4x64xbf16> to vector<32x64xbf16>
    %42 = vector.extract_strided_slice %2 {offsets = [0, 0, 1, 0], sizes = [2, 4, 4, 64], strides = [1, 1, 1, 1]} : vector<2x6x6x64xbf16> to vector<2x4x4x64xbf16>
    %43 = vector.shape_cast %42 : vector<2x4x4x64xbf16> to vector<32x64xbf16>
    %44 = vector.extract_strided_slice %2 {offsets = [0, 0, 2, 0], sizes = [2, 4, 4, 64], strides = [1, 1, 1, 1]} : vector<2x6x6x64xbf16> to vector<2x4x4x64xbf16>
    %45 = vector.shape_cast %44 : vector<2x4x4x64xbf16> to vector<32x64xbf16>
    %46 = vector.extract_strided_slice %2 {offsets = [0, 1, 0, 0], sizes = [2, 4, 4, 64], strides = [1, 1, 1, 1]} : vector<2x6x6x64xbf16> to vector<2x4x4x64xbf16>
    %47 = vector.shape_cast %46 : vector<2x4x4x64xbf16> to vector<32x64xbf16>
    %48 = vector.extract_strided_slice %2 {offsets = [0, 1, 1, 0], sizes = [2, 4, 4, 64], strides = [1, 1, 1, 1]} : vector<2x6x6x64xbf16> to vector<2x4x4x64xbf16>
    %49 = vector.shape_cast %48 : vector<2x4x4x64xbf16> to vector<32x64xbf16>
    %50 = vector.extract_strided_slice %2 {offsets = [0, 1, 2, 0], sizes = [2, 4, 4, 64], strides = [1, 1, 1, 1]} : vector<2x6x6x64xbf16> to vector<2x4x4x64xbf16>
    %51 = vector.shape_cast %50 : vector<2x4x4x64xbf16> to vector<32x64xbf16>
    %52 = vector.extract_strided_slice %2 {offsets = [0, 2, 0, 0], sizes = [2, 4, 4, 64], strides = [1, 1, 1, 1]} : vector<2x6x6x64xbf16> to vector<2x4x4x64xbf16>
    %53 = vector.shape_cast %52 : vector<2x4x4x64xbf16> to vector<32x64xbf16>
    %54 = vector.extract_strided_slice %2 {offsets = [0, 2, 1, 0], sizes = [2, 4, 4, 64], strides = [1, 1, 1, 1]} : vector<2x6x6x64xbf16> to vector<2x4x4x64xbf16>
    %55 = vector.shape_cast %54 : vector<2x4x4x64xbf16> to vector<32x64xbf16>
    %56 = vector.extract_strided_slice %2 {offsets = [0, 2, 2, 0], sizes = [2, 4, 4, 64], strides = [1, 1, 1, 1]} : vector<2x6x6x64xbf16> to vector<2x4x4x64xbf16>
    %57 = vector.shape_cast %56 : vector<2x4x4x64xbf16> to vector<32x64xbf16>
    %58 = vector.extract_strided_slice %3 {offsets = [0, 0, 0, 0], sizes = [2, 4, 4, 64], strides = [1, 1, 1, 1]} : vector<2x6x6x64xbf16> to vector<2x4x4x64xbf16>
    %59 = vector.shape_cast %58 : vector<2x4x4x64xbf16> to vector<32x64xbf16>
    %60 = vector.extract_strided_slice %3 {offsets = [0, 0, 1, 0], sizes = [2, 4, 4, 64], strides = [1, 1, 1, 1]} : vector<2x6x6x64xbf16> to vector<2x4x4x64xbf16>
    %61 = vector.shape_cast %60 : vector<2x4x4x64xbf16> to vector<32x64xbf16>
    %62 = vector.extract_strided_slice %3 {offsets = [0, 0, 2, 0], sizes = [2, 4, 4, 64], strides = [1, 1, 1, 1]} : vector<2x6x6x64xbf16> to vector<2x4x4x64xbf16>
    %63 = vector.shape_cast %62 : vector<2x4x4x64xbf16> to vector<32x64xbf16>
    %64 = vector.extract_strided_slice %3 {offsets = [0, 1, 0, 0], sizes = [2, 4, 4, 64], strides = [1, 1, 1, 1]} : vector<2x6x6x64xbf16> to vector<2x4x4x64xbf16>
    %65 = vector.shape_cast %64 : vector<2x4x4x64xbf16> to vector<32x64xbf16>
    %66 = vector.extract_strided_slice %3 {offsets = [0, 1, 1, 0], sizes = [2, 4, 4, 64], strides = [1, 1, 1, 1]} : vector<2x6x6x64xbf16> to vector<2x4x4x64xbf16>
    %67 = vector.shape_cast %66 : vector<2x4x4x64xbf16> to vector<32x64xbf16>
    %68 = vector.extract_strided_slice %3 {offsets = [0, 1, 2, 0], sizes = [2, 4, 4, 64], strides = [1, 1, 1, 1]} : vector<2x6x6x64xbf16> to vector<2x4x4x64xbf16>
    %69 = vector.shape_cast %68 : vector<2x4x4x64xbf16> to vector<32x64xbf16>
    %70 = vector.extract_strided_slice %3 {offsets = [0, 2, 0, 0], sizes = [2, 4, 4, 64], strides = [1, 1, 1, 1]} : vector<2x6x6x64xbf16> to vector<2x4x4x64xbf16>
    %71 = vector.shape_cast %70 : vector<2x4x4x64xbf16> to vector<32x64xbf16>
    %72 = vector.extract_strided_slice %3 {offsets = [0, 2, 1, 0], sizes = [2, 4, 4, 64], strides = [1, 1, 1, 1]} : vector<2x6x6x64xbf16> to vector<2x4x4x64xbf16>
    %73 = vector.shape_cast %72 : vector<2x4x4x64xbf16> to vector<32x64xbf16>
    %74 = vector.extract_strided_slice %3 {offsets = [0, 2, 2, 0], sizes = [2, 4, 4, 64], strides = [1, 1, 1, 1]} : vector<2x6x6x64xbf16> to vector<2x4x4x64xbf16>
    %75 = vector.shape_cast %74 : vector<2x4x4x64xbf16> to vector<32x64xbf16>
    %cst = arith.constant 0.000000e+00 : f32
    %76 = vector.broadcast %cst : f32 to vector<128x128xf32>
    %77 = tpu.concatenate %5, %23, %41, %59 in 0 : vector<32x64xbf16>, vector<32x64xbf16>, vector<32x64xbf16>, vector<32x64xbf16> -> vector<128x64xbf16>
    %c0_15 = arith.constant 0 : index
    %c0_16 = arith.constant 0 : index
    %c0_17 = arith.constant 0 : index
    %78 = vector.load %arg5[%c0_15, %c0_16, %c0_17] : memref<25x64x128xbf16, #tpu.memory_space<vmem>>, vector<1x64x128xbf16>
    %79 = vector.shape_cast %78 : vector<1x64x128xbf16> to vector<64x128xbf16>
    %cst_18 = arith.constant dense<0.000000e+00> : vector<128x128xf32>
    %80 = tpu.matmul %77, %79, %cst_18 {dimension_numbers = #tpu.dot_dimension_numbers<[1], [0], [0], [1], [0, 0, 1, 1], [], []>} : vector<128x64xbf16>, vector<64x128xbf16>, vector<128x128xf32> -> vector<128x128xf32>
    %81 = arith.addf %76, %80 : vector<128x128xf32>
    %82 = tpu.concatenate %23, %7, %59, %43 in 0 : vector<32x64xbf16>, vector<32x64xbf16>, vector<32x64xbf16>, vector<32x64xbf16> -> vector<128x64xbf16>
    %c1 = arith.constant 1 : index
    %c0_19 = arith.constant 0 : index
    %c0_20 = arith.constant 0 : index
    %83 = vector.load %arg5[%c1, %c0_19, %c0_20] : memref<25x64x128xbf16, #tpu.memory_space<vmem>>, vector<1x64x128xbf16>
    %84 = vector.shape_cast %83 : vector<1x64x128xbf16> to vector<64x128xbf16>
    %cst_21 = arith.constant dense<0.000000e+00> : vector<128x128xf32>
    %85 = tpu.matmul %82, %84, %cst_21 {dimension_numbers = #tpu.dot_dimension_numbers<[1], [0], [0], [1], [0, 0, 1, 1], [], []>} : vector<128x64xbf16>, vector<64x128xbf16>, vector<128x128xf32> -> vector<128x128xf32>
    %86 = arith.addf %81, %85 : vector<128x128xf32>
    %87 = tpu.concatenate %7, %25, %43, %61 in 0 : vector<32x64xbf16>, vector<32x64xbf16>, vector<32x64xbf16>, vector<32x64xbf16> -> vector<128x64xbf16>
    %c2 = arith.constant 2 : index
    %c0_22 = arith.constant 0 : index
    %c0_23 = arith.constant 0 : index
    %88 = vector.load %arg5[%c2, %c0_22, %c0_23] : memref<25x64x128xbf16, #tpu.memory_space<vmem>>, vector<1x64x128xbf16>
    %89 = vector.shape_cast %88 : vector<1x64x128xbf16> to vector<64x128xbf16>
    %cst_24 = arith.constant dense<0.000000e+00> : vector<128x128xf32>
    %90 = tpu.matmul %87, %89, %cst_24 {dimension_numbers = #tpu.dot_dimension_numbers<[1], [0], [0], [1], [0, 0, 1, 1], [], []>} : vector<128x64xbf16>, vector<64x128xbf16>, vector<128x128xf32> -> vector<128x128xf32>
    %91 = arith.addf %86, %90 : vector<128x128xf32>
    %92 = tpu.concatenate %25, %9, %61, %45 in 0 : vector<32x64xbf16>, vector<32x64xbf16>, vector<32x64xbf16>, vector<32x64xbf16> -> vector<128x64xbf16>
    %c3 = arith.constant 3 : index
    %c0_25 = arith.constant 0 : index
    %c0_26 = arith.constant 0 : index
    %93 = vector.load %arg5[%c3, %c0_25, %c0_26] : memref<25x64x128xbf16, #tpu.memory_space<vmem>>, vector<1x64x128xbf16>
    %94 = vector.shape_cast %93 : vector<1x64x128xbf16> to vector<64x128xbf16>
    %cst_27 = arith.constant dense<0.000000e+00> : vector<128x128xf32>
    %95 = tpu.matmul %92, %94, %cst_27 {dimension_numbers = #tpu.dot_dimension_numbers<[1], [0], [0], [1], [0, 0, 1, 1], [], []>} : vector<128x64xbf16>, vector<64x128xbf16>, vector<128x128xf32> -> vector<128x128xf32>
    %96 = arith.addf %91, %95 : vector<128x128xf32>
    %97 = tpu.concatenate %9, %27, %45, %63 in 0 : vector<32x64xbf16>, vector<32x64xbf16>, vector<32x64xbf16>, vector<32x64xbf16> -> vector<128x64xbf16>
    %c4 = arith.constant 4 : index
    %c0_28 = arith.constant 0 : index
    %c0_29 = arith.constant 0 : index
    %98 = vector.load %arg5[%c4, %c0_28, %c0_29] : memref<25x64x128xbf16, #tpu.memory_space<vmem>>, vector<1x64x128xbf16>
    %99 = vector.shape_cast %98 : vector<1x64x128xbf16> to vector<64x128xbf16>
    %cst_30 = arith.constant dense<0.000000e+00> : vector<128x128xf32>
    %100 = tpu.matmul %97, %99, %cst_30 {dimension_numbers = #tpu.dot_dimension_numbers<[1], [0], [0], [1], [0, 0, 1, 1], [], []>} : vector<128x64xbf16>, vector<64x128xbf16>, vector<128x128xf32> -> vector<128x128xf32>
    %101 = arith.addf %96, %100 : vector<128x128xf32>
    %102 = tpu.concatenate %41, %59, %11, %29 in 0 : vector<32x64xbf16>, vector<32x64xbf16>, vector<32x64xbf16>, vector<32x64xbf16> -> vector<128x64xbf16>
    %c5 = arith.constant 5 : index
    %c0_31 = arith.constant 0 : index
    %c0_32 = arith.constant 0 : index
    %103 = vector.load %arg5[%c5, %c0_31, %c0_32] : memref<25x64x128xbf16, #tpu.memory_space<vmem>>, vector<1x64x128xbf16>
    %104 = vector.shape_cast %103 : vector<1x64x128xbf16> to vector<64x128xbf16>
    %cst_33 = arith.constant dense<0.000000e+00> : vector<128x128xf32>
    %105 = tpu.matmul %102, %104, %cst_33 {dimension_numbers = #tpu.dot_dimension_numbers<[1], [0], [0], [1], [0, 0, 1, 1], [], []>} : vector<128x64xbf16>, vector<64x128xbf16>, vector<128x128xf32> -> vector<128x128xf32>
    %106 = arith.addf %101, %105 : vector<128x128xf32>
    %107 = tpu.concatenate %59, %43, %29, %13 in 0 : vector<32x64xbf16>, vector<32x64xbf16>, vector<32x64xbf16>, vector<32x64xbf16> -> vector<128x64xbf16>
    %c6 = arith.constant 6 : index
    %c0_34 = arith.constant 0 : index
    %c0_35 = arith.constant 0 : index
    %108 = vector.load %arg5[%c6, %c0_34, %c0_35] : memref<25x64x128xbf16, #tpu.memory_space<vmem>>, vector<1x64x128xbf16>
    %109 = vector.shape_cast %108 : vector<1x64x128xbf16> to vector<64x128xbf16>
    %cst_36 = arith.constant dense<0.000000e+00> : vector<128x128xf32>
    %110 = tpu.matmul %107, %109, %cst_36 {dimension_numbers = #tpu.dot_dimension_numbers<[1], [0], [0], [1], [0, 0, 1, 1], [], []>} : vector<128x64xbf16>, vector<64x128xbf16>, vector<128x128xf32> -> vector<128x128xf32>
    %111 = arith.addf %106, %110 : vector<128x128xf32>
    %112 = tpu.concatenate %43, %61, %13, %31 in 0 : vector<32x64xbf16>, vector<32x64xbf16>, vector<32x64xbf16>, vector<32x64xbf16> -> vector<128x64xbf16>
    %c7 = arith.constant 7 : index
    %c0_37 = arith.constant 0 : index
    %c0_38 = arith.constant 0 : index
    %113 = vector.load %arg5[%c7, %c0_37, %c0_38] : memref<25x64x128xbf16, #tpu.memory_space<vmem>>, vector<1x64x128xbf16>
    %114 = vector.shape_cast %113 : vector<1x64x128xbf16> to vector<64x128xbf16>
    %cst_39 = arith.constant dense<0.000000e+00> : vector<128x128xf32>
    %115 = tpu.matmul %112, %114, %cst_39 {dimension_numbers = #tpu.dot_dimension_numbers<[1], [0], [0], [1], [0, 0, 1, 1], [], []>} : vector<128x64xbf16>, vector<64x128xbf16>, vector<128x128xf32> -> vector<128x128xf32>
    %116 = arith.addf %111, %115 : vector<128x128xf32>
    %117 = tpu.concatenate %61, %45, %31, %15 in 0 : vector<32x64xbf16>, vector<32x64xbf16>, vector<32x64xbf16>, vector<32x64xbf16> -> vector<128x64xbf16>
    %c8 = arith.constant 8 : index
    %c0_40 = arith.constant 0 : index
    %c0_41 = arith.constant 0 : index
    %118 = vector.load %arg5[%c8, %c0_40, %c0_41] : memref<25x64x128xbf16, #tpu.memory_space<vmem>>, vector<1x64x128xbf16>
    %119 = vector.shape_cast %118 : vector<1x64x128xbf16> to vector<64x128xbf16>
    %cst_42 = arith.constant dense<0.000000e+00> : vector<128x128xf32>
    %120 = tpu.matmul %117, %119, %cst_42 {dimension_numbers = #tpu.dot_dimension_numbers<[1], [0], [0], [1], [0, 0, 1, 1], [], []>} : vector<128x64xbf16>, vector<64x128xbf16>, vector<128x128xf32> -> vector<128x128xf32>
    %121 = arith.addf %116, %120 : vector<128x128xf32>
    %122 = tpu.concatenate %45, %63, %15, %33 in 0 : vector<32x64xbf16>, vector<32x64xbf16>, vector<32x64xbf16>, vector<32x64xbf16> -> vector<128x64xbf16>
    %c9 = arith.constant 9 : index
    %c0_43 = arith.constant 0 : index
    %c0_44 = arith.constant 0 : index
    %123 = vector.load %arg5[%c9, %c0_43, %c0_44] : memref<25x64x128xbf16, #tpu.memory_space<vmem>>, vector<1x64x128xbf16>
    %124 = vector.shape_cast %123 : vector<1x64x128xbf16> to vector<64x128xbf16>
    %cst_45 = arith.constant dense<0.000000e+00> : vector<128x128xf32>
    %125 = tpu.matmul %122, %124, %cst_45 {dimension_numbers = #tpu.dot_dimension_numbers<[1], [0], [0], [1], [0, 0, 1, 1], [], []>} : vector<128x64xbf16>, vector<64x128xbf16>, vector<128x128xf32> -> vector<128x128xf32>
    %126 = arith.addf %121, %125 : vector<128x128xf32>
    %127 = tpu.concatenate %11, %29, %47, %65 in 0 : vector<32x64xbf16>, vector<32x64xbf16>, vector<32x64xbf16>, vector<32x64xbf16> -> vector<128x64xbf16>
    %c10 = arith.constant 10 : index
    %c0_46 = arith.constant 0 : index
    %c0_47 = arith.constant 0 : index
    %128 = vector.load %arg5[%c10, %c0_46, %c0_47] : memref<25x64x128xbf16, #tpu.memory_space<vmem>>, vector<1x64x128xbf16>
    %129 = vector.shape_cast %128 : vector<1x64x128xbf16> to vector<64x128xbf16>
    %cst_48 = arith.constant dense<0.000000e+00> : vector<128x128xf32>
    %130 = tpu.matmul %127, %129, %cst_48 {dimension_numbers = #tpu.dot_dimension_numbers<[1], [0], [0], [1], [0, 0, 1, 1], [], []>} : vector<128x64xbf16>, vector<64x128xbf16>, vector<128x128xf32> -> vector<128x128xf32>
    %131 = arith.addf %126, %130 : vector<128x128xf32>
    %132 = tpu.concatenate %29, %13, %65, %49 in 0 : vector<32x64xbf16>, vector<32x64xbf16>, vector<32x64xbf16>, vector<32x64xbf16> -> vector<128x64xbf16>
    %c11 = arith.constant 11 : index
    %c0_49 = arith.constant 0 : index
    %c0_50 = arith.constant 0 : index
    %133 = vector.load %arg5[%c11, %c0_49, %c0_50] : memref<25x64x128xbf16, #tpu.memory_space<vmem>>, vector<1x64x128xbf16>
    %134 = vector.shape_cast %133 : vector<1x64x128xbf16> to vector<64x128xbf16>
    %cst_51 = arith.constant dense<0.000000e+00> : vector<128x128xf32>
    %135 = tpu.matmul %132, %134, %cst_51 {dimension_numbers = #tpu.dot_dimension_numbers<[1], [0], [0], [1], [0, 0, 1, 1], [], []>} : vector<128x64xbf16>, vector<64x128xbf16>, vector<128x128xf32> -> vector<128x128xf32>
    %136 = arith.addf %131, %135 : vector<128x128xf32>
    %137 = tpu.concatenate %13, %31, %49, %67 in 0 : vector<32x64xbf16>, vector<32x64xbf16>, vector<32x64xbf16>, vector<32x64xbf16> -> vector<128x64xbf16>
    %c12 = arith.constant 12 : index
    %c0_52 = arith.constant 0 : index
    %c0_53 = arith.constant 0 : index
    %138 = vector.load %arg5[%c12, %c0_52, %c0_53] : memref<25x64x128xbf16, #tpu.memory_space<vmem>>, vector<1x64x128xbf16>
    %139 = vector.shape_cast %138 : vector<1x64x128xbf16> to vector<64x128xbf16>
    %cst_54 = arith.constant dense<0.000000e+00> : vector<128x128xf32>
    %140 = tpu.matmul %137, %139, %cst_54 {dimension_numbers = #tpu.dot_dimension_numbers<[1], [0], [0], [1], [0, 0, 1, 1], [], []>} : vector<128x64xbf16>, vector<64x128xbf16>, vector<128x128xf32> -> vector<128x128xf32>
    %141 = arith.addf %136, %140 : vector<128x128xf32>
    %142 = tpu.concatenate %31, %15, %67, %51 in 0 : vector<32x64xbf16>, vector<32x64xbf16>, vector<32x64xbf16>, vector<32x64xbf16> -> vector<128x64xbf16>
    %c13 = arith.constant 13 : index
    %c0_55 = arith.constant 0 : index
    %c0_56 = arith.constant 0 : index
    %143 = vector.load %arg5[%c13, %c0_55, %c0_56] : memref<25x64x128xbf16, #tpu.memory_space<vmem>>, vector<1x64x128xbf16>
    %144 = vector.shape_cast %143 : vector<1x64x128xbf16> to vector<64x128xbf16>
    %cst_57 = arith.constant dense<0.000000e+00> : vector<128x128xf32>
    %145 = tpu.matmul %142, %144, %cst_57 {dimension_numbers = #tpu.dot_dimension_numbers<[1], [0], [0], [1], [0, 0, 1, 1], [], []>} : vector<128x64xbf16>, vector<64x128xbf16>, vector<128x128xf32> -> vector<128x128xf32>
    %146 = arith.addf %141, %145 : vector<128x128xf32>
    %147 = tpu.concatenate %15, %33, %51, %69 in 0 : vector<32x64xbf16>, vector<32x64xbf16>, vector<32x64xbf16>, vector<32x64xbf16> -> vector<128x64xbf16>
    %c14 = arith.constant 14 : index
    %c0_58 = arith.constant 0 : index
    %c0_59 = arith.constant 0 : index
    %148 = vector.load %arg5[%c14, %c0_58, %c0_59] : memref<25x64x128xbf16, #tpu.memory_space<vmem>>, vector<1x64x128xbf16>
    %149 = vector.shape_cast %148 : vector<1x64x128xbf16> to vector<64x128xbf16>
    %cst_60 = arith.constant dense<0.000000e+00> : vector<128x128xf32>
    %150 = tpu.matmul %147, %149, %cst_60 {dimension_numbers = #tpu.dot_dimension_numbers<[1], [0], [0], [1], [0, 0, 1, 1], [], []>} : vector<128x64xbf16>, vector<64x128xbf16>, vector<128x128xf32> -> vector<128x128xf32>
    %151 = arith.addf %146, %150 : vector<128x128xf32>
    %152 = tpu.concatenate %47, %65, %17, %35 in 0 : vector<32x64xbf16>, vector<32x64xbf16>, vector<32x64xbf16>, vector<32x64xbf16> -> vector<128x64xbf16>
    %c15 = arith.constant 15 : index
    %c0_61 = arith.constant 0 : index
    %c0_62 = arith.constant 0 : index
    %153 = vector.load %arg5[%c15, %c0_61, %c0_62] : memref<25x64x128xbf16, #tpu.memory_space<vmem>>, vector<1x64x128xbf16>
    %154 = vector.shape_cast %153 : vector<1x64x128xbf16> to vector<64x128xbf16>
    %cst_63 = arith.constant dense<0.000000e+00> : vector<128x128xf32>
    %155 = tpu.matmul %152, %154, %cst_63 {dimension_numbers = #tpu.dot_dimension_numbers<[1], [0], [0], [1], [0, 0, 1, 1], [], []>} : vector<128x64xbf16>, vector<64x128xbf16>, vector<128x128xf32> -> vector<128x128xf32>
    %156 = arith.addf %151, %155 : vector<128x128xf32>
    %157 = tpu.concatenate %65, %49, %35, %19 in 0 : vector<32x64xbf16>, vector<32x64xbf16>, vector<32x64xbf16>, vector<32x64xbf16> -> vector<128x64xbf16>
    %c16 = arith.constant 16 : index
    %c0_64 = arith.constant 0 : index
    %c0_65 = arith.constant 0 : index
    %158 = vector.load %arg5[%c16, %c0_64, %c0_65] : memref<25x64x128xbf16, #tpu.memory_space<vmem>>, vector<1x64x128xbf16>
    %159 = vector.shape_cast %158 : vector<1x64x128xbf16> to vector<64x128xbf16>
    %cst_66 = arith.constant dense<0.000000e+00> : vector<128x128xf32>
    %160 = tpu.matmul %157, %159, %cst_66 {dimension_numbers = #tpu.dot_dimension_numbers<[1], [0], [0], [1], [0, 0, 1, 1], [], []>} : vector<128x64xbf16>, vector<64x128xbf16>, vector<128x128xf32> -> vector<128x128xf32>
    %161 = arith.addf %156, %160 : vector<128x128xf32>
    %162 = tpu.concatenate %49, %67, %19, %37 in 0 : vector<32x64xbf16>, vector<32x64xbf16>, vector<32x64xbf16>, vector<32x64xbf16> -> vector<128x64xbf16>
    %c17 = arith.constant 17 : index
    %c0_67 = arith.constant 0 : index
    %c0_68 = arith.constant 0 : index
    %163 = vector.load %arg5[%c17, %c0_67, %c0_68] : memref<25x64x128xbf16, #tpu.memory_space<vmem>>, vector<1x64x128xbf16>
    %164 = vector.shape_cast %163 : vector<1x64x128xbf16> to vector<64x128xbf16>
    %cst_69 = arith.constant dense<0.000000e+00> : vector<128x128xf32>
    %165 = tpu.matmul %162, %164, %cst_69 {dimension_numbers = #tpu.dot_dimension_numbers<[1], [0], [0], [1], [0, 0, 1, 1], [], []>} : vector<128x64xbf16>, vector<64x128xbf16>, vector<128x128xf32> -> vector<128x128xf32>
    %166 = arith.addf %161, %165 : vector<128x128xf32>
    %167 = tpu.concatenate %67, %51, %37, %21 in 0 : vector<32x64xbf16>, vector<32x64xbf16>, vector<32x64xbf16>, vector<32x64xbf16> -> vector<128x64xbf16>
    %c18 = arith.constant 18 : index
    %c0_70 = arith.constant 0 : index
    %c0_71 = arith.constant 0 : index
    %168 = vector.load %arg5[%c18, %c0_70, %c0_71] : memref<25x64x128xbf16, #tpu.memory_space<vmem>>, vector<1x64x128xbf16>
    %169 = vector.shape_cast %168 : vector<1x64x128xbf16> to vector<64x128xbf16>
    %cst_72 = arith.constant dense<0.000000e+00> : vector<128x128xf32>
    %170 = tpu.matmul %167, %169, %cst_72 {dimension_numbers = #tpu.dot_dimension_numbers<[1], [0], [0], [1], [0, 0, 1, 1], [], []>} : vector<128x64xbf16>, vector<64x128xbf16>, vector<128x128xf32> -> vector<128x128xf32>
    %171 = arith.addf %166, %170 : vector<128x128xf32>
    %172 = tpu.concatenate %51, %69, %21, %39 in 0 : vector<32x64xbf16>, vector<32x64xbf16>, vector<32x64xbf16>, vector<32x64xbf16> -> vector<128x64xbf16>
    %c19 = arith.constant 19 : index
    %c0_73 = arith.constant 0 : index
    %c0_74 = arith.constant 0 : index
    %173 = vector.load %arg5[%c19, %c0_73, %c0_74] : memref<25x64x128xbf16, #tpu.memory_space<vmem>>, vector<1x64x128xbf16>
    %174 = vector.shape_cast %173 : vector<1x64x128xbf16> to vector<64x128xbf16>
    %cst_75 = arith.constant dense<0.000000e+00> : vector<128x128xf32>
    %175 = tpu.matmul %172, %174, %cst_75 {dimension_numbers = #tpu.dot_dimension_numbers<[1], [0], [0], [1], [0, 0, 1, 1], [], []>} : vector<128x64xbf16>, vector<64x128xbf16>, vector<128x128xf32> -> vector<128x128xf32>
    %176 = arith.addf %171, %175 : vector<128x128xf32>
    %177 = tpu.concatenate %17, %35, %53, %71 in 0 : vector<32x64xbf16>, vector<32x64xbf16>, vector<32x64xbf16>, vector<32x64xbf16> -> vector<128x64xbf16>
    %c20 = arith.constant 20 : index
    %c0_76 = arith.constant 0 : index
    %c0_77 = arith.constant 0 : index
    %178 = vector.load %arg5[%c20, %c0_76, %c0_77] : memref<25x64x128xbf16, #tpu.memory_space<vmem>>, vector<1x64x128xbf16>
    %179 = vector.shape_cast %178 : vector<1x64x128xbf16> to vector<64x128xbf16>
    %cst_78 = arith.constant dense<0.000000e+00> : vector<128x128xf32>
    %180 = tpu.matmul %177, %179, %cst_78 {dimension_numbers = #tpu.dot_dimension_numbers<[1], [0], [0], [1], [0, 0, 1, 1], [], []>} : vector<128x64xbf16>, vector<64x128xbf16>, vector<128x128xf32> -> vector<128x128xf32>
    %181 = arith.addf %176, %180 : vector<128x128xf32>
    %182 = tpu.concatenate %35, %19, %71, %55 in 0 : vector<32x64xbf16>, vector<32x64xbf16>, vector<32x64xbf16>, vector<32x64xbf16> -> vector<128x64xbf16>
    %c21 = arith.constant 21 : index
    %c0_79 = arith.constant 0 : index
    %c0_80 = arith.constant 0 : index
    %183 = vector.load %arg5[%c21, %c0_79, %c0_80] : memref<25x64x128xbf16, #tpu.memory_space<vmem>>, vector<1x64x128xbf16>
    %184 = vector.shape_cast %183 : vector<1x64x128xbf16> to vector<64x128xbf16>
    %cst_81 = arith.constant dense<0.000000e+00> : vector<128x128xf32>
    %185 = tpu.matmul %182, %184, %cst_81 {dimension_numbers = #tpu.dot_dimension_numbers<[1], [0], [0], [1], [0, 0, 1, 1], [], []>} : vector<128x64xbf16>, vector<64x128xbf16>, vector<128x128xf32> -> vector<128x128xf32>
    %186 = arith.addf %181, %185 : vector<128x128xf32>
    %187 = tpu.concatenate %19, %37, %55, %73 in 0 : vector<32x64xbf16>, vector<32x64xbf16>, vector<32x64xbf16>, vector<32x64xbf16> -> vector<128x64xbf16>
    %c22 = arith.constant 22 : index
    %c0_82 = arith.constant 0 : index
    %c0_83 = arith.constant 0 : index
    %188 = vector.load %arg5[%c22, %c0_82, %c0_83] : memref<25x64x128xbf16, #tpu.memory_space<vmem>>, vector<1x64x128xbf16>
    %189 = vector.shape_cast %188 : vector<1x64x128xbf16> to vector<64x128xbf16>
    %cst_84 = arith.constant dense<0.000000e+00> : vector<128x128xf32>
    %190 = tpu.matmul %187, %189, %cst_84 {dimension_numbers = #tpu.dot_dimension_numbers<[1], [0], [0], [1], [0, 0, 1, 1], [], []>} : vector<128x64xbf16>, vector<64x128xbf16>, vector<128x128xf32> -> vector<128x128xf32>
    %191 = arith.addf %186, %190 : vector<128x128xf32>
    %192 = tpu.concatenate %37, %21, %73, %57 in 0 : vector<32x64xbf16>, vector<32x64xbf16>, vector<32x64xbf16>, vector<32x64xbf16> -> vector<128x64xbf16>
    %c23 = arith.constant 23 : index
    %c0_85 = arith.constant 0 : index
    %c0_86 = arith.constant 0 : index
    %193 = vector.load %arg5[%c23, %c0_85, %c0_86] : memref<25x64x128xbf16, #tpu.memory_space<vmem>>, vector<1x64x128xbf16>
    %194 = vector.shape_cast %193 : vector<1x64x128xbf16> to vector<64x128xbf16>
    %cst_87 = arith.constant dense<0.000000e+00> : vector<128x128xf32>
    %195 = tpu.matmul %192, %194, %cst_87 {dimension_numbers = #tpu.dot_dimension_numbers<[1], [0], [0], [1], [0, 0, 1, 1], [], []>} : vector<128x64xbf16>, vector<64x128xbf16>, vector<128x128xf32> -> vector<128x128xf32>
    %196 = arith.addf %191, %195 : vector<128x128xf32>
    %197 = tpu.concatenate %21, %39, %57, %75 in 0 : vector<32x64xbf16>, vector<32x64xbf16>, vector<32x64xbf16>, vector<32x64xbf16> -> vector<128x64xbf16>
    %c24 = arith.constant 24 : index
    %c0_88 = arith.constant 0 : index
    %c0_89 = arith.constant 0 : index
    %198 = vector.load %arg5[%c24, %c0_88, %c0_89] : memref<25x64x128xbf16, #tpu.memory_space<vmem>>, vector<1x64x128xbf16>
    %199 = vector.shape_cast %198 : vector<1x64x128xbf16> to vector<64x128xbf16>
    %cst_90 = arith.constant dense<0.000000e+00> : vector<128x128xf32>
    %200 = tpu.matmul %197, %199, %cst_90 {dimension_numbers = #tpu.dot_dimension_numbers<[1], [0], [0], [1], [0, 0, 1, 1], [], []>} : vector<128x64xbf16>, vector<64x128xbf16>, vector<128x128xf32> -> vector<128x128xf32>
    %201 = arith.addf %196, %200 : vector<128x128xf32>
    %202 = vector.shape_cast %201 : vector<128x128xf32> to vector<4x32x128xf32>
    %cst_91 = arith.constant dense<0xFF800000> : vector<32x128xf32>
    %203 = vector.multi_reduction <maximumf>, %202, %cst_91 [0] : vector<4x32x128xf32> to vector<32x128xf32>
    %c0_92 = arith.constant 0 : index
    %c0_93 = arith.constant 0 : index
    %204 = vector.load %arg6[%c0_92, %c0_93] : memref<1x128xf32, #tpu.memory_space<vmem>>, vector<1x128xf32>
    %205 = vector.broadcast %204 : vector<1x128xf32> to vector<32x128xf32>
    %206 = arith.addf %203, %205 : vector<32x128xf32>
    %cst_94 = arith.constant 0.000000e+00 : f32
    %207 = vector.broadcast %cst_94 : f32 to vector<32x128xf32>
    %208 = arith.maximumf %206, %207 : vector<32x128xf32>
    %209 = arith.truncf %208 : vector<32x128xf32> to vector<32x128xbf16>
    %210 = vector.shape_cast %209 : vector<32x128xbf16> to vector<2x16x128xbf16>
    %cst_95 = arith.constant 0.000000e+00 : f32
    %211 = vector.broadcast %cst_95 : f32 to vector<2x128xf32>
    %212 = vector.extract_strided_slice %210 {offsets = [0, 0, 0], sizes = [2, 1, 128], strides = [1, 1, 1]} : vector<2x16x128xbf16> to vector<2x1x128xbf16>
    %213 = vector.shape_cast %212 : vector<2x1x128xbf16> to vector<2x128xbf16>
    %c0_96 = arith.constant 0 : index
    %c0_97 = arith.constant 0 : index
    %c0_98 = arith.constant 0 : index
    %214 = vector.load %arg7[%c0_96, %c0_97, %c0_98] : memref<16x128x128xbf16, #tpu.memory_space<vmem>>, vector<1x128x128xbf16>
    %215 = vector.shape_cast %214 : vector<1x128x128xbf16> to vector<128x128xbf16>
    %cst_99 = arith.constant dense<0.000000e+00> : vector<2x128xf32>
    %216 = tpu.matmul %213, %215, %cst_99 {dimension_numbers = #tpu.dot_dimension_numbers<[1], [0], [0], [1], [0, 0, 1, 1], [], []>} : vector<2x128xbf16>, vector<128x128xbf16>, vector<2x128xf32> -> vector<2x128xf32>
    %217 = arith.addf %211, %216 : vector<2x128xf32>
    %218 = vector.extract_strided_slice %210 {offsets = [0, 1, 0], sizes = [2, 1, 128], strides = [1, 1, 1]} : vector<2x16x128xbf16> to vector<2x1x128xbf16>
    %219 = vector.shape_cast %218 : vector<2x1x128xbf16> to vector<2x128xbf16>
    %c1_100 = arith.constant 1 : index
    %c0_101 = arith.constant 0 : index
    %c0_102 = arith.constant 0 : index
    %220 = vector.load %arg7[%c1_100, %c0_101, %c0_102] : memref<16x128x128xbf16, #tpu.memory_space<vmem>>, vector<1x128x128xbf16>
    %221 = vector.shape_cast %220 : vector<1x128x128xbf16> to vector<128x128xbf16>
    %cst_103 = arith.constant dense<0.000000e+00> : vector<2x128xf32>
    %222 = tpu.matmul %219, %221, %cst_103 {dimension_numbers = #tpu.dot_dimension_numbers<[1], [0], [0], [1], [0, 0, 1, 1], [], []>} : vector<2x128xbf16>, vector<128x128xbf16>, vector<2x128xf32> -> vector<2x128xf32>
    %223 = arith.addf %217, %222 : vector<2x128xf32>
    %224 = vector.extract_strided_slice %210 {offsets = [0, 2, 0], sizes = [2, 1, 128], strides = [1, 1, 1]} : vector<2x16x128xbf16> to vector<2x1x128xbf16>
    %225 = vector.shape_cast %224 : vector<2x1x128xbf16> to vector<2x128xbf16>
    %c2_104 = arith.constant 2 : index
    %c0_105 = arith.constant 0 : index
    %c0_106 = arith.constant 0 : index
    %226 = vector.load %arg7[%c2_104, %c0_105, %c0_106] : memref<16x128x128xbf16, #tpu.memory_space<vmem>>, vector<1x128x128xbf16>
    %227 = vector.shape_cast %226 : vector<1x128x128xbf16> to vector<128x128xbf16>
    %cst_107 = arith.constant dense<0.000000e+00> : vector<2x128xf32>
    %228 = tpu.matmul %225, %227, %cst_107 {dimension_numbers = #tpu.dot_dimension_numbers<[1], [0], [0], [1], [0, 0, 1, 1], [], []>} : vector<2x128xbf16>, vector<128x128xbf16>, vector<2x128xf32> -> vector<2x128xf32>
    %229 = arith.addf %223, %228 : vector<2x128xf32>
    %230 = vector.extract_strided_slice %210 {offsets = [0, 3, 0], sizes = [2, 1, 128], strides = [1, 1, 1]} : vector<2x16x128xbf16> to vector<2x1x128xbf16>
    %231 = vector.shape_cast %230 : vector<2x1x128xbf16> to vector<2x128xbf16>
    %c3_108 = arith.constant 3 : index
    %c0_109 = arith.constant 0 : index
    %c0_110 = arith.constant 0 : index
    %232 = vector.load %arg7[%c3_108, %c0_109, %c0_110] : memref<16x128x128xbf16, #tpu.memory_space<vmem>>, vector<1x128x128xbf16>
    %233 = vector.shape_cast %232 : vector<1x128x128xbf16> to vector<128x128xbf16>
    %cst_111 = arith.constant dense<0.000000e+00> : vector<2x128xf32>
    %234 = tpu.matmul %231, %233, %cst_111 {dimension_numbers = #tpu.dot_dimension_numbers<[1], [0], [0], [1], [0, 0, 1, 1], [], []>} : vector<2x128xbf16>, vector<128x128xbf16>, vector<2x128xf32> -> vector<2x128xf32>
    %235 = arith.addf %229, %234 : vector<2x128xf32>
    %236 = vector.extract_strided_slice %210 {offsets = [0, 4, 0], sizes = [2, 1, 128], strides = [1, 1, 1]} : vector<2x16x128xbf16> to vector<2x1x128xbf16>
    %237 = vector.shape_cast %236 : vector<2x1x128xbf16> to vector<2x128xbf16>
    %c4_112 = arith.constant 4 : index
    %c0_113 = arith.constant 0 : index
    %c0_114 = arith.constant 0 : index
    %238 = vector.load %arg7[%c4_112, %c0_113, %c0_114] : memref<16x128x128xbf16, #tpu.memory_space<vmem>>, vector<1x128x128xbf16>
    %239 = vector.shape_cast %238 : vector<1x128x128xbf16> to vector<128x128xbf16>
    %cst_115 = arith.constant dense<0.000000e+00> : vector<2x128xf32>
    %240 = tpu.matmul %237, %239, %cst_115 {dimension_numbers = #tpu.dot_dimension_numbers<[1], [0], [0], [1], [0, 0, 1, 1], [], []>} : vector<2x128xbf16>, vector<128x128xbf16>, vector<2x128xf32> -> vector<2x128xf32>
    %241 = arith.addf %235, %240 : vector<2x128xf32>
    %242 = vector.extract_strided_slice %210 {offsets = [0, 5, 0], sizes = [2, 1, 128], strides = [1, 1, 1]} : vector<2x16x128xbf16> to vector<2x1x128xbf16>
    %243 = vector.shape_cast %242 : vector<2x1x128xbf16> to vector<2x128xbf16>
    %c5_116 = arith.constant 5 : index
    %c0_117 = arith.constant 0 : index
    %c0_118 = arith.constant 0 : index
    %244 = vector.load %arg7[%c5_116, %c0_117, %c0_118] : memref<16x128x128xbf16, #tpu.memory_space<vmem>>, vector<1x128x128xbf16>
    %245 = vector.shape_cast %244 : vector<1x128x128xbf16> to vector<128x128xbf16>
    %cst_119 = arith.constant dense<0.000000e+00> : vector<2x128xf32>
    %246 = tpu.matmul %243, %245, %cst_119 {dimension_numbers = #tpu.dot_dimension_numbers<[1], [0], [0], [1], [0, 0, 1, 1], [], []>} : vector<2x128xbf16>, vector<128x128xbf16>, vector<2x128xf32> -> vector<2x128xf32>
    %247 = arith.addf %241, %246 : vector<2x128xf32>
    %248 = vector.extract_strided_slice %210 {offsets = [0, 6, 0], sizes = [2, 1, 128], strides = [1, 1, 1]} : vector<2x16x128xbf16> to vector<2x1x128xbf16>
    %249 = vector.shape_cast %248 : vector<2x1x128xbf16> to vector<2x128xbf16>
    %c6_120 = arith.constant 6 : index
    %c0_121 = arith.constant 0 : index
    %c0_122 = arith.constant 0 : index
    %250 = vector.load %arg7[%c6_120, %c0_121, %c0_122] : memref<16x128x128xbf16, #tpu.memory_space<vmem>>, vector<1x128x128xbf16>
    %251 = vector.shape_cast %250 : vector<1x128x128xbf16> to vector<128x128xbf16>
    %cst_123 = arith.constant dense<0.000000e+00> : vector<2x128xf32>
    %252 = tpu.matmul %249, %251, %cst_123 {dimension_numbers = #tpu.dot_dimension_numbers<[1], [0], [0], [1], [0, 0, 1, 1], [], []>} : vector<2x128xbf16>, vector<128x128xbf16>, vector<2x128xf32> -> vector<2x128xf32>
    %253 = arith.addf %247, %252 : vector<2x128xf32>
    %254 = vector.extract_strided_slice %210 {offsets = [0, 7, 0], sizes = [2, 1, 128], strides = [1, 1, 1]} : vector<2x16x128xbf16> to vector<2x1x128xbf16>
    %255 = vector.shape_cast %254 : vector<2x1x128xbf16> to vector<2x128xbf16>
    %c7_124 = arith.constant 7 : index
    %c0_125 = arith.constant 0 : index
    %c0_126 = arith.constant 0 : index
    %256 = vector.load %arg7[%c7_124, %c0_125, %c0_126] : memref<16x128x128xbf16, #tpu.memory_space<vmem>>, vector<1x128x128xbf16>
    %257 = vector.shape_cast %256 : vector<1x128x128xbf16> to vector<128x128xbf16>
    %cst_127 = arith.constant dense<0.000000e+00> : vector<2x128xf32>
    %258 = tpu.matmul %255, %257, %cst_127 {dimension_numbers = #tpu.dot_dimension_numbers<[1], [0], [0], [1], [0, 0, 1, 1], [], []>} : vector<2x128xbf16>, vector<128x128xbf16>, vector<2x128xf32> -> vector<2x128xf32>
    %259 = arith.addf %253, %258 : vector<2x128xf32>
    %260 = vector.extract_strided_slice %210 {offsets = [0, 8, 0], sizes = [2, 1, 128], strides = [1, 1, 1]} : vector<2x16x128xbf16> to vector<2x1x128xbf16>
    %261 = vector.shape_cast %260 : vector<2x1x128xbf16> to vector<2x128xbf16>
    %c8_128 = arith.constant 8 : index
    %c0_129 = arith.constant 0 : index
    %c0_130 = arith.constant 0 : index
    %262 = vector.load %arg7[%c8_128, %c0_129, %c0_130] : memref<16x128x128xbf16, #tpu.memory_space<vmem>>, vector<1x128x128xbf16>
    %263 = vector.shape_cast %262 : vector<1x128x128xbf16> to vector<128x128xbf16>
    %cst_131 = arith.constant dense<0.000000e+00> : vector<2x128xf32>
    %264 = tpu.matmul %261, %263, %cst_131 {dimension_numbers = #tpu.dot_dimension_numbers<[1], [0], [0], [1], [0, 0, 1, 1], [], []>} : vector<2x128xbf16>, vector<128x128xbf16>, vector<2x128xf32> -> vector<2x128xf32>
    %265 = arith.addf %259, %264 : vector<2x128xf32>
    %266 = vector.extract_strided_slice %210 {offsets = [0, 9, 0], sizes = [2, 1, 128], strides = [1, 1, 1]} : vector<2x16x128xbf16> to vector<2x1x128xbf16>
    %267 = vector.shape_cast %266 : vector<2x1x128xbf16> to vector<2x128xbf16>
    %c9_132 = arith.constant 9 : index
    %c0_133 = arith.constant 0 : index
    %c0_134 = arith.constant 0 : index
    %268 = vector.load %arg7[%c9_132, %c0_133, %c0_134] : memref<16x128x128xbf16, #tpu.memory_space<vmem>>, vector<1x128x128xbf16>
    %269 = vector.shape_cast %268 : vector<1x128x128xbf16> to vector<128x128xbf16>
    %cst_135 = arith.constant dense<0.000000e+00> : vector<2x128xf32>
    %270 = tpu.matmul %267, %269, %cst_135 {dimension_numbers = #tpu.dot_dimension_numbers<[1], [0], [0], [1], [0, 0, 1, 1], [], []>} : vector<2x128xbf16>, vector<128x128xbf16>, vector<2x128xf32> -> vector<2x128xf32>
    %271 = arith.addf %265, %270 : vector<2x128xf32>
    %272 = vector.extract_strided_slice %210 {offsets = [0, 10, 0], sizes = [2, 1, 128], strides = [1, 1, 1]} : vector<2x16x128xbf16> to vector<2x1x128xbf16>
    %273 = vector.shape_cast %272 : vector<2x1x128xbf16> to vector<2x128xbf16>
    %c10_136 = arith.constant 10 : index
    %c0_137 = arith.constant 0 : index
    %c0_138 = arith.constant 0 : index
    %274 = vector.load %arg7[%c10_136, %c0_137, %c0_138] : memref<16x128x128xbf16, #tpu.memory_space<vmem>>, vector<1x128x128xbf16>
    %275 = vector.shape_cast %274 : vector<1x128x128xbf16> to vector<128x128xbf16>
    %cst_139 = arith.constant dense<0.000000e+00> : vector<2x128xf32>
    %276 = tpu.matmul %273, %275, %cst_139 {dimension_numbers = #tpu.dot_dimension_numbers<[1], [0], [0], [1], [0, 0, 1, 1], [], []>} : vector<2x128xbf16>, vector<128x128xbf16>, vector<2x128xf32> -> vector<2x128xf32>
    %277 = arith.addf %271, %276 : vector<2x128xf32>
    %278 = vector.extract_strided_slice %210 {offsets = [0, 11, 0], sizes = [2, 1, 128], strides = [1, 1, 1]} : vector<2x16x128xbf16> to vector<2x1x128xbf16>
    %279 = vector.shape_cast %278 : vector<2x1x128xbf16> to vector<2x128xbf16>
    %c11_140 = arith.constant 11 : index
    %c0_141 = arith.constant 0 : index
    %c0_142 = arith.constant 0 : index
    %280 = vector.load %arg7[%c11_140, %c0_141, %c0_142] : memref<16x128x128xbf16, #tpu.memory_space<vmem>>, vector<1x128x128xbf16>
    %281 = vector.shape_cast %280 : vector<1x128x128xbf16> to vector<128x128xbf16>
    %cst_143 = arith.constant dense<0.000000e+00> : vector<2x128xf32>
    %282 = tpu.matmul %279, %281, %cst_143 {dimension_numbers = #tpu.dot_dimension_numbers<[1], [0], [0], [1], [0, 0, 1, 1], [], []>} : vector<2x128xbf16>, vector<128x128xbf16>, vector<2x128xf32> -> vector<2x128xf32>
    %283 = arith.addf %277, %282 : vector<2x128xf32>
    %284 = vector.extract_strided_slice %210 {offsets = [0, 12, 0], sizes = [2, 1, 128], strides = [1, 1, 1]} : vector<2x16x128xbf16> to vector<2x1x128xbf16>
    %285 = vector.shape_cast %284 : vector<2x1x128xbf16> to vector<2x128xbf16>
    %c12_144 = arith.constant 12 : index
    %c0_145 = arith.constant 0 : index
    %c0_146 = arith.constant 0 : index
    %286 = vector.load %arg7[%c12_144, %c0_145, %c0_146] : memref<16x128x128xbf16, #tpu.memory_space<vmem>>, vector<1x128x128xbf16>
    %287 = vector.shape_cast %286 : vector<1x128x128xbf16> to vector<128x128xbf16>
    %cst_147 = arith.constant dense<0.000000e+00> : vector<2x128xf32>
    %288 = tpu.matmul %285, %287, %cst_147 {dimension_numbers = #tpu.dot_dimension_numbers<[1], [0], [0], [1], [0, 0, 1, 1], [], []>} : vector<2x128xbf16>, vector<128x128xbf16>, vector<2x128xf32> -> vector<2x128xf32>
    %289 = arith.addf %283, %288 : vector<2x128xf32>
    %290 = vector.extract_strided_slice %210 {offsets = [0, 13, 0], sizes = [2, 1, 128], strides = [1, 1, 1]} : vector<2x16x128xbf16> to vector<2x1x128xbf16>
    %291 = vector.shape_cast %290 : vector<2x1x128xbf16> to vector<2x128xbf16>
    %c13_148 = arith.constant 13 : index
    %c0_149 = arith.constant 0 : index
    %c0_150 = arith.constant 0 : index
    %292 = vector.load %arg7[%c13_148, %c0_149, %c0_150] : memref<16x128x128xbf16, #tpu.memory_space<vmem>>, vector<1x128x128xbf16>
    %293 = vector.shape_cast %292 : vector<1x128x128xbf16> to vector<128x128xbf16>
    %cst_151 = arith.constant dense<0.000000e+00> : vector<2x128xf32>
    %294 = tpu.matmul %291, %293, %cst_151 {dimension_numbers = #tpu.dot_dimension_numbers<[1], [0], [0], [1], [0, 0, 1, 1], [], []>} : vector<2x128xbf16>, vector<128x128xbf16>, vector<2x128xf32> -> vector<2x128xf32>
    %295 = arith.addf %289, %294 : vector<2x128xf32>
    %296 = vector.extract_strided_slice %210 {offsets = [0, 14, 0], sizes = [2, 1, 128], strides = [1, 1, 1]} : vector<2x16x128xbf16> to vector<2x1x128xbf16>
    %297 = vector.shape_cast %296 : vector<2x1x128xbf16> to vector<2x128xbf16>
    %c14_152 = arith.constant 14 : index
    %c0_153 = arith.constant 0 : index
    %c0_154 = arith.constant 0 : index
    %298 = vector.load %arg7[%c14_152, %c0_153, %c0_154] : memref<16x128x128xbf16, #tpu.memory_space<vmem>>, vector<1x128x128xbf16>
    %299 = vector.shape_cast %298 : vector<1x128x128xbf16> to vector<128x128xbf16>
    %cst_155 = arith.constant dense<0.000000e+00> : vector<2x128xf32>
    %300 = tpu.matmul %297, %299, %cst_155 {dimension_numbers = #tpu.dot_dimension_numbers<[1], [0], [0], [1], [0, 0, 1, 1], [], []>} : vector<2x128xbf16>, vector<128x128xbf16>, vector<2x128xf32> -> vector<2x128xf32>
    %301 = arith.addf %295, %300 : vector<2x128xf32>
    %302 = vector.extract_strided_slice %210 {offsets = [0, 15, 0], sizes = [2, 1, 128], strides = [1, 1, 1]} : vector<2x16x128xbf16> to vector<2x1x128xbf16>
    %303 = vector.shape_cast %302 : vector<2x1x128xbf16> to vector<2x128xbf16>
    %c15_156 = arith.constant 15 : index
    %c0_157 = arith.constant 0 : index
    %c0_158 = arith.constant 0 : index
    %304 = vector.load %arg7[%c15_156, %c0_157, %c0_158] : memref<16x128x128xbf16, #tpu.memory_space<vmem>>, vector<1x128x128xbf16>
    %305 = vector.shape_cast %304 : vector<1x128x128xbf16> to vector<128x128xbf16>
    %cst_159 = arith.constant dense<0.000000e+00> : vector<2x128xf32>
    %306 = tpu.matmul %303, %305, %cst_159 {dimension_numbers = #tpu.dot_dimension_numbers<[1], [0], [0], [1], [0, 0, 1, 1], [], []>} : vector<2x128xbf16>, vector<128x128xbf16>, vector<2x128xf32> -> vector<2x128xf32>
    %307 = arith.addf %301, %306 : vector<2x128xf32>
    %c0_160 = arith.constant 0 : index
    %c0_161 = arith.constant 0 : index
    %308 = vector.load %arg8[%c0_160, %c0_161] : memref<1x128xf32, #tpu.memory_space<vmem>>, vector<1x128xf32>
    %309 = vector.broadcast %308 : vector<1x128xf32> to vector<2x128xf32>
    %310 = arith.addf %307, %309 : vector<2x128xf32>
    %c0_162 = arith.constant 0 : index
    %c0_163 = arith.constant 0 : index
    %311 = vector.load %arg9[%c0_162, %c0_163] : memref<2x128xf32, #tpu.memory_space<vmem>>, vector<2x128xf32>
    tpu.vector_store %arg9[%c0_162, %c0_163], %310 {strides = array<i32>} : memref<2x128xf32, #tpu.memory_space<vmem>>, vector<2x128xf32>,
    return
  }
  func.func @transform_0(%arg0: i32) -> (i32, i32, i32, i32) {
    %c0_i32 = arith.constant 0 : i32
    %c0_i32_0 = arith.constant 0 : i32
    %c0_i32_1 = arith.constant 0 : i32
    %c0_i32_2 = arith.constant 0 : i32
    return %arg0, %c0_i32, %c0_i32_0, %c0_i32_1 : i32, i32, i32, i32
  }
  func.func @transform_1(%arg0: i32) -> (i32, i32, i32, i32) {
    %c0_i32 = arith.constant 0 : i32
    %c0_i32_0 = arith.constant 0 : i32
    %c0_i32_1 = arith.constant 0 : i32
    %c0_i32_2 = arith.constant 0 : i32
    return %arg0, %c0_i32, %c0_i32_0, %c0_i32_1 : i32, i32, i32, i32
  }
  func.func @transform_2(%arg0: i32) -> (i32, i32, i32, i32) {
    %c0_i32 = arith.constant 0 : i32
    %c0_i32_0 = arith.constant 0 : i32
    %c0_i32_1 = arith.constant 0 : i32
    %c0_i32_2 = arith.constant 0 : i32
    return %arg0, %c0_i32, %c0_i32_0, %c0_i32_1 : i32, i32, i32, i32
  }
  func.func @transform_3(%arg0: i32) -> (i32, i32, i32, i32) {
    %c0_i32 = arith.constant 0 : i32
    %c0_i32_0 = arith.constant 0 : i32
    %c0_i32_1 = arith.constant 0 : i32
    %c0_i32_2 = arith.constant 0 : i32
    return %arg0, %c0_i32, %c0_i32_0, %c0_i32_1 : i32, i32, i32, i32
  }
  func.func @transform_4(%arg0: i32) -> (i32, i32, i32) {
    %c0_i32 = arith.constant 0 : i32
    %c0_i32_0 = arith.constant 0 : i32
    %c0_i32_1 = arith.constant 0 : i32
    %c0_i32_2 = arith.constant 0 : i32
    return %c0_i32, %c0_i32_0, %c0_i32_1 : i32, i32, i32
  }
  func.func @transform_5(%arg0: i32) -> (i32, i32) {
    %c0_i32 = arith.constant 0 : i32
    %c0_i32_0 = arith.constant 0 : i32
    %c0_i32_1 = arith.constant 0 : i32
    return %c0_i32, %c0_i32_0 : i32, i32
  }
  func.func @transform_6(%arg0: i32) -> (i32, i32, i32) {
    %c0_i32 = arith.constant 0 : i32
    %c0_i32_0 = arith.constant 0 : i32
    %c0_i32_1 = arith.constant 0 : i32
    %c0_i32_2 = arith.constant 0 : i32
    return %c0_i32, %c0_i32_0, %c0_i32_1 : i32, i32, i32
  }
  func.func @transform_7(%arg0: i32) -> (i32, i32) {
    %c0_i32 = arith.constant 0 : i32
    %c0_i32_0 = arith.constant 0 : i32
    %c0_i32_1 = arith.constant 0 : i32
    return %c0_i32, %c0_i32_0 : i32, i32
  }
  func.func @transform_8(%arg0: i32) -> (i32, i32) {
    %c0_i32 = arith.constant 0 : i32
    %c0_i32_0 = arith.constant 0 : i32
    return %arg0, %c0_i32 : i32, i32
  }
}

</mosaic_0001>

<llo_original>
// kernel: cnn_forward.2
$region0: #{cnn_forward.2}
  #allocation0 [shape = 'u32[]', space=smem, size = 0x4, offset = 0x4, fixed_abs, tag = 'smem constant byte address 0x4 - core index']
  #allocation1 [shape = 'u32[144,128]{1,0:T(1,128)}', space=vmem, size = 0x12000, scoped, tag = 'internal scratch']
  %s0 = inlined_call_operand.vmem [shape: bf16[4,288,25], index: 0, kind: input, shape index: {}]
  %s1 = inlined_call_operand.vmem [shape: bf16[25,64], index: 1, kind: input, shape index: {}]
  %s2 = inlined_call_operand.vmem [shape: f32[1,64], index: 2, kind: input, shape index: {}]
  %s3 = inlined_call_operand.vmem [shape: bf16[288,64], index: 3, kind: output, shape index: {}]
  %s4 = sld [smem:[#allocation0]]
  $region22: #{cnn_forward.2} parent=0
    _
  %s6 = ssub.s32 1, %s4
  %s7 = scalar_select 0, %s6, %s4
  // Predicated region
  $region2: #{cnn_forward.2} parent=0 // pred_check
    _
  $region3: #{cnn_forward.2} parent=0 // pred_check_branch
    %9 = sbr.rel (0) target = $region5
  $region4: #{cnn_forward.2} parent=0 // pred_region
    _
  $region5: #{cnn_forward.2} parent=0 // pred_fallthru
    _
  // Predicated region
  $region6: #{cnn_forward.2} parent=0 // pred_check
    _
  $region7: #{cnn_forward.2} parent=0 // pred_check_branch
    %11 = sbr.rel (0) target = $region9
  $region8: #{cnn_forward.2} parent=0 // pred_region
    _
  $region9: #{cnn_forward.2} parent=0 // pred_fallthru
    _
  // Predicated region
  $region10: #{cnn_forward.2} parent=0 // pred_check
    _
  $region11: #{cnn_forward.2} parent=0 // pred_check_branch
    %13 = sbr.rel (0) target = $region13
  $region12: #{cnn_forward.2} parent=0 // pred_region
    _
  $region13: #{cnn_forward.2} parent=0 // pred_fallthru
    _
  %v15 = vld [vmem:[%s0] sm:$0xf]
  %v16 = vld [vmem:[%s0 + $0x4] sm:$0xf]
  %v17 = vld [vmem:[%s0 + $0x8] sm:$0xf]
  %v18 = vld [vmem:[%s0 + $0xc] sm:$0xf]
  %v19 = vld [vmem:[%s0 + $0x10] sm:$0xf]
  %v20 = vld [vmem:[%s0 + $0x14] sm:$0xf]
  %v21 = vld [vmem:[%s0 + $0x18] sm:$0xf]
  %v22 = vld [vmem:[%s0 + $0x1c] sm:$0xf]
  %v23 = vld [vmem:[%s0 + $0x20] sm:$0xf]
  %v24 = vld [vmem:[%s0 + $0x24] sm:$0xf]
  %v25 = vld [vmem:[%s0 + $0x28] sm:$0xf]
  %v26 = vld [vmem:[%s0 + $0x2c] sm:$0xf]
  %v27 = vld [vmem:[%s0 + $0x30] sm:$0xf]
  %v28 = vld [vmem:[%s0 + $0x34] sm:$0xf]
  %v29 = vld [vmem:[%s0 + $0x38] sm:$0xf]
  %v30 = vld [vmem:[%s0 + $0x3c] sm:$0xf]
  %v31 = vld [vmem:[%s0 + $0x40] sm:$0xf]
  %v32 = vld [vmem:[%s0 + $0x44] sm:$0xf]
  %v33 = vld [vmem:[%s0 + $0x48] sm:$0xf]
  %v34 = vld [vmem:[%s0 + $0x4c] sm:$0xf]
  %v35 = vld [vmem:[%s0 + $0x50] sm:$0xf]
  %v36 = vld [vmem:[%s0 + $0x54] sm:$0xf]
  %v37 = vld [vmem:[%s0 + $0x58] sm:$0xf]
  %v38 = vld [vmem:[%s0 + $0x5c] sm:$0xf]
  %v39 = vld [vmem:[%s0 + $0x60] sm:$0xf]
  %v40 = vld [vmem:[%s0 + $0x64] sm:$0xf]
  %v41 = vld [vmem:[%s0 + $0x68] sm:$0xf]
  %v42 = vld [vmem:[%s0 + $0x6c] sm:$0xf]
  %v43 = vld [vmem:[%s0 + $0x70] sm:$0xf]
  %v44 = vld [vmem:[%s0 + $0x74] sm:$0xf]
  %v45 = vld [vmem:[%s0 + $0x78] sm:$0xf]
  %v46 = vld [vmem:[%s0 + $0x7c] sm:$0xf]
  %v47 = vld [vmem:[%s0 + $0x80] sm:$0xf]
  %v48 = vld [vmem:[%s0 + $0x84] sm:$0xf]
  %v49 = vld [vmem:[%s0 + $0x88] sm:$0xf]
  %v50 = vld [vmem:[%s0 + $0x8c] sm:$0xf]
  %v51 = vld [vmem:[%s0 + $0x90] sm:$0xf]
  %v52 = vld [vmem:[%s0 + $0x94] sm:$0xf]
  %v53 = vld [vmem:[%s0 + $0x98] sm:$0xf]
  %v54 = vld [vmem:[%s0 + $0x9c] sm:$0xf]
  %v55 = vld [vmem:[%s0 + $0xa0] sm:$0xf]
  %v56 = vld [vmem:[%s0 + $0xa4] sm:$0xf]
  %v57 = vld [vmem:[%s0 + $0xa8] sm:$0xf]
  %v58 = vld [vmem:[%s0 + $0xac] sm:$0xf]
  %v59 = vld [vmem:[%s0 + $0xb0] sm:$0xf]
  %v60 = vld [vmem:[%s0 + $0xb4] sm:$0xf]
  %v61 = vld [vmem:[%s0 + $0xb8] sm:$0xf]
  %v62 = vld [vmem:[%s0 + $0xbc] sm:$0xf]
  %v63 = vld [vmem:[%s0 + $0xc0] sm:$0xf]
  %v64 = vld [vmem:[%s0 + $0xc4] sm:$0xf]
  %v65 = vld [vmem:[%s0 + $0xc8] sm:$0xf]
  %v66 = vld [vmem:[%s0 + $0xcc] sm:$0xf]
  %v67 = vld [vmem:[%s0 + $0xd0] sm:$0xf]
  %v68 = vld [vmem:[%s0 + $0xd4] sm:$0xf]
  %v69 = vld [vmem:[%s0 + $0xd8] sm:$0xf]
  %v70 = vld [vmem:[%s0 + $0xdc] sm:$0xf]
  %v71 = vld [vmem:[%s0 + $0xe0] sm:$0xf]
  %v72 = vld [vmem:[%s0 + $0xe4] sm:$0xf]
  %v73 = vld [vmem:[%s0 + $0xe8] sm:$0xf]
  %v74 = vld [vmem:[%s0 + $0xec] sm:$0xf]
  %v75 = vld [vmem:[%s0 + $0xf0] sm:$0xf]
  %v76 = vld [vmem:[%s0 + $0xf4] sm:$0xf]
  %v77 = vld [vmem:[%s0 + $0xf8] sm:$0xf]
  %v78 = vld [vmem:[%s0 + $0xfc] sm:$0xf]
  %v79 = vld [vmem:[%s0 + $0x100] sm:$0xf]
  %v80 = vld [vmem:[%s0 + $0x104] sm:$0xf]
  %v81 = vld [vmem:[%s0 + $0x108] sm:$0xf]
  %v82 = vld [vmem:[%s0 + $0x10c] sm:$0xf]
  %v83 = vld [vmem:[%s0 + $0x110] sm:$0xf]
  %v84 = vld [vmem:[%s0 + $0x114] sm:$0xf]
  %v85 = vld [vmem:[%s0 + $0x118] sm:$0xf]
  %v86 = vld [vmem:[%s0 + $0x11c] sm:$0xf]
  %v87 = vld [vmem:[%s0 + $0x120] sm:$0xf]
  %v88 = vld [vmem:[%s0 + $0x124] sm:$0xf]
  %v89 = vld [vmem:[%s0 + $0x128] sm:$0xf]
  %v90 = vld [vmem:[%s0 + $0x12c] sm:$0xf]
  %v91 = vld [vmem:[%s0 + $0x130] sm:$0xf]
  %v92 = vld [vmem:[%s0 + $0x134] sm:$0xf]
  %v93 = vld [vmem:[%s0 + $0x138] sm:$0xf]
  %v94 = vld [vmem:[%s0 + $0x13c] sm:$0xf]
  %v95 = vld [vmem:[%s0 + $0x140] sm:$0xf]
  %v96 = vld [vmem:[%s0 + $0x144] sm:$0xf]
  %v97 = vld [vmem:[%s0 + $0x148] sm:$0xf]
  %v98 = vld [vmem:[%s0 + $0x14c] sm:$0xf]
  %v99 = vld [vmem:[%s0 + $0x150] sm:$0xf]
  %v100 = vld [vmem:[%s0 + $0x154] sm:$0xf]
  %v101 = vld [vmem:[%s0 + $0x158] sm:$0xf]
  %v102 = vld [vmem:[%s0 + $0x15c] sm:$0xf]
  %v103 = vld [vmem:[%s0 + $0x160] sm:$0xf]
  %v104 = vld [vmem:[%s0 + $0x164] sm:$0xf]
  %v105 = vld [vmem:[%s0 + $0x168] sm:$0xf]
  %v106 = vld [vmem:[%s0 + $0x16c] sm:$0xf]
  %v107 = vld [vmem:[%s0 + $0x170] sm:$0xf]
  %v108 = vld [vmem:[%s0 + $0x174] sm:$0xf]
  %v109 = vld [vmem:[%s0 + $0x178] sm:$0xf]
  %v110 = vld [vmem:[%s0 + $0x17c] sm:$0xf]
  %v111 = vld [vmem:[%s0 + $0x180] sm:$0xf]
  %v112 = vld [vmem:[%s0 + $0x184] sm:$0xf]
  %v113 = vld [vmem:[%s0 + $0x188] sm:$0xf]
  %v114 = vld [vmem:[%s0 + $0x18c] sm:$0xf]
  %v115 = vld [vmem:[%s0 + $0x190] sm:$0xf]
  %v116 = vld [vmem:[%s0 + $0x194] sm:$0xf]
  %v117 = vld [vmem:[%s0 + $0x198] sm:$0xf]
  %v118 = vld [vmem:[%s0 + $0x19c] sm:$0xf]
  %v119 = vld [vmem:[%s0 + $0x1a0] sm:$0xf]
  %v120 = vld [vmem:[%s0 + $0x1a4] sm:$0xf]
  %v121 = vld [vmem:[%s0 + $0x1a8] sm:$0xf]
  %v122 = vld [vmem:[%s0 + $0x1ac] sm:$0xf]
  %v123 = vld [vmem:[%s0 + $0x1b0] sm:$0xf]
  %v124 = vld [vmem:[%s0 + $0x1b4] sm:$0xf]
  %v125 = vld [vmem:[%s0 + $0x1b8] sm:$0xf]
  %v126 = vld [vmem:[%s0 + $0x1bc] sm:$0xf]
  %v127 = vld [vmem:[%s0 + $0x1c0] sm:$0xf]
  %v128 = vld [vmem:[%s0 + $0x1c4] sm:$0xf]
  %v129 = vld [vmem:[%s0 + $0x1c8] sm:$0xf]
  %v130 = vld [vmem:[%s0 + $0x1cc] sm:$0xf]
  %v131 = vld [vmem:[%s0 + $0x1d0] sm:$0xf]
  %v132 = vld [vmem:[%s0 + $0x1d4] sm:$0xf]
  %v133 = vld [vmem:[%s0 + $0x1d8] sm:$0xf]
  %v134 = vld [vmem:[%s0 + $0x1dc] sm:$0xf]
  %v135 = vld [vmem:[%s0 + $0x1e0] sm:$0xf]
  %v136 = vld [vmem:[%s0 + $0x1e4] sm:$0xf]
  %v137 = vld [vmem:[%s0 + $0x1e8] sm:$0xf]
  %v138 = vld [vmem:[%s0 + $0x1ec] sm:$0xf]
  %v139 = vld [vmem:[%s0 + $0x1f0] sm:$0xf]
  %v140 = vld [vmem:[%s0 + $0x1f4] sm:$0xf]
  %v141 = vld [vmem:[%s0 + $0x1f8] sm:$0xf]
  %v142 = vld [vmem:[%s0 + $0x1fc] sm:$0xf]
  %v143 = vld [vmem:[%s0 + $0x200] sm:$0xf]
  %v144 = vld [vmem:[%s0 + $0x204] sm:$0xf]
  %v145 = vld [vmem:[%s0 + $0x208] sm:$0xf]
  %v146 = vld [vmem:[%s0 + $0x20c] sm:$0xf]
  %v147 = vld [vmem:[%s0 + $0x210] sm:$0xf]
  %v148 = vld [vmem:[%s0 + $0x214] sm:$0xf]
  %v149 = vld [vmem:[%s0 + $0x218] sm:$0xf]
  %v150 = vld [vmem:[%s0 + $0x21c] sm:$0xf]
  %v151 = vld [vmem:[%s0 + $0x220] sm:$0xf]
  %v152 = vld [vmem:[%s0 + $0x224] sm:$0xf]
  %v153 = vld [vmem:[%s0 + $0x228] sm:$0xf]
  %v154 = vld [vmem:[%s0 + $0x22c] sm:$0xf]
  %v155 = vld [vmem:[%s0 + $0x230] sm:$0xf]
  %v156 = vld [vmem:[%s0 + $0x234] sm:$0xf]
  %v157 = vld [vmem:[%s0 + $0x238] sm:$0xf]
  %v158 = vld [vmem:[%s0 + $0x23c] sm:$0xf]
  %v159 = vld [vmem:[%s1] sm:$0xf]
  %v160 = vld [vmem:[%s1 + $0x4] sm:$0xf]
  %v161 = vld [vmem:[%s1 + $0x8] sm:$0xf]
  %v162 = vld [vmem:[%s1 + $0xc] sm:$0x1]
  %v307 = vunpack.c.l.b16 %v15
  %v308 = vunpack.c.l.b16 %v16
  %v309 = vunpack.c.l.b16 %v17
  %v310 = vunpack.c.l.b16 %v18
  %v311 = vunpack.c.l.b16 %v19
  %v312 = vunpack.c.l.b16 %v20
  %v313 = vunpack.c.l.b16 %v21
  %v314 = vunpack.c.l.b16 %v22
  %v315 = vunpack.c.l.b16 %v23
  %v316 = vunpack.c.l.b16 %v24
  %v317 = vunpack.c.l.b16 %v25
  %v318 = vunpack.c.l.b16 %v26
  %v319 = vunpack.c.l.b16 %v27
  %v320 = vunpack.c.l.b16 %v28
  %v321 = vunpack.c.l.b16 %v29
  %v322 = vunpack.c.l.b16 %v30
  %v323 = vunpack.c.l.b16 %v31
  %v324 = vunpack.c.l.b16 %v32
  %v325 = vunpack.c.l.b16 %v33
  %v326 = vunpack.c.l.b16 %v34
  %v327 = vunpack.c.l.b16 %v35
  %v328 = vunpack.c.l.b16 %v36
  %v329 = vunpack.c.l.b16 %v37
  %v330 = vunpack.c.l.b16 %v38
  %v331 = vunpack.c.l.b16 %v39
  %v332 = vunpack.c.l.b16 %v40
  %v333 = vunpack.c.l.b16 %v41
  %v334 = vunpack.c.l.b16 %v42
  %v335 = vunpack.c.l.b16 %v43
  %v336 = vunpack.c.l.b16 %v44
  %v337 = vunpack.c.l.b16 %v45
  %v338 = vunpack.c.l.b16 %v46
  %v339 = vunpack.c.l.b16 %v47
  %v340 = vunpack.c.l.b16 %v48
  %v341 = vunpack.c.l.b16 %v49
  %v342 = vunpack.c.l.b16 %v50
  %v343 = vunpack.c.l.b16 %v51
  %v344 = vunpack.c.l.b16 %v52
  %v345 = vunpack.c.l.b16 %v53
  %v346 = vunpack.c.l.b16 %v54
  %v347 = vunpack.c.l.b16 %v55
  %v348 = vunpack.c.l.b16 %v56
  %v349 = vunpack.c.l.b16 %v57
  %v350 = vunpack.c.l.b16 %v58
  %v351 = vunpack.c.l.b16 %v59
  %v352 = vunpack.c.l.b16 %v60
  %v353 = vunpack.c.l.b16 %v61
  %v354 = vunpack.c.l.b16 %v62
  %v355 = vunpack.c.l.b16 %v63
  %v356 = vunpack.c.l.b16 %v64
  %v357 = vunpack.c.l.b16 %v65
  %v358 = vunpack.c.l.b16 %v66
  %v359 = vunpack.c.l.b16 %v67
  %v360 = vunpack.c.l.b16 %v68
  %v361 = vunpack.c.l.b16 %v69
  %v362 = vunpack.c.l.b16 %v70
  %v363 = vunpack.c.l.b16 %v71
  %v364 = vunpack.c.l.b16 %v72
  %v365 = vunpack.c.l.b16 %v73
  %v366 = vunpack.c.l.b16 %v74
  %v367 = vunpack.c.l.b16 %v75
  %v368 = vunpack.c.l.b16 %v76
  %v369 = vunpack.c.l.b16 %v77
  %v370 = vunpack.c.l.b16 %v78
  %v371 = vunpack.c.l.b16 %v79
  %v372 = vunpack.c.l.b16 %v80
  %v373 = vunpack.c.l.b16 %v81
  %v374 = vunpack.c.l.b16 %v82
  %v375 = vunpack.c.l.b16 %v83
  %v376 = vunpack.c.l.b16 %v84
  %v377 = vunpack.c.l.b16 %v85
  %v378 = vunpack.c.l.b16 %v86
  %v379 = vunpack.c.l.b16 %v87
  %v380 = vunpack.c.l.b16 %v88
  %v381 = vunpack.c.l.b16 %v89
  %v382 = vunpack.c.l.b16 %v90
  %v383 = vunpack.c.l.b16 %v91
  %v384 = vunpack.c.l.b16 %v92
  %v385 = vunpack.c.l.b16 %v93
  %v386 = vunpack.c.l.b16 %v94
  %v387 = vunpack.c.l.b16 %v95
  %v388 = vunpack.c.l.b16 %v96
  %v389 = vunpack.c.l.b16 %v97
  %v390 = vunpack.c.l.b16 %v98
  %v391 = vunpack.c.l.b16 %v99
  %v392 = vunpack.c.l.b16 %v100
  %v393 = vunpack.c.l.b16 %v101
  %v394 = vunpack.c.l.b16 %v102
  %v395 = vunpack.c.l.b16 %v103
  %v396 = vunpack.c.l.b16 %v104
  %v397 = vunpack.c.l.b16 %v105
  %v398 = vunpack.c.l.b16 %v106
  %v399 = vunpack.c.l.b16 %v107
  %v400 = vunpack.c.l.b16 %v108
  %v401 = vunpack.c.l.b16 %v109
  %v402 = vunpack.c.l.b16 %v110
  %v403 = vunpack.c.l.b16 %v111
  %v404 = vunpack.c.l.b16 %v112
  %v405 = vunpack.c.l.b16 %v113
  %v406 = vunpack.c.l.b16 %v114
  %v407 = vunpack.c.l.b16 %v115
  %v408 = vunpack.c.l.b16 %v116
  %v409 = vunpack.c.l.b16 %v117
  %v410 = vunpack.c.l.b16 %v118
  %v411 = vunpack.c.l.b16 %v119
  %v412 = vunpack.c.l.b16 %v120
  %v413 = vunpack.c.l.b16 %v121
  %v414 = vunpack.c.l.b16 %v122
  %v415 = vunpack.c.l.b16 %v123
  %v416 = vunpack.c.l.b16 %v124
  %v417 = vunpack.c.l.b16 %v125
  %v418 = vunpack.c.l.b16 %v126
  %v419 = vunpack.c.l.b16 %v127
  %v420 = vunpack.c.l.b16 %v128
  %v421 = vunpack.c.l.b16 %v129
  %v422 = vunpack.c.l.b16 %v130
  %v423 = vunpack.c.l.b16 %v131
  %v424 = vunpack.c.l.b16 %v132
  %v425 = vunpack.c.l.b16 %v133
  %v426 = vunpack.c.l.b16 %v134
  %v427 = vunpack.c.l.b16 %v135
  %v428 = vunpack.c.l.b16 %v136
  %v429 = vunpack.c.l.b16 %v137
  %v430 = vunpack.c.l.b16 %v138
  %v431 = vunpack.c.l.b16 %v139
  %v432 = vunpack.c.l.b16 %v140
  %v433 = vunpack.c.l.b16 %v141
  %v434 = vunpack.c.l.b16 %v142
  %v435 = vunpack.c.l.b16 %v143
  %v436 = vunpack.c.l.b16 %v144
  %v437 = vunpack.c.l.b16 %v145
  %v438 = vunpack.c.l.b16 %v146
  %v439 = vunpack.c.l.b16 %v147
  %v440 = vunpack.c.l.b16 %v148
  %v441 = vunpack.c.l.b16 %v149
  %v442 = vunpack.c.l.b16 %v150
  %v443 = vunpack.c.l.b16 %v151
  %v444 = vunpack.c.l.b16 %v152
  %v445 = vunpack.c.l.b16 %v153
  %v446 = vunpack.c.l.b16 %v154
  %v447 = vunpack.c.l.b16 %v155
  %v448 = vunpack.c.l.b16 %v156
  %v449 = vunpack.c.l.b16 %v157
  %v450 = vunpack.c.l.b16 %v158
  %v451 = vpack.c.b16 %v308, %v307
  %v452 = vpack.c.b16 %v310, %v309
  %v453 = vpack.c.b16 %v312, %v311
  %v454 = vpack.c.b16 %v314, %v313
  %v455 = vpack.c.b16 %v316, %v315
  %v456 = vpack.c.b16 %v318, %v317
  %v457 = vpack.c.b16 %v320, %v319
  %v458 = vpack.c.b16 %v322, %v321
  %v459 = vpack.c.b16 %v324, %v323
  %v460 = vpack.c.b16 %v326, %v325
  %v461 = vpack.c.b16 %v328, %v327
  %v462 = vpack.c.b16 %v330, %v329
  %v463 = vpack.c.b16 %v332, %v331
  %v464 = vpack.c.b16 %v334, %v333
  %v465 = vpack.c.b16 %v336, %v335
  %v466 = vpack.c.b16 %v338, %v337
  %v467 = vpack.c.b16 %v340, %v339
  %v468 = vpack.c.b16 %v342, %v341
  %v469 = vpack.c.b16 %v344, %v343
  %v470 = vpack.c.b16 %v346, %v345
  %v471 = vpack.c.b16 %v348, %v347
  %v472 = vpack.c.b16 %v350, %v349
  %v473 = vpack.c.b16 %v352, %v351
  %v474 = vpack.c.b16 %v354, %v353
  %v475 = vpack.c.b16 %v356, %v355
  %v476 = vpack.c.b16 %v358, %v357
  %v477 = vpack.c.b16 %v360, %v359
  %v478 = vpack.c.b16 %v362, %v361
  %v479 = vpack.c.b16 %v364, %v363
  %v480 = vpack.c.b16 %v366, %v365
  %v481 = vpack.c.b16 %v368, %v367
  %v482 = vpack.c.b16 %v370, %v369
  %v483 = vpack.c.b16 %v372, %v371
  %v484 = vpack.c.b16 %v374, %v373
  %v485 = vpack.c.b16 %v376, %v375
  %v486 = vpack.c.b16 %v378, %v377
  %v487 = vpack.c.b16 %v380, %v379
  %v488 = vpack.c.b16 %v382, %v381
  %v489 = vpack.c.b16 %v384, %v383
  %v490 = vpack.c.b16 %v386, %v385
  %v491 = vpack.c.b16 %v388, %v387
  %v492 = vpack.c.b16 %v390, %v389
  %v493 = vpack.c.b16 %v392, %v391
  %v494 = vpack.c.b16 %v394, %v393
  %v495 = vpack.c.b16 %v396, %v395
  %v496 = vpack.c.b16 %v398, %v397
  %v497 = vpack.c.b16 %v400, %v399
  %v498 = vpack.c.b16 %v402, %v401
  %v499 = vpack.c.b16 %v404, %v403
  %v500 = vpack.c.b16 %v406, %v405
  %v501 = vpack.c.b16 %v408, %v407
  %v502 = vpack.c.b16 %v410, %v409
  %v503 = vpack.c.b16 %v412, %v411
  %v504 = vpack.c.b16 %v414, %v413
  %v505 = vpack.c.b16 %v416, %v415
  %v506 = vpack.c.b16 %v418, %v417
  %v507 = vpack.c.b16 %v420, %v419
  %v508 = vpack.c.b16 %v422, %v421
  %v509 = vpack.c.b16 %v424, %v423
  %v510 = vpack.c.b16 %v426, %v425
  %v511 = vpack.c.b16 %v428, %v427
  %v512 = vpack.c.b16 %v430, %v429
  %v513 = vpack.c.b16 %v432, %v431
  %v514 = vpack.c.b16 %v434, %v433
  %v515 = vpack.c.b16 %v436, %v435
  %v516 = vpack.c.b16 %v438, %v437
  %v517 = vpack.c.b16 %v440, %v439
  %v518 = vpack.c.b16 %v442, %v441
  %v519 = vpack.c.b16 %v444, %v443
  %v520 = vpack.c.b16 %v446, %v445
  %v521 = vpack.c.b16 %v448, %v447
  %v522 = vpack.c.b16 %v450, %v449
  %v527 = vunpack.c.l.b16 %v159
  %v528 = vunpack.c.l.b16 %v160
  %v529 = vunpack.c.l.b16 %v161
  %v530 = vunpack.c.l.b16 %v162
  %v531 = vpack.c.b16 %v528, %v527
  %v532 = vpack.c.b16 %v530, %v529
  %vm534 = vcmask 203776
  %v536 = vsel %vm534, %v451, 0
  %v539 = vsel %vm534, %v452, 0
  %v542 = vsel %vm534, %v453, 0
  %v545 = vsel %vm534, %v454, 0
  %v548 = vsel %vm534, %v455, 0
  %v551 = vsel %vm534, %v456, 0
  %v554 = vsel %vm534, %v457, 0
  %v557 = vsel %vm534, %v458, 0
  %v560 = vsel %vm534, %v459, 0
  %v563 = vsel %vm534, %v460, 0
  %v566 = vsel %vm534, %v461, 0
  %v569 = vsel %vm534, %v462, 0
  %v572 = vsel %vm534, %v463, 0
  %v575 = vsel %vm534, %v464, 0
  %v578 = vsel %vm534, %v465, 0
  %v581 = vsel %vm534, %v466, 0
  %v584 = vsel %vm534, %v467, 0
  %v587 = vsel %vm534, %v468, 0
  %v590 = vsel %vm534, %v469, 0
  %v593 = vsel %vm534, %v470, 0
  %v596 = vsel %vm534, %v471, 0
  %v599 = vsel %vm534, %v472, 0
  %v602 = vsel %vm534, %v473, 0
  %v605 = vsel %vm534, %v474, 0
  %v608 = vsel %vm534, %v475, 0
  %v611 = vsel %vm534, %v476, 0
  %v614 = vsel %vm534, %v477, 0
  %v617 = vsel %vm534, %v478, 0
  %v620 = vsel %vm534, %v479, 0
  %v623 = vsel %vm534, %v480, 0
  %v626 = vsel %vm534, %v481, 0
  %v629 = vsel %vm534, %v482, 0
  %v632 = vsel %vm534, %v483, 0
  %v635 = vsel %vm534, %v484, 0
  %v638 = vsel %vm534, %v485, 0
  %v641 = vsel %vm534, %v486, 0
  %v644 = vsel %vm534, %v487, 0
  %v647 = vsel %vm534, %v488, 0
  %v650 = vsel %vm534, %v489, 0
  %v653 = vsel %vm534, %v490, 0
  %v656 = vsel %vm534, %v491, 0
  %v659 = vsel %vm534, %v492, 0
  %v662 = vsel %vm534, %v493, 0
  %v665 = vsel %vm534, %v494, 0
  %v668 = vsel %vm534, %v495, 0
  %v671 = vsel %vm534, %v496, 0
  %v674 = vsel %vm534, %v497, 0
  %v677 = vsel %vm534, %v498, 0
  %v680 = vsel %vm534, %v499, 0
  %v683 = vsel %vm534, %v500, 0
  %v686 = vsel %vm534, %v501, 0
  %v689 = vsel %vm534, %v502, 0
  %v692 = vsel %vm534, %v503, 0
  %v695 = vsel %vm534, %v504, 0
  %v698 = vsel %vm534, %v505, 0
  %v701 = vsel %vm534, %v506, 0
  %v704 = vsel %vm534, %v507, 0
  %v707 = vsel %vm534, %v508, 0
  %v710 = vsel %vm534, %v509, 0
  %v713 = vsel %vm534, %v510, 0
  %v716 = vsel %vm534, %v511, 0
  %v719 = vsel %vm534, %v512, 0
  %v722 = vsel %vm534, %v513, 0
  %v725 = vsel %vm534, %v514, 0
  %v728 = vsel %vm534, %v515, 0
  %v731 = vsel %vm534, %v516, 0
  %v734 = vsel %vm534, %v517, 0
  %v737 = vsel %vm534, %v518, 0
  %v740 = vsel %vm534, %v519, 0
  %v743 = vsel %vm534, %v520, 0
  %v746 = vsel %vm534, %v521, 0
  %v749 = vsel %vm534, %v522, 0
  %vm751 = vcmask 1043456
  %vm752 = vcmask 1044480
  %v753 = vsel %vm751, 4294967295, 65535
  %v754 = vsel %vm752, %v753, 0
  %v756 = vand.u32 %v532, %v754
  %758 = vmatprep.subr.bf16.mxu0 0
  %759 = vmatpush1.bf16.msra.mxu0 %v531
  %760 = vmatprep.subr.bf16.mxu0 0
  %761 = vmatpush1.bf16.msra.mxu0 %v756
  %762 = vmatprep.subr.bf16.mxu0 0
  %763 = vmatpush1.bf16.msra.mxu0 0
  %764 = vmatprep.subr.bf16.mxu0 0
  %765 = vmatpush1.bf16.msra.mxu0 0
  %766 = vmatprep.subr.bf16.mxu0 0
  %767 = vmatpush1.bf16.msra.mxu0 0
  %768 = vmatprep.subr.bf16.mxu0 0
  %769 = vmatpush1.bf16.msra.mxu0 0
  %770 = vmatprep.subr.bf16.mxu0 0
  %771 = vmatpush1.bf16.msra.mxu0 0
  %772 = vmatprep.subr.bf16.mxu0 0
  %773 = vmatpush1.bf16.msra.mxu0 0
  %774 = vmatprep.subr.bf16.mxu0 0
  %775 = vmatpush1.bf16.msra.mxu0 0
  %776 = vmatprep.subr.bf16.mxu0 0
  %777 = vmatpush1.bf16.msra.mxu0 0
  %778 = vmatprep.subr.bf16.mxu0 0
  %779 = vmatpush1.bf16.msra.mxu0 0
  %780 = vmatprep.subr.bf16.mxu0 0
  %781 = vmatpush1.bf16.msra.mxu0 0
  %782 = vmatprep.subr.bf16.mxu0 0
  %783 = vmatpush1.bf16.msra.mxu0 0
  %784 = vmatprep.subr.bf16.mxu0 0
  %785 = vmatpush1.bf16.msra.mxu0 0
  %786 = vmatprep.subr.bf16.mxu0 0
  %787 = vmatpush1.bf16.msra.mxu0 0
  %788 = vmatprep.subr.bf16.mxu0 0
  %789 = vmatpush1.bf16.msra.mxu0 0
  %790 = vmatprep.mubr.bf16.mxu0 0
  %791 = vmatmul.mubr.bf16.gmra.mrb[0].mxu0 %v536
  %v792 = vpop.f32.mrb[0].mxu0
  %v793 = vadd.f32 0.0, %v792
  %v794 = vpop.f32.mrb[0].mxu0
  %v795 = vpop.f32.mrb[0].mxu0
  %v796 = vadd.f32 0.0, %v795
  %v797 = vpop.f32.mrb[0].mxu0
  %798 = vmatprep.mubr.bf16.mxu0 0
  %799 = vmatmul.mubr.bf16.gmra.mrb[0].mxu0 %v539
  %v800 = vpop.f32.mrb[0].mxu0
  %v801 = vadd.f32 0.0, %v800
  %v802 = vpop.f32.mrb[0].mxu0
  %v803 = vpop.f32.mrb[0].mxu0
  %v804 = vadd.f32 0.0, %v803
  %v805 = vpop.f32.mrb[0].mxu0
  %806 = vmatprep.mubr.bf16.mxu0 0
  %807 = vmatmul.mubr.bf16.gmra.mrb[0].mxu0 %v542
  %v808 = vpop.f32.mrb[0].mxu0
  %v809 = vadd.f32 0.0, %v808
  %v810 = vpop.f32.mrb[0].mxu0
  %v811 = vpop.f32.mrb[0].mxu0
  %v812 = vadd.f32 0.0, %v811
  %v813 = vpop.f32.mrb[0].mxu0
  %814 = vmatprep.mubr.bf16.mxu0 0
  %815 = vmatmul.mubr.bf16.gmra.mrb[0].mxu0 %v545
  %v816 = vpop.f32.mrb[0].mxu0
  %v817 = vadd.f32 0.0, %v816
  %v818 = vpop.f32.mrb[0].mxu0
  %v819 = vpop.f32.mrb[0].mxu0
  %v820 = vadd.f32 0.0, %v819
  %v821 = vpop.f32.mrb[0].mxu0
  %822 = vmatprep.mubr.bf16.mxu0 0
  %823 = vmatmul.mubr.bf16.gmra.mrb[0].mxu0 %v548
  %v824 = vpop.f32.mrb[0].mxu0
  %v825 = vadd.f32 0.0, %v824
  %v826 = vpop.f32.mrb[0].mxu0
  %v827 = vpop.f32.mrb[0].mxu0
  %v828 = vadd.f32 0.0, %v827
  %v829 = vpop.f32.mrb[0].mxu0
  %830 = vmatprep.mubr.bf16.mxu0 0
  %831 = vmatmul.mubr.bf16.gmra.mrb[0].mxu0 %v551
  %v832 = vpop.f32.mrb[0].mxu0
  %v833 = vadd.f32 0.0, %v832
  %v834 = vpop.f32.mrb[0].mxu0
  %v835 = vpop.f32.mrb[0].mxu0
  %v836 = vadd.f32 0.0, %v835
  %v837 = vpop.f32.mrb[0].mxu0
  %838 = vmatprep.mubr.bf16.mxu0 0
  %839 = vmatmul.mubr.bf16.gmra.mrb[0].mxu0 %v554
  %v840 = vpop.f32.mrb[0].mxu0
  %v841 = vadd.f32 0.0, %v840
  %v842 = vpop.f32.mrb[0].mxu0
  %v843 = vpop.f32.mrb[0].mxu0
  %v844 = vadd.f32 0.0, %v843
  %v845 = vpop.f32.mrb[0].mxu0
  %846 = vmatprep.mubr.bf16.mxu0 0
  %847 = vmatmul.mubr.bf16.gmra.mrb[0].mxu0 %v557
  %v848 = vpop.f32.mrb[0].mxu0
  %v849 = vadd.f32 0.0, %v848
  %v850 = vpop.f32.mrb[0].mxu0
  %v851 = vpop.f32.mrb[0].mxu0
  %v852 = vadd.f32 0.0, %v851
  %v853 = vpop.f32.mrb[0].mxu0
  %854 = vmatprep.mubr.bf16.mxu0 0
  %855 = vmatmul.mubr.bf16.gmra.mrb[0].mxu0 %v560
  %v856 = vpop.f32.mrb[0].mxu0
  %v857 = vadd.f32 0.0, %v856
  %v858 = vpop.f32.mrb[0].mxu0
  %v859 = vpop.f32.mrb[0].mxu0
  %v860 = vadd.f32 0.0, %v859
  %v861 = vpop.f32.mrb[0].mxu0
  %862 = vmatprep.mubr.bf16.mxu0 0
  %863 = vmatmul.mubr.bf16.gmra.mrb[0].mxu0 %v563
  %v864 = vpop.f32.mrb[0].mxu0
  %v865 = vadd.f32 0.0, %v864
  %v866 = vpop.f32.mrb[0].mxu0
  %v867 = vpop.f32.mrb[0].mxu0
  %v868 = vadd.f32 0.0, %v867
  %v869 = vpop.f32.mrb[0].mxu0
  %870 = vmatprep.mubr.bf16.mxu0 0
  %871 = vmatmul.mubr.bf16.gmra.mrb[0].mxu0 %v566
  %v872 = vpop.f32.mrb[0].mxu0
  %v873 = vadd.f32 0.0, %v872
  %v874 = vpop.f32.mrb[0].mxu0
  %v875 = vpop.f32.mrb[0].mxu0
  %v876 = vadd.f32 0.0, %v875
  %v877 = vpop.f32.mrb[0].mxu0
  %878 = vmatprep.mubr.bf16.mxu0 0
  %879 = vmatmul.mubr.bf16.gmra.mrb[0].mxu0 %v569
  %v880 = vpop.f32.mrb[0].mxu0
  %v881 = vadd.f32 0.0, %v880
  %v882 = vpop.f32.mrb[0].mxu0
  %v883 = vpop.f32.mrb[0].mxu0
  %v884 = vadd.f32 0.0, %v883
  %v885 = vpop.f32.mrb[0].mxu0
  %886 = vmatprep.mubr.bf16.mxu0 0
  %887 = vmatmul.mubr.bf16.gmra.mrb[0].mxu0 %v572
  %v888 = vpop.f32.mrb[0].mxu0
  %v889 = vadd.f32 0.0, %v888
  %v890 = vpop.f32.mrb[0].mxu0
  %v891 = vpop.f32.mrb[0].mxu0
  %v892 = vadd.f32 0.0, %v891
  %v893 = vpop.f32.mrb[0].mxu0
  %894 = vmatprep.mubr.bf16.mxu0 0
  %895 = vmatmul.mubr.bf16.gmra.mrb[0].mxu0 %v575
  %v896 = vpop.f32.mrb[0].mxu0
  %v897 = vadd.f32 0.0, %v896
  %v898 = vpop.f32.mrb[0].mxu0
  %v899 = vpop.f32.mrb[0].mxu0
  %v900 = vadd.f32 0.0, %v899
  %v901 = vpop.f32.mrb[0].mxu0
  %902 = vmatprep.mubr.bf16.mxu0 0
  %903 = vmatmul.mubr.bf16.gmra.mrb[0].mxu0 %v578
  %v904 = vpop.f32.mrb[0].mxu0
  %v905 = vadd.f32 0.0, %v904
  %v906 = vpop.f32.mrb[0].mxu0
  %v907 = vpop.f32.mrb[0].mxu0
  %v908 = vadd.f32 0.0, %v907
  %v909 = vpop.f32.mrb[0].mxu0
  %910 = vmatprep.mubr.bf16.mxu0 0
  %911 = vmatmul.mubr.bf16.gmra.mrb[0].mxu0 %v581
  %v912 = vpop.f32.mrb[0].mxu0
  %v913 = vadd.f32 0.0, %v912
  %v914 = vpop.f32.mrb[0].mxu0
  %v915 = vpop.f32.mrb[0].mxu0
  %v916 = vadd.f32 0.0, %v915
  %v917 = vpop.f32.mrb[0].mxu0
  %918 = vmatprep.mubr.bf16.mxu0 0
  %919 = vmatmul.mubr.bf16.gmra.mrb[0].mxu0 %v584
  %v920 = vpop.f32.mrb[0].mxu0
  %v921 = vadd.f32 0.0, %v920
  %v922 = vpop.f32.mrb[0].mxu0
  %v923 = vpop.f32.mrb[0].mxu0
  %v924 = vadd.f32 0.0, %v923
  %v925 = vpop.f32.mrb[0].mxu0
  %926 = vmatprep.mubr.bf16.mxu0 0
  %927 = vmatmul.mubr.bf16.gmra.mrb[0].mxu0 %v587
  %v928 = vpop.f32.mrb[0].mxu0
  %v929 = vadd.f32 0.0, %v928
  %v930 = vpop.f32.mrb[0].mxu0
  %v931 = vpop.f32.mrb[0].mxu0
  %v932 = vadd.f32 0.0, %v931
  %v933 = vpop.f32.mrb[0].mxu0
  %934 = vmatprep.mubr.bf16.mxu0 0
  %935 = vmatmul.mubr.bf16.gmra.mrb[0].mxu0 %v590
  %v936 = vpop.f32.mrb[0].mxu0
  %v937 = vadd.f32 0.0, %v936
  %v938 = vpop.f32.mrb[0].mxu0
  %v939 = vpop.f32.mrb[0].mxu0
  %v940 = vadd.f32 0.0, %v939
  %v941 = vpop.f32.mrb[0].mxu0
  %942 = vmatprep.mubr.bf16.mxu0 0
  %943 = vmatmul.mubr.bf16.gmra.mrb[0].mxu0 %v593
  %v944 = vpop.f32.mrb[0].mxu0
  %v945 = vadd.f32 0.0, %v944
  %v946 = vpop.f32.mrb[0].mxu0
  %v947 = vpop.f32.mrb[0].mxu0
  %v948 = vadd.f32 0.0, %v947
  %v949 = vpop.f32.mrb[0].mxu0
  %950 = vmatprep.mubr.bf16.mxu0 0
  %951 = vmatmul.mubr.bf16.gmra.mrb[0].mxu0 %v596
  %v952 = vpop.f32.mrb[0].mxu0
  %v953 = vadd.f32 0.0, %v952
  %v954 = vpop.f32.mrb[0].mxu0
  %v955 = vpop.f32.mrb[0].mxu0
  %v956 = vadd.f32 0.0, %v955
  %v957 = vpop.f32.mrb[0].mxu0
  %958 = vmatprep.mubr.bf16.mxu0 0
  %959 = vmatmul.mubr.bf16.gmra.mrb[0].mxu0 %v599
  %v960 = vpop.f32.mrb[0].mxu0
  %v961 = vadd.f32 0.0, %v960
  %v962 = vpop.f32.mrb[0].mxu0
  %v963 = vpop.f32.mrb[0].mxu0
  %v964 = vadd.f32 0.0, %v963
  %v965 = vpop.f32.mrb[0].mxu0
  %966 = vmatprep.mubr.bf16.mxu0 0
  %967 = vmatmul.mubr.bf16.gmra.mrb[0].mxu0 %v602
  %v968 = vpop.f32.mrb[0].mxu0
  %v969 = vadd.f32 0.0, %v968
  %v970 = vpop.f32.mrb[0].mxu0
  %v971 = vpop.f32.mrb[0].mxu0
  %v972 = vadd.f32 0.0, %v971
  %v973 = vpop.f32.mrb[0].mxu0
  %974 = vmatprep.mubr.bf16.mxu0 0
  %975 = vmatmul.mubr.bf16.gmra.mrb[0].mxu0 %v605
  %v976 = vpop.f32.mrb[0].mxu0
  %v977 = vadd.f32 0.0, %v976
  %v978 = vpop.f32.mrb[0].mxu0
  %v979 = vpop.f32.mrb[0].mxu0
  %v980 = vadd.f32 0.0, %v979
  %v981 = vpop.f32.mrb[0].mxu0
  %982 = vmatprep.mubr.bf16.mxu0 0
  %983 = vmatmul.mubr.bf16.gmra.mrb[0].mxu0 %v608
  %v984 = vpop.f32.mrb[0].mxu0
  %v985 = vadd.f32 0.0, %v984
  %v986 = vpop.f32.mrb[0].mxu0
  %v987 = vpop.f32.mrb[0].mxu0
  %v988 = vadd.f32 0.0, %v987
  %v989 = vpop.f32.mrb[0].mxu0
  %990 = vmatprep.mubr.bf16.mxu0 0
  %991 = vmatmul.mubr.bf16.gmra.mrb[0].mxu0 %v611
  %v992 = vpop.f32.mrb[0].mxu0
  %v993 = vadd.f32 0.0, %v992
  %v994 = vpop.f32.mrb[0].mxu0
  %v995 = vpop.f32.mrb[0].mxu0
  %v996 = vadd.f32 0.0, %v995
  %v997 = vpop.f32.mrb[0].mxu0
  %998 = vmatprep.mubr.bf16.mxu0 0
  %999 = vmatmul.mubr.bf16.gmra.mrb[0].mxu0 %v614
  %v1000 = vpop.f32.mrb[0].mxu0
  %v1001 = vadd.f32 0.0, %v1000
  %v1002 = vpop.f32.mrb[0].mxu0
  %v1003 = vpop.f32.mrb[0].mxu0
  %v1004 = vadd.f32 0.0, %v1003
  %v1005 = vpop.f32.mrb[0].mxu0
  %1006 = vmatprep.mubr.bf16.mxu0 0
  %1007 = vmatmul.mubr.bf16.gmra.mrb[0].mxu0 %v617
  %v1008 = vpop.f32.mrb[0].mxu0
  %v1009 = vadd.f32 0.0, %v1008
  %v1010 = vpop.f32.mrb[0].mxu0
  %v1011 = vpop.f32.mrb[0].mxu0
  %v1012 = vadd.f32 0.0, %v1011
  %v1013 = vpop.f32.mrb[0].mxu0
  %1014 = vmatprep.mubr.bf16.mxu0 0
  %1015 = vmatmul.mubr.bf16.gmra.mrb[0].mxu0 %v620
  %v1016 = vpop.f32.mrb[0].mxu0
  %v1017 = vadd.f32 0.0, %v1016
  %v1018 = vpop.f32.mrb[0].mxu0
  %v1019 = vpop.f32.mrb[0].mxu0
  %v1020 = vadd.f32 0.0, %v1019
  %v1021 = vpop.f32.mrb[0].mxu0
  %1022 = vmatprep.mubr.bf16.mxu0 0
  %1023 = vmatmul.mubr.bf16.gmra.mrb[0].mxu0 %v623
  %v1024 = vpop.f32.mrb[0].mxu0
  %v1025 = vadd.f32 0.0, %v1024
  %v1026 = vpop.f32.mrb[0].mxu0
  %v1027 = vpop.f32.mrb[0].mxu0
  %v1028 = vadd.f32 0.0, %v1027
  %v1029 = vpop.f32.mrb[0].mxu0
  %1030 = vmatprep.mubr.bf16.mxu0 0
  %1031 = vmatmul.mubr.bf16.gmra.mrb[0].mxu0 %v626
  %v1032 = vpop.f32.mrb[0].mxu0
  %v1033 = vadd.f32 0.0, %v1032
  %v1034 = vpop.f32.mrb[0].mxu0
  %v1035 = vpop.f32.mrb[0].mxu0
  %v1036 = vadd.f32 0.0, %v1035
  %v1037 = vpop.f32.mrb[0].mxu0
  %1038 = vmatprep.mubr.bf16.mxu0 0
  %1039 = vmatmul.mubr.bf16.gmra.mrb[0].mxu0 %v629
  %v1040 = vpop.f32.mrb[0].mxu0
  %v1041 = vadd.f32 0.0, %v1040
  %v1042 = vpop.f32.mrb[0].mxu0
  %v1043 = vpop.f32.mrb[0].mxu0
  %v1044 = vadd.f32 0.0, %v1043
  %v1045 = vpop.f32.mrb[0].mxu0
  %1046 = vmatprep.mubr.bf16.mxu0 0
  %1047 = vmatmul.mubr.bf16.gmra.mrb[0].mxu0 %v632
  %v1048 = vpop.f32.mrb[0].mxu0
  %v1049 = vadd.f32 0.0, %v1048
  %v1050 = vpop.f32.mrb[0].mxu0
  %v1051 = vpop.f32.mrb[0].mxu0
  %v1052 = vadd.f32 0.0, %v1051
  %v1053 = vpop.f32.mrb[0].mxu0
  %1054 = vmatprep.mubr.bf16.mxu0 0
  %1055 = vmatmul.mubr.bf16.gmra.mrb[0].mxu0 %v635
  %v1056 = vpop.f32.mrb[0].mxu0
  %v1057 = vadd.f32 0.0, %v1056
  %v1058 = vpop.f32.mrb[0].mxu0
  %v1059 = vpop.f32.mrb[0].mxu0
  %v1060 = vadd.f32 0.0, %v1059
  %v1061 = vpop.f32.mrb[0].mxu0
  %1062 = vmatprep.mubr.bf16.mxu0 0
  %1063 = vmatmul.mubr.bf16.gmra.mrb[0].mxu0 %v638
  %v1064 = vpop.f32.mrb[0].mxu0
  %v1065 = vadd.f32 0.0, %v1064
  %v1066 = vpop.f32.mrb[0].mxu0
  %v1067 = vpop.f32.mrb[0].mxu0
  %v1068 = vadd.f32 0.0, %v1067
  %v1069 = vpop.f32.mrb[0].mxu0
  %1070 = vmatprep.mubr.bf16.mxu0 0
  %1071 = vmatmul.mubr.bf16.gmra.mrb[0].mxu0 %v641
  %v1072 = vpop.f32.mrb[0].mxu0
  %v1073 = vadd.f32 0.0, %v1072
  %v1074 = vpop.f32.mrb[0].mxu0
  %v1075 = vpop.f32.mrb[0].mxu0
  %v1076 = vadd.f32 0.0, %v1075
  %v1077 = vpop.f32.mrb[0].mxu0
  %1078 = vmatprep.mubr.bf16.mxu0 0
  %1079 = vmatmul.mubr.bf16.gmra.mrb[0].mxu0 %v644
  %v1080 = vpop.f32.mrb[0].mxu0
  %v1081 = vadd.f32 0.0, %v1080
  %v1082 = vpop.f32.mrb[0].mxu0
  %v1083 = vpop.f32.mrb[0].mxu0
  %v1084 = vadd.f32 0.0, %v1083
  %v1085 = vpop.f32.mrb[0].mxu0
  %1086 = vmatprep.mubr.bf16.mxu0 0
  %1087 = vmatmul.mubr.bf16.gmra.mrb[0].mxu0 %v647
  %v1088 = vpop.f32.mrb[0].mxu0
  %v1089 = vadd.f32 0.0, %v1088
  %v1090 = vpop.f32.mrb[0].mxu0
  %v1091 = vpop.f32.mrb[0].mxu0
  %v1092 = vadd.f32 0.0, %v1091
  %v1093 = vpop.f32.mrb[0].mxu0
  %1094 = vmatprep.mubr.bf16.mxu0 0
  %1095 = vmatmul.mubr.bf16.gmra.mrb[0].mxu0 %v650
  %v1096 = vpop.f32.mrb[0].mxu0
  %v1097 = vadd.f32 0.0, %v1096
  %v1098 = vpop.f32.mrb[0].mxu0
  %v1099 = vpop.f32.mrb[0].mxu0
  %v1100 = vadd.f32 0.0, %v1099
  %v1101 = vpop.f32.mrb[0].mxu0
  %1102 = vmatprep.mubr.bf16.mxu0 0
  %1103 = vmatmul.mubr.bf16.gmra.mrb[0].mxu0 %v653
  %v1104 = vpop.f32.mrb[0].mxu0
  %v1105 = vadd.f32 0.0, %v1104
  %v1106 = vpop.f32.mrb[0].mxu0
  %v1107 = vpop.f32.mrb[0].mxu0
  %v1108 = vadd.f32 0.0, %v1107
  %v1109 = vpop.f32.mrb[0].mxu0
  %1110 = vmatprep.mubr.bf16.mxu0 0
  %1111 = vmatmul.mubr.bf16.gmra.mrb[0].mxu0 %v656
  %v1112 = vpop.f32.mrb[0].mxu0
  %v1113 = vadd.f32 0.0, %v1112
  %v1114 = vpop.f32.mrb[0].mxu0
  %v1115 = vpop.f32.mrb[0].mxu0
  %v1116 = vadd.f32 0.0, %v1115
  %v1117 = vpop.f32.mrb[0].mxu0
  %1118 = vmatprep.mubr.bf16.mxu0 0
  %1119 = vmatmul.mubr.bf16.gmra.mrb[0].mxu0 %v659
  %v1120 = vpop.f32.mrb[0].mxu0
  %v1121 = vadd.f32 0.0, %v1120
  %v1122 = vpop.f32.mrb[0].mxu0
  %v1123 = vpop.f32.mrb[0].mxu0
  %v1124 = vadd.f32 0.0, %v1123
  %v1125 = vpop.f32.mrb[0].mxu0
  %1126 = vmatprep.mubr.bf16.mxu0 0
  %1127 = vmatmul.mubr.bf16.gmra.mrb[0].mxu0 %v662
  %v1128 = vpop.f32.mrb[0].mxu0
  %v1129 = vadd.f32 0.0, %v1128
  %v1130 = vpop.f32.mrb[0].mxu0
  %v1131 = vpop.f32.mrb[0].mxu0
  %v1132 = vadd.f32 0.0, %v1131
  %v1133 = vpop.f32.mrb[0].mxu0
  %1134 = vmatprep.mubr.bf16.mxu0 0
  %1135 = vmatmul.mubr.bf16.gmra.mrb[0].mxu0 %v665
  %v1136 = vpop.f32.mrb[0].mxu0
  %v1137 = vadd.f32 0.0, %v1136
  %v1138 = vpop.f32.mrb[0].mxu0
  %v1139 = vpop.f32.mrb[0].mxu0
  %v1140 = vadd.f32 0.0, %v1139
  %v1141 = vpop.f32.mrb[0].mxu0
  %1142 = vmatprep.mubr.bf16.mxu0 0
  %1143 = vmatmul.mubr.bf16.gmra.mrb[0].mxu0 %v668
  %v1144 = vpop.f32.mrb[0].mxu0
  %v1145 = vadd.f32 0.0, %v1144
  %v1146 = vpop.f32.mrb[0].mxu0
  %v1147 = vpop.f32.mrb[0].mxu0
  %v1148 = vadd.f32 0.0, %v1147
  %v1149 = vpop.f32.mrb[0].mxu0
  %1150 = vmatprep.mubr.bf16.mxu0 0
  %1151 = vmatmul.mubr.bf16.gmra.mrb[0].mxu0 %v671
  %v1152 = vpop.f32.mrb[0].mxu0
  %v1153 = vadd.f32 0.0, %v1152
  %v1154 = vpop.f32.mrb[0].mxu0
  %v1155 = vpop.f32.mrb[0].mxu0
  %v1156 = vadd.f32 0.0, %v1155
  %v1157 = vpop.f32.mrb[0].mxu0
  %1158 = vmatprep.mubr.bf16.mxu0 0
  %1159 = vmatmul.mubr.bf16.gmra.mrb[0].mxu0 %v674
  %v1160 = vpop.f32.mrb[0].mxu0
  %v1161 = vadd.f32 0.0, %v1160
  %v1162 = vpop.f32.mrb[0].mxu0
  %v1163 = vpop.f32.mrb[0].mxu0
  %v1164 = vadd.f32 0.0, %v1163
  %v1165 = vpop.f32.mrb[0].mxu0
  %1166 = vmatprep.mubr.bf16.mxu0 0
  %1167 = vmatmul.mubr.bf16.gmra.mrb[0].mxu0 %v677
  %v1168 = vpop.f32.mrb[0].mxu0
  %v1169 = vadd.f32 0.0, %v1168
  %v1170 = vpop.f32.mrb[0].mxu0
  %v1171 = vpop.f32.mrb[0].mxu0
  %v1172 = vadd.f32 0.0, %v1171
  %v1173 = vpop.f32.mrb[0].mxu0
  %1174 = vmatprep.mubr.bf16.mxu0 0
  %1175 = vmatmul.mubr.bf16.gmra.mrb[0].mxu0 %v680
  %v1176 = vpop.f32.mrb[0].mxu0
  %v1177 = vadd.f32 0.0, %v1176
  %v1178 = vpop.f32.mrb[0].mxu0
  %v1179 = vpop.f32.mrb[0].mxu0
  %v1180 = vadd.f32 0.0, %v1179
  %v1181 = vpop.f32.mrb[0].mxu0
  %1182 = vmatprep.mubr.bf16.mxu0 0
  %1183 = vmatmul.mubr.bf16.gmra.mrb[0].mxu0 %v683
  %v1184 = vpop.f32.mrb[0].mxu0
  %v1185 = vadd.f32 0.0, %v1184
  %v1186 = vpop.f32.mrb[0].mxu0
  %v1187 = vpop.f32.mrb[0].mxu0
  %v1188 = vadd.f32 0.0, %v1187
  %v1189 = vpop.f32.mrb[0].mxu0
  %1190 = vmatprep.mubr.bf16.mxu0 0
  %1191 = vmatmul.mubr.bf16.gmra.mrb[0].mxu0 %v686
  %v1192 = vpop.f32.mrb[0].mxu0
  %v1193 = vadd.f32 0.0, %v1192
  %v1194 = vpop.f32.mrb[0].mxu0
  %v1195 = vpop.f32.mrb[0].mxu0
  %v1196 = vadd.f32 0.0, %v1195
  %v1197 = vpop.f32.mrb[0].mxu0
  %1198 = vmatprep.mubr.bf16.mxu0 0
  %1199 = vmatmul.mubr.bf16.gmra.mrb[0].mxu0 %v689
  %v1200 = vpop.f32.mrb[0].mxu0
  %v1201 = vadd.f32 0.0, %v1200
  %v1202 = vpop.f32.mrb[0].mxu0
  %v1203 = vpop.f32.mrb[0].mxu0
  %v1204 = vadd.f32 0.0, %v1203
  %v1205 = vpop.f32.mrb[0].mxu0
  %1206 = vmatprep.mubr.bf16.mxu0 0
  %1207 = vmatmul.mubr.bf16.gmra.mrb[0].mxu0 %v692
  %v1208 = vpop.f32.mrb[0].mxu0
  %v1209 = vadd.f32 0.0, %v1208
  %v1210 = vpop.f32.mrb[0].mxu0
  %v1211 = vpop.f32.mrb[0].mxu0
  %v1212 = vadd.f32 0.0, %v1211
  %v1213 = vpop.f32.mrb[0].mxu0
  %1214 = vmatprep.mubr.bf16.mxu0 0
  %1215 = vmatmul.mubr.bf16.gmra.mrb[0].mxu0 %v695
  %v1216 = vpop.f32.mrb[0].mxu0
  %v1217 = vadd.f32 0.0, %v1216
  %v1218 = vpop.f32.mrb[0].mxu0
  %v1219 = vpop.f32.mrb[0].mxu0
  %v1220 = vadd.f32 0.0, %v1219
  %v1221 = vpop.f32.mrb[0].mxu0
  %1222 = vmatprep.mubr.bf16.mxu0 0
  %1223 = vmatmul.mubr.bf16.gmra.mrb[0].mxu0 %v698
  %v1224 = vpop.f32.mrb[0].mxu0
  %v1225 = vadd.f32 0.0, %v1224
  %v1226 = vpop.f32.mrb[0].mxu0
  %v1227 = vpop.f32.mrb[0].mxu0
  %v1228 = vadd.f32 0.0, %v1227
  %v1229 = vpop.f32.mrb[0].mxu0
  %1230 = vmatprep.mubr.bf16.mxu0 0
  %1231 = vmatmul.mubr.bf16.gmra.mrb[0].mxu0 %v701
  %v1232 = vpop.f32.mrb[0].mxu0
  %v1233 = vadd.f32 0.0, %v1232
  %v1234 = vpop.f32.mrb[0].mxu0
  %v1235 = vpop.f32.mrb[0].mxu0
  %v1236 = vadd.f32 0.0, %v1235
  %v1237 = vpop.f32.mrb[0].mxu0
  %1238 = vmatprep.mubr.bf16.mxu0 0
  %1239 = vmatmul.mubr.bf16.gmra.mrb[0].mxu0 %v704
  %v1240 = vpop.f32.mrb[0].mxu0
  %v1241 = vadd.f32 0.0, %v1240
  %v1242 = vpop.f32.mrb[0].mxu0
  %v1243 = vpop.f32.mrb[0].mxu0
  %v1244 = vadd.f32 0.0, %v1243
  %v1245 = vpop.f32.mrb[0].mxu0
  %1246 = vmatprep.mubr.bf16.mxu0 0
  %1247 = vmatmul.mubr.bf16.gmra.mrb[0].mxu0 %v707
  %v1248 = vpop.f32.mrb[0].mxu0
  %v1249 = vadd.f32 0.0, %v1248
  %v1250 = vpop.f32.mrb[0].mxu0
  %v1251 = vpop.f32.mrb[0].mxu0
  %v1252 = vadd.f32 0.0, %v1251
  %v1253 = vpop.f32.mrb[0].mxu0
  %1254 = vmatprep.mubr.bf16.mxu0 0
  %1255 = vmatmul.mubr.bf16.gmra.mrb[0].mxu0 %v710
  %v1256 = vpop.f32.mrb[0].mxu0
  %v1257 = vadd.f32 0.0, %v1256
  %v1258 = vpop.f32.mrb[0].mxu0
  %v1259 = vpop.f32.mrb[0].mxu0
  %v1260 = vadd.f32 0.0, %v1259
  %v1261 = vpop.f32.mrb[0].mxu0
  %1262 = vmatprep.mubr.bf16.mxu0 0
  %1263 = vmatmul.mubr.bf16.gmra.mrb[0].mxu0 %v713
  %v1264 = vpop.f32.mrb[0].mxu0
  %v1265 = vadd.f32 0.0, %v1264
  %v1266 = vpop.f32.mrb[0].mxu0
  %v1267 = vpop.f32.mrb[0].mxu0
  %v1268 = vadd.f32 0.0, %v1267
  %v1269 = vpop.f32.mrb[0].mxu0
  %1270 = vmatprep.mubr.bf16.mxu0 0
  %1271 = vmatmul.mubr.bf16.gmra.mrb[0].mxu0 %v716
  %v1272 = vpop.f32.mrb[0].mxu0
  %v1273 = vadd.f32 0.0, %v1272
  %v1274 = vpop.f32.mrb[0].mxu0
  %v1275 = vpop.f32.mrb[0].mxu0
  %v1276 = vadd.f32 0.0, %v1275
  %v1277 = vpop.f32.mrb[0].mxu0
  %1278 = vmatprep.mubr.bf16.mxu0 0
  %1279 = vmatmul.mubr.bf16.gmra.mrb[0].mxu0 %v719
  %v1280 = vpop.f32.mrb[0].mxu0
  %v1281 = vadd.f32 0.0, %v1280
  %v1282 = vpop.f32.mrb[0].mxu0
  %v1283 = vpop.f32.mrb[0].mxu0
  %v1284 = vadd.f32 0.0, %v1283
  %v1285 = vpop.f32.mrb[0].mxu0
  %1286 = vmatprep.mubr.bf16.mxu0 0
  %1287 = vmatmul.mubr.bf16.gmra.mrb[0].mxu0 %v722
  %v1288 = vpop.f32.mrb[0].mxu0
  %v1289 = vadd.f32 0.0, %v1288
  %v1290 = vpop.f32.mrb[0].mxu0
  %v1291 = vpop.f32.mrb[0].mxu0
  %v1292 = vadd.f32 0.0, %v1291
  %v1293 = vpop.f32.mrb[0].mxu0
  %1294 = vmatprep.mubr.bf16.mxu0 0
  %1295 = vmatmul.mubr.bf16.gmra.mrb[0].mxu0 %v725
  %v1296 = vpop.f32.mrb[0].mxu0
  %v1297 = vadd.f32 0.0, %v1296
  %v1298 = vpop.f32.mrb[0].mxu0
  %v1299 = vpop.f32.mrb[0].mxu0
  %v1300 = vadd.f32 0.0, %v1299
  %v1301 = vpop.f32.mrb[0].mxu0
  %1302 = vmatprep.mubr.bf16.mxu0 0
  %1303 = vmatmul.mubr.bf16.gmra.mrb[0].mxu0 %v728
  %v1304 = vpop.f32.mrb[0].mxu0
  %v1305 = vadd.f32 0.0, %v1304
  %v1306 = vpop.f32.mrb[0].mxu0
  %v1307 = vpop.f32.mrb[0].mxu0
  %v1308 = vadd.f32 0.0, %v1307
  %v1309 = vpop.f32.mrb[0].mxu0
  %1310 = vmatprep.mubr.bf16.mxu0 0
  %1311 = vmatmul.mubr.bf16.gmra.mrb[0].mxu0 %v731
  %v1312 = vpop.f32.mrb[0].mxu0
  %v1313 = vadd.f32 0.0, %v1312
  %v1314 = vpop.f32.mrb[0].mxu0
  %v1315 = vpop.f32.mrb[0].mxu0
  %v1316 = vadd.f32 0.0, %v1315
  %v1317 = vpop.f32.mrb[0].mxu0
  %1318 = vmatprep.mubr.bf16.mxu0 0
  %1319 = vmatmul.mubr.bf16.gmra.mrb[0].mxu0 %v734
  %v1320 = vpop.f32.mrb[0].mxu0
  %v1321 = vadd.f32 0.0, %v1320
  %v1322 = vpop.f32.mrb[0].mxu0
  %v1323 = vpop.f32.mrb[0].mxu0
  %v1324 = vadd.f32 0.0, %v1323
  %v1325 = vpop.f32.mrb[0].mxu0
  %1326 = vmatprep.mubr.bf16.mxu0 0
  %1327 = vmatmul.mubr.bf16.gmra.mrb[0].mxu0 %v737
  %v1328 = vpop.f32.mrb[0].mxu0
  %v1329 = vadd.f32 0.0, %v1328
  %v1330 = vpop.f32.mrb[0].mxu0
  %v1331 = vpop.f32.mrb[0].mxu0
  %v1332 = vadd.f32 0.0, %v1331
  %v1333 = vpop.f32.mrb[0].mxu0
  %1334 = vmatprep.mubr.bf16.mxu0 0
  %1335 = vmatmul.mubr.bf16.gmra.mrb[0].mxu0 %v740
  %v1336 = vpop.f32.mrb[0].mxu0
  %v1337 = vadd.f32 0.0, %v1336
  %v1338 = vpop.f32.mrb[0].mxu0
  %v1339 = vpop.f32.mrb[0].mxu0
  %v1340 = vadd.f32 0.0, %v1339
  %v1341 = vpop.f32.mrb[0].mxu0
  %1342 = vmatprep.mubr.bf16.mxu0 0
  %1343 = vmatmul.mubr.bf16.gmra.mrb[0].mxu0 %v743
  %v1344 = vpop.f32.mrb[0].mxu0
  %v1345 = vadd.f32 0.0, %v1344
  %v1346 = vpop.f32.mrb[0].mxu0
  %v1347 = vpop.f32.mrb[0].mxu0
  %v1348 = vadd.f32 0.0, %v1347
  %v1349 = vpop.f32.mrb[0].mxu0
  %1350 = vmatprep.mubr.bf16.mxu0 0
  %1351 = vmatmul.mubr.bf16.gmra.mrb[0].mxu0 %v746
  %v1352 = vpop.f32.mrb[0].mxu0
  %v1353 = vadd.f32 0.0, %v1352
  %v1354 = vpop.f32.mrb[0].mxu0
  %v1355 = vpop.f32.mrb[0].mxu0
  %v1356 = vadd.f32 0.0, %v1355
  %v1357 = vpop.f32.mrb[0].mxu0
  %1358 = vmatprep.mubr.bf16.mxu0 0
  %1359 = vmatmul.mubr.bf16.gmra.mrb[0].mxu0 %v749
  %v1360 = vpop.f32.mrb[0].mxu0
  %v1361 = vadd.f32 0.0, %v1360
  %v1362 = vpop.f32.mrb[0].mxu0
  %v1363 = vpop.f32.mrb[0].mxu0
  %v1364 = vadd.f32 0.0, %v1363
  %v1365 = vpop.f32.mrb[0].mxu0
  %1366 = vdwg.mxu0
  %vm1367 = vcmask 523264
  %v1368 = vsel %vm1367, %v793, -inf
  %v1369 = vsel %vm1367, %v937, -inf
  %v1370 = vmax.f32 %v1368, %v1369
  %v1371 = vsel %vm1367, %v1081, -inf
  %v1372 = vmax.f32 %v1370, %v1371
  %v1373 = vsel %vm1367, %v1225, -inf
  %v1374 = vmax.f32 %v1372, %v1373
  %v1375 = vsel %vm1367, %v796, -inf
  %v1376 = vsel %vm1367, %v940, -inf
  %v1377 = vmax.f32 %v1375, %v1376
  %v1378 = vsel %vm1367, %v1084, -inf
  %v1379 = vmax.f32 %v1377, %v1378
  %v1380 = vsel %vm1367, %v1228, -inf
  %v1381 = vmax.f32 %v1379, %v1380
  %v1382 = vsel %vm1367, %v801, -inf
  %v1383 = vsel %vm1367, %v945, -inf
  %v1384 = vmax.f32 %v1382, %v1383
  %v1385 = vsel %vm1367, %v1089, -inf
  %v1386 = vmax.f32 %v1384, %v1385
  %v1387 = vsel %vm1367, %v1233, -inf
  %v1388 = vmax.f32 %v1386, %v1387
  %v1389 = vsel %vm1367, %v804, -inf
  %v1390 = vsel %vm1367, %v948, -inf
  %v1391 = vmax.f32 %v1389, %v1390
  %v1392 = vsel %vm1367, %v1092, -inf
  %v1393 = vmax.f32 %v1391, %v1392
  %v1394 = vsel %vm1367, %v1236, -inf
  %v1395 = vmax.f32 %v1393, %v1394
  %v1396 = vsel %vm1367, %v809, -inf
  %v1397 = vsel %vm1367, %v953, -inf
  %v1398 = vmax.f32 %v1396, %v1397
  %v1399 = vsel %vm1367, %v1097, -inf
  %v1400 = vmax.f32 %v1398, %v1399
  %v1401 = vsel %vm1367, %v1241, -inf
  %v1402 = vmax.f32 %v1400, %v1401
  %v1403 = vsel %vm1367, %v812, -inf
  %v1404 = vsel %vm1367, %v956, -inf
  %v1405 = vmax.f32 %v1403, %v1404
  %v1406 = vsel %vm1367, %v1100, -inf
  %v1407 = vmax.f32 %v1405, %v1406
  %v1408 = vsel %vm1367, %v1244, -inf
  %v1409 = vmax.f32 %v1407, %v1408
  %v1410 = vsel %vm1367, %v817, -inf
  %v1411 = vsel %vm1367, %v961, -inf
  %v1412 = vmax.f32 %v1410, %v1411
  %v1413 = vsel %vm1367, %v1105, -inf
  %v1414 = vmax.f32 %v1412, %v1413
  %v1415 = vsel %vm1367, %v1249, -inf
  %v1416 = vmax.f32 %v1414, %v1415
  %v1417 = vsel %vm1367, %v820, -inf
  %v1418 = vsel %vm1367, %v964, -inf
  %v1419 = vmax.f32 %v1417, %v1418
  %v1420 = vsel %vm1367, %v1108, -inf
  %v1421 = vmax.f32 %v1419, %v1420
  %v1422 = vsel %vm1367, %v1252, -inf
  %v1423 = vmax.f32 %v1421, %v1422
  %v1424 = vsel %vm1367, %v825, -inf
  %v1425 = vsel %vm1367, %v969, -inf
  %v1426 = vmax.f32 %v1424, %v1425
  %v1427 = vsel %vm1367, %v1113, -inf
  %v1428 = vmax.f32 %v1426, %v1427
  %v1429 = vsel %vm1367, %v1257, -inf
  %v1430 = vmax.f32 %v1428, %v1429
  %v1431 = vsel %vm1367, %v828, -inf
  %v1432 = vsel %vm1367, %v972, -inf
  %v1433 = vmax.f32 %v1431, %v1432
  %v1434 = vsel %vm1367, %v1116, -inf
  %v1435 = vmax.f32 %v1433, %v1434
  %v1436 = vsel %vm1367, %v1260, -inf
  %v1437 = vmax.f32 %v1435, %v1436
  %v1438 = vsel %vm1367, %v833, -inf
  %v1439 = vsel %vm1367, %v977, -inf
  %v1440 = vmax.f32 %v1438, %v1439
  %v1441 = vsel %vm1367, %v1121, -inf
  %v1442 = vmax.f32 %v1440, %v1441
  %v1443 = vsel %vm1367, %v1265, -inf
  %v1444 = vmax.f32 %v1442, %v1443
  %v1445 = vsel %vm1367, %v836, -inf
  %v1446 = vsel %vm1367, %v980, -inf
  %v1447 = vmax.f32 %v1445, %v1446
  %v1448 = vsel %vm1367, %v1124, -inf
  %v1449 = vmax.f32 %v1447, %v1448
  %v1450 = vsel %vm1367, %v1268, -inf
  %v1451 = vmax.f32 %v1449, %v1450
  %v1452 = vsel %vm1367, %v841, -inf
  %v1453 = vsel %vm1367, %v985, -inf
  %v1454 = vmax.f32 %v1452, %v1453
  %v1455 = vsel %vm1367, %v1129, -inf
  %v1456 = vmax.f32 %v1454, %v1455
  %v1457 = vsel %vm1367, %v1273, -inf
  %v1458 = vmax.f32 %v1456, %v1457
  %v1459 = vsel %vm1367, %v844, -inf
  %v1460 = vsel %vm1367, %v988, -inf
  %v1461 = vmax.f32 %v1459, %v1460
  %v1462 = vsel %vm1367, %v1132, -inf
  %v1463 = vmax.f32 %v1461, %v1462
  %v1464 = vsel %vm1367, %v1276, -inf
  %v1465 = vmax.f32 %v1463, %v1464
  %v1466 = vsel %vm1367, %v849, -inf
  %v1467 = vsel %vm1367, %v993, -inf
  %v1468 = vmax.f32 %v1466, %v1467
  %v1469 = vsel %vm1367, %v1137, -inf
  %v1470 = vmax.f32 %v1468, %v1469
  %v1471 = vsel %vm1367, %v1281, -inf
  %v1472 = vmax.f32 %v1470, %v1471
  %v1473 = vsel %vm1367, %v852, -inf
  %v1474 = vsel %vm1367, %v996, -inf
  %v1475 = vmax.f32 %v1473, %v1474
  %v1476 = vsel %vm1367, %v1140, -inf
  %v1477 = vmax.f32 %v1475, %v1476
  %v1478 = vsel %vm1367, %v1284, -inf
  %v1479 = vmax.f32 %v1477, %v1478
  %v1480 = vsel %vm1367, %v857, -inf
  %v1481 = vsel %vm1367, %v1001, -inf
  %v1482 = vmax.f32 %v1480, %v1481
  %v1483 = vsel %vm1367, %v1145, -inf
  %v1484 = vmax.f32 %v1482, %v1483
  %v1485 = vsel %vm1367, %v1289, -inf
  %v1486 = vmax.f32 %v1484, %v1485
  %v1487 = vsel %vm1367, %v860, -inf
  %v1488 = vsel %vm1367, %v1004, -inf
  %v1489 = vmax.f32 %v1487, %v1488
  %v1490 = vsel %vm1367, %v1148, -inf
  %v1491 = vmax.f32 %v1489, %v1490
  %v1492 = vsel %vm1367, %v1292, -inf
  %v1493 = vmax.f32 %v1491, %v1492
  %v1494 = vsel %vm1367, %v865, -inf
  %v1495 = vsel %vm1367, %v1009, -inf
  %v1496 = vmax.f32 %v1494, %v1495
  %v1497 = vsel %vm1367, %v1153, -inf
  %v1498 = vmax.f32 %v1496, %v1497
  %v1499 = vsel %vm1367, %v1297, -inf
  %v1500 = vmax.f32 %v1498, %v1499
  %v1501 = vsel %vm1367, %v868, -inf
  %v1502 = vsel %vm1367, %v1012, -inf
  %v1503 = vmax.f32 %v1501, %v1502
  %v1504 = vsel %vm1367, %v1156, -inf
  %v1505 = vmax.f32 %v1503, %v1504
  %v1506 = vsel %vm1367, %v1300, -inf
  %v1507 = vmax.f32 %v1505, %v1506
  %v1508 = vsel %vm1367, %v873, -inf
  %v1509 = vsel %vm1367, %v1017, -inf
  %v1510 = vmax.f32 %v1508, %v1509
  %v1511 = vsel %vm1367, %v1161, -inf
  %v1512 = vmax.f32 %v1510, %v1511
  %v1513 = vsel %vm1367, %v1305, -inf
  %v1514 = vmax.f32 %v1512, %v1513
  %v1515 = vsel %vm1367, %v876, -inf
  %v1516 = vsel %vm1367, %v1020, -inf
  %v1517 = vmax.f32 %v1515, %v1516
  %v1518 = vsel %vm1367, %v1164, -inf
  %v1519 = vmax.f32 %v1517, %v1518
  %v1520 = vsel %vm1367, %v1308, -inf
  %v1521 = vmax.f32 %v1519, %v1520
  %v1522 = vsel %vm1367, %v881, -inf
  %v1523 = vsel %vm1367, %v1025, -inf
  %v1524 = vmax.f32 %v1522, %v1523
  %v1525 = vsel %vm1367, %v1169, -inf
  %v1526 = vmax.f32 %v1524, %v1525
  %v1527 = vsel %vm1367, %v1313, -inf
  %v1528 = vmax.f32 %v1526, %v1527
  %v1529 = vsel %vm1367, %v884, -inf
  %v1530 = vsel %vm1367, %v1028, -inf
  %v1531 = vmax.f32 %v1529, %v1530
  %v1532 = vsel %vm1367, %v1172, -inf
  %v1533 = vmax.f32 %v1531, %v1532
  %v1534 = vsel %vm1367, %v1316, -inf
  %v1535 = vmax.f32 %v1533, %v1534
  %v1536 = vsel %vm1367, %v889, -inf
  %v1537 = vsel %vm1367, %v1033, -inf
  %v1538 = vmax.f32 %v1536, %v1537
  %v1539 = vsel %vm1367, %v1177, -inf
  %v1540 = vmax.f32 %v1538, %v1539
  %v1541 = vsel %vm1367, %v1321, -inf
  %v1542 = vmax.f32 %v1540, %v1541
  %v1543 = vsel %vm1367, %v892, -inf
  %v1544 = vsel %vm1367, %v1036, -inf
  %v1545 = vmax.f32 %v1543, %v1544
  %v1546 = vsel %vm1367, %v1180, -inf
  %v1547 = vmax.f32 %v1545, %v1546
  %v1548 = vsel %vm1367, %v1324, -inf
  %v1549 = vmax.f32 %v1547, %v1548
  %v1550 = vsel %vm1367, %v897, -inf
  %v1551 = vsel %vm1367, %v1041, -inf
  %v1552 = vmax.f32 %v1550, %v1551
  %v1553 = vsel %vm1367, %v1185, -inf
  %v1554 = vmax.f32 %v1552, %v1553
  %v1555 = vsel %vm1367, %v1329, -inf
  %v1556 = vmax.f32 %v1554, %v1555
  %v1557 = vsel %vm1367, %v900, -inf
  %v1558 = vsel %vm1367, %v1044, -inf
  %v1559 = vmax.f32 %v1557, %v1558
  %v1560 = vsel %vm1367, %v1188, -inf
  %v1561 = vmax.f32 %v1559, %v1560
  %v1562 = vsel %vm1367, %v1332, -inf
  %v1563 = vmax.f32 %v1561, %v1562
  %v1564 = vsel %vm1367, %v905, -inf
  %v1565 = vsel %vm1367, %v1049, -inf
  %v1566 = vmax.f32 %v1564, %v1565
  %v1567 = vsel %vm1367, %v1193, -inf
  %v1568 = vmax.f32 %v1566, %v1567
  %v1569 = vsel %vm1367, %v1337, -inf
  %v1570 = vmax.f32 %v1568, %v1569
  %v1571 = vsel %vm1367, %v908, -inf
  %v1572 = vsel %vm1367, %v1052, -inf
  %v1573 = vmax.f32 %v1571, %v1572
  %v1574 = vsel %vm1367, %v1196, -inf
  %v1575 = vmax.f32 %v1573, %v1574
  %v1576 = vsel %vm1367, %v1340, -inf
  %v1577 = vmax.f32 %v1575, %v1576
  %v1578 = vsel %vm1367, %v913, -inf
  %v1579 = vsel %vm1367, %v1057, -inf
  %v1580 = vmax.f32 %v1578, %v1579
  %v1581 = vsel %vm1367, %v1201, -inf
  %v1582 = vmax.f32 %v1580, %v1581
  %v1583 = vsel %vm1367, %v1345, -inf
  %v1584 = vmax.f32 %v1582, %v1583
  %v1585 = vsel %vm1367, %v916, -inf
  %v1586 = vsel %vm1367, %v1060, -inf
  %v1587 = vmax.f32 %v1585, %v1586
  %v1588 = vsel %vm1367, %v1204, -inf
  %v1589 = vmax.f32 %v1587, %v1588
  %v1590 = vsel %vm1367, %v1348, -inf
  %v1591 = vmax.f32 %v1589, %v1590
  %v1592 = vsel %vm1367, %v921, -inf
  %v1593 = vsel %vm1367, %v1065, -inf
  %v1594 = vmax.f32 %v1592, %v1593
  %v1595 = vsel %vm1367, %v1209, -inf
  %v1596 = vmax.f32 %v1594, %v1595
  %v1597 = vsel %vm1367, %v1353, -inf
  %v1598 = vmax.f32 %v1596, %v1597
  %v1599 = vsel %vm1367, %v924, -inf
  %v1600 = vsel %vm1367, %v1068, -inf
  %v1601 = vmax.f32 %v1599, %v1600
  %v1602 = vsel %vm1367, %v1212, -inf
  %v1603 = vmax.f32 %v1601, %v1602
  %v1604 = vsel %vm1367, %v1356, -inf
  %v1605 = vmax.f32 %v1603, %v1604
  %v1606 = vsel %vm1367, %v929, -inf
  %v1607 = vsel %vm1367, %v1073, -inf
  %v1608 = vmax.f32 %v1606, %v1607
  %v1609 = vsel %vm1367, %v1217, -inf
  %v1610 = vmax.f32 %v1608, %v1609
  %v1611 = vsel %vm1367, %v1361, -inf
  %v1612 = vmax.f32 %v1610, %v1611
  %v1613 = vsel %vm1367, %v932, -inf
  %v1614 = vsel %vm1367, %v1076, -inf
  %v1615 = vmax.f32 %v1613, %v1614
  %v1616 = vsel %vm1367, %v1220, -inf
  %v1617 = vmax.f32 %v1615, %v1616
  %v1618 = vsel %vm1367, %v1364, -inf
  %v1619 = vmax.f32 %v1617, %v1618
  %v1620 = vld [vmem:[%s2] sm:$0x1]
  %v1622 = vlaneseq
  %v1623 = vshrl.u32 %v1622, 7
  %v1624 = vsub.s32 0, %v1623
  %v1625 = vrot.slane %v1620, %v1624
  %v1627 = vadd.f32 %v1374, %v1625
  %v1628 = vadd.f32 %v1381, %v1625
  %v1629 = vadd.f32 %v1388, %v1625
  %v1630 = vadd.f32 %v1395, %v1625
  %v1631 = vadd.f32 %v1402, %v1625
  %v1632 = vadd.f32 %v1409, %v1625
  %v1633 = vadd.f32 %v1416, %v1625
  %v1634 = vadd.f32 %v1423, %v1625
  %v1635 = vadd.f32 %v1430, %v1625
  %v1636 = vadd.f32 %v1437, %v1625
  %v1637 = vadd.f32 %v1444, %v1625
  %v1638 = vadd.f32 %v1451, %v1625
  %v1639 = vadd.f32 %v1458, %v1625
  %v1640 = vadd.f32 %v1465, %v1625
  %v1641 = vadd.f32 %v1472, %v1625
  %v1642 = vadd.f32 %v1479, %v1625
  %v1643 = vadd.f32 %v1486, %v1625
  %v1644 = vadd.f32 %v1493, %v1625
  %v1645 = vadd.f32 %v1500, %v1625
  %v1646 = vadd.f32 %v1507, %v1625
  %v1647 = vadd.f32 %v1514, %v1625
  %v1648 = vadd.f32 %v1521, %v1625
  %v1649 = vadd.f32 %v1528, %v1625
  %v1650 = vadd.f32 %v1535, %v1625
  %v1651 = vadd.f32 %v1542, %v1625
  %v1652 = vadd.f32 %v1549, %v1625
  %v1653 = vadd.f32 %v1556, %v1625
  %v1654 = vadd.f32 %v1563, %v1625
  %v1655 = vadd.f32 %v1570, %v1625
  %v1656 = vadd.f32 %v1577, %v1625
  %v1657 = vadd.f32 %v1584, %v1625
  %v1658 = vadd.f32 %v1591, %v1625
  %v1659 = vadd.f32 %v1598, %v1625
  %v1660 = vadd.f32 %v1605, %v1625
  %v1661 = vadd.f32 %v1612, %v1625
  %v1662 = vadd.f32 %v1619, %v1625
  %v1663 = vmax.f32 %v1627, 0.0
  %v1664 = vmax.f32 %v1628, 0.0
  %v1665 = vmax.f32 %v1629, 0.0
  %v1666 = vmax.f32 %v1630, 0.0
  %v1667 = vmax.f32 %v1631, 0.0
  %v1668 = vmax.f32 %v1632, 0.0
  %v1669 = vmax.f32 %v1633, 0.0
  %v1670 = vmax.f32 %v1634, 0.0
  %v1671 = vmax.f32 %v1635, 0.0
  %v1672 = vmax.f32 %v1636, 0.0
  %v1673 = vmax.f32 %v1637, 0.0
  %v1674 = vmax.f32 %v1638, 0.0
  %v1675 = vmax.f32 %v1639, 0.0
  %v1676 = vmax.f32 %v1640, 0.0
  %v1677 = vmax.f32 %v1641, 0.0
  %v1678 = vmax.f32 %v1642, 0.0
  %v1679 = vmax.f32 %v1643, 0.0
  %v1680 = vmax.f32 %v1644, 0.0
  %v1681 = vmax.f32 %v1645, 0.0
  %v1682 = vmax.f32 %v1646, 0.0
  %v1683 = vmax.f32 %v1647, 0.0
  %v1684 = vmax.f32 %v1648, 0.0
  %v1685 = vmax.f32 %v1649, 0.0
  %v1686 = vmax.f32 %v1650, 0.0
  %v1687 = vmax.f32 %v1651, 0.0
  %v1688 = vmax.f32 %v1652, 0.0
  %v1689 = vmax.f32 %v1653, 0.0
  %v1690 = vmax.f32 %v1654, 0.0
  %v1691 = vmax.f32 %v1655, 0.0
  %v1692 = vmax.f32 %v1656, 0.0
  %v1693 = vmax.f32 %v1657, 0.0
  %v1694 = vmax.f32 %v1658, 0.0
  %v1695 = vmax.f32 %v1659, 0.0
  %v1696 = vmax.f32 %v1660, 0.0
  %v1697 = vmax.f32 %v1661, 0.0
  %v1698 = vmax.f32 %v1662, 0.0
  %v1699 = vpack.c.bf16 %v1664, %v1663
  %v1700 = vpack.c.bf16 %v1666, %v1665
  %v1701 = vpack.c.bf16 %v1668, %v1667
  %v1702 = vpack.c.bf16 %v1670, %v1669
  %v1703 = vpack.c.bf16 %v1672, %v1671
  %v1704 = vpack.c.bf16 %v1674, %v1673
  %v1705 = vpack.c.bf16 %v1676, %v1675
  %v1706 = vpack.c.bf16 %v1678, %v1677
  %v1707 = vpack.c.bf16 %v1680, %v1679
  %v1708 = vpack.c.bf16 %v1682, %v1681
  %v1709 = vpack.c.bf16 %v1684, %v1683
  %v1710 = vpack.c.bf16 %v1686, %v1685
  %v1711 = vpack.c.bf16 %v1688, %v1687
  %v1712 = vpack.c.bf16 %v1690, %v1689
  %v1713 = vpack.c.bf16 %v1692, %v1691
  %v1714 = vpack.c.bf16 %v1694, %v1693
  %v1715 = vpack.c.bf16 %v1696, %v1695
  %v1716 = vpack.c.bf16 %v1698, %v1697
  %v1735 = vunpack.c.l.b16 %v1699
  %v1736 = vunpack.c.h.b16 %v1699
  %v1737 = vunpack.c.l.b16 %v1700
  %v1738 = vunpack.c.h.b16 %v1700
  %v1739 = vunpack.c.l.b16 %v1701
  %v1740 = vunpack.c.h.b16 %v1701
  %v1741 = vunpack.c.l.b16 %v1702
  %v1742 = vunpack.c.h.b16 %v1702
  %v1743 = vunpack.c.l.b16 %v1703
  %v1744 = vunpack.c.h.b16 %v1703
  %v1745 = vunpack.c.l.b16 %v1704
  %v1746 = vunpack.c.h.b16 %v1704
  %v1747 = vunpack.c.l.b16 %v1705
  %v1748 = vunpack.c.h.b16 %v1705
  %v1749 = vunpack.c.l.b16 %v1706
  %v1750 = vunpack.c.h.b16 %v1706
  %v1751 = vunpack.c.l.b16 %v1707
  %v1752 = vunpack.c.h.b16 %v1707
  %v1753 = vunpack.c.l.b16 %v1708
  %v1754 = vunpack.c.h.b16 %v1708
  %v1755 = vunpack.c.l.b16 %v1709
  %v1756 = vunpack.c.h.b16 %v1709
  %v1757 = vunpack.c.l.b16 %v1710
  %v1758 = vunpack.c.h.b16 %v1710
  %v1759 = vunpack.c.l.b16 %v1711
  %v1760 = vunpack.c.h.b16 %v1711
  %v1761 = vunpack.c.l.b16 %v1712
  %v1762 = vunpack.c.h.b16 %v1712
  %v1763 = vunpack.c.l.b16 %v1713
  %v1764 = vunpack.c.h.b16 %v1713
  %v1765 = vunpack.c.l.b16 %v1714
  %v1766 = vunpack.c.h.b16 %v1714
  %v1767 = vunpack.c.l.b16 %v1715
  %v1768 = vunpack.c.h.b16 %v1715
  %v1769 = vunpack.c.l.b16 %v1716
  %v1770 = vunpack.c.h.b16 %v1716
  %v1771 = vpack.c.b16 %v1735, %v1735
  %v1772 = vpack.c.b16 %v1736, %v1736
  %v1773 = vpack.c.b16 %v1737, %v1737
  %v1774 = vpack.c.b16 %v1738, %v1738
  %v1775 = vpack.c.b16 %v1739, %v1739
  %v1776 = vpack.c.b16 %v1740, %v1740
  %v1777 = vpack.c.b16 %v1741, %v1741
  %v1778 = vpack.c.b16 %v1742, %v1742
  %v1779 = vpack.c.b16 %v1743, %v1743
  %v1780 = vpack.c.b16 %v1744, %v1744
  %v1781 = vpack.c.b16 %v1745, %v1745
  %v1782 = vpack.c.b16 %v1746, %v1746
  %v1783 = vpack.c.b16 %v1747, %v1747
  %v1784 = vpack.c.b16 %v1748, %v1748
  %v1785 = vpack.c.b16 %v1749, %v1749
  %v1786 = vpack.c.b16 %v1750, %v1750
  %v1787 = vpack.c.b16 %v1751, %v1751
  %v1788 = vpack.c.b16 %v1752, %v1752
  %v1789 = vpack.c.b16 %v1753, %v1753
  %v1790 = vpack.c.b16 %v1754, %v1754
  %v1791 = vpack.c.b16 %v1755, %v1755
  %v1792 = vpack.c.b16 %v1756, %v1756
  %v1793 = vpack.c.b16 %v1757, %v1757
  %v1794 = vpack.c.b16 %v1758, %v1758
  %v1795 = vpack.c.b16 %v1759, %v1759
  %v1796 = vpack.c.b16 %v1760, %v1760
  %v1797 = vpack.c.b16 %v1761, %v1761
  %v1798 = vpack.c.b16 %v1762, %v1762
  %v1799 = vpack.c.b16 %v1763, %v1763
  %v1800 = vpack.c.b16 %v1764, %v1764
  %v1801 = vpack.c.b16 %v1765, %v1765
  %v1802 = vpack.c.b16 %v1766, %v1766
  %v1803 = vpack.c.b16 %v1767, %v1767
  %v1804 = vpack.c.b16 %v1768, %v1768
  %v1805 = vpack.c.b16 %v1769, %v1769
  %v1806 = vpack.c.b16 %v1770, %v1770
  %vm1843 = vcmask 519168
  %1844 = vst.msk [vmem:[%s3] sm:$0xf] %vm1843, %v1771
  %1845 = vst.msk [vmem:[%s3 + $0x4] sm:$0xf] %vm1843, %v1772
  %1846 = vst.msk [vmem:[%s3 + $0x8] sm:$0xf] %vm1843, %v1773
  %1847 = vst.msk [vmem:[%s3 + $0xc] sm:$0xf] %vm1843, %v1774
  %1848 = vst.msk [vmem:[%s3 + $0x10] sm:$0xf] %vm1843, %v1775
  %1849 = vst.msk [vmem:[%s3 + $0x14] sm:$0xf] %vm1843, %v1776
  %1850 = vst.msk [vmem:[%s3 + $0x18] sm:$0xf] %vm1843, %v1777
  %1851 = vst.msk [vmem:[%s3 + $0x1c] sm:$0xf] %vm1843, %v1778
  %1852 = vst.msk [vmem:[%s3 + $0x20] sm:$0xf] %vm1843, %v1779
  %1853 = vst.msk [vmem:[%s3 + $0x24] sm:$0xf] %vm1843, %v1780
  %1854 = vst.msk [vmem:[%s3 + $0x28] sm:$0xf] %vm1843, %v1781
  %1855 = vst.msk [vmem:[%s3 + $0x2c] sm:$0xf] %vm1843, %v1782
  %1856 = vst.msk [vmem:[%s3 + $0x30] sm:$0xf] %vm1843, %v1783
  %1857 = vst.msk [vmem:[%s3 + $0x34] sm:$0xf] %vm1843, %v1784
  %1858 = vst.msk [vmem:[%s3 + $0x38] sm:$0xf] %vm1843, %v1785
  %1859 = vst.msk [vmem:[%s3 + $0x3c] sm:$0xf] %vm1843, %v1786
  %1860 = vst.msk [vmem:[%s3 + $0x40] sm:$0xf] %vm1843, %v1787
  %1861 = vst.msk [vmem:[%s3 + $0x44] sm:$0xf] %vm1843, %v1788
  %1862 = vst.msk [vmem:[%s3 + $0x48] sm:$0xf] %vm1843, %v1789
  %1863 = vst.msk [vmem:[%s3 + $0x4c] sm:$0xf] %vm1843, %v1790
  %1864 = vst.msk [vmem:[%s3 + $0x50] sm:$0xf] %vm1843, %v1791
  %1865 = vst.msk [vmem:[%s3 + $0x54] sm:$0xf] %vm1843, %v1792
  %1866 = vst.msk [vmem:[%s3 + $0x58] sm:$0xf] %vm1843, %v1793
  %1867 = vst.msk [vmem:[%s3 + $0x5c] sm:$0xf] %vm1843, %v1794
  %1868 = vst.msk [vmem:[%s3 + $0x60] sm:$0xf] %vm1843, %v1795
  %1869 = vst.msk [vmem:[%s3 + $0x64] sm:$0xf] %vm1843, %v1796
  %1870 = vst.msk [vmem:[%s3 + $0x68] sm:$0xf] %vm1843, %v1797
  %1871 = vst.msk [vmem:[%s3 + $0x6c] sm:$0xf] %vm1843, %v1798
  %1872 = vst.msk [vmem:[%s3 + $0x70] sm:$0xf] %vm1843, %v1799
  %1873 = vst.msk [vmem:[%s3 + $0x74] sm:$0xf] %vm1843, %v1800
  %1874 = vst.msk [vmem:[%s3 + $0x78] sm:$0xf] %vm1843, %v1801
  %1875 = vst.msk [vmem:[%s3 + $0x7c] sm:$0xf] %vm1843, %v1802
  %1876 = vst.msk [vmem:[%s3 + $0x80] sm:$0xf] %vm1843, %v1803
  %1877 = vst.msk [vmem:[%s3 + $0x84] sm:$0xf] %vm1843, %v1804
  %1878 = vst.msk [vmem:[%s3 + $0x88] sm:$0xf] %vm1843, %v1805
  %1879 = vst.msk [vmem:[%s3 + $0x8c] sm:$0xf] %vm1843, %v1806
  // Predicated region
  $region14: #{cnn_forward.2} parent=0 // pred_check
    _
  $region15: #{cnn_forward.2} parent=0 // pred_check_branch
    %1881 = sbr.rel (0) target = $region17
  $region16: #{cnn_forward.2} parent=0 // pred_region
    _
  $region17: #{cnn_forward.2} parent=0 // pred_fallthru
    _
  // Predicated region
  $region18: #{cnn_forward.2} parent=0 // pred_check
    _
  $region19: #{cnn_forward.2} parent=0 // pred_check_branch
    %1883 = sbr.rel (0) target = $region21
  $region20: #{cnn_forward.2} parent=0 // pred_region
    _
  $region21: #{cnn_forward.2} parent=0 // pred_fallthru
    _

// kernel: cnn_forward.3
$region0: #{cnn_forward.3}
  #allocation0 [shape = 'u32[]', space=smem, size = 0x4, offset = 0x4, fixed_abs, tag = 'smem constant byte address 0x4 - core index']
  #allocation1 [shape = 'u32[144,128]{1,0:T(1,128)}', space=vmem, size = 0x12000, scoped, tag = 'internal scratch']
  %s0 = inlined_call_operand.vmem [shape: bf16[2,6,6,64], index: 0, kind: input, shape index: {}]
  %s1 = inlined_call_operand.vmem [shape: bf16[2,6,6,64], index: 1, kind: input, shape index: {}]
  %s2 = inlined_call_operand.vmem [shape: bf16[2,6,6,64], index: 2, kind: input, shape index: {}]
  %s3 = inlined_call_operand.vmem [shape: bf16[2,6,6,64], index: 3, kind: input, shape index: {}]
  %s4 = inlined_call_operand.vmem [shape: bf16[25,64,128], index: 4, kind: input, shape index: {}]
  %s5 = inlined_call_operand.vmem [shape: f32[1,128], index: 5, kind: input, shape index: {}]
  %s6 = inlined_call_operand.vmem [shape: bf16[16,128,128], index: 6, kind: input, shape index: {}]
  %s7 = inlined_call_operand.vmem [shape: f32[1,128], index: 7, kind: input, shape index: {}]
  %s8 = inlined_call_operand.hbm [shape: f32[2,128], index: 8, kind: output, shape index: {}]
  %s9 = sld [smem:[#allocation0]]
  $region42: #{cnn_forward.3} parent=0
    _
  %s11 = ssub.s32 1, %s9
  %s12 = scalar_select 0, %s11, %s9
  $region1: #{cnn_forward.3} parent=0
    #allocation2 [shape = 'u8[1024]{0}', space=vmem, size = 0x400, scoped, tag = 'output window, operand 0, single buffered']
    #allocation3 [shape = 's32[1]{0}', space=sflag, size = 0x4, scoped, tag = 'scoped memory for cnn_forward.3']
    %13 = vsyncpa [#allocation3], 0
    // Predicated region
    $region2: #{cnn_forward.3} parent=1 // pred_check
      _
    $region3: #{cnn_forward.3} parent=1 // pred_check_branch
      %15 = sbr.rel (0) target = $region5
    $region4: #{cnn_forward.3} parent=1 // pred_region
      _
    $region5: #{cnn_forward.3} parent=1 // pred_fallthru
      _
    // Predicated region
    $region6: #{cnn_forward.3} parent=1 // pred_check
      _
    $region7: #{cnn_forward.3} parent=1 // pred_check_branch
      %17 = sbr.rel (0) target = $region9
    $region8: #{cnn_forward.3} parent=1 // pred_region
      _
    $region9: #{cnn_forward.3} parent=1 // pred_fallthru
      _
    // Predicated region
    $region10: #{cnn_forward.3} parent=1 // pred_check
      _
    $region11: #{cnn_forward.3} parent=1 // pred_check_branch
      %19 = sbr.rel (0) target = $region13
    $region12: #{cnn_forward.3} parent=1 // pred_region
      _
    $region13: #{cnn_forward.3} parent=1 // pred_fallthru
      _
    // Predicated region
    $region14: #{cnn_forward.3} parent=1 // pred_check
      _
    $region15: #{cnn_forward.3} parent=1 // pred_check_branch
      %21 = sbr.rel (0) target = $region17
    $region16: #{cnn_forward.3} parent=1 // pred_region
      _
    $region17: #{cnn_forward.3} parent=1 // pred_fallthru
      _
    // Predicated region
    $region18: #{cnn_forward.3} parent=1 // pred_check
      _
    $region19: #{cnn_forward.3} parent=1 // pred_check_branch
      %23 = sbr.rel (0) target = $region21
    $region20: #{cnn_forward.3} parent=1 // pred_region
      _
    $region21: #{cnn_forward.3} parent=1 // pred_fallthru
      _
    // Predicated region
    $region22: #{cnn_forward.3} parent=1 // pred_check
      _
    $region23: #{cnn_forward.3} parent=1 // pred_check_branch
      %25 = sbr.rel (0) target = $region25
    $region24: #{cnn_forward.3} parent=1 // pred_region
      _
    $region25: #{cnn_forward.3} parent=1 // pred_fallthru
      _
    // Predicated region
    $region26: #{cnn_forward.3} parent=1 // pred_check
      _
    $region27: #{cnn_forward.3} parent=1 // pred_check_branch
      %27 = sbr.rel (0) target = $region29
    $region28: #{cnn_forward.3} parent=1 // pred_region
      _
    $region29: #{cnn_forward.3} parent=1 // pred_fallthru
      _
    // Predicated region
    $region30: #{cnn_forward.3} parent=1 // pred_check
      _
    $region31: #{cnn_forward.3} parent=1 // pred_check_branch
      %29 = sbr.rel (0) target = $region33
    $region32: #{cnn_forward.3} parent=1 // pred_region
      _
    $region33: #{cnn_forward.3} parent=1 // pred_fallthru
      _
    %v31 = vld [vmem:[%s0] sm:$0x7]
    %v32 = vld [vmem:[%s0 + $0x4] sm:$0x7]
    %v33 = vld [vmem:[%s0 + $0x8] sm:$0x7]
    %v34 = vld [vmem:[%s0 + $0xc] sm:$0x7]
    %v35 = vld [vmem:[%s0 + $0x10] sm:$0x7]
    %v36 = vld [vmem:[%s0 + $0x14] sm:$0x7]
    %v37 = vld [vmem:[%s0 + $0x18] sm:$0x7]
    %v38 = vld [vmem:[%s0 + $0x1c] sm:$0x7]
    %v39 = vld [vmem:[%s0 + $0x20] sm:$0x7]
    %v40 = vld [vmem:[%s0 + $0x24] sm:$0x7]
    %v41 = vld [vmem:[%s0 + $0x28] sm:$0x7]
    %v42 = vld [vmem:[%s0 + $0x2c] sm:$0x7]
    %v43 = vld [vmem:[%s1] sm:$0x7]
    %v44 = vld [vmem:[%s1 + $0x4] sm:$0x7]
    %v45 = vld [vmem:[%s1 + $0x8] sm:$0x7]
    %v46 = vld [vmem:[%s1 + $0xc] sm:$0x7]
    %v47 = vld [vmem:[%s1 + $0x10] sm:$0x7]
    %v48 = vld [vmem:[%s1 + $0x14] sm:$0x7]
    %v49 = vld [vmem:[%s1 + $0x18] sm:$0x7]
    %v50 = vld [vmem:[%s1 + $0x1c] sm:$0x7]
    %v51 = vld [vmem:[%s1 + $0x20] sm:$0x7]
    %v52 = vld [vmem:[%s1 + $0x24] sm:$0x7]
    %v53 = vld [vmem:[%s1 + $0x28] sm:$0x7]
    %v54 = vld [vmem:[%s1 + $0x2c] sm:$0x7]
    %v55 = vld [vmem:[%s2] sm:$0x7]
    %v56 = vld [vmem:[%s2 + $0x4] sm:$0x7]
    %v57 = vld [vmem:[%s2 + $0x8] sm:$0x7]
    %v58 = vld [vmem:[%s2 + $0xc] sm:$0x7]
    %v59 = vld [vmem:[%s2 + $0x10] sm:$0x7]
    %v60 = vld [vmem:[%s2 + $0x14] sm:$0x7]
    %v61 = vld [vmem:[%s2 + $0x18] sm:$0x7]
    %v62 = vld [vmem:[%s2 + $0x1c] sm:$0x7]
    %v63 = vld [vmem:[%s2 + $0x20] sm:$0x7]
    %v64 = vld [vmem:[%s2 + $0x24] sm:$0x7]
    %v65 = vld [vmem:[%s2 + $0x28] sm:$0x7]
    %v66 = vld [vmem:[%s2 + $0x2c] sm:$0x7]
    %v67 = vld [vmem:[%s3] sm:$0x7]
    %v68 = vld [vmem:[%s3 + $0x4] sm:$0x7]
    %v69 = vld [vmem:[%s3 + $0x8] sm:$0x7]
    %v70 = vld [vmem:[%s3 + $0xc] sm:$0x7]
    %v71 = vld [vmem:[%s3 + $0x10] sm:$0x7]
    %v72 = vld [vmem:[%s3 + $0x14] sm:$0x7]
    %v73 = vld [vmem:[%s3 + $0x18] sm:$0x7]
    %v74 = vld [vmem:[%s3 + $0x1c] sm:$0x7]
    %v75 = vld [vmem:[%s3 + $0x20] sm:$0x7]
    %v76 = vld [vmem:[%s3 + $0x24] sm:$0x7]
    %v77 = vld [vmem:[%s3 + $0x28] sm:$0x7]
    %v78 = vld [vmem:[%s3 + $0x2c] sm:$0x7]
    %v88 = vunpack.c.l.s4 1983009808
    %v89 = vunpack.c.0.s8 %v88
    %v90 = vlaneseq
    %v91 = vshrl.u32 %v90, 7
    %v92 = vsub.s32 %v89, %v91
    %v93 = vrot.slane %v31, %v92
    %v94 = vcombine.high %v93, %v93
    %v96 = vunpack.c.l.s4 1983009808
    %v97 = vunpack.c.0.s8 %v96
    %v98 = vlaneseq
    %v99 = vshrl.u32 %v98, 7
    %v100 = vsub.s32 %v97, %v99
    %v101 = vrot.slane %v32, %v100
    %v102 = vcombine.high %v101, %v101
    %v104 = vunpack.c.l.s4 1983009808
    %v105 = vunpack.c.0.s8 %v104
    %v106 = vlaneseq
    %v107 = vshrl.u32 %v106, 7
    %v108 = vsub.s32 %v105, %v107
    %v109 = vrot.slane %v33, %v108
    %v110 = vcombine.high %v109, %v109
    %v112 = vunpack.c.l.s4 1983009808
    %v113 = vunpack.c.0.s8 %v112
    %v114 = vlaneseq
    %v115 = vshrl.u32 %v114, 7
    %v116 = vsub.s32 %v113, %v115
    %v117 = vrot.slane %v34, %v116
    %v118 = vcombine.high %v117, %v117
    %v120 = vunpack.c.l.s4 1983009808
    %v121 = vunpack.c.0.s8 %v120
    %v122 = vlaneseq
    %v123 = vshrl.u32 %v122, 7
    %v124 = vsub.s32 %v121, %v123
    %v125 = vrot.slane %v37, %v124
    %v126 = vcombine.high %v125, %v125
    %v128 = vunpack.c.l.s4 1983009808
    %v129 = vunpack.c.0.s8 %v128
    %v130 = vlaneseq
    %v131 = vshrl.u32 %v130, 7
    %v132 = vsub.s32 %v129, %v131
    %v133 = vrot.slane %v38, %v132
    %v134 = vcombine.high %v133, %v133
    %v136 = vunpack.c.l.s4 1983009808
    %v137 = vunpack.c.0.s8 %v136
    %v138 = vlaneseq
    %v139 = vshrl.u32 %v138, 7
    %v140 = vsub.s32 %v137, %v139
    %v141 = vrot.slane %v39, %v140
    %v142 = vcombine.high %v141, %v141
    %v144 = vunpack.c.l.s4 1983009808
    %v145 = vunpack.c.0.s8 %v144
    %v146 = vlaneseq
    %v147 = vshrl.u32 %v146, 7
    %v148 = vsub.s32 %v145, %v147
    %v149 = vrot.slane %v40, %v148
    %v150 = vcombine.high %v149, %v149
    %vm151 = vsmask.f32 1280
    %vm152 = vsmask.f32 3336
    %vm153 = vmor %vm151, %vm152
    %vm154 = vsmask.f32 5392
    %vm155 = vmor %vm153, %vm154
    %vm156 = vsmask.f32 7448
    %vm157 = vmor %vm155, %vm156
    %v159 = vshrl.u32 %v93, 16
    %v161 = vrot.slane %v159, 6
    %v162 = vshll.u32 %v93, 16
    %v164 = vrot.slane %v162, 7
    %v165 = vor.u32 %v161, %v164
    %v166 = vrot.slane %v165, 2
    %v168 = vshll.u32 %v94, 16
    %v170 = vrot.slane %v168, 7
    %v171 = vsel %vm157, %v166, %v170
    %v173 = vshrl.u32 %v101, 16
    %v175 = vrot.slane %v173, 6
    %v176 = vshll.u32 %v101, 16
    %v178 = vrot.slane %v176, 7
    %v179 = vor.u32 %v175, %v178
    %v180 = vrot.slane %v179, 2
    %v182 = vshll.u32 %v102, 16
    %v184 = vrot.slane %v182, 7
    %v185 = vsel %vm157, %v180, %v184
    %v187 = vshrl.u32 %v109, 16
    %v189 = vrot.slane %v187, 6
    %v190 = vshll.u32 %v109, 16
    %v192 = vrot.slane %v190, 7
    %v193 = vor.u32 %v189, %v192
    %v194 = vrot.slane %v193, 2
    %v196 = vshll.u32 %v110, 16
    %v198 = vrot.slane %v196, 7
    %v199 = vsel %vm157, %v194, %v198
    %v201 = vshrl.u32 %v117, 16
    %v203 = vrot.slane %v201, 6
    %v204 = vshll.u32 %v117, 16
    %v206 = vrot.slane %v204, 7
    %v207 = vor.u32 %v203, %v206
    %v208 = vrot.slane %v207, 2
    %v210 = vshll.u32 %v118, 16
    %v212 = vrot.slane %v210, 7
    %v213 = vsel %vm157, %v208, %v212
    %v215 = vshrl.u32 %v125, 16
    %v217 = vrot.slane %v215, 6
    %v218 = vshll.u32 %v125, 16
    %v220 = vrot.slane %v218, 7
    %v221 = vor.u32 %v217, %v220
    %v222 = vrot.slane %v221, 2
    %v224 = vshll.u32 %v126, 16
    %v226 = vrot.slane %v224, 7
    %v227 = vsel %vm157, %v222, %v226
    %v229 = vshrl.u32 %v133, 16
    %v231 = vrot.slane %v229, 6
    %v232 = vshll.u32 %v133, 16
    %v234 = vrot.slane %v232, 7
    %v235 = vor.u32 %v231, %v234
    %v236 = vrot.slane %v235, 2
    %v238 = vshll.u32 %v134, 16
    %v240 = vrot.slane %v238, 7
    %v241 = vsel %vm157, %v236, %v240
    %v243 = vshrl.u32 %v141, 16
    %v245 = vrot.slane %v243, 6
    %v246 = vshll.u32 %v141, 16
    %v248 = vrot.slane %v246, 7
    %v249 = vor.u32 %v245, %v248
    %v250 = vrot.slane %v249, 2
    %v252 = vshll.u32 %v142, 16
    %v254 = vrot.slane %v252, 7
    %v255 = vsel %vm157, %v250, %v254
    %v257 = vshrl.u32 %v149, 16
    %v259 = vrot.slane %v257, 6
    %v260 = vshll.u32 %v149, 16
    %v262 = vrot.slane %v260, 7
    %v263 = vor.u32 %v259, %v262
    %v264 = vrot.slane %v263, 2
    %v266 = vshll.u32 %v150, 16
    %v268 = vrot.slane %v266, 7
    %v269 = vsel %vm157, %v264, %v268
    %vm270 = vcmask 1040384
    %vm271 = vcmask 1042434
    %vm272 = vmor %vm270, %vm271
    %vm273 = vcmask 1044484
    %vm274 = vmor %vm272, %vm273
    %vm275 = vcmask 1046534
    %vm276 = vmor %vm274, %vm275
    %v277 = vrot.slane %v93, 7
    %v278 = vrot.slane %v277, 2
    %v279 = vrot.slane %v94, 7
    %v280 = vsel %vm276, %v278, %v279
    %v281 = vrot.slane %v101, 7
    %v282 = vrot.slane %v281, 2
    %v283 = vrot.slane %v102, 7
    %v284 = vsel %vm276, %v282, %v283
    %v285 = vrot.slane %v109, 7
    %v286 = vrot.slane %v285, 2
    %v287 = vrot.slane %v110, 7
    %v288 = vsel %vm276, %v286, %v287
    %v289 = vrot.slane %v117, 7
    %v290 = vrot.slane %v289, 2
    %v291 = vrot.slane %v118, 7
    %v292 = vsel %vm276, %v290, %v291
    %v293 = vrot.slane %v125, 7
    %v294 = vrot.slane %v293, 2
    %v295 = vrot.slane %v126, 7
    %v296 = vsel %vm276, %v294, %v295
    %v297 = vrot.slane %v133, 7
    %v298 = vrot.slane %v297, 2
    %v299 = vrot.slane %v134, 7
    %v300 = vsel %vm276, %v298, %v299
    %v301 = vrot.slane %v141, 7
    %v302 = vrot.slane %v301, 2
    %v303 = vrot.slane %v142, 7
    %v304 = vsel %vm276, %v302, %v303
    %v305 = vrot.slane %v149, 7
    %v306 = vrot.slane %v305, 2
    %v307 = vrot.slane %v150, 7
    %v308 = vsel %vm276, %v306, %v307
    %v312 = vunpack.c.l.s4 1983009808
    %v313 = vunpack.c.0.s8 %v312
    %v314 = vlaneseq
    %v315 = vshrl.u32 %v314, 7
    %v316 = vsub.s32 %v313, %v315
    %v317 = vrot.slane %v35, %v316
    %v318 = vcombine.high %v317, %v317
    %v320 = vunpack.c.l.s4 1983009808
    %v321 = vunpack.c.0.s8 %v320
    %v322 = vlaneseq
    %v323 = vshrl.u32 %v322, 7
    %v324 = vsub.s32 %v321, %v323
    %v325 = vrot.slane %v41, %v324
    %v326 = vcombine.high %v325, %v325
    %v328 = vshrl.u32 %v317, 16
    %v330 = vrot.slane %v328, 6
    %v331 = vshll.u32 %v317, 16
    %v333 = vrot.slane %v331, 7
    %v334 = vor.u32 %v330, %v333
    %v335 = vrot.slane %v334, 2
    %v337 = vshll.u32 %v318, 16
    %v339 = vrot.slane %v337, 7
    %v340 = vsel %vm157, %v335, %v339
    %v342 = vshrl.u32 %v325, 16
    %v344 = vrot.slane %v342, 6
    %v345 = vshll.u32 %v325, 16
    %v347 = vrot.slane %v345, 7
    %v348 = vor.u32 %v344, %v347
    %v349 = vrot.slane %v348, 2
    %v351 = vshll.u32 %v326, 16
    %v353 = vrot.slane %v351, 7
    %v354 = vsel %vm157, %v349, %v353
    %v355 = vrot.slane %v317, 7
    %v356 = vrot.slane %v355, 2
    %v357 = vrot.slane %v318, 7
    %v358 = vsel %vm276, %v356, %v357
    %v359 = vrot.slane %v325, 7
    %v360 = vrot.slane %v359, 2
    %v361 = vrot.slane %v326, 7
    %v362 = vsel %vm276, %v360, %v361
    %v366 = vunpack.c.l.s4 1983009808
    %v367 = vunpack.c.0.s8 %v366
    %v368 = vlaneseq
    %v369 = vshrl.u32 %v368, 7
    %v370 = vsub.s32 %v367, %v369
    %v371 = vrot.slane %v36, %v370
    %v372 = vcombine.high %v371, %v371
    %v374 = vunpack.c.l.s4 1983009808
    %v375 = vunpack.c.0.s8 %v374
    %v376 = vlaneseq
    %v377 = vshrl.u32 %v376, 7
    %v378 = vsub.s32 %v375, %v377
    %v379 = vrot.slane %v42, %v378
    %v380 = vcombine.high %v379, %v379
    %v382 = vshrl.u32 %v371, 16
    %v384 = vrot.slane %v382, 6
    %v385 = vshll.u32 %v371, 16
    %v387 = vrot.slane %v385, 7
    %v388 = vor.u32 %v384, %v387
    %v389 = vrot.slane %v388, 2
    %v391 = vshll.u32 %v372, 16
    %v393 = vrot.slane %v391, 7
    %v394 = vsel %vm157, %v389, %v393
    %v396 = vshrl.u32 %v379, 16
    %v398 = vrot.slane %v396, 6
    %v399 = vshll.u32 %v379, 16
    %v401 = vrot.slane %v399, 7
    %v402 = vor.u32 %v398, %v401
    %v403 = vrot.slane %v402, 2
    %v405 = vshll.u32 %v380, 16
    %v407 = vrot.slane %v405, 7
    %v408 = vsel %vm157, %v403, %v407
    %v409 = vrot.slane %v371, 7
    %v410 = vrot.slane %v409, 2
    %v411 = vrot.slane %v372, 7
    %v412 = vsel %vm276, %v410, %v411
    %v413 = vrot.slane %v379, 7
    %v414 = vrot.slane %v413, 2
    %v415 = vrot.slane %v380, 7
    %v416 = vsel %vm276, %v414, %v415
    %v426 = vunpack.c.l.s4 1983009808
    %v427 = vunpack.c.0.s8 %v426
    %v428 = vlaneseq
    %v429 = vshrl.u32 %v428, 7
    %v430 = vsub.s32 %v427, %v429
    %v431 = vrot.slane %v43, %v430
    %v432 = vcombine.high %v431, %v431
    %v434 = vunpack.c.l.s4 1983009808
    %v435 = vunpack.c.0.s8 %v434
    %v436 = vlaneseq
    %v437 = vshrl.u32 %v436, 7
    %v438 = vsub.s32 %v435, %v437
    %v439 = vrot.slane %v44, %v438
    %v440 = vcombine.high %v439, %v439
    %v442 = vunpack.c.l.s4 1983009808
    %v443 = vunpack.c.0.s8 %v442
    %v444 = vlaneseq
    %v445 = vshrl.u32 %v444, 7
    %v446 = vsub.s32 %v443, %v445
    %v447 = vrot.slane %v45, %v446
    %v448 = vcombine.high %v447, %v447
    %v450 = vunpack.c.l.s4 1983009808
    %v451 = vunpack.c.0.s8 %v450
    %v452 = vlaneseq
    %v453 = vshrl.u32 %v452, 7
    %v454 = vsub.s32 %v451, %v453
    %v455 = vrot.slane %v46, %v454
    %v456 = vcombine.high %v455, %v455
    %v458 = vunpack.c.l.s4 1983009808
    %v459 = vunpack.c.0.s8 %v458
    %v460 = vlaneseq
    %v461 = vshrl.u32 %v460, 7
    %v462 = vsub.s32 %v459, %v461
    %v463 = vrot.slane %v49, %v462
    %v464 = vcombine.high %v463, %v463
    %v466 = vunpack.c.l.s4 1983009808
    %v467 = vunpack.c.0.s8 %v466
    %v468 = vlaneseq
    %v469 = vshrl.u32 %v468, 7
    %v470 = vsub.s32 %v467, %v469
    %v471 = vrot.slane %v50, %v470
    %v472 = vcombine.high %v471, %v471
    %v474 = vunpack.c.l.s4 1983009808
    %v475 = vunpack.c.0.s8 %v474
    %v476 = vlaneseq
    %v477 = vshrl.u32 %v476, 7
    %v478 = vsub.s32 %v475, %v477
    %v479 = vrot.slane %v51, %v478
    %v480 = vcombine.high %v479, %v479
    %v482 = vunpack.c.l.s4 1983009808
    %v483 = vunpack.c.0.s8 %v482
    %v484 = vlaneseq
    %v485 = vshrl.u32 %v484, 7
    %v486 = vsub.s32 %v483, %v485
    %v487 = vrot.slane %v52, %v486
    %v488 = vcombine.high %v487, %v487
    %v490 = vshrl.u32 %v431, 16
    %v492 = vrot.slane %v490, 6
    %v493 = vshll.u32 %v431, 16
    %v495 = vrot.slane %v493, 7
    %v496 = vor.u32 %v492, %v495
    %v497 = vrot.slane %v496, 2
    %v499 = vshll.u32 %v432, 16
    %v501 = vrot.slane %v499, 7
    %v502 = vsel %vm157, %v497, %v501
    %v504 = vshrl.u32 %v439, 16
    %v506 = vrot.slane %v504, 6
    %v507 = vshll.u32 %v439, 16
    %v509 = vrot.slane %v507, 7
    %v510 = vor.u32 %v506, %v509
    %v511 = vrot.slane %v510, 2
    %v513 = vshll.u32 %v440, 16
    %v515 = vrot.slane %v513, 7
    %v516 = vsel %vm157, %v511, %v515
    %v518 = vshrl.u32 %v447, 16
    %v520 = vrot.slane %v518, 6
    %v521 = vshll.u32 %v447, 16
    %v523 = vrot.slane %v521, 7
    %v524 = vor.u32 %v520, %v523
    %v525 = vrot.slane %v524, 2
    %v527 = vshll.u32 %v448, 16
    %v529 = vrot.slane %v527, 7
    %v530 = vsel %vm157, %v525, %v529
    %v532 = vshrl.u32 %v455, 16
    %v534 = vrot.slane %v532, 6
    %v535 = vshll.u32 %v455, 16
    %v537 = vrot.slane %v535, 7
    %v538 = vor.u32 %v534, %v537
    %v539 = vrot.slane %v538, 2
    %v541 = vshll.u32 %v456, 16
    %v543 = vrot.slane %v541, 7
    %v544 = vsel %vm157, %v539, %v543
    %v546 = vshrl.u32 %v463, 16
    %v548 = vrot.slane %v546, 6
    %v549 = vshll.u32 %v463, 16
    %v551 = vrot.slane %v549, 7
    %v552 = vor.u32 %v548, %v551
    %v553 = vrot.slane %v552, 2
    %v555 = vshll.u32 %v464, 16
    %v557 = vrot.slane %v555, 7
    %v558 = vsel %vm157, %v553, %v557
    %v560 = vshrl.u32 %v471, 16
    %v562 = vrot.slane %v560, 6
    %v563 = vshll.u32 %v471, 16
    %v565 = vrot.slane %v563, 7
    %v566 = vor.u32 %v562, %v565
    %v567 = vrot.slane %v566, 2
    %v569 = vshll.u32 %v472, 16
    %v571 = vrot.slane %v569, 7
    %v572 = vsel %vm157, %v567, %v571
    %v574 = vshrl.u32 %v479, 16
    %v576 = vrot.slane %v574, 6
    %v577 = vshll.u32 %v479, 16
    %v579 = vrot.slane %v577, 7
    %v580 = vor.u32 %v576, %v579
    %v581 = vrot.slane %v580, 2
    %v583 = vshll.u32 %v480, 16
    %v585 = vrot.slane %v583, 7
    %v586 = vsel %vm157, %v581, %v585
    %v588 = vshrl.u32 %v487, 16
    %v590 = vrot.slane %v588, 6
    %v591 = vshll.u32 %v487, 16
    %v593 = vrot.slane %v591, 7
    %v594 = vor.u32 %v590, %v593
    %v595 = vrot.slane %v594, 2
    %v597 = vshll.u32 %v488, 16
    %v599 = vrot.slane %v597, 7
    %v600 = vsel %vm157, %v595, %v599
    %v601 = vrot.slane %v431, 7
    %v602 = vrot.slane %v601, 2
    %v603 = vrot.slane %v432, 7
    %v604 = vsel %vm276, %v602, %v603
    %v605 = vrot.slane %v439, 7
    %v606 = vrot.slane %v605, 2
    %v607 = vrot.slane %v440, 7
    %v608 = vsel %vm276, %v606, %v607
    %v609 = vrot.slane %v447, 7
    %v610 = vrot.slane %v609, 2
    %v611 = vrot.slane %v448, 7
    %v612 = vsel %vm276, %v610, %v611
    %v613 = vrot.slane %v455, 7
    %v614 = vrot.slane %v613, 2
    %v615 = vrot.slane %v456, 7
    %v616 = vsel %vm276, %v614, %v615
    %v617 = vrot.slane %v463, 7
    %v618 = vrot.slane %v617, 2
    %v619 = vrot.slane %v464, 7
    %v620 = vsel %vm276, %v618, %v619
    %v621 = vrot.slane %v471, 7
    %v622 = vrot.slane %v621, 2
    %v623 = vrot.slane %v472, 7
    %v624 = vsel %vm276, %v622, %v623
    %v625 = vrot.slane %v479, 7
    %v626 = vrot.slane %v625, 2
    %v627 = vrot.slane %v480, 7
    %v628 = vsel %vm276, %v626, %v627
    %v629 = vrot.slane %v487, 7
    %v630 = vrot.slane %v629, 2
    %v631 = vrot.slane %v488, 7
    %v632 = vsel %vm276, %v630, %v631
    %v636 = vunpack.c.l.s4 1983009808
    %v637 = vunpack.c.0.s8 %v636
    %v638 = vlaneseq
    %v639 = vshrl.u32 %v638, 7
    %v640 = vsub.s32 %v637, %v639
    %v641 = vrot.slane %v47, %v640
    %v642 = vcombine.high %v641, %v641
    %v644 = vunpack.c.l.s4 1983009808
    %v645 = vunpack.c.0.s8 %v644
    %v646 = vlaneseq
    %v647 = vshrl.u32 %v646, 7
    %v648 = vsub.s32 %v645, %v647
    %v649 = vrot.slane %v53, %v648
    %v650 = vcombine.high %v649, %v649
    %v652 = vshrl.u32 %v641, 16
    %v654 = vrot.slane %v652, 6
    %v655 = vshll.u32 %v641, 16
    %v657 = vrot.slane %v655, 7
    %v658 = vor.u32 %v654, %v657
    %v659 = vrot.slane %v658, 2
    %v661 = vshll.u32 %v642, 16
    %v663 = vrot.slane %v661, 7
    %v664 = vsel %vm157, %v659, %v663
    %v666 = vshrl.u32 %v649, 16
    %v668 = vrot.slane %v666, 6
    %v669 = vshll.u32 %v649, 16
    %v671 = vrot.slane %v669, 7
    %v672 = vor.u32 %v668, %v671
    %v673 = vrot.slane %v672, 2
    %v675 = vshll.u32 %v650, 16
    %v677 = vrot.slane %v675, 7
    %v678 = vsel %vm157, %v673, %v677
    %v679 = vrot.slane %v641, 7
    %v680 = vrot.slane %v679, 2
    %v681 = vrot.slane %v642, 7
    %v682 = vsel %vm276, %v680, %v681
    %v683 = vrot.slane %v649, 7
    %v684 = vrot.slane %v683, 2
    %v685 = vrot.slane %v650, 7
    %v686 = vsel %vm276, %v684, %v685
    %v690 = vunpack.c.l.s4 1983009808
    %v691 = vunpack.c.0.s8 %v690
    %v692 = vlaneseq
    %v693 = vshrl.u32 %v692, 7
    %v694 = vsub.s32 %v691, %v693
    %v695 = vrot.slane %v48, %v694
    %v696 = vcombine.high %v695, %v695
    %v698 = vunpack.c.l.s4 1983009808
    %v699 = vunpack.c.0.s8 %v698
    %v700 = vlaneseq
    %v701 = vshrl.u32 %v700, 7
    %v702 = vsub.s32 %v699, %v701
    %v703 = vrot.slane %v54, %v702
    %v704 = vcombine.high %v703, %v703
    %v706 = vshrl.u32 %v695, 16
    %v708 = vrot.slane %v706, 6
    %v709 = vshll.u32 %v695, 16
    %v711 = vrot.slane %v709, 7
    %v712 = vor.u32 %v708, %v711
    %v713 = vrot.slane %v712, 2
    %v715 = vshll.u32 %v696, 16
    %v717 = vrot.slane %v715, 7
    %v718 = vsel %vm157, %v713, %v717
    %v720 = vshrl.u32 %v703, 16
    %v722 = vrot.slane %v720, 6
    %v723 = vshll.u32 %v703, 16
    %v725 = vrot.slane %v723, 7
    %v726 = vor.u32 %v722, %v725
    %v727 = vrot.slane %v726, 2
    %v729 = vshll.u32 %v704, 16
    %v731 = vrot.slane %v729, 7
    %v732 = vsel %vm157, %v727, %v731
    %v733 = vrot.slane %v695, 7
    %v734 = vrot.slane %v733, 2
    %v735 = vrot.slane %v696, 7
    %v736 = vsel %vm276, %v734, %v735
    %v737 = vrot.slane %v703, 7
    %v738 = vrot.slane %v737, 2
    %v739 = vrot.slane %v704, 7
    %v740 = vsel %vm276, %v738, %v739
    %v750 = vunpack.c.l.s4 1983009808
    %v751 = vunpack.c.0.s8 %v750
    %v752 = vlaneseq
    %v753 = vshrl.u32 %v752, 7
    %v754 = vsub.s32 %v751, %v753
    %v755 = vrot.slane %v55, %v754
    %v756 = vcombine.high %v755, %v755
    %v758 = vunpack.c.l.s4 1983009808
    %v759 = vunpack.c.0.s8 %v758
    %v760 = vlaneseq
    %v761 = vshrl.u32 %v760, 7
    %v762 = vsub.s32 %v759, %v761
    %v763 = vrot.slane %v56, %v762
    %v764 = vcombine.high %v763, %v763
    %v766 = vunpack.c.l.s4 1983009808
    %v767 = vunpack.c.0.s8 %v766
    %v768 = vlaneseq
    %v769 = vshrl.u32 %v768, 7
    %v770 = vsub.s32 %v767, %v769
    %v771 = vrot.slane %v57, %v770
    %v772 = vcombine.high %v771, %v771
    %v774 = vunpack.c.l.s4 1983009808
    %v775 = vunpack.c.0.s8 %v774
    %v776 = vlaneseq
    %v777 = vshrl.u32 %v776, 7
    %v778 = vsub.s32 %v775, %v777
    %v779 = vrot.slane %v58, %v778
    %v780 = vcombine.high %v779, %v779
    %v782 = vunpack.c.l.s4 1983009808
    %v783 = vunpack.c.0.s8 %v782
    %v784 = vlaneseq
    %v785 = vshrl.u32 %v784, 7
    %v786 = vsub.s32 %v783, %v785
    %v787 = vrot.slane %v61, %v786
    %v788 = vcombine.high %v787, %v787
    %v790 = vunpack.c.l.s4 1983009808
    %v791 = vunpack.c.0.s8 %v790
    %v792 = vlaneseq
    %v793 = vshrl.u32 %v792, 7
    %v794 = vsub.s32 %v791, %v793
    %v795 = vrot.slane %v62, %v794
    %v796 = vcombine.high %v795, %v795
    %v798 = vunpack.c.l.s4 1983009808
    %v799 = vunpack.c.0.s8 %v798
    %v800 = vlaneseq
    %v801 = vshrl.u32 %v800, 7
    %v802 = vsub.s32 %v799, %v801
    %v803 = vrot.slane %v63, %v802
    %v804 = vcombine.high %v803, %v803
    %v806 = vunpack.c.l.s4 1983009808
    %v807 = vunpack.c.0.s8 %v806
    %v808 = vlaneseq
    %v809 = vshrl.u32 %v808, 7
    %v810 = vsub.s32 %v807, %v809
    %v811 = vrot.slane %v64, %v810
    %v812 = vcombine.high %v811, %v811
    %v814 = vshrl.u32 %v755, 16
    %v816 = vrot.slane %v814, 6
    %v817 = vshll.u32 %v755, 16
    %v819 = vrot.slane %v817, 7
    %v820 = vor.u32 %v816, %v819
    %v821 = vrot.slane %v820, 2
    %v823 = vshll.u32 %v756, 16
    %v825 = vrot.slane %v823, 7
    %v826 = vsel %vm157, %v821, %v825
    %v828 = vshrl.u32 %v763, 16
    %v830 = vrot.slane %v828, 6
    %v831 = vshll.u32 %v763, 16
    %v833 = vrot.slane %v831, 7
    %v834 = vor.u32 %v830, %v833
    %v835 = vrot.slane %v834, 2
    %v837 = vshll.u32 %v764, 16
    %v839 = vrot.slane %v837, 7
    %v840 = vsel %vm157, %v835, %v839
    %v842 = vshrl.u32 %v771, 16
    %v844 = vrot.slane %v842, 6
    %v845 = vshll.u32 %v771, 16
    %v847 = vrot.slane %v845, 7
    %v848 = vor.u32 %v844, %v847
    %v849 = vrot.slane %v848, 2
    %v851 = vshll.u32 %v772, 16
    %v853 = vrot.slane %v851, 7
    %v854 = vsel %vm157, %v849, %v853
    %v856 = vshrl.u32 %v779, 16
    %v858 = vrot.slane %v856, 6
    %v859 = vshll.u32 %v779, 16
    %v861 = vrot.slane %v859, 7
    %v862 = vor.u32 %v858, %v861
    %v863 = vrot.slane %v862, 2
    %v865 = vshll.u32 %v780, 16
    %v867 = vrot.slane %v865, 7
    %v868 = vsel %vm157, %v863, %v867
    %v870 = vshrl.u32 %v787, 16
    %v872 = vrot.slane %v870, 6
    %v873 = vshll.u32 %v787, 16
    %v875 = vrot.slane %v873, 7
    %v876 = vor.u32 %v872, %v875
    %v877 = vrot.slane %v876, 2
    %v879 = vshll.u32 %v788, 16
    %v881 = vrot.slane %v879, 7
    %v882 = vsel %vm157, %v877, %v881
    %v884 = vshrl.u32 %v795, 16
    %v886 = vrot.slane %v884, 6
    %v887 = vshll.u32 %v795, 16
    %v889 = vrot.slane %v887, 7
    %v890 = vor.u32 %v886, %v889
    %v891 = vrot.slane %v890, 2
    %v893 = vshll.u32 %v796, 16
    %v895 = vrot.slane %v893, 7
    %v896 = vsel %vm157, %v891, %v895
    %v898 = vshrl.u32 %v803, 16
    %v900 = vrot.slane %v898, 6
    %v901 = vshll.u32 %v803, 16
    %v903 = vrot.slane %v901, 7
    %v904 = vor.u32 %v900, %v903
    %v905 = vrot.slane %v904, 2
    %v907 = vshll.u32 %v804, 16
    %v909 = vrot.slane %v907, 7
    %v910 = vsel %vm157, %v905, %v909
    %v912 = vshrl.u32 %v811, 16
    %v914 = vrot.slane %v912, 6
    %v915 = vshll.u32 %v811, 16
    %v917 = vrot.slane %v915, 7
    %v918 = vor.u32 %v914, %v917
    %v919 = vrot.slane %v918, 2
    %v921 = vshll.u32 %v812, 16
    %v923 = vrot.slane %v921, 7
    %v924 = vsel %vm157, %v919, %v923
    %v925 = vrot.slane %v755, 7
    %v926 = vrot.slane %v925, 2
    %v927 = vrot.slane %v756, 7
    %v928 = vsel %vm276, %v926, %v927
    %v929 = vrot.slane %v763, 7
    %v930 = vrot.slane %v929, 2
    %v931 = vrot.slane %v764, 7
    %v932 = vsel %vm276, %v930, %v931
    %v933 = vrot.slane %v771, 7
    %v934 = vrot.slane %v933, 2
    %v935 = vrot.slane %v772, 7
    %v936 = vsel %vm276, %v934, %v935
    %v937 = vrot.slane %v779, 7
    %v938 = vrot.slane %v937, 2
    %v939 = vrot.slane %v780, 7
    %v940 = vsel %vm276, %v938, %v939
    %v941 = vrot.slane %v787, 7
    %v942 = vrot.slane %v941, 2
    %v943 = vrot.slane %v788, 7
    %v944 = vsel %vm276, %v942, %v943
    %v945 = vrot.slane %v795, 7
    %v946 = vrot.slane %v945, 2
    %v947 = vrot.slane %v796, 7
    %v948 = vsel %vm276, %v946, %v947
    %v949 = vrot.slane %v803, 7
    %v950 = vrot.slane %v949, 2
    %v951 = vrot.slane %v804, 7
    %v952 = vsel %vm276, %v950, %v951
    %v953 = vrot.slane %v811, 7
    %v954 = vrot.slane %v953, 2
    %v955 = vrot.slane %v812, 7
    %v956 = vsel %vm276, %v954, %v955
    %v960 = vunpack.c.l.s4 1983009808
    %v961 = vunpack.c.0.s8 %v960
    %v962 = vlaneseq
    %v963 = vshrl.u32 %v962, 7
    %v964 = vsub.s32 %v961, %v963
    %v965 = vrot.slane %v59, %v964
    %v966 = vcombine.high %v965, %v965
    %v968 = vunpack.c.l.s4 1983009808
    %v969 = vunpack.c.0.s8 %v968
    %v970 = vlaneseq
    %v971 = vshrl.u32 %v970, 7
    %v972 = vsub.s32 %v969, %v971
    %v973 = vrot.slane %v65, %v972
    %v974 = vcombine.high %v973, %v973
    %v976 = vshrl.u32 %v965, 16
    %v978 = vrot.slane %v976, 6
    %v979 = vshll.u32 %v965, 16
    %v981 = vrot.slane %v979, 7
    %v982 = vor.u32 %v978, %v981
    %v983 = vrot.slane %v982, 2
    %v985 = vshll.u32 %v966, 16
    %v987 = vrot.slane %v985, 7
    %v988 = vsel %vm157, %v983, %v987
    %v990 = vshrl.u32 %v973, 16
    %v992 = vrot.slane %v990, 6
    %v993 = vshll.u32 %v973, 16
    %v995 = vrot.slane %v993, 7
    %v996 = vor.u32 %v992, %v995
    %v997 = vrot.slane %v996, 2
    %v999 = vshll.u32 %v974, 16
    %v1001 = vrot.slane %v999, 7
    %v1002 = vsel %vm157, %v997, %v1001
    %v1003 = vrot.slane %v965, 7
    %v1004 = vrot.slane %v1003, 2
    %v1005 = vrot.slane %v966, 7
    %v1006 = vsel %vm276, %v1004, %v1005
    %v1007 = vrot.slane %v973, 7
    %v1008 = vrot.slane %v1007, 2
    %v1009 = vrot.slane %v974, 7
    %v1010 = vsel %vm276, %v1008, %v1009
    %v1014 = vunpack.c.l.s4 1983009808
    %v1015 = vunpack.c.0.s8 %v1014
    %v1016 = vlaneseq
    %v1017 = vshrl.u32 %v1016, 7
    %v1018 = vsub.s32 %v1015, %v1017
    %v1019 = vrot.slane %v60, %v1018
    %v1020 = vcombine.high %v1019, %v1019
    %v1022 = vunpack.c.l.s4 1983009808
    %v1023 = vunpack.c.0.s8 %v1022
    %v1024 = vlaneseq
    %v1025 = vshrl.u32 %v1024, 7
    %v1026 = vsub.s32 %v1023, %v1025
    %v1027 = vrot.slane %v66, %v1026
    %v1028 = vcombine.high %v1027, %v1027
    %v1030 = vshrl.u32 %v1019, 16
    %v1032 = vrot.slane %v1030, 6
    %v1033 = vshll.u32 %v1019, 16
    %v1035 = vrot.slane %v1033, 7
    %v1036 = vor.u32 %v1032, %v1035
    %v1037 = vrot.slane %v1036, 2
    %v1039 = vshll.u32 %v1020, 16
    %v1041 = vrot.slane %v1039, 7
    %v1042 = vsel %vm157, %v1037, %v1041
    %v1044 = vshrl.u32 %v1027, 16
    %v1046 = vrot.slane %v1044, 6
    %v1047 = vshll.u32 %v1027, 16
    %v1049 = vrot.slane %v1047, 7
    %v1050 = vor.u32 %v1046, %v1049
    %v1051 = vrot.slane %v1050, 2
    %v1053 = vshll.u32 %v1028, 16
    %v1055 = vrot.slane %v1053, 7
    %v1056 = vsel %vm157, %v1051, %v1055
    %v1057 = vrot.slane %v1019, 7
    %v1058 = vrot.slane %v1057, 2
    %v1059 = vrot.slane %v1020, 7
    %v1060 = vsel %vm276, %v1058, %v1059
    %v1061 = vrot.slane %v1027, 7
    %v1062 = vrot.slane %v1061, 2
    %v1063 = vrot.slane %v1028, 7
    %v1064 = vsel %vm276, %v1062, %v1063
    %v1074 = vunpack.c.l.s4 1983009808
    %v1075 = vunpack.c.0.s8 %v1074
    %v1076 = vlaneseq
    %v1077 = vshrl.u32 %v1076, 7
    %v1078 = vsub.s32 %v1075, %v1077
    %v1079 = vrot.slane %v67, %v1078
    %v1080 = vcombine.high %v1079, %v1079
    %v1082 = vunpack.c.l.s4 1983009808
    %v1083 = vunpack.c.0.s8 %v1082
    %v1084 = vlaneseq
    %v1085 = vshrl.u32 %v1084, 7
    %v1086 = vsub.s32 %v1083, %v1085
    %v1087 = vrot.slane %v68, %v1086
    %v1088 = vcombine.high %v1087, %v1087
    %v1090 = vunpack.c.l.s4 1983009808
    %v1091 = vunpack.c.0.s8 %v1090
    %v1092 = vlaneseq
    %v1093 = vshrl.u32 %v1092, 7
    %v1094 = vsub.s32 %v1091, %v1093
    %v1095 = vrot.slane %v69, %v1094
    %v1096 = vcombine.high %v1095, %v1095
    %v1098 = vunpack.c.l.s4 1983009808
    %v1099 = vunpack.c.0.s8 %v1098
    %v1100 = vlaneseq
    %v1101 = vshrl.u32 %v1100, 7
    %v1102 = vsub.s32 %v1099, %v1101
    %v1103 = vrot.slane %v70, %v1102
    %v1104 = vcombine.high %v1103, %v1103
    %v1106 = vunpack.c.l.s4 1983009808
    %v1107 = vunpack.c.0.s8 %v1106
    %v1108 = vlaneseq
    %v1109 = vshrl.u32 %v1108, 7
    %v1110 = vsub.s32 %v1107, %v1109
    %v1111 = vrot.slane %v73, %v1110
    %v1112 = vcombine.high %v1111, %v1111
    %v1114 = vunpack.c.l.s4 1983009808
    %v1115 = vunpack.c.0.s8 %v1114
    %v1116 = vlaneseq
    %v1117 = vshrl.u32 %v1116, 7
    %v1118 = vsub.s32 %v1115, %v1117
    %v1119 = vrot.slane %v74, %v1118
    %v1120 = vcombine.high %v1119, %v1119
    %v1122 = vunpack.c.l.s4 1983009808
    %v1123 = vunpack.c.0.s8 %v1122
    %v1124 = vlaneseq
    %v1125 = vshrl.u32 %v1124, 7
    %v1126 = vsub.s32 %v1123, %v1125
    %v1127 = vrot.slane %v75, %v1126
    %v1128 = vcombine.high %v1127, %v1127
    %v1130 = vunpack.c.l.s4 1983009808
    %v1131 = vunpack.c.0.s8 %v1130
    %v1132 = vlaneseq
    %v1133 = vshrl.u32 %v1132, 7
    %v1134 = vsub.s32 %v1131, %v1133
    %v1135 = vrot.slane %v76, %v1134
    %v1136 = vcombine.high %v1135, %v1135
    %v1138 = vshrl.u32 %v1079, 16
    %v1140 = vrot.slane %v1138, 6
    %v1141 = vshll.u32 %v1079, 16
    %v1143 = vrot.slane %v1141, 7
    %v1144 = vor.u32 %v1140, %v1143
    %v1145 = vrot.slane %v1144, 2
    %v1147 = vshll.u32 %v1080, 16
    %v1149 = vrot.slane %v1147, 7
    %v1150 = vsel %vm157, %v1145, %v1149
    %v1152 = vshrl.u32 %v1087, 16
    %v1154 = vrot.slane %v1152, 6
    %v1155 = vshll.u32 %v1087, 16
    %v1157 = vrot.slane %v1155, 7
    %v1158 = vor.u32 %v1154, %v1157
    %v1159 = vrot.slane %v1158, 2
    %v1161 = vshll.u32 %v1088, 16
    %v1163 = vrot.slane %v1161, 7
    %v1164 = vsel %vm157, %v1159, %v1163
    %v1166 = vshrl.u32 %v1095, 16
    %v1168 = vrot.slane %v1166, 6
    %v1169 = vshll.u32 %v1095, 16
    %v1171 = vrot.slane %v1169, 7
    %v1172 = vor.u32 %v1168, %v1171
    %v1173 = vrot.slane %v1172, 2
    %v1175 = vshll.u32 %v1096, 16
    %v1177 = vrot.slane %v1175, 7
    %v1178 = vsel %vm157, %v1173, %v1177
    %v1180 = vshrl.u32 %v1103, 16
    %v1182 = vrot.slane %v1180, 6
    %v1183 = vshll.u32 %v1103, 16
    %v1185 = vrot.slane %v1183, 7
    %v1186 = vor.u32 %v1182, %v1185
    %v1187 = vrot.slane %v1186, 2
    %v1189 = vshll.u32 %v1104, 16
    %v1191 = vrot.slane %v1189, 7
    %v1192 = vsel %vm157, %v1187, %v1191
    %v1194 = vshrl.u32 %v1111, 16
    %v1196 = vrot.slane %v1194, 6
    %v1197 = vshll.u32 %v1111, 16
    %v1199 = vrot.slane %v1197, 7
    %v1200 = vor.u32 %v1196, %v1199
    %v1201 = vrot.slane %v1200, 2
    %v1203 = vshll.u32 %v1112, 16
    %v1205 = vrot.slane %v1203, 7
    %v1206 = vsel %vm157, %v1201, %v1205
    %v1208 = vshrl.u32 %v1119, 16
    %v1210 = vrot.slane %v1208, 6
    %v1211 = vshll.u32 %v1119, 16
    %v1213 = vrot.slane %v1211, 7
    %v1214 = vor.u32 %v1210, %v1213
    %v1215 = vrot.slane %v1214, 2
    %v1217 = vshll.u32 %v1120, 16
    %v1219 = vrot.slane %v1217, 7
    %v1220 = vsel %vm157, %v1215, %v1219
    %v1222 = vshrl.u32 %v1127, 16
    %v1224 = vrot.slane %v1222, 6
    %v1225 = vshll.u32 %v1127, 16
    %v1227 = vrot.slane %v1225, 7
    %v1228 = vor.u32 %v1224, %v1227
    %v1229 = vrot.slane %v1228, 2
    %v1231 = vshll.u32 %v1128, 16
    %v1233 = vrot.slane %v1231, 7
    %v1234 = vsel %vm157, %v1229, %v1233
    %v1236 = vshrl.u32 %v1135, 16
    %v1238 = vrot.slane %v1236, 6
    %v1239 = vshll.u32 %v1135, 16
    %v1241 = vrot.slane %v1239, 7
    %v1242 = vor.u32 %v1238, %v1241
    %v1243 = vrot.slane %v1242, 2
    %v1245 = vshll.u32 %v1136, 16
    %v1247 = vrot.slane %v1245, 7
    %v1248 = vsel %vm157, %v1243, %v1247
    %v1249 = vrot.slane %v1079, 7
    %v1250 = vrot.slane %v1249, 2
    %v1251 = vrot.slane %v1080, 7
    %v1252 = vsel %vm276, %v1250, %v1251
    %v1253 = vrot.slane %v1087, 7
    %v1254 = vrot.slane %v1253, 2
    %v1255 = vrot.slane %v1088, 7
    %v1256 = vsel %vm276, %v1254, %v1255
    %v1257 = vrot.slane %v1095, 7
    %v1258 = vrot.slane %v1257, 2
    %v1259 = vrot.slane %v1096, 7
    %v1260 = vsel %vm276, %v1258, %v1259
    %v1261 = vrot.slane %v1103, 7
    %v1262 = vrot.slane %v1261, 2
    %v1263 = vrot.slane %v1104, 7
    %v1264 = vsel %vm276, %v1262, %v1263
    %v1265 = vrot.slane %v1111, 7
    %v1266 = vrot.slane %v1265, 2
    %v1267 = vrot.slane %v1112, 7
    %v1268 = vsel %vm276, %v1266, %v1267
    %v1269 = vrot.slane %v1119, 7
    %v1270 = vrot.slane %v1269, 2
    %v1271 = vrot.slane %v1120, 7
    %v1272 = vsel %vm276, %v1270, %v1271
    %v1273 = vrot.slane %v1127, 7
    %v1274 = vrot.slane %v1273, 2
    %v1275 = vrot.slane %v1128, 7
    %v1276 = vsel %vm276, %v1274, %v1275
    %v1277 = vrot.slane %v1135, 7
    %v1278 = vrot.slane %v1277, 2
    %v1279 = vrot.slane %v1136, 7
    %v1280 = vsel %vm276, %v1278, %v1279
    %v1284 = vunpack.c.l.s4 1983009808
    %v1285 = vunpack.c.0.s8 %v1284
    %v1286 = vlaneseq
    %v1287 = vshrl.u32 %v1286, 7
    %v1288 = vsub.s32 %v1285, %v1287
    %v1289 = vrot.slane %v71, %v1288
    %v1290 = vcombine.high %v1289, %v1289
    %v1292 = vunpack.c.l.s4 1983009808
    %v1293 = vunpack.c.0.s8 %v1292
    %v1294 = vlaneseq
    %v1295 = vshrl.u32 %v1294, 7
    %v1296 = vsub.s32 %v1293, %v1295
    %v1297 = vrot.slane %v77, %v1296
    %v1298 = vcombine.high %v1297, %v1297
    %v1300 = vshrl.u32 %v1289, 16
    %v1302 = vrot.slane %v1300, 6
    %v1303 = vshll.u32 %v1289, 16
    %v1305 = vrot.slane %v1303, 7
    %v1306 = vor.u32 %v1302, %v1305
    %v1307 = vrot.slane %v1306, 2
    %v1309 = vshll.u32 %v1290, 16
    %v1311 = vrot.slane %v1309, 7
    %v1312 = vsel %vm157, %v1307, %v1311
    %v1314 = vshrl.u32 %v1297, 16
    %v1316 = vrot.slane %v1314, 6
    %v1317 = vshll.u32 %v1297, 16
    %v1319 = vrot.slane %v1317, 7
    %v1320 = vor.u32 %v1316, %v1319
    %v1321 = vrot.slane %v1320, 2
    %v1323 = vshll.u32 %v1298, 16
    %v1325 = vrot.slane %v1323, 7
    %v1326 = vsel %vm157, %v1321, %v1325
    %v1327 = vrot.slane %v1289, 7
    %v1328 = vrot.slane %v1327, 2
    %v1329 = vrot.slane %v1290, 7
    %v1330 = vsel %vm276, %v1328, %v1329
    %v1331 = vrot.slane %v1297, 7
    %v1332 = vrot.slane %v1331, 2
    %v1333 = vrot.slane %v1298, 7
    %v1334 = vsel %vm276, %v1332, %v1333
    %v1338 = vunpack.c.l.s4 1983009808
    %v1339 = vunpack.c.0.s8 %v1338
    %v1340 = vlaneseq
    %v1341 = vshrl.u32 %v1340, 7
    %v1342 = vsub.s32 %v1339, %v1341
    %v1343 = vrot.slane %v72, %v1342
    %v1344 = vcombine.high %v1343, %v1343
    %v1346 = vunpack.c.l.s4 1983009808
    %v1347 = vunpack.c.0.s8 %v1346
    %v1348 = vlaneseq
    %v1349 = vshrl.u32 %v1348, 7
    %v1350 = vsub.s32 %v1347, %v1349
    %v1351 = vrot.slane %v78, %v1350
    %v1352 = vcombine.high %v1351, %v1351
    %v1354 = vshrl.u32 %v1343, 16
    %v1356 = vrot.slane %v1354, 6
    %v1357 = vshll.u32 %v1343, 16
    %v1359 = vrot.slane %v1357, 7
    %v1360 = vor.u32 %v1356, %v1359
    %v1361 = vrot.slane %v1360, 2
    %v1363 = vshll.u32 %v1344, 16
    %v1365 = vrot.slane %v1363, 7
    %v1366 = vsel %vm157, %v1361, %v1365
    %v1368 = vshrl.u32 %v1351, 16
    %v1370 = vrot.slane %v1368, 6
    %v1371 = vshll.u32 %v1351, 16
    %v1373 = vrot.slane %v1371, 7
    %v1374 = vor.u32 %v1370, %v1373
    %v1375 = vrot.slane %v1374, 2
    %v1377 = vshll.u32 %v1352, 16
    %v1379 = vrot.slane %v1377, 7
    %v1380 = vsel %vm157, %v1375, %v1379
    %v1381 = vrot.slane %v1343, 7
    %v1382 = vrot.slane %v1381, 2
    %v1383 = vrot.slane %v1344, 7
    %v1384 = vsel %vm276, %v1382, %v1383
    %v1385 = vrot.slane %v1351, 7
    %v1386 = vrot.slane %v1385, 2
    %v1387 = vrot.slane %v1352, 7
    %v1388 = vsel %vm276, %v1386, %v1387
    %v1389 = vcombine.low %v31, %v32
    %v1390 = vcombine.low %v33, %v34
    %v1392 = vunpack.c.l.s4 1983009808
    %v1393 = vunpack.c.0.s8 %v1392
    %v1394 = vlaneseq
    %v1395 = vshrl.u32 %v1394, 7
    %v1396 = vsub.s32 %v1393, %v1395
    %v1397 = vrot.slane %v1389, %v1396
    %v1399 = vunpack.c.l.s4 1983009808
    %v1400 = vunpack.c.0.s8 %v1399
    %v1401 = vlaneseq
    %v1402 = vshrl.u32 %v1401, 7
    %v1403 = vsub.s32 %v1400, %v1402
    %v1404 = vrot.slane %v1390, %v1403
    %v1405 = vcombine.low %v1397, %v1404
    %v1406 = vcombine.low %v37, %v38
    %v1407 = vcombine.low %v39, %v40
    %v1409 = vunpack.c.l.s4 1983009808
    %v1410 = vunpack.c.0.s8 %v1409
    %v1411 = vlaneseq
    %v1412 = vshrl.u32 %v1411, 7
    %v1413 = vsub.s32 %v1410, %v1412
    %v1414 = vrot.slane %v1406, %v1413
    %v1416 = vunpack.c.l.s4 1983009808
    %v1417 = vunpack.c.0.s8 %v1416
    %v1418 = vlaneseq
    %v1419 = vshrl.u32 %v1418, 7
    %v1420 = vsub.s32 %v1417, %v1419
    %v1421 = vrot.slane %v1407, %v1420
    %v1422 = vcombine.low %v1414, %v1421
    %v1423 = vcombine.low %v43, %v44
    %v1424 = vcombine.low %v45, %v46
    %v1426 = vunpack.c.l.s4 1983009808
    %v1427 = vunpack.c.0.s8 %v1426
    %v1428 = vlaneseq
    %v1429 = vshrl.u32 %v1428, 7
    %v1430 = vsub.s32 %v1427, %v1429
    %v1431 = vrot.slane %v1423, %v1430
    %v1433 = vunpack.c.l.s4 1983009808
    %v1434 = vunpack.c.0.s8 %v1433
    %v1435 = vlaneseq
    %v1436 = vshrl.u32 %v1435, 7
    %v1437 = vsub.s32 %v1434, %v1436
    %v1438 = vrot.slane %v1424, %v1437
    %v1439 = vcombine.low %v1431, %v1438
    %v1440 = vcombine.low %v49, %v50
    %v1441 = vcombine.low %v51, %v52
    %v1443 = vunpack.c.l.s4 1983009808
    %v1444 = vunpack.c.0.s8 %v1443
    %v1445 = vlaneseq
    %v1446 = vshrl.u32 %v1445, 7
    %v1447 = vsub.s32 %v1444, %v1446
    %v1448 = vrot.slane %v1440, %v1447
    %v1450 = vunpack.c.l.s4 1983009808
    %v1451 = vunpack.c.0.s8 %v1450
    %v1452 = vlaneseq
    %v1453 = vshrl.u32 %v1452, 7
    %v1454 = vsub.s32 %v1451, %v1453
    %v1455 = vrot.slane %v1441, %v1454
    %v1456 = vcombine.low %v1448, %v1455
    %v1457 = vcombine.low %v55, %v56
    %v1458 = vcombine.low %v57, %v58
    %v1460 = vunpack.c.l.s4 1983009808
    %v1461 = vunpack.c.0.s8 %v1460
    %v1462 = vlaneseq
    %v1463 = vshrl.u32 %v1462, 7
    %v1464 = vsub.s32 %v1461, %v1463
    %v1465 = vrot.slane %v1457, %v1464
    %v1467 = vunpack.c.l.s4 1983009808
    %v1468 = vunpack.c.0.s8 %v1467
    %v1469 = vlaneseq
    %v1470 = vshrl.u32 %v1469, 7
    %v1471 = vsub.s32 %v1468, %v1470
    %v1472 = vrot.slane %v1458, %v1471
    %v1473 = vcombine.low %v1465, %v1472
    %v1474 = vcombine.low %v61, %v62
    %v1475 = vcombine.low %v63, %v64
    %v1477 = vunpack.c.l.s4 1983009808
    %v1478 = vunpack.c.0.s8 %v1477
    %v1479 = vlaneseq
    %v1480 = vshrl.u32 %v1479, 7
    %v1481 = vsub.s32 %v1478, %v1480
    %v1482 = vrot.slane %v1474, %v1481
    %v1484 = vunpack.c.l.s4 1983009808
    %v1485 = vunpack.c.0.s8 %v1484
    %v1486 = vlaneseq
    %v1487 = vshrl.u32 %v1486, 7
    %v1488 = vsub.s32 %v1485, %v1487
    %v1489 = vrot.slane %v1475, %v1488
    %v1490 = vcombine.low %v1482, %v1489
    %v1491 = vcombine.low %v67, %v68
    %v1492 = vcombine.low %v69, %v70
    %v1494 = vunpack.c.l.s4 1983009808
    %v1495 = vunpack.c.0.s8 %v1494
    %v1496 = vlaneseq
    %v1497 = vshrl.u32 %v1496, 7
    %v1498 = vsub.s32 %v1495, %v1497
    %v1499 = vrot.slane %v1491, %v1498
    %v1501 = vunpack.c.l.s4 1983009808
    %v1502 = vunpack.c.0.s8 %v1501
    %v1503 = vlaneseq
    %v1504 = vshrl.u32 %v1503, 7
    %v1505 = vsub.s32 %v1502, %v1504
    %v1506 = vrot.slane %v1492, %v1505
    %v1507 = vcombine.low %v1499, %v1506
    %v1508 = vcombine.low %v73, %v74
    %v1509 = vcombine.low %v75, %v76
    %v1511 = vunpack.c.l.s4 1983009808
    %v1512 = vunpack.c.0.s8 %v1511
    %v1513 = vlaneseq
    %v1514 = vshrl.u32 %v1513, 7
    %v1515 = vsub.s32 %v1512, %v1514
    %v1516 = vrot.slane %v1508, %v1515
    %v1518 = vunpack.c.l.s4 1983009808
    %v1519 = vunpack.c.0.s8 %v1518
    %v1520 = vlaneseq
    %v1521 = vshrl.u32 %v1520, 7
    %v1522 = vsub.s32 %v1519, %v1521
    %v1523 = vrot.slane %v1509, %v1522
    %v1524 = vcombine.low %v1516, %v1523
    %v1525 = vld [vmem:[%s4] sm:$0xf]
    %v1526 = vld [vmem:[%s4 + $0x4] sm:$0xf]
    %v1527 = vld [vmem:[%s4 + $0x8] sm:$0xf]
    %v1528 = vld [vmem:[%s4 + $0xc] sm:$0xf]
    %v1529 = vld [vmem:[%s4 + $0x10] sm:$0xf]
    %v1530 = vld [vmem:[%s4 + $0x14] sm:$0xf]
    %v1531 = vld [vmem:[%s4 + $0x18] sm:$0xf]
    %v1532 = vld [vmem:[%s4 + $0x1c] sm:$0xf]
    %v1533 = vcombine.low %v171, %v185
    %v1534 = vcombine.low %v199, %v213
    %v1536 = vunpack.c.l.s4 1983009808
    %v1537 = vunpack.c.0.s8 %v1536
    %v1538 = vlaneseq
    %v1539 = vshrl.u32 %v1538, 7
    %v1540 = vsub.s32 %v1537, %v1539
    %v1541 = vrot.slane %v1533, %v1540
    %v1543 = vunpack.c.l.s4 1983009808
    %v1544 = vunpack.c.0.s8 %v1543
    %v1545 = vlaneseq
    %v1546 = vshrl.u32 %v1545, 7
    %v1547 = vsub.s32 %v1544, %v1546
    %v1548 = vrot.slane %v1534, %v1547
    %v1549 = vcombine.low %v1541, %v1548
    %v1550 = vcombine.low %v227, %v241
    %v1551 = vcombine.low %v255, %v269
    %v1553 = vunpack.c.l.s4 1983009808
    %v1554 = vunpack.c.0.s8 %v1553
    %v1555 = vlaneseq
    %v1556 = vshrl.u32 %v1555, 7
    %v1557 = vsub.s32 %v1554, %v1556
    %v1558 = vrot.slane %v1550, %v1557
    %v1560 = vunpack.c.l.s4 1983009808
    %v1561 = vunpack.c.0.s8 %v1560
    %v1562 = vlaneseq
    %v1563 = vshrl.u32 %v1562, 7
    %v1564 = vsub.s32 %v1561, %v1563
    %v1565 = vrot.slane %v1551, %v1564
    %v1566 = vcombine.low %v1558, %v1565
    %v1567 = vcombine.low %v826, %v840
    %v1568 = vcombine.low %v854, %v868
    %v1570 = vunpack.c.l.s4 1983009808
    %v1571 = vunpack.c.0.s8 %v1570
    %v1572 = vlaneseq
    %v1573 = vshrl.u32 %v1572, 7
    %v1574 = vsub.s32 %v1571, %v1573
    %v1575 = vrot.slane %v1567, %v1574
    %v1577 = vunpack.c.l.s4 1983009808
    %v1578 = vunpack.c.0.s8 %v1577
    %v1579 = vlaneseq
    %v1580 = vshrl.u32 %v1579, 7
    %v1581 = vsub.s32 %v1578, %v1580
    %v1582 = vrot.slane %v1568, %v1581
    %v1583 = vcombine.low %v1575, %v1582
    %v1584 = vcombine.low %v882, %v896
    %v1585 = vcombine.low %v910, %v924
    %v1587 = vunpack.c.l.s4 1983009808
    %v1588 = vunpack.c.0.s8 %v1587
    %v1589 = vlaneseq
    %v1590 = vshrl.u32 %v1589, 7
    %v1591 = vsub.s32 %v1588, %v1590
    %v1592 = vrot.slane %v1584, %v1591
    %v1594 = vunpack.c.l.s4 1983009808
    %v1595 = vunpack.c.0.s8 %v1594
    %v1596 = vlaneseq
    %v1597 = vshrl.u32 %v1596, 7
    %v1598 = vsub.s32 %v1595, %v1597
    %v1599 = vrot.slane %v1585, %v1598
    %v1600 = vcombine.low %v1592, %v1599
    %s1601 = scalar_lea.vmem %s4, 32
    %v1602 = vld [vmem:[%s1601] sm:$0xf]
    %v1603 = vld [vmem:[%s1601 + $0x4] sm:$0xf]
    %v1604 = vld [vmem:[%s1601 + $0x8] sm:$0xf]
    %v1605 = vld [vmem:[%s1601 + $0xc] sm:$0xf]
    %v1606 = vld [vmem:[%s1601 + $0x10] sm:$0xf]
    %v1607 = vld [vmem:[%s1601 + $0x14] sm:$0xf]
    %v1608 = vld [vmem:[%s1601 + $0x18] sm:$0xf]
    %v1609 = vld [vmem:[%s1601 + $0x1c] sm:$0xf]
    %v1618 = vunpack.c.l.b16 %v1602
    %v1619 = vunpack.c.l.b16 %v1603
    %v1620 = vunpack.c.l.b16 %v1604
    %v1621 = vunpack.c.l.b16 %v1605
    %v1622 = vunpack.c.l.b16 %v1606
    %v1623 = vunpack.c.l.b16 %v1607
    %v1624 = vunpack.c.l.b16 %v1608
    %v1625 = vunpack.c.l.b16 %v1609
    %v1626 = vpack.c.b16 %v1619, %v1618
    %v1627 = vpack.c.b16 %v1621, %v1620
    %v1628 = vpack.c.b16 %v1623, %v1622
    %v1629 = vpack.c.b16 %v1625, %v1624
    %vm1634 = vcmask 523264
    %v1636 = vsel %vm1634, %v1439, 0
    %v1639 = vsel %vm1634, %v1456, 0
    %v1642 = vsel %vm1634, %v1549, 0
    %v1645 = vsel %vm1634, %v1566, 0
    %v1648 = vsel %vm1634, %v1507, 0
    %v1651 = vsel %vm1634, %v1524, 0
    %v1654 = vsel %vm1634, %v1583, 0
    %v1657 = vsel %vm1634, %v1600, 0
    %1659 = vmatprep.subr.bf16.mxu0 0
    %1660 = vmatpush1.bf16.msra.mxu0 %v1626
    %1661 = vmatprep.subr.bf16.mxu0 0
    %1662 = vmatpush1.bf16.msra.mxu0 %v1627
    %1663 = vmatprep.subr.bf16.mxu0 0
    %1664 = vmatpush1.bf16.msra.mxu0 %v1628
    %1665 = vmatprep.subr.bf16.mxu0 0
    %1666 = vmatpush1.bf16.msra.mxu0 %v1629
    %1667 = vmatprep.subr.bf16.mxu0 0
    %1668 = vmatpush1.bf16.msra.mxu0 0
    %1669 = vmatprep.subr.bf16.mxu0 0
    %1670 = vmatpush1.bf16.msra.mxu0 0
    %1671 = vmatprep.subr.bf16.mxu0 0
    %1672 = vmatpush1.bf16.msra.mxu0 0
    %1673 = vmatprep.subr.bf16.mxu0 0
    %1674 = vmatpush1.bf16.msra.mxu0 0
    %1675 = vmatprep.subr.bf16.mxu0 0
    %1676 = vmatpush1.bf16.msra.mxu0 0
    %1677 = vmatprep.subr.bf16.mxu0 0
    %1678 = vmatpush1.bf16.msra.mxu0 0
    %1679 = vmatprep.subr.bf16.mxu0 0
    %1680 = vmatpush1.bf16.msra.mxu0 0
    %1681 = vmatprep.subr.bf16.mxu0 0
    %1682 = vmatpush1.bf16.msra.mxu0 0
    %1683 = vmatprep.subr.bf16.mxu0 0
    %1684 = vmatpush1.bf16.msra.mxu0 0
    %1685 = vmatprep.subr.bf16.mxu0 0
    %1686 = vmatpush1.bf16.msra.mxu0 0
    %1687 = vmatprep.subr.bf16.mxu0 0
    %1688 = vmatpush1.bf16.msra.mxu0 0
    %1689 = vmatprep.subr.bf16.mxu0 0
    %1690 = vmatpush1.bf16.msra.mxu0 0
    %1691 = vmatprep.mubr.bf16.mxu0 0
    %1692 = vmatmul.mubr.bf16.gmra.mrb[0].mxu0 %v1636
    %v1693 = vpop.f32.mrb[0].mxu0
    %v1694 = vadd.f32 0.0, %v1693
    %v1695 = vpop.f32.mrb[0].mxu0
    %v1696 = vpop.f32.mrb[0].mxu0
    %v1697 = vadd.f32 0.0, %v1696
    %v1698 = vpop.f32.mrb[0].mxu0
    %1699 = vmatprep.mubr.bf16.mxu0 0
    %1700 = vmatmul.mubr.bf16.gmra.mrb[0].mxu0 %v1639
    %v1701 = vpop.f32.mrb[0].mxu0
    %v1702 = vadd.f32 0.0, %v1701
    %v1703 = vpop.f32.mrb[0].mxu0
    %v1704 = vpop.f32.mrb[0].mxu0
    %v1705 = vadd.f32 0.0, %v1704
    %v1706 = vpop.f32.mrb[0].mxu0
    %1707 = vmatprep.mubr.bf16.mxu0 0
    %1708 = vmatmul.mubr.bf16.gmra.mrb[0].mxu0 %v1642
    %v1709 = vpop.f32.mrb[0].mxu0
    %v1710 = vadd.f32 0.0, %v1709
    %v1711 = vpop.f32.mrb[0].mxu0
    %v1712 = vpop.f32.mrb[0].mxu0
    %v1713 = vadd.f32 0.0, %v1712
    %v1714 = vpop.f32.mrb[0].mxu0
    %1715 = vmatprep.mubr.bf16.mxu0 0
    %1716 = vmatmul.mubr.bf16.gmra.mrb[0].mxu0 %v1645
    %v1717 = vpop.f32.mrb[0].mxu0
    %v1718 = vadd.f32 0.0, %v1717
    %v1719 = vpop.f32.mrb[0].mxu0
    %v1720 = vpop.f32.mrb[0].mxu0
    %v1721 = vadd.f32 0.0, %v1720
    %v1722 = vpop.f32.mrb[0].mxu0
    %1723 = vmatprep.mubr.bf16.mxu0 0
    %1724 = vmatmul.mubr.bf16.gmra.mrb[0].mxu0 %v1648
    %v1725 = vpop.f32.mrb[0].mxu0
    %v1726 = vadd.f32 0.0, %v1725
    %v1727 = vpop.f32.mrb[0].mxu0
    %v1728 = vpop.f32.mrb[0].mxu0
    %v1729 = vadd.f32 0.0, %v1728
    %v1730 = vpop.f32.mrb[0].mxu0
    %1731 = vmatprep.mubr.bf16.mxu0 0
    %1732 = vmatmul.mubr.bf16.gmra.mrb[0].mxu0 %v1651
    %v1733 = vpop.f32.mrb[0].mxu0
    %v1734 = vadd.f32 0.0, %v1733
    %v1735 = vpop.f32.mrb[0].mxu0
    %v1736 = vpop.f32.mrb[0].mxu0
    %v1737 = vadd.f32 0.0, %v1736
    %v1738 = vpop.f32.mrb[0].mxu0
    %1739 = vmatprep.mubr.bf16.mxu0 0
    %1740 = vmatmul.mubr.bf16.gmra.mrb[0].mxu0 %v1654
    %v1741 = vpop.f32.mrb[0].mxu0
    %v1742 = vadd.f32 0.0, %v1741
    %v1743 = vpop.f32.mrb[0].mxu0
    %v1744 = vpop.f32.mrb[0].mxu0
    %v1745 = vadd.f32 0.0, %v1744
    %v1746 = vpop.f32.mrb[0].mxu0
    %1747 = vmatprep.mubr.bf16.mxu0 0
    %1748 = vmatmul.mubr.bf16.gmra.mrb[0].mxu0 %v1657
    %v1749 = vpop.f32.mrb[0].mxu0
    %v1750 = vadd.f32 0.0, %v1749
    %v1751 = vpop.f32.mrb[0].mxu0
    %v1752 = vpop.f32.mrb[0].mxu0
    %v1753 = vadd.f32 0.0, %v1752
    %v1754 = vpop.f32.mrb[0].mxu0
    %1755 = vdwg.mxu0
    %v1764 = vunpack.c.l.b16 %v1525
    %v1765 = vunpack.c.l.b16 %v1526
    %v1766 = vunpack.c.l.b16 %v1527
    %v1767 = vunpack.c.l.b16 %v1528
    %v1768 = vunpack.c.l.b16 %v1529
    %v1769 = vunpack.c.l.b16 %v1530
    %v1770 = vunpack.c.l.b16 %v1531
    %v1771 = vunpack.c.l.b16 %v1532
    %v1772 = vpack.c.b16 %v1765, %v1764
    %v1773 = vpack.c.b16 %v1767, %v1766
    %v1774 = vpack.c.b16 %v1769, %v1768
    %v1775 = vpack.c.b16 %v1771, %v1770
    %v1781 = vsel %vm1634, %v1405, 0
    %v1784 = vsel %vm1634, %v1422, 0
    %v1787 = vsel %vm1634, %v1473, 0
    %v1790 = vsel %vm1634, %v1490, 0
    %1792 = vmatprep.subr.bf16.mxu0 0
    %1793 = vmatpush1.bf16.msra.mxu0 %v1772
    %1794 = vmatprep.subr.bf16.mxu0 0
    %1795 = vmatpush1.bf16.msra.mxu0 %v1773
    %1796 = vmatprep.subr.bf16.mxu0 0
    %1797 = vmatpush1.bf16.msra.mxu0 %v1774
    %1798 = vmatprep.subr.bf16.mxu0 0
    %1799 = vmatpush1.bf16.msra.mxu0 %v1775
    %1800 = vmatprep.subr.bf16.mxu0 0
    %1801 = vmatpush1.bf16.msra.mxu0 0
    %1802 = vmatprep.subr.bf16.mxu0 0
    %1803 = vmatpush1.bf16.msra.mxu0 0
    %1804 = vmatprep.subr.bf16.mxu0 0
    %1805 = vmatpush1.bf16.msra.mxu0 0
    %1806 = vmatprep.subr.bf16.mxu0 0
    %1807 = vmatpush1.bf16.msra.mxu0 0
    %1808 = vmatprep.subr.bf16.mxu0 0
    %1809 = vmatpush1.bf16.msra.mxu0 0
    %1810 = vmatprep.subr.bf16.mxu0 0
    %1811 = vmatpush1.bf16.msra.mxu0 0
    %1812 = vmatprep.subr.bf16.mxu0 0
    %1813 = vmatpush1.bf16.msra.mxu0 0
    %1814 = vmatprep.subr.bf16.mxu0 0
    %1815 = vmatpush1.bf16.msra.mxu0 0
    %1816 = vmatprep.subr.bf16.mxu0 0
    %1817 = vmatpush1.bf16.msra.mxu0 0
    %1818 = vmatprep.subr.bf16.mxu0 0
    %1819 = vmatpush1.bf16.msra.mxu0 0
    %1820 = vmatprep.subr.bf16.mxu0 0
    %1821 = vmatpush1.bf16.msra.mxu0 0
    %1822 = vmatprep.subr.bf16.mxu0 0
    %1823 = vmatpush1.bf16.msra.mxu0 0
    %1824 = vmatprep.mubr.bf16.mxu0 0
    %1825 = vmatmul.mubr.bf16.gmra.mrb[0].mxu0 %v1781
    %v1826 = vpop.f32.mrb[0].mxu0
    %v1827 = vadd.f32 %v1694, %v1826
    %v1828 = vpop.f32.mrb[0].mxu0
    %v1829 = vpop.f32.mrb[0].mxu0
    %v1830 = vadd.f32 %v1697, %v1829
    %v1831 = vpop.f32.mrb[0].mxu0
    %1832 = vmatprep.mubr.bf16.mxu0 0
    %1833 = vmatmul.mubr.bf16.gmra.mrb[0].mxu0 %v1784
    %v1834 = vpop.f32.mrb[0].mxu0
    %v1835 = vadd.f32 %v1702, %v1834
    %v1836 = vpop.f32.mrb[0].mxu0
    %v1837 = vpop.f32.mrb[0].mxu0
    %v1838 = vadd.f32 %v1705, %v1837
    %v1839 = vpop.f32.mrb[0].mxu0
    %1840 = vmatprep.mubr.bf16.mxu0 0
    %1841 = vmatmul.mubr.bf16.gmra.mrb[0].mxu0 %v1636
    %v1842 = vpop.f32.mrb[0].mxu0
    %v1843 = vadd.f32 %v1710, %v1842
    %v1844 = vpop.f32.mrb[0].mxu0
    %v1845 = vpop.f32.mrb[0].mxu0
    %v1846 = vadd.f32 %v1713, %v1845
    %v1847 = vpop.f32.mrb[0].mxu0
    %1848 = vmatprep.mubr.bf16.mxu0 0
    %1849 = vmatmul.mubr.bf16.gmra.mrb[0].mxu0 %v1639
    %v1850 = vpop.f32.mrb[0].mxu0
    %v1851 = vadd.f32 %v1718, %v1850
    %v1852 = vpop.f32.mrb[0].mxu0
    %v1853 = vpop.f32.mrb[0].mxu0
    %v1854 = vadd.f32 %v1721, %v1853
    %v1855 = vpop.f32.mrb[0].mxu0
    %1856 = vmatprep.mubr.bf16.mxu0 0
    %1857 = vmatmul.mubr.bf16.gmra.mrb[0].mxu0 %v1787
    %v1858 = vpop.f32.mrb[0].mxu0
    %v1859 = vadd.f32 %v1726, %v1858
    %v1860 = vpop.f32.mrb[0].mxu0
    %v1861 = vpop.f32.mrb[0].mxu0
    %v1862 = vadd.f32 %v1729, %v1861
    %v1863 = vpop.f32.mrb[0].mxu0
    %1864 = vmatprep.mubr.bf16.mxu0 0
    %1865 = vmatmul.mubr.bf16.gmra.mrb[0].mxu0 %v1790
    %v1866 = vpop.f32.mrb[0].mxu0
    %v1867 = vadd.f32 %v1734, %v1866
    %v1868 = vpop.f32.mrb[0].mxu0
    %v1869 = vpop.f32.mrb[0].mxu0
    %v1870 = vadd.f32 %v1737, %v1869
    %v1871 = vpop.f32.mrb[0].mxu0
    %1872 = vmatprep.mubr.bf16.mxu0 0
    %1873 = vmatmul.mubr.bf16.gmra.mrb[0].mxu0 %v1648
    %v1874 = vpop.f32.mrb[0].mxu0
    %v1875 = vadd.f32 %v1742, %v1874
    %v1876 = vpop.f32.mrb[0].mxu0
    %v1877 = vpop.f32.mrb[0].mxu0
    %v1878 = vadd.f32 %v1745, %v1877
    %v1879 = vpop.f32.mrb[0].mxu0
    %1880 = vmatprep.mubr.bf16.mxu0 0
    %1881 = vmatmul.mubr.bf16.gmra.mrb[0].mxu0 %v1651
    %v1882 = vpop.f32.mrb[0].mxu0
    %v1883 = vadd.f32 %v1750, %v1882
    %v1884 = vpop.f32.mrb[0].mxu0
    %v1885 = vpop.f32.mrb[0].mxu0
    %v1886 = vadd.f32 %v1753, %v1885
    %v1887 = vpop.f32.mrb[0].mxu0
    %1888 = vdwg.mxu0
    %v1889 = vcombine.low %v502, %v516
    %v1890 = vcombine.low %v530, %v544
    %v1892 = vunpack.c.l.s4 1983009808
    %v1893 = vunpack.c.0.s8 %v1892
    %v1894 = vlaneseq
    %v1895 = vshrl.u32 %v1894, 7
    %v1896 = vsub.s32 %v1893, %v1895
    %v1897 = vrot.slane %v1889, %v1896
    %v1899 = vunpack.c.l.s4 1983009808
    %v1900 = vunpack.c.0.s8 %v1899
    %v1901 = vlaneseq
    %v1902 = vshrl.u32 %v1901, 7
    %v1903 = vsub.s32 %v1900, %v1902
    %v1904 = vrot.slane %v1890, %v1903
    %v1905 = vcombine.low %v1897, %v1904
    %v1906 = vcombine.low %v558, %v572
    %v1907 = vcombine.low %v586, %v600
    %v1909 = vunpack.c.l.s4 1983009808
    %v1910 = vunpack.c.0.s8 %v1909
    %v1911 = vlaneseq
    %v1912 = vshrl.u32 %v1911, 7
    %v1913 = vsub.s32 %v1910, %v1912
    %v1914 = vrot.slane %v1906, %v1913
    %v1916 = vunpack.c.l.s4 1983009808
    %v1917 = vunpack.c.0.s8 %v1916
    %v1918 = vlaneseq
    %v1919 = vshrl.u32 %v1918, 7
    %v1920 = vsub.s32 %v1917, %v1919
    %v1921 = vrot.slane %v1907, %v1920
    %v1922 = vcombine.low %v1914, %v1921
    %v1923 = vcombine.low %v1150, %v1164
    %v1924 = vcombine.low %v1178, %v1192
    %v1926 = vunpack.c.l.s4 1983009808
    %v1927 = vunpack.c.0.s8 %v1926
    %v1928 = vlaneseq
    %v1929 = vshrl.u32 %v1928, 7
    %v1930 = vsub.s32 %v1927, %v1929
    %v1931 = vrot.slane %v1923, %v1930
    %v1933 = vunpack.c.l.s4 1983009808
    %v1934 = vunpack.c.0.s8 %v1933
    %v1935 = vlaneseq
    %v1936 = vshrl.u32 %v1935, 7
    %v1937 = vsub.s32 %v1934, %v1936
    %v1938 = vrot.slane %v1924, %v1937
    %v1939 = vcombine.low %v1931, %v1938
    %v1940 = vcombine.low %v1206, %v1220
    %v1941 = vcombine.low %v1234, %v1248
    %v1943 = vunpack.c.l.s4 1983009808
    %v1944 = vunpack.c.0.s8 %v1943
    %v1945 = vlaneseq
    %v1946 = vshrl.u32 %v1945, 7
    %v1947 = vsub.s32 %v1944, %v1946
    %v1948 = vrot.slane %v1940, %v1947
    %v1950 = vunpack.c.l.s4 1983009808
    %v1951 = vunpack.c.0.s8 %v1950
    %v1952 = vlaneseq
    %v1953 = vshrl.u32 %v1952, 7
    %v1954 = vsub.s32 %v1951, %v1953
    %v1955 = vrot.slane %v1941, %v1954
    %v1956 = vcombine.low %v1948, %v1955
    %s1957 = scalar_lea.vmem %s4, 64
    %v1958 = vld [vmem:[%s1957] sm:$0xf]
    %v1959 = vld [vmem:[%s1957 + $0x4] sm:$0xf]
    %v1960 = vld [vmem:[%s1957 + $0x8] sm:$0xf]
    %v1961 = vld [vmem:[%s1957 + $0xc] sm:$0xf]
    %v1962 = vld [vmem:[%s1957 + $0x10] sm:$0xf]
    %v1963 = vld [vmem:[%s1957 + $0x14] sm:$0xf]
    %v1964 = vld [vmem:[%s1957 + $0x18] sm:$0xf]
    %v1965 = vld [vmem:[%s1957 + $0x1c] sm:$0xf]
    %v1974 = vunpack.c.l.b16 %v1958
    %v1975 = vunpack.c.l.b16 %v1959
    %v1976 = vunpack.c.l.b16 %v1960
    %v1977 = vunpack.c.l.b16 %v1961
    %v1978 = vunpack.c.l.b16 %v1962
    %v1979 = vunpack.c.l.b16 %v1963
    %v1980 = vunpack.c.l.b16 %v1964
    %v1981 = vunpack.c.l.b16 %v1965
    %v1982 = vpack.c.b16 %v1975, %v1974
    %v1983 = vpack.c.b16 %v1977, %v1976
    %v1984 = vpack.c.b16 %v1979, %v1978
    %v1985 = vpack.c.b16 %v1981, %v1980
    %v1991 = vsel %vm1634, %v1905, 0
    %v1994 = vsel %vm1634, %v1922, 0
    %v1997 = vsel %vm1634, %v1939, 0
    %v2000 = vsel %vm1634, %v1956, 0
    %2002 = vmatprep.subr.bf16.mxu0 0
    %2003 = vmatpush1.bf16.msra.mxu0 %v1982
    %2004 = vmatprep.subr.bf16.mxu0 0
    %2005 = vmatpush1.bf16.msra.mxu0 %v1983
    %2006 = vmatprep.subr.bf16.mxu0 0
    %2007 = vmatpush1.bf16.msra.mxu0 %v1984
    %2008 = vmatprep.subr.bf16.mxu0 0
    %2009 = vmatpush1.bf16.msra.mxu0 %v1985
    %2010 = vmatprep.subr.bf16.mxu0 0
    %2011 = vmatpush1.bf16.msra.mxu0 0
    %2012 = vmatprep.subr.bf16.mxu0 0
    %2013 = vmatpush1.bf16.msra.mxu0 0
    %2014 = vmatprep.subr.bf16.mxu0 0
    %2015 = vmatpush1.bf16.msra.mxu0 0
    %2016 = vmatprep.subr.bf16.mxu0 0
    %2017 = vmatpush1.bf16.msra.mxu0 0
    %2018 = vmatprep.subr.bf16.mxu0 0
    %2019 = vmatpush1.bf16.msra.mxu0 0
    %2020 = vmatprep.subr.bf16.mxu0 0
    %2021 = vmatpush1.bf16.msra.mxu0 0
    %2022 = vmatprep.subr.bf16.mxu0 0
    %2023 = vmatpush1.bf16.msra.mxu0 0
    %2024 = vmatprep.subr.bf16.mxu0 0
    %2025 = vmatpush1.bf16.msra.mxu0 0
    %2026 = vmatprep.subr.bf16.mxu0 0
    %2027 = vmatpush1.bf16.msra.mxu0 0
    %2028 = vmatprep.subr.bf16.mxu0 0
    %2029 = vmatpush1.bf16.msra.mxu0 0
    %2030 = vmatprep.subr.bf16.mxu0 0
    %2031 = vmatpush1.bf16.msra.mxu0 0
    %2032 = vmatprep.subr.bf16.mxu0 0
    %2033 = vmatpush1.bf16.msra.mxu0 0
    %2034 = vmatprep.mubr.bf16.mxu0 0
    %2035 = vmatmul.mubr.bf16.gmra.mrb[0].mxu0 %v1642
    %v2036 = vpop.f32.mrb[0].mxu0
    %v2037 = vadd.f32 0.0, %v2036
    %v2038 = vpop.f32.mrb[0].mxu0
    %v2039 = vpop.f32.mrb[0].mxu0
    %v2040 = vadd.f32 0.0, %v2039
    %v2041 = vpop.f32.mrb[0].mxu0
    %2042 = vmatprep.mubr.bf16.mxu0 0
    %2043 = vmatmul.mubr.bf16.gmra.mrb[0].mxu0 %v1645
    %v2044 = vpop.f32.mrb[0].mxu0
    %v2045 = vadd.f32 0.0, %v2044
    %v2046 = vpop.f32.mrb[0].mxu0
    %v2047 = vpop.f32.mrb[0].mxu0
    %v2048 = vadd.f32 0.0, %v2047
    %v2049 = vpop.f32.mrb[0].mxu0
    %2050 = vmatprep.mubr.bf16.mxu0 0
    %2051 = vmatmul.mubr.bf16.gmra.mrb[0].mxu0 %v1991
    %v2052 = vpop.f32.mrb[0].mxu0
    %v2053 = vadd.f32 0.0, %v2052
    %v2054 = vpop.f32.mrb[0].mxu0
    %v2055 = vpop.f32.mrb[0].mxu0
    %v2056 = vadd.f32 0.0, %v2055
    %v2057 = vpop.f32.mrb[0].mxu0
    %2058 = vmatprep.mubr.bf16.mxu0 0
    %2059 = vmatmul.mubr.bf16.gmra.mrb[0].mxu0 %v1994
    %v2060 = vpop.f32.mrb[0].mxu0
    %v2061 = vadd.f32 0.0, %v2060
    %v2062 = vpop.f32.mrb[0].mxu0
    %v2063 = vpop.f32.mrb[0].mxu0
    %v2064 = vadd.f32 0.0, %v2063
    %v2065 = vpop.f32.mrb[0].mxu0
    %2066 = vmatprep.mubr.bf16.mxu0 0
    %2067 = vmatmul.mubr.bf16.gmra.mrb[0].mxu0 %v1654
    %v2068 = vpop.f32.mrb[0].mxu0
    %v2069 = vadd.f32 0.0, %v2068
    %v2070 = vpop.f32.mrb[0].mxu0
    %v2071 = vpop.f32.mrb[0].mxu0
    %v2072 = vadd.f32 0.0, %v2071
    %v2073 = vpop.f32.mrb[0].mxu0
    %2074 = vmatprep.mubr.bf16.mxu0 0
    %2075 = vmatmul.mubr.bf16.gmra.mrb[0].mxu0 %v1657
    %v2076 = vpop.f32.mrb[0].mxu0
    %v2077 = vadd.f32 0.0, %v2076
    %v2078 = vpop.f32.mrb[0].mxu0
    %v2079 = vpop.f32.mrb[0].mxu0
    %v2080 = vadd.f32 0.0, %v2079
    %v2081 = vpop.f32.mrb[0].mxu0
    %2082 = vmatprep.mubr.bf16.mxu0 0
    %2083 = vmatmul.mubr.bf16.gmra.mrb[0].mxu0 %v1997
    %v2084 = vpop.f32.mrb[0].mxu0
    %v2085 = vadd.f32 0.0, %v2084
    %v2086 = vpop.f32.mrb[0].mxu0
    %v2087 = vpop.f32.mrb[0].mxu0
    %v2088 = vadd.f32 0.0, %v2087
    %v2089 = vpop.f32.mrb[0].mxu0
    %2090 = vmatprep.mubr.bf16.mxu0 0
    %2091 = vmatmul.mubr.bf16.gmra.mrb[0].mxu0 %v2000
    %v2092 = vpop.f32.mrb[0].mxu0
    %v2093 = vadd.f32 0.0, %v2092
    %v2094 = vpop.f32.mrb[0].mxu0
    %v2095 = vpop.f32.mrb[0].mxu0
    %v2096 = vadd.f32 0.0, %v2095
    %v2097 = vpop.f32.mrb[0].mxu0
    %2098 = vdwg.mxu0
    %v2099 = vadd.f32 %v1827, %v2037
    %v2100 = vadd.f32 %v1830, %v2040
    %v2101 = vadd.f32 %v1835, %v2045
    %v2102 = vadd.f32 %v1838, %v2048
    %v2103 = vadd.f32 %v1843, %v2053
    %v2104 = vadd.f32 %v1846, %v2056
    %v2105 = vadd.f32 %v1851, %v2061
    %v2106 = vadd.f32 %v1854, %v2064
    %v2107 = vadd.f32 %v1859, %v2069
    %v2108 = vadd.f32 %v1862, %v2072
    %v2109 = vadd.f32 %v1867, %v2077
    %v2110 = vadd.f32 %v1870, %v2080
    %v2111 = vadd.f32 %v1875, %v2085
    %v2112 = vadd.f32 %v1878, %v2088
    %v2113 = vadd.f32 %v1883, %v2093
    %v2114 = vadd.f32 %v1886, %v2096
    %v2115 = vcombine.low %v280, %v284
    %v2116 = vcombine.low %v288, %v292
    %v2118 = vunpack.c.l.s4 1983009808
    %v2119 = vunpack.c.0.s8 %v2118
    %v2120 = vlaneseq
    %v2121 = vshrl.u32 %v2120, 7
    %v2122 = vsub.s32 %v2119, %v2121
    %v2123 = vrot.slane %v2115, %v2122
    %v2125 = vunpack.c.l.s4 1983009808
    %v2126 = vunpack.c.0.s8 %v2125
    %v2127 = vlaneseq
    %v2128 = vshrl.u32 %v2127, 7
    %v2129 = vsub.s32 %v2126, %v2128
    %v2130 = vrot.slane %v2116, %v2129
    %v2131 = vcombine.low %v2123, %v2130
    %v2132 = vcombine.low %v296, %v300
    %v2133 = vcombine.low %v304, %v308
    %v2135 = vunpack.c.l.s4 1983009808
    %v2136 = vunpack.c.0.s8 %v2135
    %v2137 = vlaneseq
    %v2138 = vshrl.u32 %v2137, 7
    %v2139 = vsub.s32 %v2136, %v2138
    %v2140 = vrot.slane %v2132, %v2139
    %v2142 = vunpack.c.l.s4 1983009808
    %v2143 = vunpack.c.0.s8 %v2142
    %v2144 = vlaneseq
    %v2145 = vshrl.u32 %v2144, 7
    %v2146 = vsub.s32 %v2143, %v2145
    %v2147 = vrot.slane %v2133, %v2146
    %v2148 = vcombine.low %v2140, %v2147
    %v2149 = vcombine.low %v928, %v932
    %v2150 = vcombine.low %v936, %v940
    %v2152 = vunpack.c.l.s4 1983009808
    %v2153 = vunpack.c.0.s8 %v2152
    %v2154 = vlaneseq
    %v2155 = vshrl.u32 %v2154, 7
    %v2156 = vsub.s32 %v2153, %v2155
    %v2157 = vrot.slane %v2149, %v2156
    %v2159 = vunpack.c.l.s4 1983009808
    %v2160 = vunpack.c.0.s8 %v2159
    %v2161 = vlaneseq
    %v2162 = vshrl.u32 %v2161, 7
    %v2163 = vsub.s32 %v2160, %v2162
    %v2164 = vrot.slane %v2150, %v2163
    %v2165 = vcombine.low %v2157, %v2164
    %v2166 = vcombine.low %v944, %v948
    %v2167 = vcombine.low %v952, %v956
    %v2169 = vunpack.c.l.s4 1983009808
    %v2170 = vunpack.c.0.s8 %v2169
    %v2171 = vlaneseq
    %v2172 = vshrl.u32 %v2171, 7
    %v2173 = vsub.s32 %v2170, %v2172
    %v2174 = vrot.slane %v2166, %v2173
    %v2176 = vunpack.c.l.s4 1983009808
    %v2177 = vunpack.c.0.s8 %v2176
    %v2178 = vlaneseq
    %v2179 = vshrl.u32 %v2178, 7
    %v2180 = vsub.s32 %v2177, %v2179
    %v2181 = vrot.slane %v2167, %v2180
    %v2182 = vcombine.low %v2174, %v2181
    %s2183 = scalar_lea.vmem %s4, 96
    %v2184 = vld [vmem:[%s2183] sm:$0xf]
    %v2185 = vld [vmem:[%s2183 + $0x4] sm:$0xf]
    %v2186 = vld [vmem:[%s2183 + $0x8] sm:$0xf]
    %v2187 = vld [vmem:[%s2183 + $0xc] sm:$0xf]
    %v2188 = vld [vmem:[%s2183 + $0x10] sm:$0xf]
    %v2189 = vld [vmem:[%s2183 + $0x14] sm:$0xf]
    %v2190 = vld [vmem:[%s2183 + $0x18] sm:$0xf]
    %v2191 = vld [vmem:[%s2183 + $0x1c] sm:$0xf]
    %v2200 = vunpack.c.l.b16 %v2184
    %v2201 = vunpack.c.l.b16 %v2185
    %v2202 = vunpack.c.l.b16 %v2186
    %v2203 = vunpack.c.l.b16 %v2187
    %v2204 = vunpack.c.l.b16 %v2188
    %v2205 = vunpack.c.l.b16 %v2189
    %v2206 = vunpack.c.l.b16 %v2190
    %v2207 = vunpack.c.l.b16 %v2191
    %v2208 = vpack.c.b16 %v2201, %v2200
    %v2209 = vpack.c.b16 %v2203, %v2202
    %v2210 = vpack.c.b16 %v2205, %v2204
    %v2211 = vpack.c.b16 %v2207, %v2206
    %v2217 = vsel %vm1634, %v2131, 0
    %v2220 = vsel %vm1634, %v2148, 0
    %v2223 = vsel %vm1634, %v2165, 0
    %v2226 = vsel %vm1634, %v2182, 0
    %2228 = vmatprep.subr.bf16.mxu0 0
    %2229 = vmatpush1.bf16.msra.mxu0 %v2208
    %2230 = vmatprep.subr.bf16.mxu0 0
    %2231 = vmatpush1.bf16.msra.mxu0 %v2209
    %2232 = vmatprep.subr.bf16.mxu0 0
    %2233 = vmatpush1.bf16.msra.mxu0 %v2210
    %2234 = vmatprep.subr.bf16.mxu0 0
    %2235 = vmatpush1.bf16.msra.mxu0 %v2211
    %2236 = vmatprep.subr.bf16.mxu0 0
    %2237 = vmatpush1.bf16.msra.mxu0 0
    %2238 = vmatprep.subr.bf16.mxu0 0
    %2239 = vmatpush1.bf16.msra.mxu0 0
    %2240 = vmatprep.subr.bf16.mxu0 0
    %2241 = vmatpush1.bf16.msra.mxu0 0
    %2242 = vmatprep.subr.bf16.mxu0 0
    %2243 = vmatpush1.bf16.msra.mxu0 0
    %2244 = vmatprep.subr.bf16.mxu0 0
    %2245 = vmatpush1.bf16.msra.mxu0 0
    %2246 = vmatprep.subr.bf16.mxu0 0
    %2247 = vmatpush1.bf16.msra.mxu0 0
    %2248 = vmatprep.subr.bf16.mxu0 0
    %2249 = vmatpush1.bf16.msra.mxu0 0
    %2250 = vmatprep.subr.bf16.mxu0 0
    %2251 = vmatpush1.bf16.msra.mxu0 0
    %2252 = vmatprep.subr.bf16.mxu0 0
    %2253 = vmatpush1.bf16.msra.mxu0 0
    %2254 = vmatprep.subr.bf16.mxu0 0
    %2255 = vmatpush1.bf16.msra.mxu0 0
    %2256 = vmatprep.subr.bf16.mxu0 0
    %2257 = vmatpush1.bf16.msra.mxu0 0
    %2258 = vmatprep.subr.bf16.mxu0 0
    %2259 = vmatpush1.bf16.msra.mxu0 0
    %2260 = vmatprep.mubr.bf16.mxu0 0
    %2261 = vmatmul.mubr.bf16.gmra.mrb[0].mxu0 %v1991
    %v2262 = vpop.f32.mrb[0].mxu0
    %v2263 = vadd.f32 0.0, %v2262
    %v2264 = vpop.f32.mrb[0].mxu0
    %v2265 = vpop.f32.mrb[0].mxu0
    %v2266 = vadd.f32 0.0, %v2265
    %v2267 = vpop.f32.mrb[0].mxu0
    %2268 = vmatprep.mubr.bf16.mxu0 0
    %2269 = vmatmul.mubr.bf16.gmra.mrb[0].mxu0 %v1994
    %v2270 = vpop.f32.mrb[0].mxu0
    %v2271 = vadd.f32 0.0, %v2270
    %v2272 = vpop.f32.mrb[0].mxu0
    %v2273 = vpop.f32.mrb[0].mxu0
    %v2274 = vadd.f32 0.0, %v2273
    %v2275 = vpop.f32.mrb[0].mxu0
    %2276 = vmatprep.mubr.bf16.mxu0 0
    %2277 = vmatmul.mubr.bf16.gmra.mrb[0].mxu0 %v2217
    %v2278 = vpop.f32.mrb[0].mxu0
    %v2279 = vadd.f32 0.0, %v2278
    %v2280 = vpop.f32.mrb[0].mxu0
    %v2281 = vpop.f32.mrb[0].mxu0
    %v2282 = vadd.f32 0.0, %v2281
    %v2283 = vpop.f32.mrb[0].mxu0
    %2284 = vmatprep.mubr.bf16.mxu0 0
    %2285 = vmatmul.mubr.bf16.gmra.mrb[0].mxu0 %v2220
    %v2286 = vpop.f32.mrb[0].mxu0
    %v2287 = vadd.f32 0.0, %v2286
    %v2288 = vpop.f32.mrb[0].mxu0
    %v2289 = vpop.f32.mrb[0].mxu0
    %v2290 = vadd.f32 0.0, %v2289
    %v2291 = vpop.f32.mrb[0].mxu0
    %2292 = vmatprep.mubr.bf16.mxu0 0
    %2293 = vmatmul.mubr.bf16.gmra.mrb[0].mxu0 %v1997
    %v2294 = vpop.f32.mrb[0].mxu0
    %v2295 = vadd.f32 0.0, %v2294
    %v2296 = vpop.f32.mrb[0].mxu0
    %v2297 = vpop.f32.mrb[0].mxu0
    %v2298 = vadd.f32 0.0, %v2297
    %v2299 = vpop.f32.mrb[0].mxu0
    %2300 = vmatprep.mubr.bf16.mxu0 0
    %2301 = vmatmul.mubr.bf16.gmra.mrb[0].mxu0 %v2000
    %v2302 = vpop.f32.mrb[0].mxu0
    %v2303 = vadd.f32 0.0, %v2302
    %v2304 = vpop.f32.mrb[0].mxu0
    %v2305 = vpop.f32.mrb[0].mxu0
    %v2306 = vadd.f32 0.0, %v2305
    %v2307 = vpop.f32.mrb[0].mxu0
    %2308 = vmatprep.mubr.bf16.mxu0 0
    %2309 = vmatmul.mubr.bf16.gmra.mrb[0].mxu0 %v2223
    %v2310 = vpop.f32.mrb[0].mxu0
    %v2311 = vadd.f32 0.0, %v2310
    %v2312 = vpop.f32.mrb[0].mxu0
    %v2313 = vpop.f32.mrb[0].mxu0
    %v2314 = vadd.f32 0.0, %v2313
    %v2315 = vpop.f32.mrb[0].mxu0
    %2316 = vmatprep.mubr.bf16.mxu0 0
    %2317 = vmatmul.mubr.bf16.gmra.mrb[0].mxu0 %v2226
    %v2318 = vpop.f32.mrb[0].mxu0
    %v2319 = vadd.f32 0.0, %v2318
    %v2320 = vpop.f32.mrb[0].mxu0
    %v2321 = vpop.f32.mrb[0].mxu0
    %v2322 = vadd.f32 0.0, %v2321
    %v2323 = vpop.f32.mrb[0].mxu0
    %2324 = vdwg.mxu0
    %v2325 = vadd.f32 %v2099, %v2263
    %v2326 = vadd.f32 %v2100, %v2266
    %v2327 = vadd.f32 %v2101, %v2271
    %v2328 = vadd.f32 %v2102, %v2274
    %v2329 = vadd.f32 %v2103, %v2279
    %v2330 = vadd.f32 %v2104, %v2282
    %v2331 = vadd.f32 %v2105, %v2287
    %v2332 = vadd.f32 %v2106, %v2290
    %v2333 = vadd.f32 %v2107, %v2295
    %v2334 = vadd.f32 %v2108, %v2298
    %v2335 = vadd.f32 %v2109, %v2303
    %v2336 = vadd.f32 %v2110, %v2306
    %v2337 = vadd.f32 %v2111, %v2311
    %v2338 = vadd.f32 %v2112, %v2314
    %v2339 = vadd.f32 %v2113, %v2319
    %v2340 = vadd.f32 %v2114, %v2322
    %v2341 = vcombine.low %v604, %v608
    %v2342 = vcombine.low %v612, %v616
    %v2344 = vunpack.c.l.s4 1983009808
    %v2345 = vunpack.c.0.s8 %v2344
    %v2346 = vlaneseq
    %v2347 = vshrl.u32 %v2346, 7
    %v2348 = vsub.s32 %v2345, %v2347
    %v2349 = vrot.slane %v2341, %v2348
    %v2351 = vunpack.c.l.s4 1983009808
    %v2352 = vunpack.c.0.s8 %v2351
    %v2353 = vlaneseq
    %v2354 = vshrl.u32 %v2353, 7
    %v2355 = vsub.s32 %v2352, %v2354
    %v2356 = vrot.slane %v2342, %v2355
    %v2357 = vcombine.low %v2349, %v2356
    %v2358 = vcombine.low %v620, %v624
    %v2359 = vcombine.low %v628, %v632
    %v2361 = vunpack.c.l.s4 1983009808
    %v2362 = vunpack.c.0.s8 %v2361
    %v2363 = vlaneseq
    %v2364 = vshrl.u32 %v2363, 7
    %v2365 = vsub.s32 %v2362, %v2364
    %v2366 = vrot.slane %v2358, %v2365
    %v2368 = vunpack.c.l.s4 1983009808
    %v2369 = vunpack.c.0.s8 %v2368
    %v2370 = vlaneseq
    %v2371 = vshrl.u32 %v2370, 7
    %v2372 = vsub.s32 %v2369, %v2371
    %v2373 = vrot.slane %v2359, %v2372
    %v2374 = vcombine.low %v2366, %v2373
    %v2375 = vcombine.low %v1252, %v1256
    %v2376 = vcombine.low %v1260, %v1264
    %v2378 = vunpack.c.l.s4 1983009808
    %v2379 = vunpack.c.0.s8 %v2378
    %v2380 = vlaneseq
    %v2381 = vshrl.u32 %v2380, 7
    %v2382 = vsub.s32 %v2379, %v2381
    %v2383 = vrot.slane %v2375, %v2382
    %v2385 = vunpack.c.l.s4 1983009808
    %v2386 = vunpack.c.0.s8 %v2385
    %v2387 = vlaneseq
    %v2388 = vshrl.u32 %v2387, 7
    %v2389 = vsub.s32 %v2386, %v2388
    %v2390 = vrot.slane %v2376, %v2389
    %v2391 = vcombine.low %v2383, %v2390
    %v2392 = vcombine.low %v1268, %v1272
    %v2393 = vcombine.low %v1276, %v1280
    %v2395 = vunpack.c.l.s4 1983009808
    %v2396 = vunpack.c.0.s8 %v2395
    %v2397 = vlaneseq
    %v2398 = vshrl.u32 %v2397, 7
    %v2399 = vsub.s32 %v2396, %v2398
    %v2400 = vrot.slane %v2392, %v2399
    %v2402 = vunpack.c.l.s4 1983009808
    %v2403 = vunpack.c.0.s8 %v2402
    %v2404 = vlaneseq
    %v2405 = vshrl.u32 %v2404, 7
    %v2406 = vsub.s32 %v2403, %v2405
    %v2407 = vrot.slane %v2393, %v2406
    %v2408 = vcombine.low %v2400, %v2407
    %s2409 = scalar_lea.vmem %s4, 128
    %v2410 = vld [vmem:[%s2409] sm:$0xf]
    %v2411 = vld [vmem:[%s2409 + $0x4] sm:$0xf]
    %v2412 = vld [vmem:[%s2409 + $0x8] sm:$0xf]
    %v2413 = vld [vmem:[%s2409 + $0xc] sm:$0xf]
    %v2414 = vld [vmem:[%s2409 + $0x10] sm:$0xf]
    %v2415 = vld [vmem:[%s2409 + $0x14] sm:$0xf]
    %v2416 = vld [vmem:[%s2409 + $0x18] sm:$0xf]
    %v2417 = vld [vmem:[%s2409 + $0x1c] sm:$0xf]
    %v2426 = vunpack.c.l.b16 %v2410
    %v2427 = vunpack.c.l.b16 %v2411
    %v2428 = vunpack.c.l.b16 %v2412
    %v2429 = vunpack.c.l.b16 %v2413
    %v2430 = vunpack.c.l.b16 %v2414
    %v2431 = vunpack.c.l.b16 %v2415
    %v2432 = vunpack.c.l.b16 %v2416
    %v2433 = vunpack.c.l.b16 %v2417
    %v2434 = vpack.c.b16 %v2427, %v2426
    %v2435 = vpack.c.b16 %v2429, %v2428
    %v2436 = vpack.c.b16 %v2431, %v2430
    %v2437 = vpack.c.b16 %v2433, %v2432
    %v2443 = vsel %vm1634, %v2357, 0
    %v2446 = vsel %vm1634, %v2374, 0
    %v2449 = vsel %vm1634, %v2391, 0
    %v2452 = vsel %vm1634, %v2408, 0
    %2454 = vmatprep.subr.bf16.mxu0 0
    %2455 = vmatpush1.bf16.msra.mxu0 %v2434
    %2456 = vmatprep.subr.bf16.mxu0 0
    %2457 = vmatpush1.bf16.msra.mxu0 %v2435
    %2458 = vmatprep.subr.bf16.mxu0 0
    %2459 = vmatpush1.bf16.msra.mxu0 %v2436
    %2460 = vmatprep.subr.bf16.mxu0 0
    %2461 = vmatpush1.bf16.msra.mxu0 %v2437
    %2462 = vmatprep.subr.bf16.mxu0 0
    %2463 = vmatpush1.bf16.msra.mxu0 0
    %2464 = vmatprep.subr.bf16.mxu0 0
    %2465 = vmatpush1.bf16.msra.mxu0 0
    %2466 = vmatprep.subr.bf16.mxu0 0
    %2467 = vmatpush1.bf16.msra.mxu0 0
    %2468 = vmatprep.subr.bf16.mxu0 0
    %2469 = vmatpush1.bf16.msra.mxu0 0
    %2470 = vmatprep.subr.bf16.mxu0 0
    %2471 = vmatpush1.bf16.msra.mxu0 0
    %2472 = vmatprep.subr.bf16.mxu0 0
    %2473 = vmatpush1.bf16.msra.mxu0 0
    %2474 = vmatprep.subr.bf16.mxu0 0
    %2475 = vmatpush1.bf16.msra.mxu0 0
    %2476 = vmatprep.subr.bf16.mxu0 0
    %2477 = vmatpush1.bf16.msra.mxu0 0
    %2478 = vmatprep.subr.bf16.mxu0 0
    %2479 = vmatpush1.bf16.msra.mxu0 0
    %2480 = vmatprep.subr.bf16.mxu0 0
    %2481 = vmatpush1.bf16.msra.mxu0 0
    %2482 = vmatprep.subr.bf16.mxu0 0
    %2483 = vmatpush1.bf16.msra.mxu0 0
    %2484 = vmatprep.subr.bf16.mxu0 0
    %2485 = vmatpush1.bf16.msra.mxu0 0
    %2486 = vmatprep.mubr.bf16.mxu0 0
    %2487 = vmatmul.mubr.bf16.gmra.mrb[0].mxu0 %v2217
    %v2488 = vpop.f32.mrb[0].mxu0
    %v2489 = vadd.f32 0.0, %v2488
    %v2490 = vpop.f32.mrb[0].mxu0
    %v2491 = vpop.f32.mrb[0].mxu0
    %v2492 = vadd.f32 0.0, %v2491
    %v2493 = vpop.f32.mrb[0].mxu0
    %2494 = vmatprep.mubr.bf16.mxu0 0
    %2495 = vmatmul.mubr.bf16.gmra.mrb[0].mxu0 %v2220
    %v2496 = vpop.f32.mrb[0].mxu0
    %v2497 = vadd.f32 0.0, %v2496
    %v2498 = vpop.f32.mrb[0].mxu0
    %v2499 = vpop.f32.mrb[0].mxu0
    %v2500 = vadd.f32 0.0, %v2499
    %v2501 = vpop.f32.mrb[0].mxu0
    %2502 = vmatprep.mubr.bf16.mxu0 0
    %2503 = vmatmul.mubr.bf16.gmra.mrb[0].mxu0 %v2443
    %v2504 = vpop.f32.mrb[0].mxu0
    %v2505 = vadd.f32 0.0, %v2504
    %v2506 = vpop.f32.mrb[0].mxu0
    %v2507 = vpop.f32.mrb[0].mxu0
    %v2508 = vadd.f32 0.0, %v2507
    %v2509 = vpop.f32.mrb[0].mxu0
    %2510 = vmatprep.mubr.bf16.mxu0 0
    %2511 = vmatmul.mubr.bf16.gmra.mrb[0].mxu0 %v2446
    %v2512 = vpop.f32.mrb[0].mxu0
    %v2513 = vadd.f32 0.0, %v2512
    %v2514 = vpop.f32.mrb[0].mxu0
    %v2515 = vpop.f32.mrb[0].mxu0
    %v2516 = vadd.f32 0.0, %v2515
    %v2517 = vpop.f32.mrb[0].mxu0
    %2518 = vmatprep.mubr.bf16.mxu0 0
    %2519 = vmatmul.mubr.bf16.gmra.mrb[0].mxu0 %v2223
    %v2520 = vpop.f32.mrb[0].mxu0
    %v2521 = vadd.f32 0.0, %v2520
    %v2522 = vpop.f32.mrb[0].mxu0
    %v2523 = vpop.f32.mrb[0].mxu0
    %v2524 = vadd.f32 0.0, %v2523
    %v2525 = vpop.f32.mrb[0].mxu0
    %2526 = vmatprep.mubr.bf16.mxu0 0
    %2527 = vmatmul.mubr.bf16.gmra.mrb[0].mxu0 %v2226
    %v2528 = vpop.f32.mrb[0].mxu0
    %v2529 = vadd.f32 0.0, %v2528
    %v2530 = vpop.f32.mrb[0].mxu0
    %v2531 = vpop.f32.mrb[0].mxu0
    %v2532 = vadd.f32 0.0, %v2531
    %v2533 = vpop.f32.mrb[0].mxu0
    %2534 = vmatprep.mubr.bf16.mxu0 0
    %2535 = vmatmul.mubr.bf16.gmra.mrb[0].mxu0 %v2449
    %v2536 = vpop.f32.mrb[0].mxu0
    %v2537 = vadd.f32 0.0, %v2536
    %v2538 = vpop.f32.mrb[0].mxu0
    %v2539 = vpop.f32.mrb[0].mxu0
    %v2540 = vadd.f32 0.0, %v2539
    %v2541 = vpop.f32.mrb[0].mxu0
    %2542 = vmatprep.mubr.bf16.mxu0 0
    %2543 = vmatmul.mubr.bf16.gmra.mrb[0].mxu0 %v2452
    %v2544 = vpop.f32.mrb[0].mxu0
    %v2545 = vadd.f32 0.0, %v2544
    %v2546 = vpop.f32.mrb[0].mxu0
    %v2547 = vpop.f32.mrb[0].mxu0
    %v2548 = vadd.f32 0.0, %v2547
    %v2549 = vpop.f32.mrb[0].mxu0
    %2550 = vdwg.mxu0
    %v2551 = vadd.f32 %v2325, %v2489
    %v2552 = vadd.f32 %v2326, %v2492
    %v2553 = vadd.f32 %v2327, %v2497
    %v2554 = vadd.f32 %v2328, %v2500
    %v2555 = vadd.f32 %v2329, %v2505
    %v2556 = vadd.f32 %v2330, %v2508
    %v2557 = vadd.f32 %v2331, %v2513
    %v2558 = vadd.f32 %v2332, %v2516
    %v2559 = vadd.f32 %v2333, %v2521
    %v2560 = vadd.f32 %v2334, %v2524
    %v2561 = vadd.f32 %v2335, %v2529
    %v2562 = vadd.f32 %v2336, %v2532
    %v2563 = vadd.f32 %v2337, %v2537
    %v2564 = vadd.f32 %v2338, %v2540
    %v2565 = vadd.f32 %v2339, %v2545
    %v2566 = vadd.f32 %v2340, %v2548
    %v2567 = vcombine.low %v32, %v33
    %v2568 = vcombine.low %v34, %v35
    %v2570 = vunpack.c.l.s4 1983009808
    %v2571 = vunpack.c.0.s8 %v2570
    %v2572 = vlaneseq
    %v2573 = vshrl.u32 %v2572, 7
    %v2574 = vsub.s32 %v2571, %v2573
    %v2575 = vrot.slane %v2567, %v2574
    %v2577 = vunpack.c.l.s4 1983009808
    %v2578 = vunpack.c.0.s8 %v2577
    %v2579 = vlaneseq
    %v2580 = vshrl.u32 %v2579, 7
    %v2581 = vsub.s32 %v2578, %v2580
    %v2582 = vrot.slane %v2568, %v2581
    %v2583 = vcombine.low %v2575, %v2582
    %v2584 = vcombine.low %v38, %v39
    %v2585 = vcombine.low %v40, %v41
    %v2587 = vunpack.c.l.s4 1983009808
    %v2588 = vunpack.c.0.s8 %v2587
    %v2589 = vlaneseq
    %v2590 = vshrl.u32 %v2589, 7
    %v2591 = vsub.s32 %v2588, %v2590
    %v2592 = vrot.slane %v2584, %v2591
    %v2594 = vunpack.c.l.s4 1983009808
    %v2595 = vunpack.c.0.s8 %v2594
    %v2596 = vlaneseq
    %v2597 = vshrl.u32 %v2596, 7
    %v2598 = vsub.s32 %v2595, %v2597
    %v2599 = vrot.slane %v2585, %v2598
    %v2600 = vcombine.low %v2592, %v2599
    %v2601 = vcombine.low %v44, %v45
    %v2602 = vcombine.low %v46, %v47
    %v2604 = vunpack.c.l.s4 1983009808
    %v2605 = vunpack.c.0.s8 %v2604
    %v2606 = vlaneseq
    %v2607 = vshrl.u32 %v2606, 7
    %v2608 = vsub.s32 %v2605, %v2607
    %v2609 = vrot.slane %v2601, %v2608
    %v2611 = vunpack.c.l.s4 1983009808
    %v2612 = vunpack.c.0.s8 %v2611
    %v2613 = vlaneseq
    %v2614 = vshrl.u32 %v2613, 7
    %v2615 = vsub.s32 %v2612, %v2614
    %v2616 = vrot.slane %v2602, %v2615
    %v2617 = vcombine.low %v2609, %v2616
    %v2618 = vcombine.low %v50, %v51
    %v2619 = vcombine.low %v52, %v53
    %v2621 = vunpack.c.l.s4 1983009808
    %v2622 = vunpack.c.0.s8 %v2621
    %v2623 = vlaneseq
    %v2624 = vshrl.u32 %v2623, 7
    %v2625 = vsub.s32 %v2622, %v2624
    %v2626 = vrot.slane %v2618, %v2625
    %v2628 = vunpack.c.l.s4 1983009808
    %v2629 = vunpack.c.0.s8 %v2628
    %v2630 = vlaneseq
    %v2631 = vshrl.u32 %v2630, 7
    %v2632 = vsub.s32 %v2629, %v2631
    %v2633 = vrot.slane %v2619, %v2632
    %v2634 = vcombine.low %v2626, %v2633
    %s2635 = scalar_lea.vmem %s4, 160
    %v2636 = vld [vmem:[%s2635] sm:$0xf]
    %v2637 = vld [vmem:[%s2635 + $0x4] sm:$0xf]
    %v2638 = vld [vmem:[%s2635 + $0x8] sm:$0xf]
    %v2639 = vld [vmem:[%s2635 + $0xc] sm:$0xf]
    %v2640 = vld [vmem:[%s2635 + $0x10] sm:$0xf]
    %v2641 = vld [vmem:[%s2635 + $0x14] sm:$0xf]
    %v2642 = vld [vmem:[%s2635 + $0x18] sm:$0xf]
    %v2643 = vld [vmem:[%s2635 + $0x1c] sm:$0xf]
    %v2652 = vunpack.c.l.b16 %v2636
    %v2653 = vunpack.c.l.b16 %v2637
    %v2654 = vunpack.c.l.b16 %v2638
    %v2655 = vunpack.c.l.b16 %v2639
    %v2656 = vunpack.c.l.b16 %v2640
    %v2657 = vunpack.c.l.b16 %v2641
    %v2658 = vunpack.c.l.b16 %v2642
    %v2659 = vunpack.c.l.b16 %v2643
    %v2660 = vpack.c.b16 %v2653, %v2652
    %v2661 = vpack.c.b16 %v2655, %v2654
    %v2662 = vpack.c.b16 %v2657, %v2656
    %v2663 = vpack.c.b16 %v2659, %v2658
    %v2669 = vsel %vm1634, %v2583, 0
    %v2672 = vsel %vm1634, %v2600, 0
    %v2675 = vsel %vm1634, %v2617, 0
    %v2678 = vsel %vm1634, %v2634, 0
    %2680 = vmatprep.subr.bf16.mxu0 0
    %2681 = vmatpush1.bf16.msra.mxu0 %v2660
    %2682 = vmatprep.subr.bf16.mxu0 0
    %2683 = vmatpush1.bf16.msra.mxu0 %v2661
    %2684 = vmatprep.subr.bf16.mxu0 0
    %2685 = vmatpush1.bf16.msra.mxu0 %v2662
    %2686 = vmatprep.subr.bf16.mxu0 0
    %2687 = vmatpush1.bf16.msra.mxu0 %v2663
    %2688 = vmatprep.subr.bf16.mxu0 0
    %2689 = vmatpush1.bf16.msra.mxu0 0
    %2690 = vmatprep.subr.bf16.mxu0 0
    %2691 = vmatpush1.bf16.msra.mxu0 0
    %2692 = vmatprep.subr.bf16.mxu0 0
    %2693 = vmatpush1.bf16.msra.mxu0 0
    %2694 = vmatprep.subr.bf16.mxu0 0
    %2695 = vmatpush1.bf16.msra.mxu0 0
    %2696 = vmatprep.subr.bf16.mxu0 0
    %2697 = vmatpush1.bf16.msra.mxu0 0
    %2698 = vmatprep.subr.bf16.mxu0 0
    %2699 = vmatpush1.bf16.msra.mxu0 0
    %2700 = vmatprep.subr.bf16.mxu0 0
    %2701 = vmatpush1.bf16.msra.mxu0 0
    %2702 = vmatprep.subr.bf16.mxu0 0
    %2703 = vmatpush1.bf16.msra.mxu0 0
    %2704 = vmatprep.subr.bf16.mxu0 0
    %2705 = vmatpush1.bf16.msra.mxu0 0
    %2706 = vmatprep.subr.bf16.mxu0 0
    %2707 = vmatpush1.bf16.msra.mxu0 0
    %2708 = vmatprep.subr.bf16.mxu0 0
    %2709 = vmatpush1.bf16.msra.mxu0 0
    %2710 = vmatprep.subr.bf16.mxu0 0
    %2711 = vmatpush1.bf16.msra.mxu0 0
    %2712 = vmatprep.mubr.bf16.mxu0 0
    %2713 = vmatmul.mubr.bf16.gmra.mrb[0].mxu0 %v1787
    %v2714 = vpop.f32.mrb[0].mxu0
    %v2715 = vadd.f32 0.0, %v2714
    %v2716 = vpop.f32.mrb[0].mxu0
    %v2717 = vpop.f32.mrb[0].mxu0
    %v2718 = vadd.f32 0.0, %v2717
    %v2719 = vpop.f32.mrb[0].mxu0
    %2720 = vmatprep.mubr.bf16.mxu0 0
    %2721 = vmatmul.mubr.bf16.gmra.mrb[0].mxu0 %v1790
    %v2722 = vpop.f32.mrb[0].mxu0
    %v2723 = vadd.f32 0.0, %v2722
    %v2724 = vpop.f32.mrb[0].mxu0
    %v2725 = vpop.f32.mrb[0].mxu0
    %v2726 = vadd.f32 0.0, %v2725
    %v2727 = vpop.f32.mrb[0].mxu0
    %2728 = vmatprep.mubr.bf16.mxu0 0
    %2729 = vmatmul.mubr.bf16.gmra.mrb[0].mxu0 %v1648
    %v2730 = vpop.f32.mrb[0].mxu0
    %v2731 = vadd.f32 0.0, %v2730
    %v2732 = vpop.f32.mrb[0].mxu0
    %v2733 = vpop.f32.mrb[0].mxu0
    %v2734 = vadd.f32 0.0, %v2733
    %v2735 = vpop.f32.mrb[0].mxu0
    %2736 = vmatprep.mubr.bf16.mxu0 0
    %2737 = vmatmul.mubr.bf16.gmra.mrb[0].mxu0 %v1651
    %v2738 = vpop.f32.mrb[0].mxu0
    %v2739 = vadd.f32 0.0, %v2738
    %v2740 = vpop.f32.mrb[0].mxu0
    %v2741 = vpop.f32.mrb[0].mxu0
    %v2742 = vadd.f32 0.0, %v2741
    %v2743 = vpop.f32.mrb[0].mxu0
    %2744 = vmatprep.mubr.bf16.mxu0 0
    %2745 = vmatmul.mubr.bf16.gmra.mrb[0].mxu0 %v2669
    %v2746 = vpop.f32.mrb[0].mxu0
    %v2747 = vadd.f32 0.0, %v2746
    %v2748 = vpop.f32.mrb[0].mxu0
    %v2749 = vpop.f32.mrb[0].mxu0
    %v2750 = vadd.f32 0.0, %v2749
    %v2751 = vpop.f32.mrb[0].mxu0
    %2752 = vmatprep.mubr.bf16.mxu0 0
    %2753 = vmatmul.mubr.bf16.gmra.mrb[0].mxu0 %v2672
    %v2754 = vpop.f32.mrb[0].mxu0
    %v2755 = vadd.f32 0.0, %v2754
    %v2756 = vpop.f32.mrb[0].mxu0
    %v2757 = vpop.f32.mrb[0].mxu0
    %v2758 = vadd.f32 0.0, %v2757
    %v2759 = vpop.f32.mrb[0].mxu0
    %2760 = vmatprep.mubr.bf16.mxu0 0
    %2761 = vmatmul.mubr.bf16.gmra.mrb[0].mxu0 %v2675
    %v2762 = vpop.f32.mrb[0].mxu0
    %v2763 = vadd.f32 0.0, %v2762
    %v2764 = vpop.f32.mrb[0].mxu0
    %v2765 = vpop.f32.mrb[0].mxu0
    %v2766 = vadd.f32 0.0, %v2765
    %v2767 = vpop.f32.mrb[0].mxu0
    %2768 = vmatprep.mubr.bf16.mxu0 0
    %2769 = vmatmul.mubr.bf16.gmra.mrb[0].mxu0 %v2678
    %v2770 = vpop.f32.mrb[0].mxu0
    %v2771 = vadd.f32 0.0, %v2770
    %v2772 = vpop.f32.mrb[0].mxu0
    %v2773 = vpop.f32.mrb[0].mxu0
    %v2774 = vadd.f32 0.0, %v2773
    %v2775 = vpop.f32.mrb[0].mxu0
    %2776 = vdwg.mxu0
    %v2777 = vadd.f32 %v2551, %v2715
    %v2778 = vadd.f32 %v2552, %v2718
    %v2779 = vadd.f32 %v2553, %v2723
    %v2780 = vadd.f32 %v2554, %v2726
    %v2781 = vadd.f32 %v2555, %v2731
    %v2782 = vadd.f32 %v2556, %v2734
    %v2783 = vadd.f32 %v2557, %v2739
    %v2784 = vadd.f32 %v2558, %v2742
    %v2785 = vadd.f32 %v2559, %v2747
    %v2786 = vadd.f32 %v2560, %v2750
    %v2787 = vadd.f32 %v2561, %v2755
    %v2788 = vadd.f32 %v2562, %v2758
    %v2789 = vadd.f32 %v2563, %v2763
    %v2790 = vadd.f32 %v2564, %v2766
    %v2791 = vadd.f32 %v2565, %v2771
    %v2792 = vadd.f32 %v2566, %v2774
    %v2793 = vcombine.low %v185, %v199
    %v2794 = vcombine.low %v213, %v340
    %v2796 = vunpack.c.l.s4 1983009808
    %v2797 = vunpack.c.0.s8 %v2796
    %v2798 = vlaneseq
    %v2799 = vshrl.u32 %v2798, 7
    %v2800 = vsub.s32 %v2797, %v2799
    %v2801 = vrot.slane %v2793, %v2800
    %v2803 = vunpack.c.l.s4 1983009808
    %v2804 = vunpack.c.0.s8 %v2803
    %v2805 = vlaneseq
    %v2806 = vshrl.u32 %v2805, 7
    %v2807 = vsub.s32 %v2804, %v2806
    %v2808 = vrot.slane %v2794, %v2807
    %v2809 = vcombine.low %v2801, %v2808
    %v2810 = vcombine.low %v241, %v255
    %v2811 = vcombine.low %v269, %v354
    %v2813 = vunpack.c.l.s4 1983009808
    %v2814 = vunpack.c.0.s8 %v2813
    %v2815 = vlaneseq
    %v2816 = vshrl.u32 %v2815, 7
    %v2817 = vsub.s32 %v2814, %v2816
    %v2818 = vrot.slane %v2810, %v2817
    %v2820 = vunpack.c.l.s4 1983009808
    %v2821 = vunpack.c.0.s8 %v2820
    %v2822 = vlaneseq
    %v2823 = vshrl.u32 %v2822, 7
    %v2824 = vsub.s32 %v2821, %v2823
    %v2825 = vrot.slane %v2811, %v2824
    %v2826 = vcombine.low %v2818, %v2825
    %s2827 = scalar_lea.vmem %s4, 192
    %v2828 = vld [vmem:[%s2827] sm:$0xf]
    %v2829 = vld [vmem:[%s2827 + $0x4] sm:$0xf]
    %v2830 = vld [vmem:[%s2827 + $0x8] sm:$0xf]
    %v2831 = vld [vmem:[%s2827 + $0xc] sm:$0xf]
    %v2832 = vld [vmem:[%s2827 + $0x10] sm:$0xf]
    %v2833 = vld [vmem:[%s2827 + $0x14] sm:$0xf]
    %v2834 = vld [vmem:[%s2827 + $0x18] sm:$0xf]
    %v2835 = vld [vmem:[%s2827 + $0x1c] sm:$0xf]
    %v2844 = vunpack.c.l.b16 %v2828
    %v2845 = vunpack.c.l.b16 %v2829
    %v2846 = vunpack.c.l.b16 %v2830
    %v2847 = vunpack.c.l.b16 %v2831
    %v2848 = vunpack.c.l.b16 %v2832
    %v2849 = vunpack.c.l.b16 %v2833
    %v2850 = vunpack.c.l.b16 %v2834
    %v2851 = vunpack.c.l.b16 %v2835
    %v2852 = vpack.c.b16 %v2845, %v2844
    %v2853 = vpack.c.b16 %v2847, %v2846
    %v2854 = vpack.c.b16 %v2849, %v2848
    %v2855 = vpack.c.b16 %v2851, %v2850
    %v2861 = vsel %vm1634, %v2809, 0
    %v2864 = vsel %vm1634, %v2826, 0
    %2866 = vmatprep.subr.bf16.mxu0 0
    %2867 = vmatpush1.bf16.msra.mxu0 %v2852
    %2868 = vmatprep.subr.bf16.mxu0 0
    %2869 = vmatpush1.bf16.msra.mxu0 %v2853
    %2870 = vmatprep.subr.bf16.mxu0 0
    %2871 = vmatpush1.bf16.msra.mxu0 %v2854
    %2872 = vmatprep.subr.bf16.mxu0 0
    %2873 = vmatpush1.bf16.msra.mxu0 %v2855
    %2874 = vmatprep.subr.bf16.mxu0 0
    %2875 = vmatpush1.bf16.msra.mxu0 0
    %2876 = vmatprep.subr.bf16.mxu0 0
    %2877 = vmatpush1.bf16.msra.mxu0 0
    %2878 = vmatprep.subr.bf16.mxu0 0
    %2879 = vmatpush1.bf16.msra.mxu0 0
    %2880 = vmatprep.subr.bf16.mxu0 0
    %2881 = vmatpush1.bf16.msra.mxu0 0
    %2882 = vmatprep.subr.bf16.mxu0 0
    %2883 = vmatpush1.bf16.msra.mxu0 0
    %2884 = vmatprep.subr.bf16.mxu0 0
    %2885 = vmatpush1.bf16.msra.mxu0 0
    %2886 = vmatprep.subr.bf16.mxu0 0
    %2887 = vmatpush1.bf16.msra.mxu0 0
    %2888 = vmatprep.subr.bf16.mxu0 0
    %2889 = vmatpush1.bf16.msra.mxu0 0
    %2890 = vmatprep.subr.bf16.mxu0 0
    %2891 = vmatpush1.bf16.msra.mxu0 0
    %2892 = vmatprep.subr.bf16.mxu0 0
    %2893 = vmatpush1.bf16.msra.mxu0 0
    %2894 = vmatprep.subr.bf16.mxu0 0
    %2895 = vmatpush1.bf16.msra.mxu0 0
    %2896 = vmatprep.subr.bf16.mxu0 0
    %2897 = vmatpush1.bf16.msra.mxu0 0
    %2898 = vmatprep.mubr.bf16.mxu0 0
    %2899 = vmatmul.mubr.bf16.gmra.mrb[0].mxu0 %v1648
    %v2900 = vpop.f32.mrb[0].mxu0
    %v2901 = vadd.f32 0.0, %v2900
    %v2902 = vpop.f32.mrb[0].mxu0
    %v2903 = vpop.f32.mrb[0].mxu0
    %v2904 = vadd.f32 0.0, %v2903
    %v2905 = vpop.f32.mrb[0].mxu0
    %2906 = vmatprep.mubr.bf16.mxu0 0
    %2907 = vmatmul.mubr.bf16.gmra.mrb[0].mxu0 %v1651
    %v2908 = vpop.f32.mrb[0].mxu0
    %v2909 = vadd.f32 0.0, %v2908
    %v2910 = vpop.f32.mrb[0].mxu0
    %v2911 = vpop.f32.mrb[0].mxu0
    %v2912 = vadd.f32 0.0, %v2911
    %v2913 = vpop.f32.mrb[0].mxu0
    %2914 = vmatprep.mubr.bf16.mxu0 0
    %2915 = vmatmul.mubr.bf16.gmra.mrb[0].mxu0 %v1654
    %v2916 = vpop.f32.mrb[0].mxu0
    %v2917 = vadd.f32 0.0, %v2916
    %v2918 = vpop.f32.mrb[0].mxu0
    %v2919 = vpop.f32.mrb[0].mxu0
    %v2920 = vadd.f32 0.0, %v2919
    %v2921 = vpop.f32.mrb[0].mxu0
    %2922 = vmatprep.mubr.bf16.mxu0 0
    %2923 = vmatmul.mubr.bf16.gmra.mrb[0].mxu0 %v1657
    %v2924 = vpop.f32.mrb[0].mxu0
    %v2925 = vadd.f32 0.0, %v2924
    %v2926 = vpop.f32.mrb[0].mxu0
    %v2927 = vpop.f32.mrb[0].mxu0
    %v2928 = vadd.f32 0.0, %v2927
    %v2929 = vpop.f32.mrb[0].mxu0
    %2930 = vmatprep.mubr.bf16.mxu0 0
    %2931 = vmatmul.mubr.bf16.gmra.mrb[0].mxu0 %v2675
    %v2932 = vpop.f32.mrb[0].mxu0
    %v2933 = vadd.f32 0.0, %v2932
    %v2934 = vpop.f32.mrb[0].mxu0
    %v2935 = vpop.f32.mrb[0].mxu0
    %v2936 = vadd.f32 0.0, %v2935
    %v2937 = vpop.f32.mrb[0].mxu0
    %2938 = vmatprep.mubr.bf16.mxu0 0
    %2939 = vmatmul.mubr.bf16.gmra.mrb[0].mxu0 %v2678
    %v2940 = vpop.f32.mrb[0].mxu0
    %v2941 = vadd.f32 0.0, %v2940
    %v2942 = vpop.f32.mrb[0].mxu0
    %v2943 = vpop.f32.mrb[0].mxu0
    %v2944 = vadd.f32 0.0, %v2943
    %v2945 = vpop.f32.mrb[0].mxu0
    %2946 = vmatprep.mubr.bf16.mxu0 0
    %2947 = vmatmul.mubr.bf16.gmra.mrb[0].mxu0 %v2861
    %v2948 = vpop.f32.mrb[0].mxu0
    %v2949 = vadd.f32 0.0, %v2948
    %v2950 = vpop.f32.mrb[0].mxu0
    %v2951 = vpop.f32.mrb[0].mxu0
    %v2952 = vadd.f32 0.0, %v2951
    %v2953 = vpop.f32.mrb[0].mxu0
    %2954 = vmatprep.mubr.bf16.mxu0 0
    %2955 = vmatmul.mubr.bf16.gmra.mrb[0].mxu0 %v2864
    %v2956 = vpop.f32.mrb[0].mxu0
    %v2957 = vadd.f32 0.0, %v2956
    %v2958 = vpop.f32.mrb[0].mxu0
    %v2959 = vpop.f32.mrb[0].mxu0
    %v2960 = vadd.f32 0.0, %v2959
    %v2961 = vpop.f32.mrb[0].mxu0
    %2962 = vdwg.mxu0
    %v2963 = vadd.f32 %v2777, %v2901
    %v2964 = vadd.f32 %v2778, %v2904
    %v2965 = vadd.f32 %v2779, %v2909
    %v2966 = vadd.f32 %v2780, %v2912
    %v2967 = vadd.f32 %v2781, %v2917
    %v2968 = vadd.f32 %v2782, %v2920
    %v2969 = vadd.f32 %v2783, %v2925
    %v2970 = vadd.f32 %v2784, %v2928
    %v2971 = vadd.f32 %v2785, %v2933
    %v2972 = vadd.f32 %v2786, %v2936
    %v2973 = vadd.f32 %v2787, %v2941
    %v2974 = vadd.f32 %v2788, %v2944
    %v2975 = vadd.f32 %v2789, %v2949
    %v2976 = vadd.f32 %v2790, %v2952
    %v2977 = vadd.f32 %v2791, %v2957
    %v2978 = vadd.f32 %v2792, %v2960
    %v2979 = vcombine.low %v516, %v530
    %v2980 = vcombine.low %v544, %v664
    %v2982 = vunpack.c.l.s4 1983009808
    %v2983 = vunpack.c.0.s8 %v2982
    %v2984 = vlaneseq
    %v2985 = vshrl.u32 %v2984, 7
    %v2986 = vsub.s32 %v2983, %v2985
    %v2987 = vrot.slane %v2979, %v2986
    %v2989 = vunpack.c.l.s4 1983009808
    %v2990 = vunpack.c.0.s8 %v2989
    %v2991 = vlaneseq
    %v2992 = vshrl.u32 %v2991, 7
    %v2993 = vsub.s32 %v2990, %v2992
    %v2994 = vrot.slane %v2980, %v2993
    %v2995 = vcombine.low %v2987, %v2994
    %v2996 = vcombine.low %v572, %v586
    %v2997 = vcombine.low %v600, %v678
    %v2999 = vunpack.c.l.s4 1983009808
    %v3000 = vunpack.c.0.s8 %v2999
    %v3001 = vlaneseq
    %v3002 = vshrl.u32 %v3001, 7
    %v3003 = vsub.s32 %v3000, %v3002
    %v3004 = vrot.slane %v2996, %v3003
    %v3006 = vunpack.c.l.s4 1983009808
    %v3007 = vunpack.c.0.s8 %v3006
    %v3008 = vlaneseq
    %v3009 = vshrl.u32 %v3008, 7
    %v3010 = vsub.s32 %v3007, %v3009
    %v3011 = vrot.slane %v2997, %v3010
    %v3012 = vcombine.low %v3004, %v3011
    %s3013 = scalar_lea.vmem %s4, 224
    %v3014 = vld [vmem:[%s3013] sm:$0xf]
    %v3015 = vld [vmem:[%s3013 + $0x4] sm:$0xf]
    %v3016 = vld [vmem:[%s3013 + $0x8] sm:$0xf]
    %v3017 = vld [vmem:[%s3013 + $0xc] sm:$0xf]
    %v3018 = vld [vmem:[%s3013 + $0x10] sm:$0xf]
    %v3019 = vld [vmem:[%s3013 + $0x14] sm:$0xf]
    %v3020 = vld [vmem:[%s3013 + $0x18] sm:$0xf]
    %v3021 = vld [vmem:[%s3013 + $0x1c] sm:$0xf]
    %v3030 = vunpack.c.l.b16 %v3014
    %v3031 = vunpack.c.l.b16 %v3015
    %v3032 = vunpack.c.l.b16 %v3016
    %v3033 = vunpack.c.l.b16 %v3017
    %v3034 = vunpack.c.l.b16 %v3018
    %v3035 = vunpack.c.l.b16 %v3019
    %v3036 = vunpack.c.l.b16 %v3020
    %v3037 = vunpack.c.l.b16 %v3021
    %v3038 = vpack.c.b16 %v3031, %v3030
    %v3039 = vpack.c.b16 %v3033, %v3032
    %v3040 = vpack.c.b16 %v3035, %v3034
    %v3041 = vpack.c.b16 %v3037, %v3036
    %v3047 = vsel %vm1634, %v2995, 0
    %v3050 = vsel %vm1634, %v3012, 0
    %3052 = vmatprep.subr.bf16.mxu0 0
    %3053 = vmatpush1.bf16.msra.mxu0 %v3038
    %3054 = vmatprep.subr.bf16.mxu0 0
    %3055 = vmatpush1.bf16.msra.mxu0 %v3039
    %3056 = vmatprep.subr.bf16.mxu0 0
    %3057 = vmatpush1.bf16.msra.mxu0 %v3040
    %3058 = vmatprep.subr.bf16.mxu0 0
    %3059 = vmatpush1.bf16.msra.mxu0 %v3041
    %3060 = vmatprep.subr.bf16.mxu0 0
    %3061 = vmatpush1.bf16.msra.mxu0 0
    %3062 = vmatprep.subr.bf16.mxu0 0
    %3063 = vmatpush1.bf16.msra.mxu0 0
    %3064 = vmatprep.subr.bf16.mxu0 0
    %3065 = vmatpush1.bf16.msra.mxu0 0
    %3066 = vmatprep.subr.bf16.mxu0 0
    %3067 = vmatpush1.bf16.msra.mxu0 0
    %3068 = vmatprep.subr.bf16.mxu0 0
    %3069 = vmatpush1.bf16.msra.mxu0 0
    %3070 = vmatprep.subr.bf16.mxu0 0
    %3071 = vmatpush1.bf16.msra.mxu0 0
    %3072 = vmatprep.subr.bf16.mxu0 0
    %3073 = vmatpush1.bf16.msra.mxu0 0
    %3074 = vmatprep.subr.bf16.mxu0 0
    %3075 = vmatpush1.bf16.msra.mxu0 0
    %3076 = vmatprep.subr.bf16.mxu0 0
    %3077 = vmatpush1.bf16.msra.mxu0 0
    %3078 = vmatprep.subr.bf16.mxu0 0
    %3079 = vmatpush1.bf16.msra.mxu0 0
    %3080 = vmatprep.subr.bf16.mxu0 0
    %3081 = vmatpush1.bf16.msra.mxu0 0
    %3082 = vmatprep.subr.bf16.mxu0 0
    %3083 = vmatpush1.bf16.msra.mxu0 0
    %3084 = vmatprep.mubr.bf16.mxu0 0
    %3085 = vmatmul.mubr.bf16.gmra.mrb[0].mxu0 %v1654
    %v3086 = vpop.f32.mrb[0].mxu0
    %v3087 = vadd.f32 0.0, %v3086
    %v3088 = vpop.f32.mrb[0].mxu0
    %v3089 = vpop.f32.mrb[0].mxu0
    %v3090 = vadd.f32 0.0, %v3089
    %v3091 = vpop.f32.mrb[0].mxu0
    %3092 = vmatprep.mubr.bf16.mxu0 0
    %3093 = vmatmul.mubr.bf16.gmra.mrb[0].mxu0 %v1657
    %v3094 = vpop.f32.mrb[0].mxu0
    %v3095 = vadd.f32 0.0, %v3094
    %v3096 = vpop.f32.mrb[0].mxu0
    %v3097 = vpop.f32.mrb[0].mxu0
    %v3098 = vadd.f32 0.0, %v3097
    %v3099 = vpop.f32.mrb[0].mxu0
    %3100 = vmatprep.mubr.bf16.mxu0 0
    %3101 = vmatmul.mubr.bf16.gmra.mrb[0].mxu0 %v1997
    %v3102 = vpop.f32.mrb[0].mxu0
    %v3103 = vadd.f32 0.0, %v3102
    %v3104 = vpop.f32.mrb[0].mxu0
    %v3105 = vpop.f32.mrb[0].mxu0
    %v3106 = vadd.f32 0.0, %v3105
    %v3107 = vpop.f32.mrb[0].mxu0
    %3108 = vmatprep.mubr.bf16.mxu0 0
    %3109 = vmatmul.mubr.bf16.gmra.mrb[0].mxu0 %v2000
    %v3110 = vpop.f32.mrb[0].mxu0
    %v3111 = vadd.f32 0.0, %v3110
    %v3112 = vpop.f32.mrb[0].mxu0
    %v3113 = vpop.f32.mrb[0].mxu0
    %v3114 = vadd.f32 0.0, %v3113
    %v3115 = vpop.f32.mrb[0].mxu0
    %3116 = vmatprep.mubr.bf16.mxu0 0
    %3117 = vmatmul.mubr.bf16.gmra.mrb[0].mxu0 %v2861
    %v3118 = vpop.f32.mrb[0].mxu0
    %v3119 = vadd.f32 0.0, %v3118
    %v3120 = vpop.f32.mrb[0].mxu0
    %v3121 = vpop.f32.mrb[0].mxu0
    %v3122 = vadd.f32 0.0, %v3121
    %v3123 = vpop.f32.mrb[0].mxu0
    %3124 = vmatprep.mubr.bf16.mxu0 0
    %3125 = vmatmul.mubr.bf16.gmra.mrb[0].mxu0 %v2864
    %v3126 = vpop.f32.mrb[0].mxu0
    %v3127 = vadd.f32 0.0, %v3126
    %v3128 = vpop.f32.mrb[0].mxu0
    %v3129 = vpop.f32.mrb[0].mxu0
    %v3130 = vadd.f32 0.0, %v3129
    %v3131 = vpop.f32.mrb[0].mxu0
    %3132 = vmatprep.mubr.bf16.mxu0 0
    %3133 = vmatmul.mubr.bf16.gmra.mrb[0].mxu0 %v3047
    %v3134 = vpop.f32.mrb[0].mxu0
    %v3135 = vadd.f32 0.0, %v3134
    %v3136 = vpop.f32.mrb[0].mxu0
    %v3137 = vpop.f32.mrb[0].mxu0
    %v3138 = vadd.f32 0.0, %v3137
    %v3139 = vpop.f32.mrb[0].mxu0
    %3140 = vmatprep.mubr.bf16.mxu0 0
    %3141 = vmatmul.mubr.bf16.gmra.mrb[0].mxu0 %v3050
    %v3142 = vpop.f32.mrb[0].mxu0
    %v3143 = vadd.f32 0.0, %v3142
    %v3144 = vpop.f32.mrb[0].mxu0
    %v3145 = vpop.f32.mrb[0].mxu0
    %v3146 = vadd.f32 0.0, %v3145
    %v3147 = vpop.f32.mrb[0].mxu0
    %3148 = vdwg.mxu0
    %v3149 = vadd.f32 %v2963, %v3087
    %v3150 = vadd.f32 %v2964, %v3090
    %v3151 = vadd.f32 %v2965, %v3095
    %v3152 = vadd.f32 %v2966, %v3098
    %v3153 = vadd.f32 %v2967, %v3103
    %v3154 = vadd.f32 %v2968, %v3106
    %v3155 = vadd.f32 %v2969, %v3111
    %v3156 = vadd.f32 %v2970, %v3114
    %v3157 = vadd.f32 %v2971, %v3119
    %v3158 = vadd.f32 %v2972, %v3122
    %v3159 = vadd.f32 %v2973, %v3127
    %v3160 = vadd.f32 %v2974, %v3130
    %v3161 = vadd.f32 %v2975, %v3135
    %v3162 = vadd.f32 %v2976, %v3138
    %v3163 = vadd.f32 %v2977, %v3143
    %v3164 = vadd.f32 %v2978, %v3146
    %v3165 = vcombine.low %v284, %v288
    %v3166 = vcombine.low %v292, %v358
    %v3168 = vunpack.c.l.s4 1983009808
    %v3169 = vunpack.c.0.s8 %v3168
    %v3170 = vlaneseq
    %v3171 = vshrl.u32 %v3170, 7
    %v3172 = vsub.s32 %v3169, %v3171
    %v3173 = vrot.slane %v3165, %v3172
    %v3175 = vunpack.c.l.s4 1983009808
    %v3176 = vunpack.c.0.s8 %v3175
    %v3177 = vlaneseq
    %v3178 = vshrl.u32 %v3177, 7
    %v3179 = vsub.s32 %v3176, %v3178
    %v3180 = vrot.slane %v3166, %v3179
    %v3181 = vcombine.low %v3173, %v3180
    %v3182 = vcombine.low %v300, %v304
    %v3183 = vcombine.low %v308, %v362
    %v3185 = vunpack.c.l.s4 1983009808
    %v3186 = vunpack.c.0.s8 %v3185
    %v3187 = vlaneseq
    %v3188 = vshrl.u32 %v3187, 7
    %v3189 = vsub.s32 %v3186, %v3188
    %v3190 = vrot.slane %v3182, %v3189
    %v3192 = vunpack.c.l.s4 1983009808
    %v3193 = vunpack.c.0.s8 %v3192
    %v3194 = vlaneseq
    %v3195 = vshrl.u32 %v3194, 7
    %v3196 = vsub.s32 %v3193, %v3195
    %v3197 = vrot.slane %v3183, %v3196
    %v3198 = vcombine.low %v3190, %v3197
    %s3199 = scalar_lea.vmem %s4, 256
    %v3200 = vld [vmem:[%s3199] sm:$0xf]
    %v3201 = vld [vmem:[%s3199 + $0x4] sm:$0xf]
    %v3202 = vld [vmem:[%s3199 + $0x8] sm:$0xf]
    %v3203 = vld [vmem:[%s3199 + $0xc] sm:$0xf]
    %v3204 = vld [vmem:[%s3199 + $0x10] sm:$0xf]
    %v3205 = vld [vmem:[%s3199 + $0x14] sm:$0xf]
    %v3206 = vld [vmem:[%s3199 + $0x18] sm:$0xf]
    %v3207 = vld [vmem:[%s3199 + $0x1c] sm:$0xf]
    %v3216 = vunpack.c.l.b16 %v3200
    %v3217 = vunpack.c.l.b16 %v3201
    %v3218 = vunpack.c.l.b16 %v3202
    %v3219 = vunpack.c.l.b16 %v3203
    %v3220 = vunpack.c.l.b16 %v3204
    %v3221 = vunpack.c.l.b16 %v3205
    %v3222 = vunpack.c.l.b16 %v3206
    %v3223 = vunpack.c.l.b16 %v3207
    %v3224 = vpack.c.b16 %v3217, %v3216
    %v3225 = vpack.c.b16 %v3219, %v3218
    %v3226 = vpack.c.b16 %v3221, %v3220
    %v3227 = vpack.c.b16 %v3223, %v3222
    %v3233 = vsel %vm1634, %v3181, 0
    %v3236 = vsel %vm1634, %v3198, 0
    %3238 = vmatprep.subr.bf16.mxu0 0
    %3239 = vmatpush1.bf16.msra.mxu0 %v3224
    %3240 = vmatprep.subr.bf16.mxu0 0
    %3241 = vmatpush1.bf16.msra.mxu0 %v3225
    %3242 = vmatprep.subr.bf16.mxu0 0
    %3243 = vmatpush1.bf16.msra.mxu0 %v3226
    %3244 = vmatprep.subr.bf16.mxu0 0
    %3245 = vmatpush1.bf16.msra.mxu0 %v3227
    %3246 = vmatprep.subr.bf16.mxu0 0
    %3247 = vmatpush1.bf16.msra.mxu0 0
    %3248 = vmatprep.subr.bf16.mxu0 0
    %3249 = vmatpush1.bf16.msra.mxu0 0
    %3250 = vmatprep.subr.bf16.mxu0 0
    %3251 = vmatpush1.bf16.msra.mxu0 0
    %3252 = vmatprep.subr.bf16.mxu0 0
    %3253 = vmatpush1.bf16.msra.mxu0 0
    %3254 = vmatprep.subr.bf16.mxu0 0
    %3255 = vmatpush1.bf16.msra.mxu0 0
    %3256 = vmatprep.subr.bf16.mxu0 0
    %3257 = vmatpush1.bf16.msra.mxu0 0
    %3258 = vmatprep.subr.bf16.mxu0 0
    %3259 = vmatpush1.bf16.msra.mxu0 0
    %3260 = vmatprep.subr.bf16.mxu0 0
    %3261 = vmatpush1.bf16.msra.mxu0 0
    %3262 = vmatprep.subr.bf16.mxu0 0
    %3263 = vmatpush1.bf16.msra.mxu0 0
    %3264 = vmatprep.subr.bf16.mxu0 0
    %3265 = vmatpush1.bf16.msra.mxu0 0
    %3266 = vmatprep.subr.bf16.mxu0 0
    %3267 = vmatpush1.bf16.msra.mxu0 0
    %3268 = vmatprep.subr.bf16.mxu0 0
    %3269 = vmatpush1.bf16.msra.mxu0 0
    %3270 = vmatprep.mubr.bf16.mxu0 0
    %3271 = vmatmul.mubr.bf16.gmra.mrb[0].mxu0 %v1997
    %v3272 = vpop.f32.mrb[0].mxu0
    %v3273 = vadd.f32 0.0, %v3272
    %v3274 = vpop.f32.mrb[0].mxu0
    %v3275 = vpop.f32.mrb[0].mxu0
    %v3276 = vadd.f32 0.0, %v3275
    %v3277 = vpop.f32.mrb[0].mxu0
    %3278 = vmatprep.mubr.bf16.mxu0 0
    %3279 = vmatmul.mubr.bf16.gmra.mrb[0].mxu0 %v2000
    %v3280 = vpop.f32.mrb[0].mxu0
    %v3281 = vadd.f32 0.0, %v3280
    %v3282 = vpop.f32.mrb[0].mxu0
    %v3283 = vpop.f32.mrb[0].mxu0
    %v3284 = vadd.f32 0.0, %v3283
    %v3285 = vpop.f32.mrb[0].mxu0
    %3286 = vmatprep.mubr.bf16.mxu0 0
    %3287 = vmatmul.mubr.bf16.gmra.mrb[0].mxu0 %v2223
    %v3288 = vpop.f32.mrb[0].mxu0
    %v3289 = vadd.f32 0.0, %v3288
    %v3290 = vpop.f32.mrb[0].mxu0
    %v3291 = vpop.f32.mrb[0].mxu0
    %v3292 = vadd.f32 0.0, %v3291
    %v3293 = vpop.f32.mrb[0].mxu0
    %3294 = vmatprep.mubr.bf16.mxu0 0
    %3295 = vmatmul.mubr.bf16.gmra.mrb[0].mxu0 %v2226
    %v3296 = vpop.f32.mrb[0].mxu0
    %v3297 = vadd.f32 0.0, %v3296
    %v3298 = vpop.f32.mrb[0].mxu0
    %v3299 = vpop.f32.mrb[0].mxu0
    %v3300 = vadd.f32 0.0, %v3299
    %v3301 = vpop.f32.mrb[0].mxu0
    %3302 = vmatprep.mubr.bf16.mxu0 0
    %3303 = vmatmul.mubr.bf16.gmra.mrb[0].mxu0 %v3047
    %v3304 = vpop.f32.mrb[0].mxu0
    %v3305 = vadd.f32 0.0, %v3304
    %v3306 = vpop.f32.mrb[0].mxu0
    %v3307 = vpop.f32.mrb[0].mxu0
    %v3308 = vadd.f32 0.0, %v3307
    %v3309 = vpop.f32.mrb[0].mxu0
    %3310 = vmatprep.mubr.bf16.mxu0 0
    %3311 = vmatmul.mubr.bf16.gmra.mrb[0].mxu0 %v3050
    %v3312 = vpop.f32.mrb[0].mxu0
    %v3313 = vadd.f32 0.0, %v3312
    %v3314 = vpop.f32.mrb[0].mxu0
    %v3315 = vpop.f32.mrb[0].mxu0
    %v3316 = vadd.f32 0.0, %v3315
    %v3317 = vpop.f32.mrb[0].mxu0
    %3318 = vmatprep.mubr.bf16.mxu0 0
    %3319 = vmatmul.mubr.bf16.gmra.mrb[0].mxu0 %v3233
    %v3320 = vpop.f32.mrb[0].mxu0
    %v3321 = vadd.f32 0.0, %v3320
    %v3322 = vpop.f32.mrb[0].mxu0
    %v3323 = vpop.f32.mrb[0].mxu0
    %v3324 = vadd.f32 0.0, %v3323
    %v3325 = vpop.f32.mrb[0].mxu0
    %3326 = vmatprep.mubr.bf16.mxu0 0
    %3327 = vmatmul.mubr.bf16.gmra.mrb[0].mxu0 %v3236
    %v3328 = vpop.f32.mrb[0].mxu0
    %v3329 = vadd.f32 0.0, %v3328
    %v3330 = vpop.f32.mrb[0].mxu0
    %v3331 = vpop.f32.mrb[0].mxu0
    %v3332 = vadd.f32 0.0, %v3331
    %v3333 = vpop.f32.mrb[0].mxu0
    %3334 = vdwg.mxu0
    %v3335 = vadd.f32 %v3149, %v3273
    %v3336 = vadd.f32 %v3150, %v3276
    %v3337 = vadd.f32 %v3151, %v3281
    %v3338 = vadd.f32 %v3152, %v3284
    %v3339 = vadd.f32 %v3153, %v3289
    %v3340 = vadd.f32 %v3154, %v3292
    %v3341 = vadd.f32 %v3155, %v3297
    %v3342 = vadd.f32 %v3156, %v3300
    %v3343 = vadd.f32 %v3157, %v3305
    %v3344 = vadd.f32 %v3158, %v3308
    %v3345 = vadd.f32 %v3159, %v3313
    %v3346 = vadd.f32 %v3160, %v3316
    %v3347 = vadd.f32 %v3161, %v3321
    %v3348 = vadd.f32 %v3162, %v3324
    %v3349 = vadd.f32 %v3163, %v3329
    %v3350 = vadd.f32 %v3164, %v3332
    %v3351 = vcombine.low %v608, %v612
    %v3352 = vcombine.low %v616, %v682
    %v3354 = vunpack.c.l.s4 1983009808
    %v3355 = vunpack.c.0.s8 %v3354
    %v3356 = vlaneseq
    %v3357 = vshrl.u32 %v3356, 7
    %v3358 = vsub.s32 %v3355, %v3357
    %v3359 = vrot.slane %v3351, %v3358
    %v3361 = vunpack.c.l.s4 1983009808
    %v3362 = vunpack.c.0.s8 %v3361
    %v3363 = vlaneseq
    %v3364 = vshrl.u32 %v3363, 7
    %v3365 = vsub.s32 %v3362, %v3364
    %v3366 = vrot.slane %v3352, %v3365
    %v3367 = vcombine.low %v3359, %v3366
    %v3368 = vcombine.low %v624, %v628
    %v3369 = vcombine.low %v632, %v686
    %v3371 = vunpack.c.l.s4 1983009808
    %v3372 = vunpack.c.0.s8 %v3371
    %v3373 = vlaneseq
    %v3374 = vshrl.u32 %v3373, 7
    %v3375 = vsub.s32 %v3372, %v3374
    %v3376 = vrot.slane %v3368, %v3375
    %v3378 = vunpack.c.l.s4 1983009808
    %v3379 = vunpack.c.0.s8 %v3378
    %v3380 = vlaneseq
    %v3381 = vshrl.u32 %v3380, 7
    %v3382 = vsub.s32 %v3379, %v3381
    %v3383 = vrot.slane %v3369, %v3382
    %v3384 = vcombine.low %v3376, %v3383
    %s3385 = scalar_lea.vmem %s4, 288
    %v3386 = vld [vmem:[%s3385] sm:$0xf]
    %v3387 = vld [vmem:[%s3385 + $0x4] sm:$0xf]
    %v3388 = vld [vmem:[%s3385 + $0x8] sm:$0xf]
    %v3389 = vld [vmem:[%s3385 + $0xc] sm:$0xf]
    %v3390 = vld [vmem:[%s3385 + $0x10] sm:$0xf]
    %v3391 = vld [vmem:[%s3385 + $0x14] sm:$0xf]
    %v3392 = vld [vmem:[%s3385 + $0x18] sm:$0xf]
    %v3393 = vld [vmem:[%s3385 + $0x1c] sm:$0xf]
    %v3402 = vunpack.c.l.b16 %v3386
    %v3403 = vunpack.c.l.b16 %v3387
    %v3404 = vunpack.c.l.b16 %v3388
    %v3405 = vunpack.c.l.b16 %v3389
    %v3406 = vunpack.c.l.b16 %v3390
    %v3407 = vunpack.c.l.b16 %v3391
    %v3408 = vunpack.c.l.b16 %v3392
    %v3409 = vunpack.c.l.b16 %v3393
    %v3410 = vpack.c.b16 %v3403, %v3402
    %v3411 = vpack.c.b16 %v3405, %v3404
    %v3412 = vpack.c.b16 %v3407, %v3406
    %v3413 = vpack.c.b16 %v3409, %v3408
    %v3419 = vsel %vm1634, %v3367, 0
    %v3422 = vsel %vm1634, %v3384, 0
    %3424 = vmatprep.subr.bf16.mxu0 0
    %3425 = vmatpush1.bf16.msra.mxu0 %v3410
    %3426 = vmatprep.subr.bf16.mxu0 0
    %3427 = vmatpush1.bf16.msra.mxu0 %v3411
    %3428 = vmatprep.subr.bf16.mxu0 0
    %3429 = vmatpush1.bf16.msra.mxu0 %v3412
    %3430 = vmatprep.subr.bf16.mxu0 0
    %3431 = vmatpush1.bf16.msra.mxu0 %v3413
    %3432 = vmatprep.subr.bf16.mxu0 0
    %3433 = vmatpush1.bf16.msra.mxu0 0
    %3434 = vmatprep.subr.bf16.mxu0 0
    %3435 = vmatpush1.bf16.msra.mxu0 0
    %3436 = vmatprep.subr.bf16.mxu0 0
    %3437 = vmatpush1.bf16.msra.mxu0 0
    %3438 = vmatprep.subr.bf16.mxu0 0
    %3439 = vmatpush1.bf16.msra.mxu0 0
    %3440 = vmatprep.subr.bf16.mxu0 0
    %3441 = vmatpush1.bf16.msra.mxu0 0
    %3442 = vmatprep.subr.bf16.mxu0 0
    %3443 = vmatpush1.bf16.msra.mxu0 0
    %3444 = vmatprep.subr.bf16.mxu0 0
    %3445 = vmatpush1.bf16.msra.mxu0 0
    %3446 = vmatprep.subr.bf16.mxu0 0
    %3447 = vmatpush1.bf16.msra.mxu0 0
    %3448 = vmatprep.subr.bf16.mxu0 0
    %3449 = vmatpush1.bf16.msra.mxu0 0
    %3450 = vmatprep.subr.bf16.mxu0 0
    %3451 = vmatpush1.bf16.msra.mxu0 0
    %3452 = vmatprep.subr.bf16.mxu0 0
    %3453 = vmatpush1.bf16.msra.mxu0 0
    %3454 = vmatprep.subr.bf16.mxu0 0
    %3455 = vmatpush1.bf16.msra.mxu0 0
    %3456 = vmatprep.mubr.bf16.mxu0 0
    %3457 = vmatmul.mubr.bf16.gmra.mrb[0].mxu0 %v2223
    %v3458 = vpop.f32.mrb[0].mxu0
    %v3459 = vadd.f32 0.0, %v3458
    %v3460 = vpop.f32.mrb[0].mxu0
    %v3461 = vpop.f32.mrb[0].mxu0
    %v3462 = vadd.f32 0.0, %v3461
    %v3463 = vpop.f32.mrb[0].mxu0
    %3464 = vmatprep.mubr.bf16.mxu0 0
    %3465 = vmatmul.mubr.bf16.gmra.mrb[0].mxu0 %v2226
    %v3466 = vpop.f32.mrb[0].mxu0
    %v3467 = vadd.f32 0.0, %v3466
    %v3468 = vpop.f32.mrb[0].mxu0
    %v3469 = vpop.f32.mrb[0].mxu0
    %v3470 = vadd.f32 0.0, %v3469
    %v3471 = vpop.f32.mrb[0].mxu0
    %3472 = vmatprep.mubr.bf16.mxu0 0
    %3473 = vmatmul.mubr.bf16.gmra.mrb[0].mxu0 %v2449
    %v3474 = vpop.f32.mrb[0].mxu0
    %v3475 = vadd.f32 0.0, %v3474
    %v3476 = vpop.f32.mrb[0].mxu0
    %v3477 = vpop.f32.mrb[0].mxu0
    %v3478 = vadd.f32 0.0, %v3477
    %v3479 = vpop.f32.mrb[0].mxu0
    %3480 = vmatprep.mubr.bf16.mxu0 0
    %3481 = vmatmul.mubr.bf16.gmra.mrb[0].mxu0 %v2452
    %v3482 = vpop.f32.mrb[0].mxu0
    %v3483 = vadd.f32 0.0, %v3482
    %v3484 = vpop.f32.mrb[0].mxu0
    %v3485 = vpop.f32.mrb[0].mxu0
    %v3486 = vadd.f32 0.0, %v3485
    %v3487 = vpop.f32.mrb[0].mxu0
    %3488 = vmatprep.mubr.bf16.mxu0 0
    %3489 = vmatmul.mubr.bf16.gmra.mrb[0].mxu0 %v3233
    %v3490 = vpop.f32.mrb[0].mxu0
    %v3491 = vadd.f32 0.0, %v3490
    %v3492 = vpop.f32.mrb[0].mxu0
    %v3493 = vpop.f32.mrb[0].mxu0
    %v3494 = vadd.f32 0.0, %v3493
    %v3495 = vpop.f32.mrb[0].mxu0
    %3496 = vmatprep.mubr.bf16.mxu0 0
    %3497 = vmatmul.mubr.bf16.gmra.mrb[0].mxu0 %v3236
    %v3498 = vpop.f32.mrb[0].mxu0
    %v3499 = vadd.f32 0.0, %v3498
    %v3500 = vpop.f32.mrb[0].mxu0
    %v3501 = vpop.f32.mrb[0].mxu0
    %v3502 = vadd.f32 0.0, %v3501
    %v3503 = vpop.f32.mrb[0].mxu0
    %3504 = vmatprep.mubr.bf16.mxu0 0
    %3505 = vmatmul.mubr.bf16.gmra.mrb[0].mxu0 %v3419
    %v3506 = vpop.f32.mrb[0].mxu0
    %v3507 = vadd.f32 0.0, %v3506
    %v3508 = vpop.f32.mrb[0].mxu0
    %v3509 = vpop.f32.mrb[0].mxu0
    %v3510 = vadd.f32 0.0, %v3509
    %v3511 = vpop.f32.mrb[0].mxu0
    %3512 = vmatprep.mubr.bf16.mxu0 0
    %3513 = vmatmul.mubr.bf16.gmra.mrb[0].mxu0 %v3422
    %v3514 = vpop.f32.mrb[0].mxu0
    %v3515 = vadd.f32 0.0, %v3514
    %v3516 = vpop.f32.mrb[0].mxu0
    %v3517 = vpop.f32.mrb[0].mxu0
    %v3518 = vadd.f32 0.0, %v3517
    %v3519 = vpop.f32.mrb[0].mxu0
    %3520 = vdwg.mxu0
    %v3521 = vadd.f32 %v3335, %v3459
    %v3522 = vadd.f32 %v3336, %v3462
    %v3523 = vadd.f32 %v3337, %v3467
    %v3524 = vadd.f32 %v3338, %v3470
    %v3525 = vadd.f32 %v3339, %v3475
    %v3526 = vadd.f32 %v3340, %v3478
    %v3527 = vadd.f32 %v3341, %v3483
    %v3528 = vadd.f32 %v3342, %v3486
    %v3529 = vadd.f32 %v3343, %v3491
    %v3530 = vadd.f32 %v3344, %v3494
    %v3531 = vadd.f32 %v3345, %v3499
    %v3532 = vadd.f32 %v3346, %v3502
    %v3533 = vadd.f32 %v3347, %v3507
    %v3534 = vadd.f32 %v3348, %v3510
    %v3535 = vadd.f32 %v3349, %v3515
    %v3536 = vadd.f32 %v3350, %v3518
    %v3537 = vcombine.low %v56, %v57
    %v3538 = vcombine.low %v58, %v59
    %v3540 = vunpack.c.l.s4 1983009808
    %v3541 = vunpack.c.0.s8 %v3540
    %v3542 = vlaneseq
    %v3543 = vshrl.u32 %v3542, 7
    %v3544 = vsub.s32 %v3541, %v3543
    %v3545 = vrot.slane %v3537, %v3544
    %v3547 = vunpack.c.l.s4 1983009808
    %v3548 = vunpack.c.0.s8 %v3547
    %v3549 = vlaneseq
    %v3550 = vshrl.u32 %v3549, 7
    %v3551 = vsub.s32 %v3548, %v3550
    %v3552 = vrot.slane %v3538, %v3551
    %v3553 = vcombine.low %v3545, %v3552
    %v3554 = vcombine.low %v62, %v63
    %v3555 = vcombine.low %v64, %v65
    %v3557 = vunpack.c.l.s4 1983009808
    %v3558 = vunpack.c.0.s8 %v3557
    %v3559 = vlaneseq
    %v3560 = vshrl.u32 %v3559, 7
    %v3561 = vsub.s32 %v3558, %v3560
    %v3562 = vrot.slane %v3554, %v3561
    %v3564 = vunpack.c.l.s4 1983009808
    %v3565 = vunpack.c.0.s8 %v3564
    %v3566 = vlaneseq
    %v3567 = vshrl.u32 %v3566, 7
    %v3568 = vsub.s32 %v3565, %v3567
    %v3569 = vrot.slane %v3555, %v3568
    %v3570 = vcombine.low %v3562, %v3569
    %v3571 = vcombine.low %v68, %v69
    %v3572 = vcombine.low %v70, %v71
    %v3574 = vunpack.c.l.s4 1983009808
    %v3575 = vunpack.c.0.s8 %v3574
    %v3576 = vlaneseq
    %v3577 = vshrl.u32 %v3576, 7
    %v3578 = vsub.s32 %v3575, %v3577
    %v3579 = vrot.slane %v3571, %v3578
    %v3581 = vunpack.c.l.s4 1983009808
    %v3582 = vunpack.c.0.s8 %v3581
    %v3583 = vlaneseq
    %v3584 = vshrl.u32 %v3583, 7
    %v3585 = vsub.s32 %v3582, %v3584
    %v3586 = vrot.slane %v3572, %v3585
    %v3587 = vcombine.low %v3579, %v3586
    %v3588 = vcombine.low %v74, %v75
    %v3589 = vcombine.low %v76, %v77
    %v3591 = vunpack.c.l.s4 1983009808
    %v3592 = vunpack.c.0.s8 %v3591
    %v3593 = vlaneseq
    %v3594 = vshrl.u32 %v3593, 7
    %v3595 = vsub.s32 %v3592, %v3594
    %v3596 = vrot.slane %v3588, %v3595
    %v3598 = vunpack.c.l.s4 1983009808
    %v3599 = vunpack.c.0.s8 %v3598
    %v3600 = vlaneseq
    %v3601 = vshrl.u32 %v3600, 7
    %v3602 = vsub.s32 %v3599, %v3601
    %v3603 = vrot.slane %v3589, %v3602
    %v3604 = vcombine.low %v3596, %v3603
    %s3605 = scalar_lea.vmem %s4, 320
    %v3606 = vld [vmem:[%s3605] sm:$0xf]
    %v3607 = vld [vmem:[%s3605 + $0x4] sm:$0xf]
    %v3608 = vld [vmem:[%s3605 + $0x8] sm:$0xf]
    %v3609 = vld [vmem:[%s3605 + $0xc] sm:$0xf]
    %v3610 = vld [vmem:[%s3605 + $0x10] sm:$0xf]
    %v3611 = vld [vmem:[%s3605 + $0x14] sm:$0xf]
    %v3612 = vld [vmem:[%s3605 + $0x18] sm:$0xf]
    %v3613 = vld [vmem:[%s3605 + $0x1c] sm:$0xf]
    %v3622 = vunpack.c.l.b16 %v3606
    %v3623 = vunpack.c.l.b16 %v3607
    %v3624 = vunpack.c.l.b16 %v3608
    %v3625 = vunpack.c.l.b16 %v3609
    %v3626 = vunpack.c.l.b16 %v3610
    %v3627 = vunpack.c.l.b16 %v3611
    %v3628 = vunpack.c.l.b16 %v3612
    %v3629 = vunpack.c.l.b16 %v3613
    %v3630 = vpack.c.b16 %v3623, %v3622
    %v3631 = vpack.c.b16 %v3625, %v3624
    %v3632 = vpack.c.b16 %v3627, %v3626
    %v3633 = vpack.c.b16 %v3629, %v3628
    %v3639 = vsel %vm1634, %v3553, 0
    %v3642 = vsel %vm1634, %v3570, 0
    %v3645 = vsel %vm1634, %v3587, 0
    %v3648 = vsel %vm1634, %v3604, 0
    %3650 = vmatprep.subr.bf16.mxu0 0
    %3651 = vmatpush1.bf16.msra.mxu0 %v3630
    %3652 = vmatprep.subr.bf16.mxu0 0
    %3653 = vmatpush1.bf16.msra.mxu0 %v3631
    %3654 = vmatprep.subr.bf16.mxu0 0
    %3655 = vmatpush1.bf16.msra.mxu0 %v3632
    %3656 = vmatprep.subr.bf16.mxu0 0
    %3657 = vmatpush1.bf16.msra.mxu0 %v3633
    %3658 = vmatprep.subr.bf16.mxu0 0
    %3659 = vmatpush1.bf16.msra.mxu0 0
    %3660 = vmatprep.subr.bf16.mxu0 0
    %3661 = vmatpush1.bf16.msra.mxu0 0
    %3662 = vmatprep.subr.bf16.mxu0 0
    %3663 = vmatpush1.bf16.msra.mxu0 0
    %3664 = vmatprep.subr.bf16.mxu0 0
    %3665 = vmatpush1.bf16.msra.mxu0 0
    %3666 = vmatprep.subr.bf16.mxu0 0
    %3667 = vmatpush1.bf16.msra.mxu0 0
    %3668 = vmatprep.subr.bf16.mxu0 0
    %3669 = vmatpush1.bf16.msra.mxu0 0
    %3670 = vmatprep.subr.bf16.mxu0 0
    %3671 = vmatpush1.bf16.msra.mxu0 0
    %3672 = vmatprep.subr.bf16.mxu0 0
    %3673 = vmatpush1.bf16.msra.mxu0 0
    %3674 = vmatprep.subr.bf16.mxu0 0
    %3675 = vmatpush1.bf16.msra.mxu0 0
    %3676 = vmatprep.subr.bf16.mxu0 0
    %3677 = vmatpush1.bf16.msra.mxu0 0
    %3678 = vmatprep.subr.bf16.mxu0 0
    %3679 = vmatpush1.bf16.msra.mxu0 0
    %3680 = vmatprep.subr.bf16.mxu0 0
    %3681 = vmatpush1.bf16.msra.mxu0 0
    %3682 = vmatprep.mubr.bf16.mxu0 0
    %3683 = vmatmul.mubr.bf16.gmra.mrb[0].mxu0 %v2669
    %v3684 = vpop.f32.mrb[0].mxu0
    %v3685 = vadd.f32 0.0, %v3684
    %v3686 = vpop.f32.mrb[0].mxu0
    %v3687 = vpop.f32.mrb[0].mxu0
    %v3688 = vadd.f32 0.0, %v3687
    %v3689 = vpop.f32.mrb[0].mxu0
    %3690 = vmatprep.mubr.bf16.mxu0 0
    %3691 = vmatmul.mubr.bf16.gmra.mrb[0].mxu0 %v2672
    %v3692 = vpop.f32.mrb[0].mxu0
    %v3693 = vadd.f32 0.0, %v3692
    %v3694 = vpop.f32.mrb[0].mxu0
    %v3695 = vpop.f32.mrb[0].mxu0
    %v3696 = vadd.f32 0.0, %v3695
    %v3697 = vpop.f32.mrb[0].mxu0
    %3698 = vmatprep.mubr.bf16.mxu0 0
    %3699 = vmatmul.mubr.bf16.gmra.mrb[0].mxu0 %v2675
    %v3700 = vpop.f32.mrb[0].mxu0
    %v3701 = vadd.f32 0.0, %v3700
    %v3702 = vpop.f32.mrb[0].mxu0
    %v3703 = vpop.f32.mrb[0].mxu0
    %v3704 = vadd.f32 0.0, %v3703
    %v3705 = vpop.f32.mrb[0].mxu0
    %3706 = vmatprep.mubr.bf16.mxu0 0
    %3707 = vmatmul.mubr.bf16.gmra.mrb[0].mxu0 %v2678
    %v3708 = vpop.f32.mrb[0].mxu0
    %v3709 = vadd.f32 0.0, %v3708
    %v3710 = vpop.f32.mrb[0].mxu0
    %v3711 = vpop.f32.mrb[0].mxu0
    %v3712 = vadd.f32 0.0, %v3711
    %v3713 = vpop.f32.mrb[0].mxu0
    %3714 = vmatprep.mubr.bf16.mxu0 0
    %3715 = vmatmul.mubr.bf16.gmra.mrb[0].mxu0 %v3639
    %v3716 = vpop.f32.mrb[0].mxu0
    %v3717 = vadd.f32 0.0, %v3716
    %v3718 = vpop.f32.mrb[0].mxu0
    %v3719 = vpop.f32.mrb[0].mxu0
    %v3720 = vadd.f32 0.0, %v3719
    %v3721 = vpop.f32.mrb[0].mxu0
    %3722 = vmatprep.mubr.bf16.mxu0 0
    %3723 = vmatmul.mubr.bf16.gmra.mrb[0].mxu0 %v3642
    %v3724 = vpop.f32.mrb[0].mxu0
    %v3725 = vadd.f32 0.0, %v3724
    %v3726 = vpop.f32.mrb[0].mxu0
    %v3727 = vpop.f32.mrb[0].mxu0
    %v3728 = vadd.f32 0.0, %v3727
    %v3729 = vpop.f32.mrb[0].mxu0
    %3730 = vmatprep.mubr.bf16.mxu0 0
    %3731 = vmatmul.mubr.bf16.gmra.mrb[0].mxu0 %v3645
    %v3732 = vpop.f32.mrb[0].mxu0
    %v3733 = vadd.f32 0.0, %v3732
    %v3734 = vpop.f32.mrb[0].mxu0
    %v3735 = vpop.f32.mrb[0].mxu0
    %v3736 = vadd.f32 0.0, %v3735
    %v3737 = vpop.f32.mrb[0].mxu0
    %3738 = vmatprep.mubr.bf16.mxu0 0
    %3739 = vmatmul.mubr.bf16.gmra.mrb[0].mxu0 %v3648
    %v3740 = vpop.f32.mrb[0].mxu0
    %v3741 = vadd.f32 0.0, %v3740
    %v3742 = vpop.f32.mrb[0].mxu0
    %v3743 = vpop.f32.mrb[0].mxu0
    %v3744 = vadd.f32 0.0, %v3743
    %v3745 = vpop.f32.mrb[0].mxu0
    %3746 = vdwg.mxu0
    %v3747 = vadd.f32 %v3521, %v3685
    %v3748 = vadd.f32 %v3522, %v3688
    %v3749 = vadd.f32 %v3523, %v3693
    %v3750 = vadd.f32 %v3524, %v3696
    %v3751 = vadd.f32 %v3525, %v3701
    %v3752 = vadd.f32 %v3526, %v3704
    %v3753 = vadd.f32 %v3527, %v3709
    %v3754 = vadd.f32 %v3528, %v3712
    %v3755 = vadd.f32 %v3529, %v3717
    %v3756 = vadd.f32 %v3530, %v3720
    %v3757 = vadd.f32 %v3531, %v3725
    %v3758 = vadd.f32 %v3532, %v3728
    %v3759 = vadd.f32 %v3533, %v3733
    %v3760 = vadd.f32 %v3534, %v3736
    %v3761 = vadd.f32 %v3535, %v3741
    %v3762 = vadd.f32 %v3536, %v3744
    %v3763 = vcombine.low %v840, %v854
    %v3764 = vcombine.low %v868, %v988
    %v3766 = vunpack.c.l.s4 1983009808
    %v3767 = vunpack.c.0.s8 %v3766
    %v3768 = vlaneseq
    %v3769 = vshrl.u32 %v3768, 7
    %v3770 = vsub.s32 %v3767, %v3769
    %v3771 = vrot.slane %v3763, %v3770
    %v3773 = vunpack.c.l.s4 1983009808
    %v3774 = vunpack.c.0.s8 %v3773
    %v3775 = vlaneseq
    %v3776 = vshrl.u32 %v3775, 7
    %v3777 = vsub.s32 %v3774, %v3776
    %v3778 = vrot.slane %v3764, %v3777
    %v3779 = vcombine.low %v3771, %v3778
    %v3780 = vcombine.low %v896, %v910
    %v3781 = vcombine.low %v924, %v1002
    %v3783 = vunpack.c.l.s4 1983009808
    %v3784 = vunpack.c.0.s8 %v3783
    %v3785 = vlaneseq
    %v3786 = vshrl.u32 %v3785, 7
    %v3787 = vsub.s32 %v3784, %v3786
    %v3788 = vrot.slane %v3780, %v3787
    %v3790 = vunpack.c.l.s4 1983009808
    %v3791 = vunpack.c.0.s8 %v3790
    %v3792 = vlaneseq
    %v3793 = vshrl.u32 %v3792, 7
    %v3794 = vsub.s32 %v3791, %v3793
    %v3795 = vrot.slane %v3781, %v3794
    %v3796 = vcombine.low %v3788, %v3795
    %s3797 = scalar_lea.vmem %s4, 352
    %v3798 = vld [vmem:[%s3797] sm:$0xf]
    %v3799 = vld [vmem:[%s3797 + $0x4] sm:$0xf]
    %v3800 = vld [vmem:[%s3797 + $0x8] sm:$0xf]
    %v3801 = vld [vmem:[%s3797 + $0xc] sm:$0xf]
    %v3802 = vld [vmem:[%s3797 + $0x10] sm:$0xf]
    %v3803 = vld [vmem:[%s3797 + $0x14] sm:$0xf]
    %v3804 = vld [vmem:[%s3797 + $0x18] sm:$0xf]
    %v3805 = vld [vmem:[%s3797 + $0x1c] sm:$0xf]
    %v3814 = vunpack.c.l.b16 %v3798
    %v3815 = vunpack.c.l.b16 %v3799
    %v3816 = vunpack.c.l.b16 %v3800
    %v3817 = vunpack.c.l.b16 %v3801
    %v3818 = vunpack.c.l.b16 %v3802
    %v3819 = vunpack.c.l.b16 %v3803
    %v3820 = vunpack.c.l.b16 %v3804
    %v3821 = vunpack.c.l.b16 %v3805
    %v3822 = vpack.c.b16 %v3815, %v3814
    %v3823 = vpack.c.b16 %v3817, %v3816
    %v3824 = vpack.c.b16 %v3819, %v3818
    %v3825 = vpack.c.b16 %v3821, %v3820
    %v3831 = vsel %vm1634, %v3779, 0
    %v3834 = vsel %vm1634, %v3796, 0
    %3836 = vmatprep.subr.bf16.mxu0 0
    %3837 = vmatpush1.bf16.msra.mxu0 %v3822
    %3838 = vmatprep.subr.bf16.mxu0 0
    %3839 = vmatpush1.bf16.msra.mxu0 %v3823
    %3840 = vmatprep.subr.bf16.mxu0 0
    %3841 = vmatpush1.bf16.msra.mxu0 %v3824
    %3842 = vmatprep.subr.bf16.mxu0 0
    %3843 = vmatpush1.bf16.msra.mxu0 %v3825
    %3844 = vmatprep.subr.bf16.mxu0 0
    %3845 = vmatpush1.bf16.msra.mxu0 0
    %3846 = vmatprep.subr.bf16.mxu0 0
    %3847 = vmatpush1.bf16.msra.mxu0 0
    %3848 = vmatprep.subr.bf16.mxu0 0
    %3849 = vmatpush1.bf16.msra.mxu0 0
    %3850 = vmatprep.subr.bf16.mxu0 0
    %3851 = vmatpush1.bf16.msra.mxu0 0
    %3852 = vmatprep.subr.bf16.mxu0 0
    %3853 = vmatpush1.bf16.msra.mxu0 0
    %3854 = vmatprep.subr.bf16.mxu0 0
    %3855 = vmatpush1.bf16.msra.mxu0 0
    %3856 = vmatprep.subr.bf16.mxu0 0
    %3857 = vmatpush1.bf16.msra.mxu0 0
    %3858 = vmatprep.subr.bf16.mxu0 0
    %3859 = vmatpush1.bf16.msra.mxu0 0
    %3860 = vmatprep.subr.bf16.mxu0 0
    %3861 = vmatpush1.bf16.msra.mxu0 0
    %3862 = vmatprep.subr.bf16.mxu0 0
    %3863 = vmatpush1.bf16.msra.mxu0 0
    %3864 = vmatprep.subr.bf16.mxu0 0
    %3865 = vmatpush1.bf16.msra.mxu0 0
    %3866 = vmatprep.subr.bf16.mxu0 0
    %3867 = vmatpush1.bf16.msra.mxu0 0
    %3868 = vmatprep.mubr.bf16.mxu0 0
    %3869 = vmatmul.mubr.bf16.gmra.mrb[0].mxu0 %v2675
    %v3870 = vpop.f32.mrb[0].mxu0
    %v3871 = vadd.f32 0.0, %v3870
    %v3872 = vpop.f32.mrb[0].mxu0
    %v3873 = vpop.f32.mrb[0].mxu0
    %v3874 = vadd.f32 0.0, %v3873
    %v3875 = vpop.f32.mrb[0].mxu0
    %3876 = vmatprep.mubr.bf16.mxu0 0
    %3877 = vmatmul.mubr.bf16.gmra.mrb[0].mxu0 %v2678
    %v3878 = vpop.f32.mrb[0].mxu0
    %v3879 = vadd.f32 0.0, %v3878
    %v3880 = vpop.f32.mrb[0].mxu0
    %v3881 = vpop.f32.mrb[0].mxu0
    %v3882 = vadd.f32 0.0, %v3881
    %v3883 = vpop.f32.mrb[0].mxu0
    %3884 = vmatprep.mubr.bf16.mxu0 0
    %3885 = vmatmul.mubr.bf16.gmra.mrb[0].mxu0 %v2861
    %v3886 = vpop.f32.mrb[0].mxu0
    %v3887 = vadd.f32 0.0, %v3886
    %v3888 = vpop.f32.mrb[0].mxu0
    %v3889 = vpop.f32.mrb[0].mxu0
    %v3890 = vadd.f32 0.0, %v3889
    %v3891 = vpop.f32.mrb[0].mxu0
    %3892 = vmatprep.mubr.bf16.mxu0 0
    %3893 = vmatmul.mubr.bf16.gmra.mrb[0].mxu0 %v2864
    %v3894 = vpop.f32.mrb[0].mxu0
    %v3895 = vadd.f32 0.0, %v3894
    %v3896 = vpop.f32.mrb[0].mxu0
    %v3897 = vpop.f32.mrb[0].mxu0
    %v3898 = vadd.f32 0.0, %v3897
    %v3899 = vpop.f32.mrb[0].mxu0
    %3900 = vmatprep.mubr.bf16.mxu0 0
    %3901 = vmatmul.mubr.bf16.gmra.mrb[0].mxu0 %v3645
    %v3902 = vpop.f32.mrb[0].mxu0
    %v3903 = vadd.f32 0.0, %v3902
    %v3904 = vpop.f32.mrb[0].mxu0
    %v3905 = vpop.f32.mrb[0].mxu0
    %v3906 = vadd.f32 0.0, %v3905
    %v3907 = vpop.f32.mrb[0].mxu0
    %3908 = vmatprep.mubr.bf16.mxu0 0
    %3909 = vmatmul.mubr.bf16.gmra.mrb[0].mxu0 %v3648
    %v3910 = vpop.f32.mrb[0].mxu0
    %v3911 = vadd.f32 0.0, %v3910
    %v3912 = vpop.f32.mrb[0].mxu0
    %v3913 = vpop.f32.mrb[0].mxu0
    %v3914 = vadd.f32 0.0, %v3913
    %v3915 = vpop.f32.mrb[0].mxu0
    %3916 = vmatprep.mubr.bf16.mxu0 0
    %3917 = vmatmul.mubr.bf16.gmra.mrb[0].mxu0 %v3831
    %v3918 = vpop.f32.mrb[0].mxu0
    %v3919 = vadd.f32 0.0, %v3918
    %v3920 = vpop.f32.mrb[0].mxu0
    %v3921 = vpop.f32.mrb[0].mxu0
    %v3922 = vadd.f32 0.0, %v3921
    %v3923 = vpop.f32.mrb[0].mxu0
    %3924 = vmatprep.mubr.bf16.mxu0 0
    %3925 = vmatmul.mubr.bf16.gmra.mrb[0].mxu0 %v3834
    %v3926 = vpop.f32.mrb[0].mxu0
    %v3927 = vadd.f32 0.0, %v3926
    %v3928 = vpop.f32.mrb[0].mxu0
    %v3929 = vpop.f32.mrb[0].mxu0
    %v3930 = vadd.f32 0.0, %v3929
    %v3931 = vpop.f32.mrb[0].mxu0
    %3932 = vdwg.mxu0
    %v3933 = vadd.f32 %v3747, %v3871
    %v3934 = vadd.f32 %v3748, %v3874
    %v3935 = vadd.f32 %v3749, %v3879
    %v3936 = vadd.f32 %v3750, %v3882
    %v3937 = vadd.f32 %v3751, %v3887
    %v3938 = vadd.f32 %v3752, %v3890
    %v3939 = vadd.f32 %v3753, %v3895
    %v3940 = vadd.f32 %v3754, %v3898
    %v3941 = vadd.f32 %v3755, %v3903
    %v3942 = vadd.f32 %v3756, %v3906
    %v3943 = vadd.f32 %v3757, %v3911
    %v3944 = vadd.f32 %v3758, %v3914
    %v3945 = vadd.f32 %v3759, %v3919
    %v3946 = vadd.f32 %v3760, %v3922
    %v3947 = vadd.f32 %v3761, %v3927
    %v3948 = vadd.f32 %v3762, %v3930
    %v3949 = vcombine.low %v1164, %v1178
    %v3950 = vcombine.low %v1192, %v1312
    %v3952 = vunpack.c.l.s4 1983009808
    %v3953 = vunpack.c.0.s8 %v3952
    %v3954 = vlaneseq
    %v3955 = vshrl.u32 %v3954, 7
    %v3956 = vsub.s32 %v3953, %v3955
    %v3957 = vrot.slane %v3949, %v3956
    %v3959 = vunpack.c.l.s4 1983009808
    %v3960 = vunpack.c.0.s8 %v3959
    %v3961 = vlaneseq
    %v3962 = vshrl.u32 %v3961, 7
    %v3963 = vsub.s32 %v3960, %v3962
    %v3964 = vrot.slane %v3950, %v3963
    %v3965 = vcombine.low %v3957, %v3964
    %v3966 = vcombine.low %v1220, %v1234
    %v3967 = vcombine.low %v1248, %v1326
    %v3969 = vunpack.c.l.s4 1983009808
    %v3970 = vunpack.c.0.s8 %v3969
    %v3971 = vlaneseq
    %v3972 = vshrl.u32 %v3971, 7
    %v3973 = vsub.s32 %v3970, %v3972
    %v3974 = vrot.slane %v3966, %v3973
    %v3976 = vunpack.c.l.s4 1983009808
    %v3977 = vunpack.c.0.s8 %v3976
    %v3978 = vlaneseq
    %v3979 = vshrl.u32 %v3978, 7
    %v3980 = vsub.s32 %v3977, %v3979
    %v3981 = vrot.slane %v3967, %v3980
    %v3982 = vcombine.low %v3974, %v3981
    %s3983 = scalar_lea.vmem %s4, 384
    %v3984 = vld [vmem:[%s3983] sm:$0xf]
    %v3985 = vld [vmem:[%s3983 + $0x4] sm:$0xf]
    %v3986 = vld [vmem:[%s3983 + $0x8] sm:$0xf]
    %v3987 = vld [vmem:[%s3983 + $0xc] sm:$0xf]
    %v3988 = vld [vmem:[%s3983 + $0x10] sm:$0xf]
    %v3989 = vld [vmem:[%s3983 + $0x14] sm:$0xf]
    %v3990 = vld [vmem:[%s3983 + $0x18] sm:$0xf]
    %v3991 = vld [vmem:[%s3983 + $0x1c] sm:$0xf]
    %v4000 = vunpack.c.l.b16 %v3984
    %v4001 = vunpack.c.l.b16 %v3985
    %v4002 = vunpack.c.l.b16 %v3986
    %v4003 = vunpack.c.l.b16 %v3987
    %v4004 = vunpack.c.l.b16 %v3988
    %v4005 = vunpack.c.l.b16 %v3989
    %v4006 = vunpack.c.l.b16 %v3990
    %v4007 = vunpack.c.l.b16 %v3991
    %v4008 = vpack.c.b16 %v4001, %v4000
    %v4009 = vpack.c.b16 %v4003, %v4002
    %v4010 = vpack.c.b16 %v4005, %v4004
    %v4011 = vpack.c.b16 %v4007, %v4006
    %v4017 = vsel %vm1634, %v3965, 0
    %v4020 = vsel %vm1634, %v3982, 0
    %4022 = vmatprep.subr.bf16.mxu0 0
    %4023 = vmatpush1.bf16.msra.mxu0 %v4008
    %4024 = vmatprep.subr.bf16.mxu0 0
    %4025 = vmatpush1.bf16.msra.mxu0 %v4009
    %4026 = vmatprep.subr.bf16.mxu0 0
    %4027 = vmatpush1.bf16.msra.mxu0 %v4010
    %4028 = vmatprep.subr.bf16.mxu0 0
    %4029 = vmatpush1.bf16.msra.mxu0 %v4011
    %4030 = vmatprep.subr.bf16.mxu0 0
    %4031 = vmatpush1.bf16.msra.mxu0 0
    %4032 = vmatprep.subr.bf16.mxu0 0
    %4033 = vmatpush1.bf16.msra.mxu0 0
    %4034 = vmatprep.subr.bf16.mxu0 0
    %4035 = vmatpush1.bf16.msra.mxu0 0
    %4036 = vmatprep.subr.bf16.mxu0 0
    %4037 = vmatpush1.bf16.msra.mxu0 0
    %4038 = vmatprep.subr.bf16.mxu0 0
    %4039 = vmatpush1.bf16.msra.mxu0 0
    %4040 = vmatprep.subr.bf16.mxu0 0
    %4041 = vmatpush1.bf16.msra.mxu0 0
    %4042 = vmatprep.subr.bf16.mxu0 0
    %4043 = vmatpush1.bf16.msra.mxu0 0
    %4044 = vmatprep.subr.bf16.mxu0 0
    %4045 = vmatpush1.bf16.msra.mxu0 0
    %4046 = vmatprep.subr.bf16.mxu0 0
    %4047 = vmatpush1.bf16.msra.mxu0 0
    %4048 = vmatprep.subr.bf16.mxu0 0
    %4049 = vmatpush1.bf16.msra.mxu0 0
    %4050 = vmatprep.subr.bf16.mxu0 0
    %4051 = vmatpush1.bf16.msra.mxu0 0
    %4052 = vmatprep.subr.bf16.mxu0 0
    %4053 = vmatpush1.bf16.msra.mxu0 0
    %4054 = vmatprep.mubr.bf16.mxu0 0
    %4055 = vmatmul.mubr.bf16.gmra.mrb[0].mxu0 %v2861
    %v4056 = vpop.f32.mrb[0].mxu0
    %v4057 = vadd.f32 0.0, %v4056
    %v4058 = vpop.f32.mrb[0].mxu0
    %v4059 = vpop.f32.mrb[0].mxu0
    %v4060 = vadd.f32 0.0, %v4059
    %v4061 = vpop.f32.mrb[0].mxu0
    %4062 = vmatprep.mubr.bf16.mxu0 0
    %4063 = vmatmul.mubr.bf16.gmra.mrb[0].mxu0 %v2864
    %v4064 = vpop.f32.mrb[0].mxu0
    %v4065 = vadd.f32 0.0, %v4064
    %v4066 = vpop.f32.mrb[0].mxu0
    %v4067 = vpop.f32.mrb[0].mxu0
    %v4068 = vadd.f32 0.0, %v4067
    %v4069 = vpop.f32.mrb[0].mxu0
    %4070 = vmatprep.mubr.bf16.mxu0 0
    %4071 = vmatmul.mubr.bf16.gmra.mrb[0].mxu0 %v3047
    %v4072 = vpop.f32.mrb[0].mxu0
    %v4073 = vadd.f32 0.0, %v4072
    %v4074 = vpop.f32.mrb[0].mxu0
    %v4075 = vpop.f32.mrb[0].mxu0
    %v4076 = vadd.f32 0.0, %v4075
    %v4077 = vpop.f32.mrb[0].mxu0
    %4078 = vmatprep.mubr.bf16.mxu0 0
    %4079 = vmatmul.mubr.bf16.gmra.mrb[0].mxu0 %v3050
    %v4080 = vpop.f32.mrb[0].mxu0
    %v4081 = vadd.f32 0.0, %v4080
    %v4082 = vpop.f32.mrb[0].mxu0
    %v4083 = vpop.f32.mrb[0].mxu0
    %v4084 = vadd.f32 0.0, %v4083
    %v4085 = vpop.f32.mrb[0].mxu0
    %4086 = vmatprep.mubr.bf16.mxu0 0
    %4087 = vmatmul.mubr.bf16.gmra.mrb[0].mxu0 %v3831
    %v4088 = vpop.f32.mrb[0].mxu0
    %v4089 = vadd.f32 0.0, %v4088
    %v4090 = vpop.f32.mrb[0].mxu0
    %v4091 = vpop.f32.mrb[0].mxu0
    %v4092 = vadd.f32 0.0, %v4091
    %v4093 = vpop.f32.mrb[0].mxu0
    %4094 = vmatprep.mubr.bf16.mxu0 0
    %4095 = vmatmul.mubr.bf16.gmra.mrb[0].mxu0 %v3834
    %v4096 = vpop.f32.mrb[0].mxu0
    %v4097 = vadd.f32 0.0, %v4096
    %v4098 = vpop.f32.mrb[0].mxu0
    %v4099 = vpop.f32.mrb[0].mxu0
    %v4100 = vadd.f32 0.0, %v4099
    %v4101 = vpop.f32.mrb[0].mxu0
    %4102 = vmatprep.mubr.bf16.mxu0 0
    %4103 = vmatmul.mubr.bf16.gmra.mrb[0].mxu0 %v4017
    %v4104 = vpop.f32.mrb[0].mxu0
    %v4105 = vadd.f32 0.0, %v4104
    %v4106 = vpop.f32.mrb[0].mxu0
    %v4107 = vpop.f32.mrb[0].mxu0
    %v4108 = vadd.f32 0.0, %v4107
    %v4109 = vpop.f32.mrb[0].mxu0
    %4110 = vmatprep.mubr.bf16.mxu0 0
    %4111 = vmatmul.mubr.bf16.gmra.mrb[0].mxu0 %v4020
    %v4112 = vpop.f32.mrb[0].mxu0
    %v4113 = vadd.f32 0.0, %v4112
    %v4114 = vpop.f32.mrb[0].mxu0
    %v4115 = vpop.f32.mrb[0].mxu0
    %v4116 = vadd.f32 0.0, %v4115
    %v4117 = vpop.f32.mrb[0].mxu0
    %4118 = vdwg.mxu0
    %v4119 = vadd.f32 %v3933, %v4057
    %v4120 = vadd.f32 %v3934, %v4060
    %v4121 = vadd.f32 %v3935, %v4065
    %v4122 = vadd.f32 %v3936, %v4068
    %v4123 = vadd.f32 %v3937, %v4073
    %v4124 = vadd.f32 %v3938, %v4076
    %v4125 = vadd.f32 %v3939, %v4081
    %v4126 = vadd.f32 %v3940, %v4084
    %v4127 = vadd.f32 %v3941, %v4089
    %v4128 = vadd.f32 %v3942, %v4092
    %v4129 = vadd.f32 %v3943, %v4097
    %v4130 = vadd.f32 %v3944, %v4100
    %v4131 = vadd.f32 %v3945, %v4105
    %v4132 = vadd.f32 %v3946, %v4108
    %v4133 = vadd.f32 %v3947, %v4113
    %v4134 = vadd.f32 %v3948, %v4116
    %v4135 = vcombine.low %v932, %v936
    %v4136 = vcombine.low %v940, %v1006
    %v4138 = vunpack.c.l.s4 1983009808
    %v4139 = vunpack.c.0.s8 %v4138
    %v4140 = vlaneseq
    %v4141 = vshrl.u32 %v4140, 7
    %v4142 = vsub.s32 %v4139, %v4141
    %v4143 = vrot.slane %v4135, %v4142
    %v4145 = vunpack.c.l.s4 1983009808
    %v4146 = vunpack.c.0.s8 %v4145
    %v4147 = vlaneseq
    %v4148 = vshrl.u32 %v4147, 7
    %v4149 = vsub.s32 %v4146, %v4148
    %v4150 = vrot.slane %v4136, %v4149
    %v4151 = vcombine.low %v4143, %v4150
    %v4152 = vcombine.low %v948, %v952
    %v4153 = vcombine.low %v956, %v1010
    %v4155 = vunpack.c.l.s4 1983009808
    %v4156 = vunpack.c.0.s8 %v4155
    %v4157 = vlaneseq
    %v4158 = vshrl.u32 %v4157, 7
    %v4159 = vsub.s32 %v4156, %v4158
    %v4160 = vrot.slane %v4152, %v4159
    %v4162 = vunpack.c.l.s4 1983009808
    %v4163 = vunpack.c.0.s8 %v4162
    %v4164 = vlaneseq
    %v4165 = vshrl.u32 %v4164, 7
    %v4166 = vsub.s32 %v4163, %v4165
    %v4167 = vrot.slane %v4153, %v4166
    %v4168 = vcombine.low %v4160, %v4167
    %s4169 = scalar_lea.vmem %s4, 416
    %v4170 = vld [vmem:[%s4169] sm:$0xf]
    %v4171 = vld [vmem:[%s4169 + $0x4] sm:$0xf]
    %v4172 = vld [vmem:[%s4169 + $0x8] sm:$0xf]
    %v4173 = vld [vmem:[%s4169 + $0xc] sm:$0xf]
    %v4174 = vld [vmem:[%s4169 + $0x10] sm:$0xf]
    %v4175 = vld [vmem:[%s4169 + $0x14] sm:$0xf]
    %v4176 = vld [vmem:[%s4169 + $0x18] sm:$0xf]
    %v4177 = vld [vmem:[%s4169 + $0x1c] sm:$0xf]
    %v4186 = vunpack.c.l.b16 %v4170
    %v4187 = vunpack.c.l.b16 %v4171
    %v4188 = vunpack.c.l.b16 %v4172
    %v4189 = vunpack.c.l.b16 %v4173
    %v4190 = vunpack.c.l.b16 %v4174
    %v4191 = vunpack.c.l.b16 %v4175
    %v4192 = vunpack.c.l.b16 %v4176
    %v4193 = vunpack.c.l.b16 %v4177
    %v4194 = vpack.c.b16 %v4187, %v4186
    %v4195 = vpack.c.b16 %v4189, %v4188
    %v4196 = vpack.c.b16 %v4191, %v4190
    %v4197 = vpack.c.b16 %v4193, %v4192
    %v4203 = vsel %vm1634, %v4151, 0
    %v4206 = vsel %vm1634, %v4168, 0
    %4208 = vmatprep.subr.bf16.mxu0 0
    %4209 = vmatpush1.bf16.msra.mxu0 %v4194
    %4210 = vmatprep.subr.bf16.mxu0 0
    %4211 = vmatpush1.bf16.msra.mxu0 %v4195
    %4212 = vmatprep.subr.bf16.mxu0 0
    %4213 = vmatpush1.bf16.msra.mxu0 %v4196
    %4214 = vmatprep.subr.bf16.mxu0 0
    %4215 = vmatpush1.bf16.msra.mxu0 %v4197
    %4216 = vmatprep.subr.bf16.mxu0 0
    %4217 = vmatpush1.bf16.msra.mxu0 0
    %4218 = vmatprep.subr.bf16.mxu0 0
    %4219 = vmatpush1.bf16.msra.mxu0 0
    %4220 = vmatprep.subr.bf16.mxu0 0
    %4221 = vmatpush1.bf16.msra.mxu0 0
    %4222 = vmatprep.subr.bf16.mxu0 0
    %4223 = vmatpush1.bf16.msra.mxu0 0
    %4224 = vmatprep.subr.bf16.mxu0 0
    %4225 = vmatpush1.bf16.msra.mxu0 0
    %4226 = vmatprep.subr.bf16.mxu0 0
    %4227 = vmatpush1.bf16.msra.mxu0 0
    %4228 = vmatprep.subr.bf16.mxu0 0
    %4229 = vmatpush1.bf16.msra.mxu0 0
    %4230 = vmatprep.subr.bf16.mxu0 0
    %4231 = vmatpush1.bf16.msra.mxu0 0
    %4232 = vmatprep.subr.bf16.mxu0 0
    %4233 = vmatpush1.bf16.msra.mxu0 0
    %4234 = vmatprep.subr.bf16.mxu0 0
    %4235 = vmatpush1.bf16.msra.mxu0 0
    %4236 = vmatprep.subr.bf16.mxu0 0
    %4237 = vmatpush1.bf16.msra.mxu0 0
    %4238 = vmatprep.subr.bf16.mxu0 0
    %4239 = vmatpush1.bf16.msra.mxu0 0
    %4240 = vmatprep.mubr.bf16.mxu0 0
    %4241 = vmatmul.mubr.bf16.gmra.mrb[0].mxu0 %v3047
    %v4242 = vpop.f32.mrb[0].mxu0
    %v4243 = vadd.f32 0.0, %v4242
    %v4244 = vpop.f32.mrb[0].mxu0
    %v4245 = vpop.f32.mrb[0].mxu0
    %v4246 = vadd.f32 0.0, %v4245
    %v4247 = vpop.f32.mrb[0].mxu0
    %4248 = vmatprep.mubr.bf16.mxu0 0
    %4249 = vmatmul.mubr.bf16.gmra.mrb[0].mxu0 %v3050
    %v4250 = vpop.f32.mrb[0].mxu0
    %v4251 = vadd.f32 0.0, %v4250
    %v4252 = vpop.f32.mrb[0].mxu0
    %v4253 = vpop.f32.mrb[0].mxu0
    %v4254 = vadd.f32 0.0, %v4253
    %v4255 = vpop.f32.mrb[0].mxu0
    %4256 = vmatprep.mubr.bf16.mxu0 0
    %4257 = vmatmul.mubr.bf16.gmra.mrb[0].mxu0 %v3233
    %v4258 = vpop.f32.mrb[0].mxu0
    %v4259 = vadd.f32 0.0, %v4258
    %v4260 = vpop.f32.mrb[0].mxu0
    %v4261 = vpop.f32.mrb[0].mxu0
    %v4262 = vadd.f32 0.0, %v4261
    %v4263 = vpop.f32.mrb[0].mxu0
    %4264 = vmatprep.mubr.bf16.mxu0 0
    %4265 = vmatmul.mubr.bf16.gmra.mrb[0].mxu0 %v3236
    %v4266 = vpop.f32.mrb[0].mxu0
    %v4267 = vadd.f32 0.0, %v4266
    %v4268 = vpop.f32.mrb[0].mxu0
    %v4269 = vpop.f32.mrb[0].mxu0
    %v4270 = vadd.f32 0.0, %v4269
    %v4271 = vpop.f32.mrb[0].mxu0
    %4272 = vmatprep.mubr.bf16.mxu0 0
    %4273 = vmatmul.mubr.bf16.gmra.mrb[0].mxu0 %v4017
    %v4274 = vpop.f32.mrb[0].mxu0
    %v4275 = vadd.f32 0.0, %v4274
    %v4276 = vpop.f32.mrb[0].mxu0
    %v4277 = vpop.f32.mrb[0].mxu0
    %v4278 = vadd.f32 0.0, %v4277
    %v4279 = vpop.f32.mrb[0].mxu0
    %4280 = vmatprep.mubr.bf16.mxu0 0
    %4281 = vmatmul.mubr.bf16.gmra.mrb[0].mxu0 %v4020
    %v4282 = vpop.f32.mrb[0].mxu0
    %v4283 = vadd.f32 0.0, %v4282
    %v4284 = vpop.f32.mrb[0].mxu0
    %v4285 = vpop.f32.mrb[0].mxu0
    %v4286 = vadd.f32 0.0, %v4285
    %v4287 = vpop.f32.mrb[0].mxu0
    %4288 = vmatprep.mubr.bf16.mxu0 0
    %4289 = vmatmul.mubr.bf16.gmra.mrb[0].mxu0 %v4203
    %v4290 = vpop.f32.mrb[0].mxu0
    %v4291 = vadd.f32 0.0, %v4290
    %v4292 = vpop.f32.mrb[0].mxu0
    %v4293 = vpop.f32.mrb[0].mxu0
    %v4294 = vadd.f32 0.0, %v4293
    %v4295 = vpop.f32.mrb[0].mxu0
    %4296 = vmatprep.mubr.bf16.mxu0 0
    %4297 = vmatmul.mubr.bf16.gmra.mrb[0].mxu0 %v4206
    %v4298 = vpop.f32.mrb[0].mxu0
    %v4299 = vadd.f32 0.0, %v4298
    %v4300 = vpop.f32.mrb[0].mxu0
    %v4301 = vpop.f32.mrb[0].mxu0
    %v4302 = vadd.f32 0.0, %v4301
    %v4303 = vpop.f32.mrb[0].mxu0
    %4304 = vdwg.mxu0
    %v4305 = vadd.f32 %v4119, %v4243
    %v4306 = vadd.f32 %v4120, %v4246
    %v4307 = vadd.f32 %v4121, %v4251
    %v4308 = vadd.f32 %v4122, %v4254
    %v4309 = vadd.f32 %v4123, %v4259
    %v4310 = vadd.f32 %v4124, %v4262
    %v4311 = vadd.f32 %v4125, %v4267
    %v4312 = vadd.f32 %v4126, %v4270
    %v4313 = vadd.f32 %v4127, %v4275
    %v4314 = vadd.f32 %v4128, %v4278
    %v4315 = vadd.f32 %v4129, %v4283
    %v4316 = vadd.f32 %v4130, %v4286
    %v4317 = vadd.f32 %v4131, %v4291
    %v4318 = vadd.f32 %v4132, %v4294
    %v4319 = vadd.f32 %v4133, %v4299
    %v4320 = vadd.f32 %v4134, %v4302
    %v4321 = vcombine.low %v1256, %v1260
    %v4322 = vcombine.low %v1264, %v1330
    %v4324 = vunpack.c.l.s4 1983009808
    %v4325 = vunpack.c.0.s8 %v4324
    %v4326 = vlaneseq
    %v4327 = vshrl.u32 %v4326, 7
    %v4328 = vsub.s32 %v4325, %v4327
    %v4329 = vrot.slane %v4321, %v4328
    %v4331 = vunpack.c.l.s4 1983009808
    %v4332 = vunpack.c.0.s8 %v4331
    %v4333 = vlaneseq
    %v4334 = vshrl.u32 %v4333, 7
    %v4335 = vsub.s32 %v4332, %v4334
    %v4336 = vrot.slane %v4322, %v4335
    %v4337 = vcombine.low %v4329, %v4336
    %v4338 = vcombine.low %v1272, %v1276
    %v4339 = vcombine.low %v1280, %v1334
    %v4341 = vunpack.c.l.s4 1983009808
    %v4342 = vunpack.c.0.s8 %v4341
    %v4343 = vlaneseq
    %v4344 = vshrl.u32 %v4343, 7
    %v4345 = vsub.s32 %v4342, %v4344
    %v4346 = vrot.slane %v4338, %v4345
    %v4348 = vunpack.c.l.s4 1983009808
    %v4349 = vunpack.c.0.s8 %v4348
    %v4350 = vlaneseq
    %v4351 = vshrl.u32 %v4350, 7
    %v4352 = vsub.s32 %v4349, %v4351
    %v4353 = vrot.slane %v4339, %v4352
    %v4354 = vcombine.low %v4346, %v4353
    %s4355 = scalar_lea.vmem %s4, 448
    %v4356 = vld [vmem:[%s4355] sm:$0xf]
    %v4357 = vld [vmem:[%s4355 + $0x4] sm:$0xf]
    %v4358 = vld [vmem:[%s4355 + $0x8] sm:$0xf]
    %v4359 = vld [vmem:[%s4355 + $0xc] sm:$0xf]
    %v4360 = vld [vmem:[%s4355 + $0x10] sm:$0xf]
    %v4361 = vld [vmem:[%s4355 + $0x14] sm:$0xf]
    %v4362 = vld [vmem:[%s4355 + $0x18] sm:$0xf]
    %v4363 = vld [vmem:[%s4355 + $0x1c] sm:$0xf]
    %v4372 = vunpack.c.l.b16 %v4356
    %v4373 = vunpack.c.l.b16 %v4357
    %v4374 = vunpack.c.l.b16 %v4358
    %v4375 = vunpack.c.l.b16 %v4359
    %v4376 = vunpack.c.l.b16 %v4360
    %v4377 = vunpack.c.l.b16 %v4361
    %v4378 = vunpack.c.l.b16 %v4362
    %v4379 = vunpack.c.l.b16 %v4363
    %v4380 = vpack.c.b16 %v4373, %v4372
    %v4381 = vpack.c.b16 %v4375, %v4374
    %v4382 = vpack.c.b16 %v4377, %v4376
    %v4383 = vpack.c.b16 %v4379, %v4378
    %v4389 = vsel %vm1634, %v4337, 0
    %v4392 = vsel %vm1634, %v4354, 0
    %4394 = vmatprep.subr.bf16.mxu0 0
    %4395 = vmatpush1.bf16.msra.mxu0 %v4380
    %4396 = vmatprep.subr.bf16.mxu0 0
    %4397 = vmatpush1.bf16.msra.mxu0 %v4381
    %4398 = vmatprep.subr.bf16.mxu0 0
    %4399 = vmatpush1.bf16.msra.mxu0 %v4382
    %4400 = vmatprep.subr.bf16.mxu0 0
    %4401 = vmatpush1.bf16.msra.mxu0 %v4383
    %4402 = vmatprep.subr.bf16.mxu0 0
    %4403 = vmatpush1.bf16.msra.mxu0 0
    %4404 = vmatprep.subr.bf16.mxu0 0
    %4405 = vmatpush1.bf16.msra.mxu0 0
    %4406 = vmatprep.subr.bf16.mxu0 0
    %4407 = vmatpush1.bf16.msra.mxu0 0
    %4408 = vmatprep.subr.bf16.mxu0 0
    %4409 = vmatpush1.bf16.msra.mxu0 0
    %4410 = vmatprep.subr.bf16.mxu0 0
    %4411 = vmatpush1.bf16.msra.mxu0 0
    %4412 = vmatprep.subr.bf16.mxu0 0
    %4413 = vmatpush1.bf16.msra.mxu0 0
    %4414 = vmatprep.subr.bf16.mxu0 0
    %4415 = vmatpush1.bf16.msra.mxu0 0
    %4416 = vmatprep.subr.bf16.mxu0 0
    %4417 = vmatpush1.bf16.msra.mxu0 0
    %4418 = vmatprep.subr.bf16.mxu0 0
    %4419 = vmatpush1.bf16.msra.mxu0 0
    %4420 = vmatprep.subr.bf16.mxu0 0
    %4421 = vmatpush1.bf16.msra.mxu0 0
    %4422 = vmatprep.subr.bf16.mxu0 0
    %4423 = vmatpush1.bf16.msra.mxu0 0
    %4424 = vmatprep.subr.bf16.mxu0 0
    %4425 = vmatpush1.bf16.msra.mxu0 0
    %4426 = vmatprep.mubr.bf16.mxu0 0
    %4427 = vmatmul.mubr.bf16.gmra.mrb[0].mxu0 %v3233
    %v4428 = vpop.f32.mrb[0].mxu0
    %v4429 = vadd.f32 0.0, %v4428
    %v4430 = vpop.f32.mrb[0].mxu0
    %v4431 = vpop.f32.mrb[0].mxu0
    %v4432 = vadd.f32 0.0, %v4431
    %v4433 = vpop.f32.mrb[0].mxu0
    %4434 = vmatprep.mubr.bf16.mxu0 0
    %4435 = vmatmul.mubr.bf16.gmra.mrb[0].mxu0 %v3236
    %v4436 = vpop.f32.mrb[0].mxu0
    %v4437 = vadd.f32 0.0, %v4436
    %v4438 = vpop.f32.mrb[0].mxu0
    %v4439 = vpop.f32.mrb[0].mxu0
    %v4440 = vadd.f32 0.0, %v4439
    %v4441 = vpop.f32.mrb[0].mxu0
    %4442 = vmatprep.mubr.bf16.mxu0 0
    %4443 = vmatmul.mubr.bf16.gmra.mrb[0].mxu0 %v3419
    %v4444 = vpop.f32.mrb[0].mxu0
    %v4445 = vadd.f32 0.0, %v4444
    %v4446 = vpop.f32.mrb[0].mxu0
    %v4447 = vpop.f32.mrb[0].mxu0
    %v4448 = vadd.f32 0.0, %v4447
    %v4449 = vpop.f32.mrb[0].mxu0
    %4450 = vmatprep.mubr.bf16.mxu0 0
    %4451 = vmatmul.mubr.bf16.gmra.mrb[0].mxu0 %v3422
    %v4452 = vpop.f32.mrb[0].mxu0
    %v4453 = vadd.f32 0.0, %v4452
    %v4454 = vpop.f32.mrb[0].mxu0
    %v4455 = vpop.f32.mrb[0].mxu0
    %v4456 = vadd.f32 0.0, %v4455
    %v4457 = vpop.f32.mrb[0].mxu0
    %4458 = vmatprep.mubr.bf16.mxu0 0
    %4459 = vmatmul.mubr.bf16.gmra.mrb[0].mxu0 %v4203
    %v4460 = vpop.f32.mrb[0].mxu0
    %v4461 = vadd.f32 0.0, %v4460
    %v4462 = vpop.f32.mrb[0].mxu0
    %v4463 = vpop.f32.mrb[0].mxu0
    %v4464 = vadd.f32 0.0, %v4463
    %v4465 = vpop.f32.mrb[0].mxu0
    %4466 = vmatprep.mubr.bf16.mxu0 0
    %4467 = vmatmul.mubr.bf16.gmra.mrb[0].mxu0 %v4206
    %v4468 = vpop.f32.mrb[0].mxu0
    %v4469 = vadd.f32 0.0, %v4468
    %v4470 = vpop.f32.mrb[0].mxu0
    %v4471 = vpop.f32.mrb[0].mxu0
    %v4472 = vadd.f32 0.0, %v4471
    %v4473 = vpop.f32.mrb[0].mxu0
    %4474 = vmatprep.mubr.bf16.mxu0 0
    %4475 = vmatmul.mubr.bf16.gmra.mrb[0].mxu0 %v4389
    %v4476 = vpop.f32.mrb[0].mxu0
    %v4477 = vadd.f32 0.0, %v4476
    %v4478 = vpop.f32.mrb[0].mxu0
    %v4479 = vpop.f32.mrb[0].mxu0
    %v4480 = vadd.f32 0.0, %v4479
    %v4481 = vpop.f32.mrb[0].mxu0
    %4482 = vmatprep.mubr.bf16.mxu0 0
    %4483 = vmatmul.mubr.bf16.gmra.mrb[0].mxu0 %v4392
    %v4484 = vpop.f32.mrb[0].mxu0
    %v4485 = vadd.f32 0.0, %v4484
    %v4486 = vpop.f32.mrb[0].mxu0
    %v4487 = vpop.f32.mrb[0].mxu0
    %v4488 = vadd.f32 0.0, %v4487
    %v4489 = vpop.f32.mrb[0].mxu0
    %4490 = vdwg.mxu0
    %v4491 = vadd.f32 %v4305, %v4429
    %v4492 = vadd.f32 %v4306, %v4432
    %v4493 = vadd.f32 %v4307, %v4437
    %v4494 = vadd.f32 %v4308, %v4440
    %v4495 = vadd.f32 %v4309, %v4445
    %v4496 = vadd.f32 %v4310, %v4448
    %v4497 = vadd.f32 %v4311, %v4453
    %v4498 = vadd.f32 %v4312, %v4456
    %v4499 = vadd.f32 %v4313, %v4461
    %v4500 = vadd.f32 %v4314, %v4464
    %v4501 = vadd.f32 %v4315, %v4469
    %v4502 = vadd.f32 %v4316, %v4472
    %v4503 = vadd.f32 %v4317, %v4477
    %v4504 = vadd.f32 %v4318, %v4480
    %v4505 = vadd.f32 %v4319, %v4485
    %v4506 = vadd.f32 %v4320, %v4488
    %v4507 = vcombine.low %v35, %v36
    %v4509 = vunpack.c.l.s4 1983009808
    %v4510 = vunpack.c.0.s8 %v4509
    %v4511 = vlaneseq
    %v4512 = vshrl.u32 %v4511, 7
    %v4513 = vsub.s32 %v4510, %v4512
    %v4514 = vrot.slane %v4507, %v4513
    %v4515 = vcombine.low %v1404, %v4514
    %v4516 = vcombine.low %v41, %v42
    %v4518 = vunpack.c.l.s4 1983009808
    %v4519 = vunpack.c.0.s8 %v4518
    %v4520 = vlaneseq
    %v4521 = vshrl.u32 %v4520, 7
    %v4522 = vsub.s32 %v4519, %v4521
    %v4523 = vrot.slane %v4516, %v4522
    %v4524 = vcombine.low %v1421, %v4523
    %v4525 = vcombine.low %v47, %v48
    %v4527 = vunpack.c.l.s4 1983009808
    %v4528 = vunpack.c.0.s8 %v4527
    %v4529 = vlaneseq
    %v4530 = vshrl.u32 %v4529, 7
    %v4531 = vsub.s32 %v4528, %v4530
    %v4532 = vrot.slane %v4525, %v4531
    %v4533 = vcombine.low %v1438, %v4532
    %v4534 = vcombine.low %v53, %v54
    %v4536 = vunpack.c.l.s4 1983009808
    %v4537 = vunpack.c.0.s8 %v4536
    %v4538 = vlaneseq
    %v4539 = vshrl.u32 %v4538, 7
    %v4540 = vsub.s32 %v4537, %v4539
    %v4541 = vrot.slane %v4534, %v4540
    %v4542 = vcombine.low %v1455, %v4541
    %s4543 = scalar_lea.vmem %s4, 480
    %v4544 = vld [vmem:[%s4543] sm:$0xf]
    %v4545 = vld [vmem:[%s4543 + $0x4] sm:$0xf]
    %v4546 = vld [vmem:[%s4543 + $0x8] sm:$0xf]
    %v4547 = vld [vmem:[%s4543 + $0xc] sm:$0xf]
    %v4548 = vld [vmem:[%s4543 + $0x10] sm:$0xf]
    %v4549 = vld [vmem:[%s4543 + $0x14] sm:$0xf]
    %v4550 = vld [vmem:[%s4543 + $0x18] sm:$0xf]
    %v4551 = vld [vmem:[%s4543 + $0x1c] sm:$0xf]
    %v4560 = vunpack.c.l.b16 %v4544
    %v4561 = vunpack.c.l.b16 %v4545
    %v4562 = vunpack.c.l.b16 %v4546
    %v4563 = vunpack.c.l.b16 %v4547
    %v4564 = vunpack.c.l.b16 %v4548
    %v4565 = vunpack.c.l.b16 %v4549
    %v4566 = vunpack.c.l.b16 %v4550
    %v4567 = vunpack.c.l.b16 %v4551
    %v4568 = vpack.c.b16 %v4561, %v4560
    %v4569 = vpack.c.b16 %v4563, %v4562
    %v4570 = vpack.c.b16 %v4565, %v4564
    %v4571 = vpack.c.b16 %v4567, %v4566
    %v4577 = vsel %vm1634, %v4515, 0
    %v4580 = vsel %vm1634, %v4524, 0
    %v4583 = vsel %vm1634, %v4533, 0
    %v4586 = vsel %vm1634, %v4542, 0
    %4588 = vmatprep.subr.bf16.mxu0 0
    %4589 = vmatpush1.bf16.msra.mxu0 %v4568
    %4590 = vmatprep.subr.bf16.mxu0 0
    %4591 = vmatpush1.bf16.msra.mxu0 %v4569
    %4592 = vmatprep.subr.bf16.mxu0 0
    %4593 = vmatpush1.bf16.msra.mxu0 %v4570
    %4594 = vmatprep.subr.bf16.mxu0 0
    %4595 = vmatpush1.bf16.msra.mxu0 %v4571
    %4596 = vmatprep.subr.bf16.mxu0 0
    %4597 = vmatpush1.bf16.msra.mxu0 0
    %4598 = vmatprep.subr.bf16.mxu0 0
    %4599 = vmatpush1.bf16.msra.mxu0 0
    %4600 = vmatprep.subr.bf16.mxu0 0
    %4601 = vmatpush1.bf16.msra.mxu0 0
    %4602 = vmatprep.subr.bf16.mxu0 0
    %4603 = vmatpush1.bf16.msra.mxu0 0
    %4604 = vmatprep.subr.bf16.mxu0 0
    %4605 = vmatpush1.bf16.msra.mxu0 0
    %4606 = vmatprep.subr.bf16.mxu0 0
    %4607 = vmatpush1.bf16.msra.mxu0 0
    %4608 = vmatprep.subr.bf16.mxu0 0
    %4609 = vmatpush1.bf16.msra.mxu0 0
    %4610 = vmatprep.subr.bf16.mxu0 0
    %4611 = vmatpush1.bf16.msra.mxu0 0
    %4612 = vmatprep.subr.bf16.mxu0 0
    %4613 = vmatpush1.bf16.msra.mxu0 0
    %4614 = vmatprep.subr.bf16.mxu0 0
    %4615 = vmatpush1.bf16.msra.mxu0 0
    %4616 = vmatprep.subr.bf16.mxu0 0
    %4617 = vmatpush1.bf16.msra.mxu0 0
    %4618 = vmatprep.subr.bf16.mxu0 0
    %4619 = vmatpush1.bf16.msra.mxu0 0
    %4620 = vmatprep.mubr.bf16.mxu0 0
    %4621 = vmatmul.mubr.bf16.gmra.mrb[0].mxu0 %v3639
    %v4622 = vpop.f32.mrb[0].mxu0
    %v4623 = vadd.f32 0.0, %v4622
    %v4624 = vpop.f32.mrb[0].mxu0
    %v4625 = vpop.f32.mrb[0].mxu0
    %v4626 = vadd.f32 0.0, %v4625
    %v4627 = vpop.f32.mrb[0].mxu0
    %4628 = vmatprep.mubr.bf16.mxu0 0
    %4629 = vmatmul.mubr.bf16.gmra.mrb[0].mxu0 %v3642
    %v4630 = vpop.f32.mrb[0].mxu0
    %v4631 = vadd.f32 0.0, %v4630
    %v4632 = vpop.f32.mrb[0].mxu0
    %v4633 = vpop.f32.mrb[0].mxu0
    %v4634 = vadd.f32 0.0, %v4633
    %v4635 = vpop.f32.mrb[0].mxu0
    %4636 = vmatprep.mubr.bf16.mxu0 0
    %4637 = vmatmul.mubr.bf16.gmra.mrb[0].mxu0 %v3645
    %v4638 = vpop.f32.mrb[0].mxu0
    %v4639 = vadd.f32 0.0, %v4638
    %v4640 = vpop.f32.mrb[0].mxu0
    %v4641 = vpop.f32.mrb[0].mxu0
    %v4642 = vadd.f32 0.0, %v4641
    %v4643 = vpop.f32.mrb[0].mxu0
    %4644 = vmatprep.mubr.bf16.mxu0 0
    %4645 = vmatmul.mubr.bf16.gmra.mrb[0].mxu0 %v3648
    %v4646 = vpop.f32.mrb[0].mxu0
    %v4647 = vadd.f32 0.0, %v4646
    %v4648 = vpop.f32.mrb[0].mxu0
    %v4649 = vpop.f32.mrb[0].mxu0
    %v4650 = vadd.f32 0.0, %v4649
    %v4651 = vpop.f32.mrb[0].mxu0
    %4652 = vmatprep.mubr.bf16.mxu0 0
    %4653 = vmatmul.mubr.bf16.gmra.mrb[0].mxu0 %v4577
    %v4654 = vpop.f32.mrb[0].mxu0
    %v4655 = vadd.f32 0.0, %v4654
    %v4656 = vpop.f32.mrb[0].mxu0
    %v4657 = vpop.f32.mrb[0].mxu0
    %v4658 = vadd.f32 0.0, %v4657
    %v4659 = vpop.f32.mrb[0].mxu0
    %4660 = vmatprep.mubr.bf16.mxu0 0
    %4661 = vmatmul.mubr.bf16.gmra.mrb[0].mxu0 %v4580
    %v4662 = vpop.f32.mrb[0].mxu0
    %v4663 = vadd.f32 0.0, %v4662
    %v4664 = vpop.f32.mrb[0].mxu0
    %v4665 = vpop.f32.mrb[0].mxu0
    %v4666 = vadd.f32 0.0, %v4665
    %v4667 = vpop.f32.mrb[0].mxu0
    %4668 = vmatprep.mubr.bf16.mxu0 0
    %4669 = vmatmul.mubr.bf16.gmra.mrb[0].mxu0 %v4583
    %v4670 = vpop.f32.mrb[0].mxu0
    %v4671 = vadd.f32 0.0, %v4670
    %v4672 = vpop.f32.mrb[0].mxu0
    %v4673 = vpop.f32.mrb[0].mxu0
    %v4674 = vadd.f32 0.0, %v4673
    %v4675 = vpop.f32.mrb[0].mxu0
    %4676 = vmatprep.mubr.bf16.mxu0 0
    %4677 = vmatmul.mubr.bf16.gmra.mrb[0].mxu0 %v4586
    %v4678 = vpop.f32.mrb[0].mxu0
    %v4679 = vadd.f32 0.0, %v4678
    %v4680 = vpop.f32.mrb[0].mxu0
    %v4681 = vpop.f32.mrb[0].mxu0
    %v4682 = vadd.f32 0.0, %v4681
    %v4683 = vpop.f32.mrb[0].mxu0
    %4684 = vdwg.mxu0
    %v4685 = vadd.f32 %v4491, %v4623
    %v4686 = vadd.f32 %v4492, %v4626
    %v4687 = vadd.f32 %v4493, %v4631
    %v4688 = vadd.f32 %v4494, %v4634
    %v4689 = vadd.f32 %v4495, %v4639
    %v4690 = vadd.f32 %v4496, %v4642
    %v4691 = vadd.f32 %v4497, %v4647
    %v4692 = vadd.f32 %v4498, %v4650
    %v4693 = vadd.f32 %v4499, %v4655
    %v4694 = vadd.f32 %v4500, %v4658
    %v4695 = vadd.f32 %v4501, %v4663
    %v4696 = vadd.f32 %v4502, %v4666
    %v4697 = vadd.f32 %v4503, %v4671
    %v4698 = vadd.f32 %v4504, %v4674
    %v4699 = vadd.f32 %v4505, %v4679
    %v4700 = vadd.f32 %v4506, %v4682
    %v4701 = vcombine.low %v340, %v394
    %v4703 = vunpack.c.l.s4 1983009808
    %v4704 = vunpack.c.0.s8 %v4703
    %v4705 = vlaneseq
    %v4706 = vshrl.u32 %v4705, 7
    %v4707 = vsub.s32 %v4704, %v4706
    %v4708 = vrot.slane %v4701, %v4707
    %v4709 = vcombine.low %v1548, %v4708
    %v4710 = vcombine.low %v354, %v408
    %v4712 = vunpack.c.l.s4 1983009808
    %v4713 = vunpack.c.0.s8 %v4712
    %v4714 = vlaneseq
    %v4715 = vshrl.u32 %v4714, 7
    %v4716 = vsub.s32 %v4713, %v4715
    %v4717 = vrot.slane %v4710, %v4716
    %v4718 = vcombine.low %v1565, %v4717
    %s4719 = scalar_lea.vmem %s4, 512
    %v4720 = vld [vmem:[%s4719] sm:$0xf]
    %v4721 = vld [vmem:[%s4719 + $0x4] sm:$0xf]
    %v4722 = vld [vmem:[%s4719 + $0x8] sm:$0xf]
    %v4723 = vld [vmem:[%s4719 + $0xc] sm:$0xf]
    %v4724 = vld [vmem:[%s4719 + $0x10] sm:$0xf]
    %v4725 = vld [vmem:[%s4719 + $0x14] sm:$0xf]
    %v4726 = vld [vmem:[%s4719 + $0x18] sm:$0xf]
    %v4727 = vld [vmem:[%s4719 + $0x1c] sm:$0xf]
    %v4736 = vunpack.c.l.b16 %v4720
    %v4737 = vunpack.c.l.b16 %v4721
    %v4738 = vunpack.c.l.b16 %v4722
    %v4739 = vunpack.c.l.b16 %v4723
    %v4740 = vunpack.c.l.b16 %v4724
    %v4741 = vunpack.c.l.b16 %v4725
    %v4742 = vunpack.c.l.b16 %v4726
    %v4743 = vunpack.c.l.b16 %v4727
    %v4744 = vpack.c.b16 %v4737, %v4736
    %v4745 = vpack.c.b16 %v4739, %v4738
    %v4746 = vpack.c.b16 %v4741, %v4740
    %v4747 = vpack.c.b16 %v4743, %v4742
    %v4753 = vsel %vm1634, %v4709, 0
    %v4756 = vsel %vm1634, %v4718, 0
    %4758 = vmatprep.subr.bf16.mxu0 0
    %4759 = vmatpush1.bf16.msra.mxu0 %v4744
    %4760 = vmatprep.subr.bf16.mxu0 0
    %4761 = vmatpush1.bf16.msra.mxu0 %v4745
    %4762 = vmatprep.subr.bf16.mxu0 0
    %4763 = vmatpush1.bf16.msra.mxu0 %v4746
    %4764 = vmatprep.subr.bf16.mxu0 0
    %4765 = vmatpush1.bf16.msra.mxu0 %v4747
    %4766 = vmatprep.subr.bf16.mxu0 0
    %4767 = vmatpush1.bf16.msra.mxu0 0
    %4768 = vmatprep.subr.bf16.mxu0 0
    %4769 = vmatpush1.bf16.msra.mxu0 0
    %4770 = vmatprep.subr.bf16.mxu0 0
    %4771 = vmatpush1.bf16.msra.mxu0 0
    %4772 = vmatprep.subr.bf16.mxu0 0
    %4773 = vmatpush1.bf16.msra.mxu0 0
    %4774 = vmatprep.subr.bf16.mxu0 0
    %4775 = vmatpush1.bf16.msra.mxu0 0
    %4776 = vmatprep.subr.bf16.mxu0 0
    %4777 = vmatpush1.bf16.msra.mxu0 0
    %4778 = vmatprep.subr.bf16.mxu0 0
    %4779 = vmatpush1.bf16.msra.mxu0 0
    %4780 = vmatprep.subr.bf16.mxu0 0
    %4781 = vmatpush1.bf16.msra.mxu0 0
    %4782 = vmatprep.subr.bf16.mxu0 0
    %4783 = vmatpush1.bf16.msra.mxu0 0
    %4784 = vmatprep.subr.bf16.mxu0 0
    %4785 = vmatpush1.bf16.msra.mxu0 0
    %4786 = vmatprep.subr.bf16.mxu0 0
    %4787 = vmatpush1.bf16.msra.mxu0 0
    %4788 = vmatprep.subr.bf16.mxu0 0
    %4789 = vmatpush1.bf16.msra.mxu0 0
    %4790 = vmatprep.mubr.bf16.mxu0 0
    %4791 = vmatmul.mubr.bf16.gmra.mrb[0].mxu0 %v3645
    %v4792 = vpop.f32.mrb[0].mxu0
    %v4793 = vadd.f32 0.0, %v4792
    %v4794 = vpop.f32.mrb[0].mxu0
    %v4795 = vpop.f32.mrb[0].mxu0
    %v4796 = vadd.f32 0.0, %v4795
    %v4797 = vpop.f32.mrb[0].mxu0
    %4798 = vmatprep.mubr.bf16.mxu0 0
    %4799 = vmatmul.mubr.bf16.gmra.mrb[0].mxu0 %v3648
    %v4800 = vpop.f32.mrb[0].mxu0
    %v4801 = vadd.f32 0.0, %v4800
    %v4802 = vpop.f32.mrb[0].mxu0
    %v4803 = vpop.f32.mrb[0].mxu0
    %v4804 = vadd.f32 0.0, %v4803
    %v4805 = vpop.f32.mrb[0].mxu0
    %4806 = vmatprep.mubr.bf16.mxu0 0
    %4807 = vmatmul.mubr.bf16.gmra.mrb[0].mxu0 %v3831
    %v4808 = vpop.f32.mrb[0].mxu0
    %v4809 = vadd.f32 0.0, %v4808
    %v4810 = vpop.f32.mrb[0].mxu0
    %v4811 = vpop.f32.mrb[0].mxu0
    %v4812 = vadd.f32 0.0, %v4811
    %v4813 = vpop.f32.mrb[0].mxu0
    %4814 = vmatprep.mubr.bf16.mxu0 0
    %4815 = vmatmul.mubr.bf16.gmra.mrb[0].mxu0 %v3834
    %v4816 = vpop.f32.mrb[0].mxu0
    %v4817 = vadd.f32 0.0, %v4816
    %v4818 = vpop.f32.mrb[0].mxu0
    %v4819 = vpop.f32.mrb[0].mxu0
    %v4820 = vadd.f32 0.0, %v4819
    %v4821 = vpop.f32.mrb[0].mxu0
    %4822 = vmatprep.mubr.bf16.mxu0 0
    %4823 = vmatmul.mubr.bf16.gmra.mrb[0].mxu0 %v4583
    %v4824 = vpop.f32.mrb[0].mxu0
    %v4825 = vadd.f32 0.0, %v4824
    %v4826 = vpop.f32.mrb[0].mxu0
    %v4827 = vpop.f32.mrb[0].mxu0
    %v4828 = vadd.f32 0.0, %v4827
    %v4829 = vpop.f32.mrb[0].mxu0
    %4830 = vmatprep.mubr.bf16.mxu0 0
    %4831 = vmatmul.mubr.bf16.gmra.mrb[0].mxu0 %v4586
    %v4832 = vpop.f32.mrb[0].mxu0
    %v4833 = vadd.f32 0.0, %v4832
    %v4834 = vpop.f32.mrb[0].mxu0
    %v4835 = vpop.f32.mrb[0].mxu0
    %v4836 = vadd.f32 0.0, %v4835
    %v4837 = vpop.f32.mrb[0].mxu0
    %4838 = vmatprep.mubr.bf16.mxu0 0
    %4839 = vmatmul.mubr.bf16.gmra.mrb[0].mxu0 %v4753
    %v4840 = vpop.f32.mrb[0].mxu0
    %v4841 = vadd.f32 0.0, %v4840
    %v4842 = vpop.f32.mrb[0].mxu0
    %v4843 = vpop.f32.mrb[0].mxu0
    %v4844 = vadd.f32 0.0, %v4843
    %v4845 = vpop.f32.mrb[0].mxu0
    %4846 = vmatprep.mubr.bf16.mxu0 0
    %4847 = vmatmul.mubr.bf16.gmra.mrb[0].mxu0 %v4756
    %v4848 = vpop.f32.mrb[0].mxu0
    %v4849 = vadd.f32 0.0, %v4848
    %v4850 = vpop.f32.mrb[0].mxu0
    %v4851 = vpop.f32.mrb[0].mxu0
    %v4852 = vadd.f32 0.0, %v4851
    %v4853 = vpop.f32.mrb[0].mxu0
    %4854 = vdwg.mxu0
    %v4855 = vadd.f32 %v4685, %v4793
    %v4856 = vadd.f32 %v4686, %v4796
    %v4857 = vadd.f32 %v4687, %v4801
    %v4858 = vadd.f32 %v4688, %v4804
    %v4859 = vadd.f32 %v4689, %v4809
    %v4860 = vadd.f32 %v4690, %v4812
    %v4861 = vadd.f32 %v4691, %v4817
    %v4862 = vadd.f32 %v4692, %v4820
    %v4863 = vadd.f32 %v4693, %v4825
    %v4864 = vadd.f32 %v4694, %v4828
    %v4865 = vadd.f32 %v4695, %v4833
    %v4866 = vadd.f32 %v4696, %v4836
    %v4867 = vadd.f32 %v4697, %v4841
    %v4868 = vadd.f32 %v4698, %v4844
    %v4869 = vadd.f32 %v4699, %v4849
    %v4870 = vadd.f32 %v4700, %v4852
    %v4871 = vcombine.low %v664, %v718
    %v4873 = vunpack.c.l.s4 1983009808
    %v4874 = vunpack.c.0.s8 %v4873
    %v4875 = vlaneseq
    %v4876 = vshrl.u32 %v4875, 7
    %v4877 = vsub.s32 %v4874, %v4876
    %v4878 = vrot.slane %v4871, %v4877
    %v4879 = vcombine.low %v1904, %v4878
    %v4880 = vcombine.low %v678, %v732
    %v4882 = vunpack.c.l.s4 1983009808
    %v4883 = vunpack.c.0.s8 %v4882
    %v4884 = vlaneseq
    %v4885 = vshrl.u32 %v4884, 7
    %v4886 = vsub.s32 %v4883, %v4885
    %v4887 = vrot.slane %v4880, %v4886
    %v4888 = vcombine.low %v1921, %v4887
    %s4889 = scalar_lea.vmem %s4, 544
    %v4890 = vld [vmem:[%s4889] sm:$0xf]
    %v4891 = vld [vmem:[%s4889 + $0x4] sm:$0xf]
    %v4892 = vld [vmem:[%s4889 + $0x8] sm:$0xf]
    %v4893 = vld [vmem:[%s4889 + $0xc] sm:$0xf]
    %v4894 = vld [vmem:[%s4889 + $0x10] sm:$0xf]
    %v4895 = vld [vmem:[%s4889 + $0x14] sm:$0xf]
    %v4896 = vld [vmem:[%s4889 + $0x18] sm:$0xf]
    %v4897 = vld [vmem:[%s4889 + $0x1c] sm:$0xf]
    %v4906 = vunpack.c.l.b16 %v4890
    %v4907 = vunpack.c.l.b16 %v4891
    %v4908 = vunpack.c.l.b16 %v4892
    %v4909 = vunpack.c.l.b16 %v4893
    %v4910 = vunpack.c.l.b16 %v4894
    %v4911 = vunpack.c.l.b16 %v4895
    %v4912 = vunpack.c.l.b16 %v4896
    %v4913 = vunpack.c.l.b16 %v4897
    %v4914 = vpack.c.b16 %v4907, %v4906
    %v4915 = vpack.c.b16 %v4909, %v4908
    %v4916 = vpack.c.b16 %v4911, %v4910
    %v4917 = vpack.c.b16 %v4913, %v4912
    %v4923 = vsel %vm1634, %v4879, 0
    %v4926 = vsel %vm1634, %v4888, 0
    %4928 = vmatprep.subr.bf16.mxu0 0
    %4929 = vmatpush1.bf16.msra.mxu0 %v4914
    %4930 = vmatprep.subr.bf16.mxu0 0
    %4931 = vmatpush1.bf16.msra.mxu0 %v4915
    %4932 = vmatprep.subr.bf16.mxu0 0
    %4933 = vmatpush1.bf16.msra.mxu0 %v4916
    %4934 = vmatprep.subr.bf16.mxu0 0
    %4935 = vmatpush1.bf16.msra.mxu0 %v4917
    %4936 = vmatprep.subr.bf16.mxu0 0
    %4937 = vmatpush1.bf16.msra.mxu0 0
    %4938 = vmatprep.subr.bf16.mxu0 0
    %4939 = vmatpush1.bf16.msra.mxu0 0
    %4940 = vmatprep.subr.bf16.mxu0 0
    %4941 = vmatpush1.bf16.msra.mxu0 0
    %4942 = vmatprep.subr.bf16.mxu0 0
    %4943 = vmatpush1.bf16.msra.mxu0 0
    %4944 = vmatprep.subr.bf16.mxu0 0
    %4945 = vmatpush1.bf16.msra.mxu0 0
    %4946 = vmatprep.subr.bf16.mxu0 0
    %4947 = vmatpush1.bf16.msra.mxu0 0
    %4948 = vmatprep.subr.bf16.mxu0 0
    %4949 = vmatpush1.bf16.msra.mxu0 0
    %4950 = vmatprep.subr.bf16.mxu0 0
    %4951 = vmatpush1.bf16.msra.mxu0 0
    %4952 = vmatprep.subr.bf16.mxu0 0
    %4953 = vmatpush1.bf16.msra.mxu0 0
    %4954 = vmatprep.subr.bf16.mxu0 0
    %4955 = vmatpush1.bf16.msra.mxu0 0
    %4956 = vmatprep.subr.bf16.mxu0 0
    %4957 = vmatpush1.bf16.msra.mxu0 0
    %4958 = vmatprep.subr.bf16.mxu0 0
    %4959 = vmatpush1.bf16.msra.mxu0 0
    %4960 = vmatprep.mubr.bf16.mxu0 0
    %4961 = vmatmul.mubr.bf16.gmra.mrb[0].mxu0 %v3831
    %v4962 = vpop.f32.mrb[0].mxu0
    %v4963 = vadd.f32 0.0, %v4962
    %v4964 = vpop.f32.mrb[0].mxu0
    %v4965 = vpop.f32.mrb[0].mxu0
    %v4966 = vadd.f32 0.0, %v4965
    %v4967 = vpop.f32.mrb[0].mxu0
    %4968 = vmatprep.mubr.bf16.mxu0 0
    %4969 = vmatmul.mubr.bf16.gmra.mrb[0].mxu0 %v3834
    %v4970 = vpop.f32.mrb[0].mxu0
    %v4971 = vadd.f32 0.0, %v4970
    %v4972 = vpop.f32.mrb[0].mxu0
    %v4973 = vpop.f32.mrb[0].mxu0
    %v4974 = vadd.f32 0.0, %v4973
    %v4975 = vpop.f32.mrb[0].mxu0
    %4976 = vmatprep.mubr.bf16.mxu0 0
    %4977 = vmatmul.mubr.bf16.gmra.mrb[0].mxu0 %v4017
    %v4978 = vpop.f32.mrb[0].mxu0
    %v4979 = vadd.f32 0.0, %v4978
    %v4980 = vpop.f32.mrb[0].mxu0
    %v4981 = vpop.f32.mrb[0].mxu0
    %v4982 = vadd.f32 0.0, %v4981
    %v4983 = vpop.f32.mrb[0].mxu0
    %4984 = vmatprep.mubr.bf16.mxu0 0
    %4985 = vmatmul.mubr.bf16.gmra.mrb[0].mxu0 %v4020
    %v4986 = vpop.f32.mrb[0].mxu0
    %v4987 = vadd.f32 0.0, %v4986
    %v4988 = vpop.f32.mrb[0].mxu0
    %v4989 = vpop.f32.mrb[0].mxu0
    %v4990 = vadd.f32 0.0, %v4989
    %v4991 = vpop.f32.mrb[0].mxu0
    %4992 = vmatprep.mubr.bf16.mxu0 0
    %4993 = vmatmul.mubr.bf16.gmra.mrb[0].mxu0 %v4753
    %v4994 = vpop.f32.mrb[0].mxu0
    %v4995 = vadd.f32 0.0, %v4994
    %v4996 = vpop.f32.mrb[0].mxu0
    %v4997 = vpop.f32.mrb[0].mxu0
    %v4998 = vadd.f32 0.0, %v4997
    %v4999 = vpop.f32.mrb[0].mxu0
    %5000 = vmatprep.mubr.bf16.mxu0 0
    %5001 = vmatmul.mubr.bf16.gmra.mrb[0].mxu0 %v4756
    %v5002 = vpop.f32.mrb[0].mxu0
    %v5003 = vadd.f32 0.0, %v5002
    %v5004 = vpop.f32.mrb[0].mxu0
    %v5005 = vpop.f32.mrb[0].mxu0
    %v5006 = vadd.f32 0.0, %v5005
    %v5007 = vpop.f32.mrb[0].mxu0
    %5008 = vmatprep.mubr.bf16.mxu0 0
    %5009 = vmatmul.mubr.bf16.gmra.mrb[0].mxu0 %v4923
    %v5010 = vpop.f32.mrb[0].mxu0
    %v5011 = vadd.f32 0.0, %v5010
    %v5012 = vpop.f32.mrb[0].mxu0
    %v5013 = vpop.f32.mrb[0].mxu0
    %v5014 = vadd.f32 0.0, %v5013
    %v5015 = vpop.f32.mrb[0].mxu0
    %5016 = vmatprep.mubr.bf16.mxu0 0
    %5017 = vmatmul.mubr.bf16.gmra.mrb[0].mxu0 %v4926
    %v5018 = vpop.f32.mrb[0].mxu0
    %v5019 = vadd.f32 0.0, %v5018
    %v5020 = vpop.f32.mrb[0].mxu0
    %v5021 = vpop.f32.mrb[0].mxu0
    %v5022 = vadd.f32 0.0, %v5021
    %v5023 = vpop.f32.mrb[0].mxu0
    %5024 = vdwg.mxu0
    %v5025 = vadd.f32 %v4855, %v4963
    %v5026 = vadd.f32 %v4856, %v4966
    %v5027 = vadd.f32 %v4857, %v4971
    %v5028 = vadd.f32 %v4858, %v4974
    %v5029 = vadd.f32 %v4859, %v4979
    %v5030 = vadd.f32 %v4860, %v4982
    %v5031 = vadd.f32 %v4861, %v4987
    %v5032 = vadd.f32 %v4862, %v4990
    %v5033 = vadd.f32 %v4863, %v4995
    %v5034 = vadd.f32 %v4864, %v4998
    %v5035 = vadd.f32 %v4865, %v5003
    %v5036 = vadd.f32 %v4866, %v5006
    %v5037 = vadd.f32 %v4867, %v5011
    %v5038 = vadd.f32 %v4868, %v5014
    %v5039 = vadd.f32 %v4869, %v5019
    %v5040 = vadd.f32 %v4870, %v5022
    %v5041 = vcombine.low %v358, %v412
    %v5043 = vunpack.c.l.s4 1983009808
    %v5044 = vunpack.c.0.s8 %v5043
    %v5045 = vlaneseq
    %v5046 = vshrl.u32 %v5045, 7
    %v5047 = vsub.s32 %v5044, %v5046
    %v5048 = vrot.slane %v5041, %v5047
    %v5049 = vcombine.low %v2130, %v5048
    %v5050 = vcombine.low %v362, %v416
    %v5052 = vunpack.c.l.s4 1983009808
    %v5053 = vunpack.c.0.s8 %v5052
    %v5054 = vlaneseq
    %v5055 = vshrl.u32 %v5054, 7
    %v5056 = vsub.s32 %v5053, %v5055
    %v5057 = vrot.slane %v5050, %v5056
    %v5058 = vcombine.low %v2147, %v5057
    %s5059 = scalar_lea.vmem %s4, 576
    %v5060 = vld [vmem:[%s5059] sm:$0xf]
    %v5061 = vld [vmem:[%s5059 + $0x4] sm:$0xf]
    %v5062 = vld [vmem:[%s5059 + $0x8] sm:$0xf]
    %v5063 = vld [vmem:[%s5059 + $0xc] sm:$0xf]
    %v5064 = vld [vmem:[%s5059 + $0x10] sm:$0xf]
    %v5065 = vld [vmem:[%s5059 + $0x14] sm:$0xf]
    %v5066 = vld [vmem:[%s5059 + $0x18] sm:$0xf]
    %v5067 = vld [vmem:[%s5059 + $0x1c] sm:$0xf]
    %v5076 = vunpack.c.l.b16 %v5060
    %v5077 = vunpack.c.l.b16 %v5061
    %v5078 = vunpack.c.l.b16 %v5062
    %v5079 = vunpack.c.l.b16 %v5063
    %v5080 = vunpack.c.l.b16 %v5064
    %v5081 = vunpack.c.l.b16 %v5065
    %v5082 = vunpack.c.l.b16 %v5066
    %v5083 = vunpack.c.l.b16 %v5067
    %v5084 = vpack.c.b16 %v5077, %v5076
    %v5085 = vpack.c.b16 %v5079, %v5078
    %v5086 = vpack.c.b16 %v5081, %v5080
    %v5087 = vpack.c.b16 %v5083, %v5082
    %v5093 = vsel %vm1634, %v5049, 0
    %v5096 = vsel %vm1634, %v5058, 0
    %5098 = vmatprep.subr.bf16.mxu0 0
    %5099 = vmatpush1.bf16.msra.mxu0 %v5084
    %5100 = vmatprep.subr.bf16.mxu0 0
    %5101 = vmatpush1.bf16.msra.mxu0 %v5085
    %5102 = vmatprep.subr.bf16.mxu0 0
    %5103 = vmatpush1.bf16.msra.mxu0 %v5086
    %5104 = vmatprep.subr.bf16.mxu0 0
    %5105 = vmatpush1.bf16.msra.mxu0 %v5087
    %5106 = vmatprep.subr.bf16.mxu0 0
    %5107 = vmatpush1.bf16.msra.mxu0 0
    %5108 = vmatprep.subr.bf16.mxu0 0
    %5109 = vmatpush1.bf16.msra.mxu0 0
    %5110 = vmatprep.subr.bf16.mxu0 0
    %5111 = vmatpush1.bf16.msra.mxu0 0
    %5112 = vmatprep.subr.bf16.mxu0 0
    %5113 = vmatpush1.bf16.msra.mxu0 0
    %5114 = vmatprep.subr.bf16.mxu0 0
    %5115 = vmatpush1.bf16.msra.mxu0 0
    %5116 = vmatprep.subr.bf16.mxu0 0
    %5117 = vmatpush1.bf16.msra.mxu0 0
    %5118 = vmatprep.subr.bf16.mxu0 0
    %5119 = vmatpush1.bf16.msra.mxu0 0
    %5120 = vmatprep.subr.bf16.mxu0 0
    %5121 = vmatpush1.bf16.msra.mxu0 0
    %5122 = vmatprep.subr.bf16.mxu0 0
    %5123 = vmatpush1.bf16.msra.mxu0 0
    %5124 = vmatprep.subr.bf16.mxu0 0
    %5125 = vmatpush1.bf16.msra.mxu0 0
    %5126 = vmatprep.subr.bf16.mxu0 0
    %5127 = vmatpush1.bf16.msra.mxu0 0
    %5128 = vmatprep.subr.bf16.mxu0 0
    %5129 = vmatpush1.bf16.msra.mxu0 0
    %5130 = vmatprep.mubr.bf16.mxu0 0
    %5131 = vmatmul.mubr.bf16.gmra.mrb[0].mxu0 %v4017
    %v5132 = vpop.f32.mrb[0].mxu0
    %v5133 = vadd.f32 0.0, %v5132
    %v5134 = vpop.f32.mrb[0].mxu0
    %v5135 = vpop.f32.mrb[0].mxu0
    %v5136 = vadd.f32 0.0, %v5135
    %v5137 = vpop.f32.mrb[0].mxu0
    %5138 = vmatprep.mubr.bf16.mxu0 0
    %5139 = vmatmul.mubr.bf16.gmra.mrb[0].mxu0 %v4020
    %v5140 = vpop.f32.mrb[0].mxu0
    %v5141 = vadd.f32 0.0, %v5140
    %v5142 = vpop.f32.mrb[0].mxu0
    %v5143 = vpop.f32.mrb[0].mxu0
    %v5144 = vadd.f32 0.0, %v5143
    %v5145 = vpop.f32.mrb[0].mxu0
    %5146 = vmatprep.mubr.bf16.mxu0 0
    %5147 = vmatmul.mubr.bf16.gmra.mrb[0].mxu0 %v4203
    %v5148 = vpop.f32.mrb[0].mxu0
    %v5149 = vadd.f32 0.0, %v5148
    %v5150 = vpop.f32.mrb[0].mxu0
    %v5151 = vpop.f32.mrb[0].mxu0
    %v5152 = vadd.f32 0.0, %v5151
    %v5153 = vpop.f32.mrb[0].mxu0
    %5154 = vmatprep.mubr.bf16.mxu0 0
    %5155 = vmatmul.mubr.bf16.gmra.mrb[0].mxu0 %v4206
    %v5156 = vpop.f32.mrb[0].mxu0
    %v5157 = vadd.f32 0.0, %v5156
    %v5158 = vpop.f32.mrb[0].mxu0
    %v5159 = vpop.f32.mrb[0].mxu0
    %v5160 = vadd.f32 0.0, %v5159
    %v5161 = vpop.f32.mrb[0].mxu0
    %5162 = vmatprep.mubr.bf16.mxu0 0
    %5163 = vmatmul.mubr.bf16.gmra.mrb[0].mxu0 %v4923
    %v5164 = vpop.f32.mrb[0].mxu0
    %v5165 = vadd.f32 0.0, %v5164
    %v5166 = vpop.f32.mrb[0].mxu0
    %v5167 = vpop.f32.mrb[0].mxu0
    %v5168 = vadd.f32 0.0, %v5167
    %v5169 = vpop.f32.mrb[0].mxu0
    %5170 = vmatprep.mubr.bf16.mxu0 0
    %5171 = vmatmul.mubr.bf16.gmra.mrb[0].mxu0 %v4926
    %v5172 = vpop.f32.mrb[0].mxu0
    %v5173 = vadd.f32 0.0, %v5172
    %v5174 = vpop.f32.mrb[0].mxu0
    %v5175 = vpop.f32.mrb[0].mxu0
    %v5176 = vadd.f32 0.0, %v5175
    %v5177 = vpop.f32.mrb[0].mxu0
    %5178 = vmatprep.mubr.bf16.mxu0 0
    %5179 = vmatmul.mubr.bf16.gmra.mrb[0].mxu0 %v5093
    %v5180 = vpop.f32.mrb[0].mxu0
    %v5181 = vadd.f32 0.0, %v5180
    %v5182 = vpop.f32.mrb[0].mxu0
    %v5183 = vpop.f32.mrb[0].mxu0
    %v5184 = vadd.f32 0.0, %v5183
    %v5185 = vpop.f32.mrb[0].mxu0
    %5186 = vmatprep.mubr.bf16.mxu0 0
    %5187 = vmatmul.mubr.bf16.gmra.mrb[0].mxu0 %v5096
    %v5188 = vpop.f32.mrb[0].mxu0
    %v5189 = vadd.f32 0.0, %v5188
    %v5190 = vpop.f32.mrb[0].mxu0
    %v5191 = vpop.f32.mrb[0].mxu0
    %v5192 = vadd.f32 0.0, %v5191
    %v5193 = vpop.f32.mrb[0].mxu0
    %5194 = vdwg.mxu0
    %v5195 = vadd.f32 %v5025, %v5133
    %v5196 = vadd.f32 %v5026, %v5136
    %v5197 = vadd.f32 %v5027, %v5141
    %v5198 = vadd.f32 %v5028, %v5144
    %v5199 = vadd.f32 %v5029, %v5149
    %v5200 = vadd.f32 %v5030, %v5152
    %v5201 = vadd.f32 %v5031, %v5157
    %v5202 = vadd.f32 %v5032, %v5160
    %v5203 = vadd.f32 %v5033, %v5165
    %v5204 = vadd.f32 %v5034, %v5168
    %v5205 = vadd.f32 %v5035, %v5173
    %v5206 = vadd.f32 %v5036, %v5176
    %v5207 = vadd.f32 %v5037, %v5181
    %v5208 = vadd.f32 %v5038, %v5184
    %v5209 = vadd.f32 %v5039, %v5189
    %v5210 = vadd.f32 %v5040, %v5192
    %v5211 = vcombine.low %v682, %v736
    %v5213 = vunpack.c.l.s4 1983009808
    %v5214 = vunpack.c.0.s8 %v5213
    %v5215 = vlaneseq
    %v5216 = vshrl.u32 %v5215, 7
    %v5217 = vsub.s32 %v5214, %v5216
    %v5218 = vrot.slane %v5211, %v5217
    %v5219 = vcombine.low %v2356, %v5218
    %v5220 = vcombine.low %v686, %v740
    %v5222 = vunpack.c.l.s4 1983009808
    %v5223 = vunpack.c.0.s8 %v5222
    %v5224 = vlaneseq
    %v5225 = vshrl.u32 %v5224, 7
    %v5226 = vsub.s32 %v5223, %v5225
    %v5227 = vrot.slane %v5220, %v5226
    %v5228 = vcombine.low %v2373, %v5227
    %s5229 = scalar_lea.vmem %s4, 608
    %v5230 = vld [vmem:[%s5229] sm:$0xf]
    %v5231 = vld [vmem:[%s5229 + $0x4] sm:$0xf]
    %v5232 = vld [vmem:[%s5229 + $0x8] sm:$0xf]
    %v5233 = vld [vmem:[%s5229 + $0xc] sm:$0xf]
    %v5234 = vld [vmem:[%s5229 + $0x10] sm:$0xf]
    %v5235 = vld [vmem:[%s5229 + $0x14] sm:$0xf]
    %v5236 = vld [vmem:[%s5229 + $0x18] sm:$0xf]
    %v5237 = vld [vmem:[%s5229 + $0x1c] sm:$0xf]
    %v5246 = vunpack.c.l.b16 %v5230
    %v5247 = vunpack.c.l.b16 %v5231
    %v5248 = vunpack.c.l.b16 %v5232
    %v5249 = vunpack.c.l.b16 %v5233
    %v5250 = vunpack.c.l.b16 %v5234
    %v5251 = vunpack.c.l.b16 %v5235
    %v5252 = vunpack.c.l.b16 %v5236
    %v5253 = vunpack.c.l.b16 %v5237
    %v5254 = vpack.c.b16 %v5247, %v5246
    %v5255 = vpack.c.b16 %v5249, %v5248
    %v5256 = vpack.c.b16 %v5251, %v5250
    %v5257 = vpack.c.b16 %v5253, %v5252
    %v5263 = vsel %vm1634, %v5219, 0
    %v5266 = vsel %vm1634, %v5228, 0
    %5268 = vmatprep.subr.bf16.mxu0 0
    %5269 = vmatpush1.bf16.msra.mxu0 %v5254
    %5270 = vmatprep.subr.bf16.mxu0 0
    %5271 = vmatpush1.bf16.msra.mxu0 %v5255
    %5272 = vmatprep.subr.bf16.mxu0 0
    %5273 = vmatpush1.bf16.msra.mxu0 %v5256
    %5274 = vmatprep.subr.bf16.mxu0 0
    %5275 = vmatpush1.bf16.msra.mxu0 %v5257
    %5276 = vmatprep.subr.bf16.mxu0 0
    %5277 = vmatpush1.bf16.msra.mxu0 0
    %5278 = vmatprep.subr.bf16.mxu0 0
    %5279 = vmatpush1.bf16.msra.mxu0 0
    %5280 = vmatprep.subr.bf16.mxu0 0
    %5281 = vmatpush1.bf16.msra.mxu0 0
    %5282 = vmatprep.subr.bf16.mxu0 0
    %5283 = vmatpush1.bf16.msra.mxu0 0
    %5284 = vmatprep.subr.bf16.mxu0 0
    %5285 = vmatpush1.bf16.msra.mxu0 0
    %5286 = vmatprep.subr.bf16.mxu0 0
    %5287 = vmatpush1.bf16.msra.mxu0 0
    %5288 = vmatprep.subr.bf16.mxu0 0
    %5289 = vmatpush1.bf16.msra.mxu0 0
    %5290 = vmatprep.subr.bf16.mxu0 0
    %5291 = vmatpush1.bf16.msra.mxu0 0
    %5292 = vmatprep.subr.bf16.mxu0 0
    %5293 = vmatpush1.bf16.msra.mxu0 0
    %5294 = vmatprep.subr.bf16.mxu0 0
    %5295 = vmatpush1.bf16.msra.mxu0 0
    %5296 = vmatprep.subr.bf16.mxu0 0
    %5297 = vmatpush1.bf16.msra.mxu0 0
    %5298 = vmatprep.subr.bf16.mxu0 0
    %5299 = vmatpush1.bf16.msra.mxu0 0
    %5300 = vmatprep.mubr.bf16.mxu0 0
    %5301 = vmatmul.mubr.bf16.gmra.mrb[0].mxu0 %v4203
    %v5302 = vpop.f32.mrb[0].mxu0
    %v5303 = vadd.f32 0.0, %v5302
    %v5304 = vpop.f32.mrb[0].mxu0
    %v5305 = vpop.f32.mrb[0].mxu0
    %v5306 = vadd.f32 0.0, %v5305
    %v5307 = vpop.f32.mrb[0].mxu0
    %5308 = vmatprep.mubr.bf16.mxu0 0
    %5309 = vmatmul.mubr.bf16.gmra.mrb[0].mxu0 %v4206
    %v5310 = vpop.f32.mrb[0].mxu0
    %v5311 = vadd.f32 0.0, %v5310
    %v5312 = vpop.f32.mrb[0].mxu0
    %v5313 = vpop.f32.mrb[0].mxu0
    %v5314 = vadd.f32 0.0, %v5313
    %v5315 = vpop.f32.mrb[0].mxu0
    %5316 = vmatprep.mubr.bf16.mxu0 0
    %5317 = vmatmul.mubr.bf16.gmra.mrb[0].mxu0 %v4389
    %v5318 = vpop.f32.mrb[0].mxu0
    %v5319 = vadd.f32 0.0, %v5318
    %v5320 = vpop.f32.mrb[0].mxu0
    %v5321 = vpop.f32.mrb[0].mxu0
    %v5322 = vadd.f32 0.0, %v5321
    %v5323 = vpop.f32.mrb[0].mxu0
    %5324 = vmatprep.mubr.bf16.mxu0 0
    %5325 = vmatmul.mubr.bf16.gmra.mrb[0].mxu0 %v4392
    %v5326 = vpop.f32.mrb[0].mxu0
    %v5327 = vadd.f32 0.0, %v5326
    %v5328 = vpop.f32.mrb[0].mxu0
    %v5329 = vpop.f32.mrb[0].mxu0
    %v5330 = vadd.f32 0.0, %v5329
    %v5331 = vpop.f32.mrb[0].mxu0
    %5332 = vmatprep.mubr.bf16.mxu0 0
    %5333 = vmatmul.mubr.bf16.gmra.mrb[0].mxu0 %v5093
    %v5334 = vpop.f32.mrb[0].mxu0
    %v5335 = vadd.f32 0.0, %v5334
    %v5336 = vpop.f32.mrb[0].mxu0
    %v5337 = vpop.f32.mrb[0].mxu0
    %v5338 = vadd.f32 0.0, %v5337
    %v5339 = vpop.f32.mrb[0].mxu0
    %5340 = vmatprep.mubr.bf16.mxu0 0
    %5341 = vmatmul.mubr.bf16.gmra.mrb[0].mxu0 %v5096
    %v5342 = vpop.f32.mrb[0].mxu0
    %v5343 = vadd.f32 0.0, %v5342
    %v5344 = vpop.f32.mrb[0].mxu0
    %v5345 = vpop.f32.mrb[0].mxu0
    %v5346 = vadd.f32 0.0, %v5345
    %v5347 = vpop.f32.mrb[0].mxu0
    %5348 = vmatprep.mubr.bf16.mxu0 0
    %5349 = vmatmul.mubr.bf16.gmra.mrb[0].mxu0 %v5263
    %v5350 = vpop.f32.mrb[0].mxu0
    %v5351 = vadd.f32 0.0, %v5350
    %v5352 = vpop.f32.mrb[0].mxu0
    %v5353 = vpop.f32.mrb[0].mxu0
    %v5354 = vadd.f32 0.0, %v5353
    %v5355 = vpop.f32.mrb[0].mxu0
    %5356 = vmatprep.mubr.bf16.mxu0 0
    %5357 = vmatmul.mubr.bf16.gmra.mrb[0].mxu0 %v5266
    %v5358 = vpop.f32.mrb[0].mxu0
    %v5359 = vadd.f32 0.0, %v5358
    %v5360 = vpop.f32.mrb[0].mxu0
    %v5361 = vpop.f32.mrb[0].mxu0
    %v5362 = vadd.f32 0.0, %v5361
    %v5363 = vpop.f32.mrb[0].mxu0
    %5364 = vdwg.mxu0
    %v5365 = vadd.f32 %v5195, %v5303
    %v5366 = vadd.f32 %v5196, %v5306
    %v5367 = vadd.f32 %v5197, %v5311
    %v5368 = vadd.f32 %v5198, %v5314
    %v5369 = vadd.f32 %v5199, %v5319
    %v5370 = vadd.f32 %v5200, %v5322
    %v5371 = vadd.f32 %v5201, %v5327
    %v5372 = vadd.f32 %v5202, %v5330
    %v5373 = vadd.f32 %v5203, %v5335
    %v5374 = vadd.f32 %v5204, %v5338
    %v5375 = vadd.f32 %v5205, %v5343
    %v5376 = vadd.f32 %v5206, %v5346
    %v5377 = vadd.f32 %v5207, %v5351
    %v5378 = vadd.f32 %v5208, %v5354
    %v5379 = vadd.f32 %v5209, %v5359
    %v5380 = vadd.f32 %v5210, %v5362
    %v5381 = vcombine.low %v59, %v60
    %v5383 = vunpack.c.l.s4 1983009808
    %v5384 = vunpack.c.0.s8 %v5383
    %v5385 = vlaneseq
    %v5386 = vshrl.u32 %v5385, 7
    %v5387 = vsub.s32 %v5384, %v5386
    %v5388 = vrot.slane %v5381, %v5387
    %v5389 = vcombine.low %v1472, %v5388
    %v5390 = vcombine.low %v65, %v66
    %v5392 = vunpack.c.l.s4 1983009808
    %v5393 = vunpack.c.0.s8 %v5392
    %v5394 = vlaneseq
    %v5395 = vshrl.u32 %v5394, 7
    %v5396 = vsub.s32 %v5393, %v5395
    %v5397 = vrot.slane %v5390, %v5396
    %v5398 = vcombine.low %v1489, %v5397
    %v5399 = vcombine.low %v71, %v72
    %v5401 = vunpack.c.l.s4 1983009808
    %v5402 = vunpack.c.0.s8 %v5401
    %v5403 = vlaneseq
    %v5404 = vshrl.u32 %v5403, 7
    %v5405 = vsub.s32 %v5402, %v5404
    %v5406 = vrot.slane %v5399, %v5405
    %v5407 = vcombine.low %v1506, %v5406
    %v5408 = vcombine.low %v77, %v78
    %v5410 = vunpack.c.l.s4 1983009808
    %v5411 = vunpack.c.0.s8 %v5410
    %v5412 = vlaneseq
    %v5413 = vshrl.u32 %v5412, 7
    %v5414 = vsub.s32 %v5411, %v5413
    %v5415 = vrot.slane %v5408, %v5414
    %v5416 = vcombine.low %v1523, %v5415
    %s5417 = scalar_lea.vmem %s4, 640
    %v5418 = vld [vmem:[%s5417] sm:$0xf]
    %v5419 = vld [vmem:[%s5417 + $0x4] sm:$0xf]
    %v5420 = vld [vmem:[%s5417 + $0x8] sm:$0xf]
    %v5421 = vld [vmem:[%s5417 + $0xc] sm:$0xf]
    %v5422 = vld [vmem:[%s5417 + $0x10] sm:$0xf]
    %v5423 = vld [vmem:[%s5417 + $0x14] sm:$0xf]
    %v5424 = vld [vmem:[%s5417 + $0x18] sm:$0xf]
    %v5425 = vld [vmem:[%s5417 + $0x1c] sm:$0xf]
    %v5434 = vunpack.c.l.b16 %v5418
    %v5435 = vunpack.c.l.b16 %v5419
    %v5436 = vunpack.c.l.b16 %v5420
    %v5437 = vunpack.c.l.b16 %v5421
    %v5438 = vunpack.c.l.b16 %v5422
    %v5439 = vunpack.c.l.b16 %v5423
    %v5440 = vunpack.c.l.b16 %v5424
    %v5441 = vunpack.c.l.b16 %v5425
    %v5442 = vpack.c.b16 %v5435, %v5434
    %v5443 = vpack.c.b16 %v5437, %v5436
    %v5444 = vpack.c.b16 %v5439, %v5438
    %v5445 = vpack.c.b16 %v5441, %v5440
    %v5451 = vsel %vm1634, %v5389, 0
    %v5454 = vsel %vm1634, %v5398, 0
    %v5457 = vsel %vm1634, %v5407, 0
    %v5460 = vsel %vm1634, %v5416, 0
    %5462 = vmatprep.subr.bf16.mxu0 0
    %5463 = vmatpush1.bf16.msra.mxu0 %v5442
    %5464 = vmatprep.subr.bf16.mxu0 0
    %5465 = vmatpush1.bf16.msra.mxu0 %v5443
    %5466 = vmatprep.subr.bf16.mxu0 0
    %5467 = vmatpush1.bf16.msra.mxu0 %v5444
    %5468 = vmatprep.subr.bf16.mxu0 0
    %5469 = vmatpush1.bf16.msra.mxu0 %v5445
    %5470 = vmatprep.subr.bf16.mxu0 0
    %5471 = vmatpush1.bf16.msra.mxu0 0
    %5472 = vmatprep.subr.bf16.mxu0 0
    %5473 = vmatpush1.bf16.msra.mxu0 0
    %5474 = vmatprep.subr.bf16.mxu0 0
    %5475 = vmatpush1.bf16.msra.mxu0 0
    %5476 = vmatprep.subr.bf16.mxu0 0
    %5477 = vmatpush1.bf16.msra.mxu0 0
    %5478 = vmatprep.subr.bf16.mxu0 0
    %5479 = vmatpush1.bf16.msra.mxu0 0
    %5480 = vmatprep.subr.bf16.mxu0 0
    %5481 = vmatpush1.bf16.msra.mxu0 0
    %5482 = vmatprep.subr.bf16.mxu0 0
    %5483 = vmatpush1.bf16.msra.mxu0 0
    %5484 = vmatprep.subr.bf16.mxu0 0
    %5485 = vmatpush1.bf16.msra.mxu0 0
    %5486 = vmatprep.subr.bf16.mxu0 0
    %5487 = vmatpush1.bf16.msra.mxu0 0
    %5488 = vmatprep.subr.bf16.mxu0 0
    %5489 = vmatpush1.bf16.msra.mxu0 0
    %5490 = vmatprep.subr.bf16.mxu0 0
    %5491 = vmatpush1.bf16.msra.mxu0 0
    %5492 = vmatprep.subr.bf16.mxu0 0
    %5493 = vmatpush1.bf16.msra.mxu0 0
    %5494 = vmatprep.mubr.bf16.mxu0 0
    %5495 = vmatmul.mubr.bf16.gmra.mrb[0].mxu0 %v4577
    %v5496 = vpop.f32.mrb[0].mxu0
    %v5497 = vadd.f32 0.0, %v5496
    %v5498 = vpop.f32.mrb[0].mxu0
    %v5499 = vpop.f32.mrb[0].mxu0
    %v5500 = vadd.f32 0.0, %v5499
    %v5501 = vpop.f32.mrb[0].mxu0
    %5502 = vmatprep.mubr.bf16.mxu0 0
    %5503 = vmatmul.mubr.bf16.gmra.mrb[0].mxu0 %v4580
    %v5504 = vpop.f32.mrb[0].mxu0
    %v5505 = vadd.f32 0.0, %v5504
    %v5506 = vpop.f32.mrb[0].mxu0
    %v5507 = vpop.f32.mrb[0].mxu0
    %v5508 = vadd.f32 0.0, %v5507
    %v5509 = vpop.f32.mrb[0].mxu0
    %5510 = vmatprep.mubr.bf16.mxu0 0
    %5511 = vmatmul.mubr.bf16.gmra.mrb[0].mxu0 %v4583
    %v5512 = vpop.f32.mrb[0].mxu0
    %v5513 = vadd.f32 0.0, %v5512
    %v5514 = vpop.f32.mrb[0].mxu0
    %v5515 = vpop.f32.mrb[0].mxu0
    %v5516 = vadd.f32 0.0, %v5515
    %v5517 = vpop.f32.mrb[0].mxu0
    %5518 = vmatprep.mubr.bf16.mxu0 0
    %5519 = vmatmul.mubr.bf16.gmra.mrb[0].mxu0 %v4586
    %v5520 = vpop.f32.mrb[0].mxu0
    %v5521 = vadd.f32 0.0, %v5520
    %v5522 = vpop.f32.mrb[0].mxu0
    %v5523 = vpop.f32.mrb[0].mxu0
    %v5524 = vadd.f32 0.0, %v5523
    %v5525 = vpop.f32.mrb[0].mxu0
    %5526 = vmatprep.mubr.bf16.mxu0 0
    %5527 = vmatmul.mubr.bf16.gmra.mrb[0].mxu0 %v5451
    %v5528 = vpop.f32.mrb[0].mxu0
    %v5529 = vadd.f32 0.0, %v5528
    %v5530 = vpop.f32.mrb[0].mxu0
    %v5531 = vpop.f32.mrb[0].mxu0
    %v5532 = vadd.f32 0.0, %v5531
    %v5533 = vpop.f32.mrb[0].mxu0
    %5534 = vmatprep.mubr.bf16.mxu0 0
    %5535 = vmatmul.mubr.bf16.gmra.mrb[0].mxu0 %v5454
    %v5536 = vpop.f32.mrb[0].mxu0
    %v5537 = vadd.f32 0.0, %v5536
    %v5538 = vpop.f32.mrb[0].mxu0
    %v5539 = vpop.f32.mrb[0].mxu0
    %v5540 = vadd.f32 0.0, %v5539
    %v5541 = vpop.f32.mrb[0].mxu0
    %5542 = vmatprep.mubr.bf16.mxu0 0
    %5543 = vmatmul.mubr.bf16.gmra.mrb[0].mxu0 %v5457
    %v5544 = vpop.f32.mrb[0].mxu0
    %v5545 = vadd.f32 0.0, %v5544
    %v5546 = vpop.f32.mrb[0].mxu0
    %v5547 = vpop.f32.mrb[0].mxu0
    %v5548 = vadd.f32 0.0, %v5547
    %v5549 = vpop.f32.mrb[0].mxu0
    %5550 = vmatprep.mubr.bf16.mxu0 0
    %5551 = vmatmul.mubr.bf16.gmra.mrb[0].mxu0 %v5460
    %v5552 = vpop.f32.mrb[0].mxu0
    %v5553 = vadd.f32 0.0, %v5552
    %v5554 = vpop.f32.mrb[0].mxu0
    %v5555 = vpop.f32.mrb[0].mxu0
    %v5556 = vadd.f32 0.0, %v5555
    %v5557 = vpop.f32.mrb[0].mxu0
    %5558 = vdwg.mxu0
    %v5559 = vadd.f32 %v5365, %v5497
    %v5560 = vadd.f32 %v5366, %v5500
    %v5561 = vadd.f32 %v5367, %v5505
    %v5562 = vadd.f32 %v5368, %v5508
    %v5563 = vadd.f32 %v5369, %v5513
    %v5564 = vadd.f32 %v5370, %v5516
    %v5565 = vadd.f32 %v5371, %v5521
    %v5566 = vadd.f32 %v5372, %v5524
    %v5567 = vadd.f32 %v5373, %v5529
    %v5568 = vadd.f32 %v5374, %v5532
    %v5569 = vadd.f32 %v5375, %v5537
    %v5570 = vadd.f32 %v5376, %v5540
    %v5571 = vadd.f32 %v5377, %v5545
    %v5572 = vadd.f32 %v5378, %v5548
    %v5573 = vadd.f32 %v5379, %v5553
    %v5574 = vadd.f32 %v5380, %v5556
    %v5575 = vcombine.low %v988, %v1042
    %v5577 = vunpack.c.l.s4 1983009808
    %v5578 = vunpack.c.0.s8 %v5577
    %v5579 = vlaneseq
    %v5580 = vshrl.u32 %v5579, 7
    %v5581 = vsub.s32 %v5578, %v5580
    %v5582 = vrot.slane %v5575, %v5581
    %v5583 = vcombine.low %v1582, %v5582
    %v5584 = vcombine.low %v1002, %v1056
    %v5586 = vunpack.c.l.s4 1983009808
    %v5587 = vunpack.c.0.s8 %v5586
    %v5588 = vlaneseq
    %v5589 = vshrl.u32 %v5588, 7
    %v5590 = vsub.s32 %v5587, %v5589
    %v5591 = vrot.slane %v5584, %v5590
    %v5592 = vcombine.low %v1599, %v5591
    %s5593 = scalar_lea.vmem %s4, 672
    %v5594 = vld [vmem:[%s5593] sm:$0xf]
    %v5595 = vld [vmem:[%s5593 + $0x4] sm:$0xf]
    %v5596 = vld [vmem:[%s5593 + $0x8] sm:$0xf]
    %v5597 = vld [vmem:[%s5593 + $0xc] sm:$0xf]
    %v5598 = vld [vmem:[%s5593 + $0x10] sm:$0xf]
    %v5599 = vld [vmem:[%s5593 + $0x14] sm:$0xf]
    %v5600 = vld [vmem:[%s5593 + $0x18] sm:$0xf]
    %v5601 = vld [vmem:[%s5593 + $0x1c] sm:$0xf]
    %v5610 = vunpack.c.l.b16 %v5594
    %v5611 = vunpack.c.l.b16 %v5595
    %v5612 = vunpack.c.l.b16 %v5596
    %v5613 = vunpack.c.l.b16 %v5597
    %v5614 = vunpack.c.l.b16 %v5598
    %v5615 = vunpack.c.l.b16 %v5599
    %v5616 = vunpack.c.l.b16 %v5600
    %v5617 = vunpack.c.l.b16 %v5601
    %v5618 = vpack.c.b16 %v5611, %v5610
    %v5619 = vpack.c.b16 %v5613, %v5612
    %v5620 = vpack.c.b16 %v5615, %v5614
    %v5621 = vpack.c.b16 %v5617, %v5616
    %v5627 = vsel %vm1634, %v5583, 0
    %v5630 = vsel %vm1634, %v5592, 0
    %5632 = vmatprep.subr.bf16.mxu0 0
    %5633 = vmatpush1.bf16.msra.mxu0 %v5618
    %5634 = vmatprep.subr.bf16.mxu0 0
    %5635 = vmatpush1.bf16.msra.mxu0 %v5619
    %5636 = vmatprep.subr.bf16.mxu0 0
    %5637 = vmatpush1.bf16.msra.mxu0 %v5620
    %5638 = vmatprep.subr.bf16.mxu0 0
    %5639 = vmatpush1.bf16.msra.mxu0 %v5621
    %5640 = vmatprep.subr.bf16.mxu0 0
    %5641 = vmatpush1.bf16.msra.mxu0 0
    %5642 = vmatprep.subr.bf16.mxu0 0
    %5643 = vmatpush1.bf16.msra.mxu0 0
    %5644 = vmatprep.subr.bf16.mxu0 0
    %5645 = vmatpush1.bf16.msra.mxu0 0
    %5646 = vmatprep.subr.bf16.mxu0 0
    %5647 = vmatpush1.bf16.msra.mxu0 0
    %5648 = vmatprep.subr.bf16.mxu0 0
    %5649 = vmatpush1.bf16.msra.mxu0 0
    %5650 = vmatprep.subr.bf16.mxu0 0
    %5651 = vmatpush1.bf16.msra.mxu0 0
    %5652 = vmatprep.subr.bf16.mxu0 0
    %5653 = vmatpush1.bf16.msra.mxu0 0
    %5654 = vmatprep.subr.bf16.mxu0 0
    %5655 = vmatpush1.bf16.msra.mxu0 0
    %5656 = vmatprep.subr.bf16.mxu0 0
    %5657 = vmatpush1.bf16.msra.mxu0 0
    %5658 = vmatprep.subr.bf16.mxu0 0
    %5659 = vmatpush1.bf16.msra.mxu0 0
    %5660 = vmatprep.subr.bf16.mxu0 0
    %5661 = vmatpush1.bf16.msra.mxu0 0
    %5662 = vmatprep.subr.bf16.mxu0 0
    %5663 = vmatpush1.bf16.msra.mxu0 0
    %5664 = vmatprep.mubr.bf16.mxu0 0
    %5665 = vmatmul.mubr.bf16.gmra.mrb[0].mxu0 %v4583
    %v5666 = vpop.f32.mrb[0].mxu0
    %v5667 = vadd.f32 0.0, %v5666
    %v5668 = vpop.f32.mrb[0].mxu0
    %v5669 = vpop.f32.mrb[0].mxu0
    %v5670 = vadd.f32 0.0, %v5669
    %v5671 = vpop.f32.mrb[0].mxu0
    %5672 = vmatprep.mubr.bf16.mxu0 0
    %5673 = vmatmul.mubr.bf16.gmra.mrb[0].mxu0 %v4586
    %v5674 = vpop.f32.mrb[0].mxu0
    %v5675 = vadd.f32 0.0, %v5674
    %v5676 = vpop.f32.mrb[0].mxu0
    %v5677 = vpop.f32.mrb[0].mxu0
    %v5678 = vadd.f32 0.0, %v5677
    %v5679 = vpop.f32.mrb[0].mxu0
    %5680 = vmatprep.mubr.bf16.mxu0 0
    %5681 = vmatmul.mubr.bf16.gmra.mrb[0].mxu0 %v4753
    %v5682 = vpop.f32.mrb[0].mxu0
    %v5683 = vadd.f32 0.0, %v5682
    %v5684 = vpop.f32.mrb[0].mxu0
    %v5685 = vpop.f32.mrb[0].mxu0
    %v5686 = vadd.f32 0.0, %v5685
    %v5687 = vpop.f32.mrb[0].mxu0
    %5688 = vmatprep.mubr.bf16.mxu0 0
    %5689 = vmatmul.mubr.bf16.gmra.mrb[0].mxu0 %v4756
    %v5690 = vpop.f32.mrb[0].mxu0
    %v5691 = vadd.f32 0.0, %v5690
    %v5692 = vpop.f32.mrb[0].mxu0
    %v5693 = vpop.f32.mrb[0].mxu0
    %v5694 = vadd.f32 0.0, %v5693
    %v5695 = vpop.f32.mrb[0].mxu0
    %5696 = vmatprep.mubr.bf16.mxu0 0
    %5697 = vmatmul.mubr.bf16.gmra.mrb[0].mxu0 %v5457
    %v5698 = vpop.f32.mrb[0].mxu0
    %v5699 = vadd.f32 0.0, %v5698
    %v5700 = vpop.f32.mrb[0].mxu0
    %v5701 = vpop.f32.mrb[0].mxu0
    %v5702 = vadd.f32 0.0, %v5701
    %v5703 = vpop.f32.mrb[0].mxu0
    %5704 = vmatprep.mubr.bf16.mxu0 0
    %5705 = vmatmul.mubr.bf16.gmra.mrb[0].mxu0 %v5460
    %v5706 = vpop.f32.mrb[0].mxu0
    %v5707 = vadd.f32 0.0, %v5706
    %v5708 = vpop.f32.mrb[0].mxu0
    %v5709 = vpop.f32.mrb[0].mxu0
    %v5710 = vadd.f32 0.0, %v5709
    %v5711 = vpop.f32.mrb[0].mxu0
    %5712 = vmatprep.mubr.bf16.mxu0 0
    %5713 = vmatmul.mubr.bf16.gmra.mrb[0].mxu0 %v5627
    %v5714 = vpop.f32.mrb[0].mxu0
    %v5715 = vadd.f32 0.0, %v5714
    %v5716 = vpop.f32.mrb[0].mxu0
    %v5717 = vpop.f32.mrb[0].mxu0
    %v5718 = vadd.f32 0.0, %v5717
    %v5719 = vpop.f32.mrb[0].mxu0
    %5720 = vmatprep.mubr.bf16.mxu0 0
    %5721 = vmatmul.mubr.bf16.gmra.mrb[0].mxu0 %v5630
    %v5722 = vpop.f32.mrb[0].mxu0
    %v5723 = vadd.f32 0.0, %v5722
    %v5724 = vpop.f32.mrb[0].mxu0
    %v5725 = vpop.f32.mrb[0].mxu0
    %v5726 = vadd.f32 0.0, %v5725
    %v5727 = vpop.f32.mrb[0].mxu0
    %5728 = vdwg.mxu0
    %v5729 = vadd.f32 %v5559, %v5667
    %v5730 = vadd.f32 %v5560, %v5670
    %v5731 = vadd.f32 %v5561, %v5675
    %v5732 = vadd.f32 %v5562, %v5678
    %v5733 = vadd.f32 %v5563, %v5683
    %v5734 = vadd.f32 %v5564, %v5686
    %v5735 = vadd.f32 %v5565, %v5691
    %v5736 = vadd.f32 %v5566, %v5694
    %v5737 = vadd.f32 %v5567, %v5699
    %v5738 = vadd.f32 %v5568, %v5702
    %v5739 = vadd.f32 %v5569, %v5707
    %v5740 = vadd.f32 %v5570, %v5710
    %v5741 = vadd.f32 %v5571, %v5715
    %v5742 = vadd.f32 %v5572, %v5718
    %v5743 = vadd.f32 %v5573, %v5723
    %v5744 = vadd.f32 %v5574, %v5726
    %v5745 = vcombine.low %v1312, %v1366
    %v5747 = vunpack.c.l.s4 1983009808
    %v5748 = vunpack.c.0.s8 %v5747
    %v5749 = vlaneseq
    %v5750 = vshrl.u32 %v5749, 7
    %v5751 = vsub.s32 %v5748, %v5750
    %v5752 = vrot.slane %v5745, %v5751
    %v5753 = vcombine.low %v1938, %v5752
    %v5754 = vcombine.low %v1326, %v1380
    %v5756 = vunpack.c.l.s4 1983009808
    %v5757 = vunpack.c.0.s8 %v5756
    %v5758 = vlaneseq
    %v5759 = vshrl.u32 %v5758, 7
    %v5760 = vsub.s32 %v5757, %v5759
    %v5761 = vrot.slane %v5754, %v5760
    %v5762 = vcombine.low %v1955, %v5761
    %s5763 = scalar_lea.vmem %s4, 704
    %v5764 = vld [vmem:[%s5763] sm:$0xf]
    %v5765 = vld [vmem:[%s5763 + $0x4] sm:$0xf]
    %v5766 = vld [vmem:[%s5763 + $0x8] sm:$0xf]
    %v5767 = vld [vmem:[%s5763 + $0xc] sm:$0xf]
    %v5768 = vld [vmem:[%s5763 + $0x10] sm:$0xf]
    %v5769 = vld [vmem:[%s5763 + $0x14] sm:$0xf]
    %v5770 = vld [vmem:[%s5763 + $0x18] sm:$0xf]
    %v5771 = vld [vmem:[%s5763 + $0x1c] sm:$0xf]
    %v5780 = vunpack.c.l.b16 %v5764
    %v5781 = vunpack.c.l.b16 %v5765
    %v5782 = vunpack.c.l.b16 %v5766
    %v5783 = vunpack.c.l.b16 %v5767
    %v5784 = vunpack.c.l.b16 %v5768
    %v5785 = vunpack.c.l.b16 %v5769
    %v5786 = vunpack.c.l.b16 %v5770
    %v5787 = vunpack.c.l.b16 %v5771
    %v5788 = vpack.c.b16 %v5781, %v5780
    %v5789 = vpack.c.b16 %v5783, %v5782
    %v5790 = vpack.c.b16 %v5785, %v5784
    %v5791 = vpack.c.b16 %v5787, %v5786
    %v5797 = vsel %vm1634, %v5753, 0
    %v5800 = vsel %vm1634, %v5762, 0
    %5802 = vmatprep.subr.bf16.mxu0 0
    %5803 = vmatpush1.bf16.msra.mxu0 %v5788
    %5804 = vmatprep.subr.bf16.mxu0 0
    %5805 = vmatpush1.bf16.msra.mxu0 %v5789
    %5806 = vmatprep.subr.bf16.mxu0 0
    %5807 = vmatpush1.bf16.msra.mxu0 %v5790
    %5808 = vmatprep.subr.bf16.mxu0 0
    %5809 = vmatpush1.bf16.msra.mxu0 %v5791
    %5810 = vmatprep.subr.bf16.mxu0 0
    %5811 = vmatpush1.bf16.msra.mxu0 0
    %5812 = vmatprep.subr.bf16.mxu0 0
    %5813 = vmatpush1.bf16.msra.mxu0 0
    %5814 = vmatprep.subr.bf16.mxu0 0
    %5815 = vmatpush1.bf16.msra.mxu0 0
    %5816 = vmatprep.subr.bf16.mxu0 0
    %5817 = vmatpush1.bf16.msra.mxu0 0
    %5818 = vmatprep.subr.bf16.mxu0 0
    %5819 = vmatpush1.bf16.msra.mxu0 0
    %5820 = vmatprep.subr.bf16.mxu0 0
    %5821 = vmatpush1.bf16.msra.mxu0 0
    %5822 = vmatprep.subr.bf16.mxu0 0
    %5823 = vmatpush1.bf16.msra.mxu0 0
    %5824 = vmatprep.subr.bf16.mxu0 0
    %5825 = vmatpush1.bf16.msra.mxu0 0
    %5826 = vmatprep.subr.bf16.mxu0 0
    %5827 = vmatpush1.bf16.msra.mxu0 0
    %5828 = vmatprep.subr.bf16.mxu0 0
    %5829 = vmatpush1.bf16.msra.mxu0 0
    %5830 = vmatprep.subr.bf16.mxu0 0
    %5831 = vmatpush1.bf16.msra.mxu0 0
    %5832 = vmatprep.subr.bf16.mxu0 0
    %5833 = vmatpush1.bf16.msra.mxu0 0
    %5834 = vmatprep.mubr.bf16.mxu0 0
    %5835 = vmatmul.mubr.bf16.gmra.mrb[0].mxu0 %v4753
    %v5836 = vpop.f32.mrb[0].mxu0
    %v5837 = vadd.f32 0.0, %v5836
    %v5838 = vpop.f32.mrb[0].mxu0
    %v5839 = vpop.f32.mrb[0].mxu0
    %v5840 = vadd.f32 0.0, %v5839
    %v5841 = vpop.f32.mrb[0].mxu0
    %5842 = vmatprep.mubr.bf16.mxu0 0
    %5843 = vmatmul.mubr.bf16.gmra.mrb[0].mxu0 %v4756
    %v5844 = vpop.f32.mrb[0].mxu0
    %v5845 = vadd.f32 0.0, %v5844
    %v5846 = vpop.f32.mrb[0].mxu0
    %v5847 = vpop.f32.mrb[0].mxu0
    %v5848 = vadd.f32 0.0, %v5847
    %v5849 = vpop.f32.mrb[0].mxu0
    %5850 = vmatprep.mubr.bf16.mxu0 0
    %5851 = vmatmul.mubr.bf16.gmra.mrb[0].mxu0 %v4923
    %v5852 = vpop.f32.mrb[0].mxu0
    %v5853 = vadd.f32 0.0, %v5852
    %v5854 = vpop.f32.mrb[0].mxu0
    %v5855 = vpop.f32.mrb[0].mxu0
    %v5856 = vadd.f32 0.0, %v5855
    %v5857 = vpop.f32.mrb[0].mxu0
    %5858 = vmatprep.mubr.bf16.mxu0 0
    %5859 = vmatmul.mubr.bf16.gmra.mrb[0].mxu0 %v4926
    %v5860 = vpop.f32.mrb[0].mxu0
    %v5861 = vadd.f32 0.0, %v5860
    %v5862 = vpop.f32.mrb[0].mxu0
    %v5863 = vpop.f32.mrb[0].mxu0
    %v5864 = vadd.f32 0.0, %v5863
    %v5865 = vpop.f32.mrb[0].mxu0
    %5866 = vmatprep.mubr.bf16.mxu0 0
    %5867 = vmatmul.mubr.bf16.gmra.mrb[0].mxu0 %v5627
    %v5868 = vpop.f32.mrb[0].mxu0
    %v5869 = vadd.f32 0.0, %v5868
    %v5870 = vpop.f32.mrb[0].mxu0
    %v5871 = vpop.f32.mrb[0].mxu0
    %v5872 = vadd.f32 0.0, %v5871
    %v5873 = vpop.f32.mrb[0].mxu0
    %5874 = vmatprep.mubr.bf16.mxu0 0
    %5875 = vmatmul.mubr.bf16.gmra.mrb[0].mxu0 %v5630
    %v5876 = vpop.f32.mrb[0].mxu0
    %v5877 = vadd.f32 0.0, %v5876
    %v5878 = vpop.f32.mrb[0].mxu0
    %v5879 = vpop.f32.mrb[0].mxu0
    %v5880 = vadd.f32 0.0, %v5879
    %v5881 = vpop.f32.mrb[0].mxu0
    %5882 = vmatprep.mubr.bf16.mxu0 0
    %5883 = vmatmul.mubr.bf16.gmra.mrb[0].mxu0 %v5797
    %v5884 = vpop.f32.mrb[0].mxu0
    %v5885 = vadd.f32 0.0, %v5884
    %v5886 = vpop.f32.mrb[0].mxu0
    %v5887 = vpop.f32.mrb[0].mxu0
    %v5888 = vadd.f32 0.0, %v5887
    %v5889 = vpop.f32.mrb[0].mxu0
    %5890 = vmatprep.mubr.bf16.mxu0 0
    %5891 = vmatmul.mubr.bf16.gmra.mrb[0].mxu0 %v5800
    %v5892 = vpop.f32.mrb[0].mxu0
    %v5893 = vadd.f32 0.0, %v5892
    %v5894 = vpop.f32.mrb[0].mxu0
    %v5895 = vpop.f32.mrb[0].mxu0
    %v5896 = vadd.f32 0.0, %v5895
    %v5897 = vpop.f32.mrb[0].mxu0
    %5898 = vdwg.mxu0
    %v5899 = vadd.f32 %v5729, %v5837
    %v5900 = vadd.f32 %v5730, %v5840
    %v5901 = vadd.f32 %v5731, %v5845
    %v5902 = vadd.f32 %v5732, %v5848
    %v5903 = vadd.f32 %v5733, %v5853
    %v5904 = vadd.f32 %v5734, %v5856
    %v5905 = vadd.f32 %v5735, %v5861
    %v5906 = vadd.f32 %v5736, %v5864
    %v5907 = vadd.f32 %v5737, %v5869
    %v5908 = vadd.f32 %v5738, %v5872
    %v5909 = vadd.f32 %v5739, %v5877
    %v5910 = vadd.f32 %v5740, %v5880
    %v5911 = vadd.f32 %v5741, %v5885
    %v5912 = vadd.f32 %v5742, %v5888
    %v5913 = vadd.f32 %v5743, %v5893
    %v5914 = vadd.f32 %v5744, %v5896
    %v5915 = vcombine.low %v1006, %v1060
    %v5917 = vunpack.c.l.s4 1983009808
    %v5918 = vunpack.c.0.s8 %v5917
    %v5919 = vlaneseq
    %v5920 = vshrl.u32 %v5919, 7
    %v5921 = vsub.s32 %v5918, %v5920
    %v5922 = vrot.slane %v5915, %v5921
    %v5923 = vcombine.low %v2164, %v5922
    %v5924 = vcombine.low %v1010, %v1064
    %v5926 = vunpack.c.l.s4 1983009808
    %v5927 = vunpack.c.0.s8 %v5926
    %v5928 = vlaneseq
    %v5929 = vshrl.u32 %v5928, 7
    %v5930 = vsub.s32 %v5927, %v5929
    %v5931 = vrot.slane %v5924, %v5930
    %v5932 = vcombine.low %v2181, %v5931
    %s5933 = scalar_lea.vmem %s4, 736
    %v5934 = vld [vmem:[%s5933] sm:$0xf]
    %v5935 = vld [vmem:[%s5933 + $0x4] sm:$0xf]
    %v5936 = vld [vmem:[%s5933 + $0x8] sm:$0xf]
    %v5937 = vld [vmem:[%s5933 + $0xc] sm:$0xf]
    %v5938 = vld [vmem:[%s5933 + $0x10] sm:$0xf]
    %v5939 = vld [vmem:[%s5933 + $0x14] sm:$0xf]
    %v5940 = vld [vmem:[%s5933 + $0x18] sm:$0xf]
    %v5941 = vld [vmem:[%s5933 + $0x1c] sm:$0xf]
    %v5950 = vunpack.c.l.b16 %v5934
    %v5951 = vunpack.c.l.b16 %v5935
    %v5952 = vunpack.c.l.b16 %v5936
    %v5953 = vunpack.c.l.b16 %v5937
    %v5954 = vunpack.c.l.b16 %v5938
    %v5955 = vunpack.c.l.b16 %v5939
    %v5956 = vunpack.c.l.b16 %v5940
    %v5957 = vunpack.c.l.b16 %v5941
    %v5958 = vpack.c.b16 %v5951, %v5950
    %v5959 = vpack.c.b16 %v5953, %v5952
    %v5960 = vpack.c.b16 %v5955, %v5954
    %v5961 = vpack.c.b16 %v5957, %v5956
    %v5967 = vsel %vm1634, %v5923, 0
    %v5970 = vsel %vm1634, %v5932, 0
    %5972 = vmatprep.subr.bf16.mxu0 0
    %5973 = vmatpush1.bf16.msra.mxu0 %v5958
    %5974 = vmatprep.subr.bf16.mxu0 0
    %5975 = vmatpush1.bf16.msra.mxu0 %v5959
    %5976 = vmatprep.subr.bf16.mxu0 0
    %5977 = vmatpush1.bf16.msra.mxu0 %v5960
    %5978 = vmatprep.subr.bf16.mxu0 0
    %5979 = vmatpush1.bf16.msra.mxu0 %v5961
    %5980 = vmatprep.subr.bf16.mxu0 0
    %5981 = vmatpush1.bf16.msra.mxu0 0
    %5982 = vmatprep.subr.bf16.mxu0 0
    %5983 = vmatpush1.bf16.msra.mxu0 0
    %5984 = vmatprep.subr.bf16.mxu0 0
    %5985 = vmatpush1.bf16.msra.mxu0 0
    %5986 = vmatprep.subr.bf16.mxu0 0
    %5987 = vmatpush1.bf16.msra.mxu0 0
    %5988 = vmatprep.subr.bf16.mxu0 0
    %5989 = vmatpush1.bf16.msra.mxu0 0
    %5990 = vmatprep.subr.bf16.mxu0 0
    %5991 = vmatpush1.bf16.msra.mxu0 0
    %5992 = vmatprep.subr.bf16.mxu0 0
    %5993 = vmatpush1.bf16.msra.mxu0 0
    %5994 = vmatprep.subr.bf16.mxu0 0
    %5995 = vmatpush1.bf16.msra.mxu0 0
    %5996 = vmatprep.subr.bf16.mxu0 0
    %5997 = vmatpush1.bf16.msra.mxu0 0
    %5998 = vmatprep.subr.bf16.mxu0 0
    %5999 = vmatpush1.bf16.msra.mxu0 0
    %6000 = vmatprep.subr.bf16.mxu0 0
    %6001 = vmatpush1.bf16.msra.mxu0 0
    %6002 = vmatprep.subr.bf16.mxu0 0
    %6003 = vmatpush1.bf16.msra.mxu0 0
    %6004 = vmatprep.mubr.bf16.mxu0 0
    %6005 = vmatmul.mubr.bf16.gmra.mrb[0].mxu0 %v4923
    %v6006 = vpop.f32.mrb[0].mxu0
    %v6007 = vadd.f32 0.0, %v6006
    %v6008 = vpop.f32.mrb[0].mxu0
    %v6009 = vpop.f32.mrb[0].mxu0
    %v6010 = vadd.f32 0.0, %v6009
    %v6011 = vpop.f32.mrb[0].mxu0
    %6012 = vmatprep.mubr.bf16.mxu0 0
    %6013 = vmatmul.mubr.bf16.gmra.mrb[0].mxu0 %v4926
    %v6014 = vpop.f32.mrb[0].mxu0
    %v6015 = vadd.f32 0.0, %v6014
    %v6016 = vpop.f32.mrb[0].mxu0
    %v6017 = vpop.f32.mrb[0].mxu0
    %v6018 = vadd.f32 0.0, %v6017
    %v6019 = vpop.f32.mrb[0].mxu0
    %6020 = vmatprep.mubr.bf16.mxu0 0
    %6021 = vmatmul.mubr.bf16.gmra.mrb[0].mxu0 %v5093
    %v6022 = vpop.f32.mrb[0].mxu0
    %v6023 = vadd.f32 0.0, %v6022
    %v6024 = vpop.f32.mrb[0].mxu0
    %v6025 = vpop.f32.mrb[0].mxu0
    %v6026 = vadd.f32 0.0, %v6025
    %v6027 = vpop.f32.mrb[0].mxu0
    %6028 = vmatprep.mubr.bf16.mxu0 0
    %6029 = vmatmul.mubr.bf16.gmra.mrb[0].mxu0 %v5096
    %v6030 = vpop.f32.mrb[0].mxu0
    %v6031 = vadd.f32 0.0, %v6030
    %v6032 = vpop.f32.mrb[0].mxu0
    %v6033 = vpop.f32.mrb[0].mxu0
    %v6034 = vadd.f32 0.0, %v6033
    %v6035 = vpop.f32.mrb[0].mxu0
    %6036 = vmatprep.mubr.bf16.mxu0 0
    %6037 = vmatmul.mubr.bf16.gmra.mrb[0].mxu0 %v5797
    %v6038 = vpop.f32.mrb[0].mxu0
    %v6039 = vadd.f32 0.0, %v6038
    %v6040 = vpop.f32.mrb[0].mxu0
    %v6041 = vpop.f32.mrb[0].mxu0
    %v6042 = vadd.f32 0.0, %v6041
    %v6043 = vpop.f32.mrb[0].mxu0
    %6044 = vmatprep.mubr.bf16.mxu0 0
    %6045 = vmatmul.mubr.bf16.gmra.mrb[0].mxu0 %v5800
    %v6046 = vpop.f32.mrb[0].mxu0
    %v6047 = vadd.f32 0.0, %v6046
    %v6048 = vpop.f32.mrb[0].mxu0
    %v6049 = vpop.f32.mrb[0].mxu0
    %v6050 = vadd.f32 0.0, %v6049
    %v6051 = vpop.f32.mrb[0].mxu0
    %6052 = vmatprep.mubr.bf16.mxu0 0
    %6053 = vmatmul.mubr.bf16.gmra.mrb[0].mxu0 %v5967
    %v6054 = vpop.f32.mrb[0].mxu0
    %v6055 = vadd.f32 0.0, %v6054
    %v6056 = vpop.f32.mrb[0].mxu0
    %v6057 = vpop.f32.mrb[0].mxu0
    %v6058 = vadd.f32 0.0, %v6057
    %v6059 = vpop.f32.mrb[0].mxu0
    %6060 = vmatprep.mubr.bf16.mxu0 0
    %6061 = vmatmul.mubr.bf16.gmra.mrb[0].mxu0 %v5970
    %v6062 = vpop.f32.mrb[0].mxu0
    %v6063 = vadd.f32 0.0, %v6062
    %v6064 = vpop.f32.mrb[0].mxu0
    %v6065 = vpop.f32.mrb[0].mxu0
    %v6066 = vadd.f32 0.0, %v6065
    %v6067 = vpop.f32.mrb[0].mxu0
    %6068 = vdwg.mxu0
    %v6069 = vadd.f32 %v5899, %v6007
    %v6070 = vadd.f32 %v5900, %v6010
    %v6071 = vadd.f32 %v5901, %v6015
    %v6072 = vadd.f32 %v5902, %v6018
    %v6073 = vadd.f32 %v5903, %v6023
    %v6074 = vadd.f32 %v5904, %v6026
    %v6075 = vadd.f32 %v5905, %v6031
    %v6076 = vadd.f32 %v5906, %v6034
    %v6077 = vadd.f32 %v5907, %v6039
    %v6078 = vadd.f32 %v5908, %v6042
    %v6079 = vadd.f32 %v5909, %v6047
    %v6080 = vadd.f32 %v5910, %v6050
    %v6081 = vadd.f32 %v5911, %v6055
    %v6082 = vadd.f32 %v5912, %v6058
    %v6083 = vadd.f32 %v5913, %v6063
    %v6084 = vadd.f32 %v5914, %v6066
    %v6085 = vcombine.low %v1330, %v1384
    %v6087 = vunpack.c.l.s4 1983009808
    %v6088 = vunpack.c.0.s8 %v6087
    %v6089 = vlaneseq
    %v6090 = vshrl.u32 %v6089, 7
    %v6091 = vsub.s32 %v6088, %v6090
    %v6092 = vrot.slane %v6085, %v6091
    %v6093 = vcombine.low %v2390, %v6092
    %v6094 = vcombine.low %v1334, %v1388
    %v6096 = vunpack.c.l.s4 1983009808
    %v6097 = vunpack.c.0.s8 %v6096
    %v6098 = vlaneseq
    %v6099 = vshrl.u32 %v6098, 7
    %v6100 = vsub.s32 %v6097, %v6099
    %v6101 = vrot.slane %v6094, %v6100
    %v6102 = vcombine.low %v2407, %v6101
    %s6103 = scalar_lea.vmem %s4, 768
    %v6104 = vld [vmem:[%s6103] sm:$0xf]
    %v6105 = vld [vmem:[%s6103 + $0x4] sm:$0xf]
    %v6106 = vld [vmem:[%s6103 + $0x8] sm:$0xf]
    %v6107 = vld [vmem:[%s6103 + $0xc] sm:$0xf]
    %v6108 = vld [vmem:[%s6103 + $0x10] sm:$0xf]
    %v6109 = vld [vmem:[%s6103 + $0x14] sm:$0xf]
    %v6110 = vld [vmem:[%s6103 + $0x18] sm:$0xf]
    %v6111 = vld [vmem:[%s6103 + $0x1c] sm:$0xf]
    %v6120 = vunpack.c.l.b16 %v6104
    %v6121 = vunpack.c.l.b16 %v6105
    %v6122 = vunpack.c.l.b16 %v6106
    %v6123 = vunpack.c.l.b16 %v6107
    %v6124 = vunpack.c.l.b16 %v6108
    %v6125 = vunpack.c.l.b16 %v6109
    %v6126 = vunpack.c.l.b16 %v6110
    %v6127 = vunpack.c.l.b16 %v6111
    %v6128 = vpack.c.b16 %v6121, %v6120
    %v6129 = vpack.c.b16 %v6123, %v6122
    %v6130 = vpack.c.b16 %v6125, %v6124
    %v6131 = vpack.c.b16 %v6127, %v6126
    %v6137 = vsel %vm1634, %v6093, 0
    %v6140 = vsel %vm1634, %v6102, 0
    %6142 = vmatprep.subr.bf16.mxu0 0
    %6143 = vmatpush1.bf16.msra.mxu0 %v6128
    %6144 = vmatprep.subr.bf16.mxu0 0
    %6145 = vmatpush1.bf16.msra.mxu0 %v6129
    %6146 = vmatprep.subr.bf16.mxu0 0
    %6147 = vmatpush1.bf16.msra.mxu0 %v6130
    %6148 = vmatprep.subr.bf16.mxu0 0
    %6149 = vmatpush1.bf16.msra.mxu0 %v6131
    %6150 = vmatprep.subr.bf16.mxu0 0
    %6151 = vmatpush1.bf16.msra.mxu0 0
    %6152 = vmatprep.subr.bf16.mxu0 0
    %6153 = vmatpush1.bf16.msra.mxu0 0
    %6154 = vmatprep.subr.bf16.mxu0 0
    %6155 = vmatpush1.bf16.msra.mxu0 0
    %6156 = vmatprep.subr.bf16.mxu0 0
    %6157 = vmatpush1.bf16.msra.mxu0 0
    %6158 = vmatprep.subr.bf16.mxu0 0
    %6159 = vmatpush1.bf16.msra.mxu0 0
    %6160 = vmatprep.subr.bf16.mxu0 0
    %6161 = vmatpush1.bf16.msra.mxu0 0
    %6162 = vmatprep.subr.bf16.mxu0 0
    %6163 = vmatpush1.bf16.msra.mxu0 0
    %6164 = vmatprep.subr.bf16.mxu0 0
    %6165 = vmatpush1.bf16.msra.mxu0 0
    %6166 = vmatprep.subr.bf16.mxu0 0
    %6167 = vmatpush1.bf16.msra.mxu0 0
    %6168 = vmatprep.subr.bf16.mxu0 0
    %6169 = vmatpush1.bf16.msra.mxu0 0
    %6170 = vmatprep.subr.bf16.mxu0 0
    %6171 = vmatpush1.bf16.msra.mxu0 0
    %6172 = vmatprep.subr.bf16.mxu0 0
    %6173 = vmatpush1.bf16.msra.mxu0 0
    %6174 = vmatprep.mubr.bf16.mxu0 0
    %6175 = vmatmul.mubr.bf16.gmra.mrb[0].mxu0 %v5093
    %v6176 = vpop.f32.mrb[0].mxu0
    %v6177 = vadd.f32 0.0, %v6176
    %v6178 = vpop.f32.mrb[0].mxu0
    %v6179 = vpop.f32.mrb[0].mxu0
    %v6180 = vadd.f32 0.0, %v6179
    %v6181 = vpop.f32.mrb[0].mxu0
    %6182 = vmatprep.mubr.bf16.mxu0 0
    %6183 = vmatmul.mubr.bf16.gmra.mrb[0].mxu0 %v5096
    %v6184 = vpop.f32.mrb[0].mxu0
    %v6185 = vadd.f32 0.0, %v6184
    %v6186 = vpop.f32.mrb[0].mxu0
    %v6187 = vpop.f32.mrb[0].mxu0
    %v6188 = vadd.f32 0.0, %v6187
    %v6189 = vpop.f32.mrb[0].mxu0
    %6190 = vmatprep.mubr.bf16.mxu0 0
    %6191 = vmatmul.mubr.bf16.gmra.mrb[0].mxu0 %v5263
    %v6192 = vpop.f32.mrb[0].mxu0
    %v6193 = vadd.f32 0.0, %v6192
    %v6194 = vpop.f32.mrb[0].mxu0
    %v6195 = vpop.f32.mrb[0].mxu0
    %v6196 = vadd.f32 0.0, %v6195
    %v6197 = vpop.f32.mrb[0].mxu0
    %6198 = vmatprep.mubr.bf16.mxu0 0
    %6199 = vmatmul.mubr.bf16.gmra.mrb[0].mxu0 %v5266
    %v6200 = vpop.f32.mrb[0].mxu0
    %v6201 = vadd.f32 0.0, %v6200
    %v6202 = vpop.f32.mrb[0].mxu0
    %v6203 = vpop.f32.mrb[0].mxu0
    %v6204 = vadd.f32 0.0, %v6203
    %v6205 = vpop.f32.mrb[0].mxu0
    %6206 = vmatprep.mubr.bf16.mxu0 0
    %6207 = vmatmul.mubr.bf16.gmra.mrb[0].mxu0 %v5967
    %v6208 = vpop.f32.mrb[0].mxu0
    %v6209 = vadd.f32 0.0, %v6208
    %v6210 = vpop.f32.mrb[0].mxu0
    %v6211 = vpop.f32.mrb[0].mxu0
    %v6212 = vadd.f32 0.0, %v6211
    %v6213 = vpop.f32.mrb[0].mxu0
    %6214 = vmatprep.mubr.bf16.mxu0 0
    %6215 = vmatmul.mubr.bf16.gmra.mrb[0].mxu0 %v5970
    %v6216 = vpop.f32.mrb[0].mxu0
    %v6217 = vadd.f32 0.0, %v6216
    %v6218 = vpop.f32.mrb[0].mxu0
    %v6219 = vpop.f32.mrb[0].mxu0
    %v6220 = vadd.f32 0.0, %v6219
    %v6221 = vpop.f32.mrb[0].mxu0
    %6222 = vmatprep.mubr.bf16.mxu0 0
    %6223 = vmatmul.mubr.bf16.gmra.mrb[0].mxu0 %v6137
    %v6224 = vpop.f32.mrb[0].mxu0
    %v6225 = vadd.f32 0.0, %v6224
    %v6226 = vpop.f32.mrb[0].mxu0
    %v6227 = vpop.f32.mrb[0].mxu0
    %v6228 = vadd.f32 0.0, %v6227
    %v6229 = vpop.f32.mrb[0].mxu0
    %6230 = vmatprep.mubr.bf16.mxu0 0
    %6231 = vmatmul.mubr.bf16.gmra.mrb[0].mxu0 %v6140
    %v6232 = vpop.f32.mrb[0].mxu0
    %v6233 = vadd.f32 0.0, %v6232
    %v6234 = vpop.f32.mrb[0].mxu0
    %v6235 = vpop.f32.mrb[0].mxu0
    %v6236 = vadd.f32 0.0, %v6235
    %v6237 = vpop.f32.mrb[0].mxu0
    %6238 = vdwg.mxu0
    %v6239 = vadd.f32 %v6069, %v6177
    %v6240 = vadd.f32 %v6070, %v6180
    %v6241 = vadd.f32 %v6071, %v6185
    %v6242 = vadd.f32 %v6072, %v6188
    %v6243 = vadd.f32 %v6073, %v6193
    %v6244 = vadd.f32 %v6074, %v6196
    %v6245 = vadd.f32 %v6075, %v6201
    %v6246 = vadd.f32 %v6076, %v6204
    %v6247 = vadd.f32 %v6077, %v6209
    %v6248 = vadd.f32 %v6078, %v6212
    %v6249 = vadd.f32 %v6079, %v6217
    %v6250 = vadd.f32 %v6080, %v6220
    %v6251 = vadd.f32 %v6081, %v6225
    %v6252 = vadd.f32 %v6082, %v6228
    %v6253 = vadd.f32 %v6083, %v6233
    %v6254 = vadd.f32 %v6084, %v6236
    %v6255 = vmax.f32 %v6239, %v6243
    %v6256 = vmax.f32 %v6255, %v6247
    %v6257 = vmax.f32 %v6256, %v6251
    %v6258 = vmax.f32 %v6240, %v6244
    %v6259 = vmax.f32 %v6258, %v6248
    %v6260 = vmax.f32 %v6259, %v6252
    %v6261 = vmax.f32 %v6241, %v6245
    %v6262 = vmax.f32 %v6261, %v6249
    %v6263 = vmax.f32 %v6262, %v6253
    %v6264 = vmax.f32 %v6242, %v6246
    %v6265 = vmax.f32 %v6264, %v6250
    %v6266 = vmax.f32 %v6265, %v6254
    %v6267 = vld [vmem:[%s5] sm:$0x1]
    %v6269 = vlaneseq
    %v6270 = vshrl.u32 %v6269, 7
    %v6271 = vsub.s32 0, %v6270
    %v6272 = vrot.slane %v6267, %v6271
    %v6274 = vadd.f32 %v6257, %v6272
    %v6275 = vadd.f32 %v6260, %v6272
    %v6276 = vadd.f32 %v6263, %v6272
    %v6277 = vadd.f32 %v6266, %v6272
    %v6278 = vmax.f32 %v6274, 0.0
    %v6279 = vmax.f32 %v6275, 0.0
    %v6280 = vmax.f32 %v6276, 0.0
    %v6281 = vmax.f32 %v6277, 0.0
    %v6282 = vpack.c.bf16 %v6279, %v6278
    %v6283 = vpack.c.bf16 %v6281, %v6280
    %v6284 = vld [vmem:[%s6] sm:$0xf]
    %v6285 = vld [vmem:[%s6 + $0x4] sm:$0xf]
    %v6286 = vld [vmem:[%s6 + $0x8] sm:$0xf]
    %v6287 = vld [vmem:[%s6 + $0xc] sm:$0xf]
    %v6288 = vld [vmem:[%s6 + $0x10] sm:$0xf]
    %v6289 = vld [vmem:[%s6 + $0x14] sm:$0xf]
    %v6290 = vld [vmem:[%s6 + $0x18] sm:$0xf]
    %v6291 = vld [vmem:[%s6 + $0x1c] sm:$0xf]
    %v6292 = vld [vmem:[%s6 + $0x20] sm:$0xf]
    %v6293 = vld [vmem:[%s6 + $0x24] sm:$0xf]
    %v6294 = vld [vmem:[%s6 + $0x28] sm:$0xf]
    %v6295 = vld [vmem:[%s6 + $0x2c] sm:$0xf]
    %v6296 = vld [vmem:[%s6 + $0x30] sm:$0xf]
    %v6297 = vld [vmem:[%s6 + $0x34] sm:$0xf]
    %v6298 = vld [vmem:[%s6 + $0x38] sm:$0xf]
    %v6299 = vld [vmem:[%s6 + $0x3c] sm:$0xf]
    %s6300 = scalar_lea.vmem %s6, 64
    %v6301 = vld [vmem:[%s6300] sm:$0xf]
    %v6302 = vld [vmem:[%s6300 + $0x4] sm:$0xf]
    %v6303 = vld [vmem:[%s6300 + $0x8] sm:$0xf]
    %v6304 = vld [vmem:[%s6300 + $0xc] sm:$0xf]
    %v6305 = vld [vmem:[%s6300 + $0x10] sm:$0xf]
    %v6306 = vld [vmem:[%s6300 + $0x14] sm:$0xf]
    %v6307 = vld [vmem:[%s6300 + $0x18] sm:$0xf]
    %v6308 = vld [vmem:[%s6300 + $0x1c] sm:$0xf]
    %v6309 = vld [vmem:[%s6300 + $0x20] sm:$0xf]
    %v6310 = vld [vmem:[%s6300 + $0x24] sm:$0xf]
    %v6311 = vld [vmem:[%s6300 + $0x28] sm:$0xf]
    %v6312 = vld [vmem:[%s6300 + $0x2c] sm:$0xf]
    %v6313 = vld [vmem:[%s6300 + $0x30] sm:$0xf]
    %v6314 = vld [vmem:[%s6300 + $0x34] sm:$0xf]
    %v6315 = vld [vmem:[%s6300 + $0x38] sm:$0xf]
    %v6316 = vld [vmem:[%s6300 + $0x3c] sm:$0xf]
    %v6319 = vunpack.c.l.b16 %v6282
    %v6320 = vunpack.c.l.b16 %v6283
    %v6321 = vrot.slane %v6319, 1
    %vm6322 = vcmask 1041409
    %v6323 = vsel %vm6322, %v6320, %v6321
    %v6324 = vpack.c.b16 %v6323, %v6323
    %v6342 = vunpack.c.l.b16 %v6301
    %v6343 = vunpack.c.l.b16 %v6302
    %v6344 = vunpack.c.l.b16 %v6303
    %v6345 = vunpack.c.l.b16 %v6304
    %v6346 = vunpack.c.l.b16 %v6305
    %v6347 = vunpack.c.l.b16 %v6306
    %v6348 = vunpack.c.l.b16 %v6307
    %v6349 = vunpack.c.l.b16 %v6308
    %v6350 = vunpack.c.l.b16 %v6309
    %v6351 = vunpack.c.l.b16 %v6310
    %v6352 = vunpack.c.l.b16 %v6311
    %v6353 = vunpack.c.l.b16 %v6312
    %v6354 = vunpack.c.l.b16 %v6313
    %v6355 = vunpack.c.l.b16 %v6314
    %v6356 = vunpack.c.l.b16 %v6315
    %v6357 = vunpack.c.l.b16 %v6316
    %v6358 = vpack.c.b16 %v6343, %v6342
    %v6359 = vpack.c.b16 %v6345, %v6344
    %v6360 = vpack.c.b16 %v6347, %v6346
    %v6361 = vpack.c.b16 %v6349, %v6348
    %v6362 = vpack.c.b16 %v6351, %v6350
    %v6363 = vpack.c.b16 %v6353, %v6352
    %v6364 = vpack.c.b16 %v6355, %v6354
    %v6365 = vpack.c.b16 %v6357, %v6356
    %6374 = vmatprep.subr.bf16.mxu0 0
    %6375 = vmatpush1.bf16.msra.mxu0 %v6358
    %6376 = vmatprep.subr.bf16.mxu0 0
    %6377 = vmatpush1.bf16.msra.mxu0 %v6359
    %6378 = vmatprep.subr.bf16.mxu0 0
    %6379 = vmatpush1.bf16.msra.mxu0 %v6360
    %6380 = vmatprep.subr.bf16.mxu0 0
    %6381 = vmatpush1.bf16.msra.mxu0 %v6361
    %6382 = vmatprep.subr.bf16.mxu0 0
    %6383 = vmatpush1.bf16.msra.mxu0 %v6362
    %6384 = vmatprep.subr.bf16.mxu0 0
    %6385 = vmatpush1.bf16.msra.mxu0 %v6363
    %6386 = vmatprep.subr.bf16.mxu0 0
    %6387 = vmatpush1.bf16.msra.mxu0 %v6364
    %6388 = vmatprep.subr.bf16.mxu0 0
    %6389 = vmatpush1.bf16.msra.mxu0 %v6365
    %6390 = vmatprep.subr.bf16.mxu0 0
    %6391 = vmatpush1.bf16.msra.mxu0 0
    %6392 = vmatprep.subr.bf16.mxu0 0
    %6393 = vmatpush1.bf16.msra.mxu0 0
    %6394 = vmatprep.subr.bf16.mxu0 0
    %6395 = vmatpush1.bf16.msra.mxu0 0
    %6396 = vmatprep.subr.bf16.mxu0 0
    %6397 = vmatpush1.bf16.msra.mxu0 0
    %6398 = vmatprep.subr.bf16.mxu0 0
    %6399 = vmatpush1.bf16.msra.mxu0 0
    %6400 = vmatprep.subr.bf16.mxu0 0
    %6401 = vmatpush1.bf16.msra.mxu0 0
    %6402 = vmatprep.subr.bf16.mxu0 0
    %6403 = vmatpush1.bf16.msra.mxu0 0
    %6404 = vmatprep.subr.bf16.mxu0 0
    %6405 = vmatpush1.bf16.msra.mxu0 0
    %6406 = vmatprep.mubr.bf16.mxu0 0
    %6407 = vmatmul.mubr.bf16.gmra.mrb[0].mxu0 %v6324
    %v6408 = vpop.f32.mrb[0].mxu0
    %v6409 = vadd.f32 0.0, %v6408
    %v6410 = vpop.f32.mrb[0].mxu0
    %v6411 = vpop.f32.mrb[0].mxu0
    %v6412 = vpop.f32.mrb[0].mxu0
    %6413 = vdwg.mxu0
    %v6414 = vrot.slane %v6320, 7
    %v6415 = vsel %vm6322, %v6414, %v6319
    %v6416 = vpack.c.b16 %v6415, %v6415
    %v6434 = vunpack.c.l.b16 %v6284
    %v6435 = vunpack.c.l.b16 %v6285
    %v6436 = vunpack.c.l.b16 %v6286
    %v6437 = vunpack.c.l.b16 %v6287
    %v6438 = vunpack.c.l.b16 %v6288
    %v6439 = vunpack.c.l.b16 %v6289
    %v6440 = vunpack.c.l.b16 %v6290
    %v6441 = vunpack.c.l.b16 %v6291
    %v6442 = vunpack.c.l.b16 %v6292
    %v6443 = vunpack.c.l.b16 %v6293
    %v6444 = vunpack.c.l.b16 %v6294
    %v6445 = vunpack.c.l.b16 %v6295
    %v6446 = vunpack.c.l.b16 %v6296
    %v6447 = vunpack.c.l.b16 %v6297
    %v6448 = vunpack.c.l.b16 %v6298
    %v6449 = vunpack.c.l.b16 %v6299
    %v6450 = vpack.c.b16 %v6435, %v6434
    %v6451 = vpack.c.b16 %v6437, %v6436
    %v6452 = vpack.c.b16 %v6439, %v6438
    %v6453 = vpack.c.b16 %v6441, %v6440
    %v6454 = vpack.c.b16 %v6443, %v6442
    %v6455 = vpack.c.b16 %v6445, %v6444
    %v6456 = vpack.c.b16 %v6447, %v6446
    %v6457 = vpack.c.b16 %v6449, %v6448
    %6466 = vmatprep.subr.bf16.mxu0 0
    %6467 = vmatpush1.bf16.msra.mxu0 %v6450
    %6468 = vmatprep.subr.bf16.mxu0 0
    %6469 = vmatpush1.bf16.msra.mxu0 %v6451
    %6470 = vmatprep.subr.bf16.mxu0 0
    %6471 = vmatpush1.bf16.msra.mxu0 %v6452
    %6472 = vmatprep.subr.bf16.mxu0 0
    %6473 = vmatpush1.bf16.msra.mxu0 %v6453
    %6474 = vmatprep.subr.bf16.mxu0 0
    %6475 = vmatpush1.bf16.msra.mxu0 %v6454
    %6476 = vmatprep.subr.bf16.mxu0 0
    %6477 = vmatpush1.bf16.msra.mxu0 %v6455
    %6478 = vmatprep.subr.bf16.mxu0 0
    %6479 = vmatpush1.bf16.msra.mxu0 %v6456
    %6480 = vmatprep.subr.bf16.mxu0 0
    %6481 = vmatpush1.bf16.msra.mxu0 %v6457
    %6482 = vmatprep.subr.bf16.mxu0 0
    %6483 = vmatpush1.bf16.msra.mxu0 0
    %6484 = vmatprep.subr.bf16.mxu0 0
    %6485 = vmatpush1.bf16.msra.mxu0 0
    %6486 = vmatprep.subr.bf16.mxu0 0
    %6487 = vmatpush1.bf16.msra.mxu0 0
    %6488 = vmatprep.subr.bf16.mxu0 0
    %6489 = vmatpush1.bf16.msra.mxu0 0
    %6490 = vmatprep.subr.bf16.mxu0 0
    %6491 = vmatpush1.bf16.msra.mxu0 0
    %6492 = vmatprep.subr.bf16.mxu0 0
    %6493 = vmatpush1.bf16.msra.mxu0 0
    %6494 = vmatprep.subr.bf16.mxu0 0
    %6495 = vmatpush1.bf16.msra.mxu0 0
    %6496 = vmatprep.subr.bf16.mxu0 0
    %6497 = vmatpush1.bf16.msra.mxu0 0
    %6498 = vmatprep.mubr.bf16.mxu0 0
    %6499 = vmatmul.mubr.bf16.gmra.mrb[0].mxu0 %v6416
    %v6500 = vpop.f32.mrb[0].mxu0
    %v6501 = vadd.f32 %v6409, %v6500
    %v6502 = vpop.f32.mrb[0].mxu0
    %v6503 = vpop.f32.mrb[0].mxu0
    %v6504 = vpop.f32.mrb[0].mxu0
    %6505 = vdwg.mxu0
    %s6506 = scalar_lea.vmem %s6, 128
    %v6507 = vld [vmem:[%s6506] sm:$0xf]
    %v6508 = vld [vmem:[%s6506 + $0x4] sm:$0xf]
    %v6509 = vld [vmem:[%s6506 + $0x8] sm:$0xf]
    %v6510 = vld [vmem:[%s6506 + $0xc] sm:$0xf]
    %v6511 = vld [vmem:[%s6506 + $0x10] sm:$0xf]
    %v6512 = vld [vmem:[%s6506 + $0x14] sm:$0xf]
    %v6513 = vld [vmem:[%s6506 + $0x18] sm:$0xf]
    %v6514 = vld [vmem:[%s6506 + $0x1c] sm:$0xf]
    %v6515 = vld [vmem:[%s6506 + $0x20] sm:$0xf]
    %v6516 = vld [vmem:[%s6506 + $0x24] sm:$0xf]
    %v6517 = vld [vmem:[%s6506 + $0x28] sm:$0xf]
    %v6518 = vld [vmem:[%s6506 + $0x2c] sm:$0xf]
    %v6519 = vld [vmem:[%s6506 + $0x30] sm:$0xf]
    %v6520 = vld [vmem:[%s6506 + $0x34] sm:$0xf]
    %v6521 = vld [vmem:[%s6506 + $0x38] sm:$0xf]
    %v6522 = vld [vmem:[%s6506 + $0x3c] sm:$0xf]
    %v6523 = vrot.slane %v6319, 2
    %v6524 = vrot.slane %v6320, 1
    %v6525 = vsel %vm6322, %v6524, %v6523
    %v6526 = vpack.c.b16 %v6525, %v6525
    %v6544 = vunpack.c.l.b16 %v6507
    %v6545 = vunpack.c.l.b16 %v6508
    %v6546 = vunpack.c.l.b16 %v6509
    %v6547 = vunpack.c.l.b16 %v6510
    %v6548 = vunpack.c.l.b16 %v6511
    %v6549 = vunpack.c.l.b16 %v6512
    %v6550 = vunpack.c.l.b16 %v6513
    %v6551 = vunpack.c.l.b16 %v6514
    %v6552 = vunpack.c.l.b16 %v6515
    %v6553 = vunpack.c.l.b16 %v6516
    %v6554 = vunpack.c.l.b16 %v6517
    %v6555 = vunpack.c.l.b16 %v6518
    %v6556 = vunpack.c.l.b16 %v6519
    %v6557 = vunpack.c.l.b16 %v6520
    %v6558 = vunpack.c.l.b16 %v6521
    %v6559 = vunpack.c.l.b16 %v6522
    %v6560 = vpack.c.b16 %v6545, %v6544
    %v6561 = vpack.c.b16 %v6547, %v6546
    %v6562 = vpack.c.b16 %v6549, %v6548
    %v6563 = vpack.c.b16 %v6551, %v6550
    %v6564 = vpack.c.b16 %v6553, %v6552
    %v6565 = vpack.c.b16 %v6555, %v6554
    %v6566 = vpack.c.b16 %v6557, %v6556
    %v6567 = vpack.c.b16 %v6559, %v6558
    %6576 = vmatprep.subr.bf16.mxu0 0
    %6577 = vmatpush1.bf16.msra.mxu0 %v6560
    %6578 = vmatprep.subr.bf16.mxu0 0
    %6579 = vmatpush1.bf16.msra.mxu0 %v6561
    %6580 = vmatprep.subr.bf16.mxu0 0
    %6581 = vmatpush1.bf16.msra.mxu0 %v6562
    %6582 = vmatprep.subr.bf16.mxu0 0
    %6583 = vmatpush1.bf16.msra.mxu0 %v6563
    %6584 = vmatprep.subr.bf16.mxu0 0
    %6585 = vmatpush1.bf16.msra.mxu0 %v6564
    %6586 = vmatprep.subr.bf16.mxu0 0
    %6587 = vmatpush1.bf16.msra.mxu0 %v6565
    %6588 = vmatprep.subr.bf16.mxu0 0
    %6589 = vmatpush1.bf16.msra.mxu0 %v6566
    %6590 = vmatprep.subr.bf16.mxu0 0
    %6591 = vmatpush1.bf16.msra.mxu0 %v6567
    %6592 = vmatprep.subr.bf16.mxu0 0
    %6593 = vmatpush1.bf16.msra.mxu0 0
    %6594 = vmatprep.subr.bf16.mxu0 0
    %6595 = vmatpush1.bf16.msra.mxu0 0
    %6596 = vmatprep.subr.bf16.mxu0 0
    %6597 = vmatpush1.bf16.msra.mxu0 0
    %6598 = vmatprep.subr.bf16.mxu0 0
    %6599 = vmatpush1.bf16.msra.mxu0 0
    %6600 = vmatprep.subr.bf16.mxu0 0
    %6601 = vmatpush1.bf16.msra.mxu0 0
    %6602 = vmatprep.subr.bf16.mxu0 0
    %6603 = vmatpush1.bf16.msra.mxu0 0
    %6604 = vmatprep.subr.bf16.mxu0 0
    %6605 = vmatpush1.bf16.msra.mxu0 0
    %6606 = vmatprep.subr.bf16.mxu0 0
    %6607 = vmatpush1.bf16.msra.mxu0 0
    %6608 = vmatprep.mubr.bf16.mxu0 0
    %6609 = vmatmul.mubr.bf16.gmra.mrb[0].mxu0 %v6526
    %v6610 = vpop.f32.mrb[0].mxu0
    %v6611 = vadd.f32 0.0, %v6610
    %v6612 = vpop.f32.mrb[0].mxu0
    %v6613 = vpop.f32.mrb[0].mxu0
    %v6614 = vpop.f32.mrb[0].mxu0
    %6615 = vdwg.mxu0
    %v6616 = vadd.f32 %v6501, %v6611
    %s6617 = scalar_lea.vmem %s6, 192
    %v6618 = vld [vmem:[%s6617] sm:$0xf]
    %v6619 = vld [vmem:[%s6617 + $0x4] sm:$0xf]
    %v6620 = vld [vmem:[%s6617 + $0x8] sm:$0xf]
    %v6621 = vld [vmem:[%s6617 + $0xc] sm:$0xf]
    %v6622 = vld [vmem:[%s6617 + $0x10] sm:$0xf]
    %v6623 = vld [vmem:[%s6617 + $0x14] sm:$0xf]
    %v6624 = vld [vmem:[%s6617 + $0x18] sm:$0xf]
    %v6625 = vld [vmem:[%s6617 + $0x1c] sm:$0xf]
    %v6626 = vld [vmem:[%s6617 + $0x20] sm:$0xf]
    %v6627 = vld [vmem:[%s6617 + $0x24] sm:$0xf]
    %v6628 = vld [vmem:[%s6617 + $0x28] sm:$0xf]
    %v6629 = vld [vmem:[%s6617 + $0x2c] sm:$0xf]
    %v6630 = vld [vmem:[%s6617 + $0x30] sm:$0xf]
    %v6631 = vld [vmem:[%s6617 + $0x34] sm:$0xf]
    %v6632 = vld [vmem:[%s6617 + $0x38] sm:$0xf]
    %v6633 = vld [vmem:[%s6617 + $0x3c] sm:$0xf]
    %v6634 = vrot.slane %v6319, 3
    %v6635 = vrot.slane %v6320, 2
    %v6636 = vsel %vm6322, %v6635, %v6634
    %v6637 = vpack.c.b16 %v6636, %v6636
    %v6655 = vunpack.c.l.b16 %v6618
    %v6656 = vunpack.c.l.b16 %v6619
    %v6657 = vunpack.c.l.b16 %v6620
    %v6658 = vunpack.c.l.b16 %v6621
    %v6659 = vunpack.c.l.b16 %v6622
    %v6660 = vunpack.c.l.b16 %v6623
    %v6661 = vunpack.c.l.b16 %v6624
    %v6662 = vunpack.c.l.b16 %v6625
    %v6663 = vunpack.c.l.b16 %v6626
    %v6664 = vunpack.c.l.b16 %v6627
    %v6665 = vunpack.c.l.b16 %v6628
    %v6666 = vunpack.c.l.b16 %v6629
    %v6667 = vunpack.c.l.b16 %v6630
    %v6668 = vunpack.c.l.b16 %v6631
    %v6669 = vunpack.c.l.b16 %v6632
    %v6670 = vunpack.c.l.b16 %v6633
    %v6671 = vpack.c.b16 %v6656, %v6655
    %v6672 = vpack.c.b16 %v6658, %v6657
    %v6673 = vpack.c.b16 %v6660, %v6659
    %v6674 = vpack.c.b16 %v6662, %v6661
    %v6675 = vpack.c.b16 %v6664, %v6663
    %v6676 = vpack.c.b16 %v6666, %v6665
    %v6677 = vpack.c.b16 %v6668, %v6667
    %v6678 = vpack.c.b16 %v6670, %v6669
    %6687 = vmatprep.subr.bf16.mxu0 0
    %6688 = vmatpush1.bf16.msra.mxu0 %v6671
    %6689 = vmatprep.subr.bf16.mxu0 0
    %6690 = vmatpush1.bf16.msra.mxu0 %v6672
    %6691 = vmatprep.subr.bf16.mxu0 0
    %6692 = vmatpush1.bf16.msra.mxu0 %v6673
    %6693 = vmatprep.subr.bf16.mxu0 0
    %6694 = vmatpush1.bf16.msra.mxu0 %v6674
    %6695 = vmatprep.subr.bf16.mxu0 0
    %6696 = vmatpush1.bf16.msra.mxu0 %v6675
    %6697 = vmatprep.subr.bf16.mxu0 0
    %6698 = vmatpush1.bf16.msra.mxu0 %v6676
    %6699 = vmatprep.subr.bf16.mxu0 0
    %6700 = vmatpush1.bf16.msra.mxu0 %v6677
    %6701 = vmatprep.subr.bf16.mxu0 0
    %6702 = vmatpush1.bf16.msra.mxu0 %v6678
    %6703 = vmatprep.subr.bf16.mxu0 0
    %6704 = vmatpush1.bf16.msra.mxu0 0
    %6705 = vmatprep.subr.bf16.mxu0 0
    %6706 = vmatpush1.bf16.msra.mxu0 0
    %6707 = vmatprep.subr.bf16.mxu0 0
    %6708 = vmatpush1.bf16.msra.mxu0 0
    %6709 = vmatprep.subr.bf16.mxu0 0
    %6710 = vmatpush1.bf16.msra.mxu0 0
    %6711 = vmatprep.subr.bf16.mxu0 0
    %6712 = vmatpush1.bf16.msra.mxu0 0
    %6713 = vmatprep.subr.bf16.mxu0 0
    %6714 = vmatpush1.bf16.msra.mxu0 0
    %6715 = vmatprep.subr.bf16.mxu0 0
    %6716 = vmatpush1.bf16.msra.mxu0 0
    %6717 = vmatprep.subr.bf16.mxu0 0
    %6718 = vmatpush1.bf16.msra.mxu0 0
    %6719 = vmatprep.mubr.bf16.mxu0 0
    %6720 = vmatmul.mubr.bf16.gmra.mrb[0].mxu0 %v6637
    %v6721 = vpop.f32.mrb[0].mxu0
    %v6722 = vadd.f32 0.0, %v6721
    %v6723 = vpop.f32.mrb[0].mxu0
    %v6724 = vpop.f32.mrb[0].mxu0
    %v6725 = vpop.f32.mrb[0].mxu0
    %6726 = vdwg.mxu0
    %v6727 = vadd.f32 %v6616, %v6722
    %s6728 = scalar_lea.vmem %s6, 256
    %v6729 = vld [vmem:[%s6728] sm:$0xf]
    %v6730 = vld [vmem:[%s6728 + $0x4] sm:$0xf]
    %v6731 = vld [vmem:[%s6728 + $0x8] sm:$0xf]
    %v6732 = vld [vmem:[%s6728 + $0xc] sm:$0xf]
    %v6733 = vld [vmem:[%s6728 + $0x10] sm:$0xf]
    %v6734 = vld [vmem:[%s6728 + $0x14] sm:$0xf]
    %v6735 = vld [vmem:[%s6728 + $0x18] sm:$0xf]
    %v6736 = vld [vmem:[%s6728 + $0x1c] sm:$0xf]
    %v6737 = vld [vmem:[%s6728 + $0x20] sm:$0xf]
    %v6738 = vld [vmem:[%s6728 + $0x24] sm:$0xf]
    %v6739 = vld [vmem:[%s6728 + $0x28] sm:$0xf]
    %v6740 = vld [vmem:[%s6728 + $0x2c] sm:$0xf]
    %v6741 = vld [vmem:[%s6728 + $0x30] sm:$0xf]
    %v6742 = vld [vmem:[%s6728 + $0x34] sm:$0xf]
    %v6743 = vld [vmem:[%s6728 + $0x38] sm:$0xf]
    %v6744 = vld [vmem:[%s6728 + $0x3c] sm:$0xf]
    %v6745 = vrot.slane %v6319, 4
    %v6746 = vrot.slane %v6320, 3
    %v6747 = vsel %vm6322, %v6746, %v6745
    %v6748 = vpack.c.b16 %v6747, %v6747
    %v6766 = vunpack.c.l.b16 %v6729
    %v6767 = vunpack.c.l.b16 %v6730
    %v6768 = vunpack.c.l.b16 %v6731
    %v6769 = vunpack.c.l.b16 %v6732
    %v6770 = vunpack.c.l.b16 %v6733
    %v6771 = vunpack.c.l.b16 %v6734
    %v6772 = vunpack.c.l.b16 %v6735
    %v6773 = vunpack.c.l.b16 %v6736
    %v6774 = vunpack.c.l.b16 %v6737
    %v6775 = vunpack.c.l.b16 %v6738
    %v6776 = vunpack.c.l.b16 %v6739
    %v6777 = vunpack.c.l.b16 %v6740
    %v6778 = vunpack.c.l.b16 %v6741
    %v6779 = vunpack.c.l.b16 %v6742
    %v6780 = vunpack.c.l.b16 %v6743
    %v6781 = vunpack.c.l.b16 %v6744
    %v6782 = vpack.c.b16 %v6767, %v6766
    %v6783 = vpack.c.b16 %v6769, %v6768
    %v6784 = vpack.c.b16 %v6771, %v6770
    %v6785 = vpack.c.b16 %v6773, %v6772
    %v6786 = vpack.c.b16 %v6775, %v6774
    %v6787 = vpack.c.b16 %v6777, %v6776
    %v6788 = vpack.c.b16 %v6779, %v6778
    %v6789 = vpack.c.b16 %v6781, %v6780
    %6798 = vmatprep.subr.bf16.mxu0 0
    %6799 = vmatpush1.bf16.msra.mxu0 %v6782
    %6800 = vmatprep.subr.bf16.mxu0 0
    %6801 = vmatpush1.bf16.msra.mxu0 %v6783
    %6802 = vmatprep.subr.bf16.mxu0 0
    %6803 = vmatpush1.bf16.msra.mxu0 %v6784
    %6804 = vmatprep.subr.bf16.mxu0 0
    %6805 = vmatpush1.bf16.msra.mxu0 %v6785
    %6806 = vmatprep.subr.bf16.mxu0 0
    %6807 = vmatpush1.bf16.msra.mxu0 %v6786
    %6808 = vmatprep.subr.bf16.mxu0 0
    %6809 = vmatpush1.bf16.msra.mxu0 %v6787
    %6810 = vmatprep.subr.bf16.mxu0 0
    %6811 = vmatpush1.bf16.msra.mxu0 %v6788
    %6812 = vmatprep.subr.bf16.mxu0 0
    %6813 = vmatpush1.bf16.msra.mxu0 %v6789
    %6814 = vmatprep.subr.bf16.mxu0 0
    %6815 = vmatpush1.bf16.msra.mxu0 0
    %6816 = vmatprep.subr.bf16.mxu0 0
    %6817 = vmatpush1.bf16.msra.mxu0 0
    %6818 = vmatprep.subr.bf16.mxu0 0
    %6819 = vmatpush1.bf16.msra.mxu0 0
    %6820 = vmatprep.subr.bf16.mxu0 0
    %6821 = vmatpush1.bf16.msra.mxu0 0
    %6822 = vmatprep.subr.bf16.mxu0 0
    %6823 = vmatpush1.bf16.msra.mxu0 0
    %6824 = vmatprep.subr.bf16.mxu0 0
    %6825 = vmatpush1.bf16.msra.mxu0 0
    %6826 = vmatprep.subr.bf16.mxu0 0
    %6827 = vmatpush1.bf16.msra.mxu0 0
    %6828 = vmatprep.subr.bf16.mxu0 0
    %6829 = vmatpush1.bf16.msra.mxu0 0
    %6830 = vmatprep.mubr.bf16.mxu0 0
    %6831 = vmatmul.mubr.bf16.gmra.mrb[0].mxu0 %v6748
    %v6832 = vpop.f32.mrb[0].mxu0
    %v6833 = vadd.f32 0.0, %v6832
    %v6834 = vpop.f32.mrb[0].mxu0
    %v6835 = vpop.f32.mrb[0].mxu0
    %v6836 = vpop.f32.mrb[0].mxu0
    %6837 = vdwg.mxu0
    %v6838 = vadd.f32 %v6727, %v6833
    %s6839 = scalar_lea.vmem %s6, 320
    %v6840 = vld [vmem:[%s6839] sm:$0xf]
    %v6841 = vld [vmem:[%s6839 + $0x4] sm:$0xf]
    %v6842 = vld [vmem:[%s6839 + $0x8] sm:$0xf]
    %v6843 = vld [vmem:[%s6839 + $0xc] sm:$0xf]
    %v6844 = vld [vmem:[%s6839 + $0x10] sm:$0xf]
    %v6845 = vld [vmem:[%s6839 + $0x14] sm:$0xf]
    %v6846 = vld [vmem:[%s6839 + $0x18] sm:$0xf]
    %v6847 = vld [vmem:[%s6839 + $0x1c] sm:$0xf]
    %v6848 = vld [vmem:[%s6839 + $0x20] sm:$0xf]
    %v6849 = vld [vmem:[%s6839 + $0x24] sm:$0xf]
    %v6850 = vld [vmem:[%s6839 + $0x28] sm:$0xf]
    %v6851 = vld [vmem:[%s6839 + $0x2c] sm:$0xf]
    %v6852 = vld [vmem:[%s6839 + $0x30] sm:$0xf]
    %v6853 = vld [vmem:[%s6839 + $0x34] sm:$0xf]
    %v6854 = vld [vmem:[%s6839 + $0x38] sm:$0xf]
    %v6855 = vld [vmem:[%s6839 + $0x3c] sm:$0xf]
    %v6856 = vrot.slane %v6319, 5
    %v6857 = vrot.slane %v6320, 4
    %v6858 = vsel %vm6322, %v6857, %v6856
    %v6859 = vpack.c.b16 %v6858, %v6858
    %v6877 = vunpack.c.l.b16 %v6840
    %v6878 = vunpack.c.l.b16 %v6841
    %v6879 = vunpack.c.l.b16 %v6842
    %v6880 = vunpack.c.l.b16 %v6843
    %v6881 = vunpack.c.l.b16 %v6844
    %v6882 = vunpack.c.l.b16 %v6845
    %v6883 = vunpack.c.l.b16 %v6846
    %v6884 = vunpack.c.l.b16 %v6847
    %v6885 = vunpack.c.l.b16 %v6848
    %v6886 = vunpack.c.l.b16 %v6849
    %v6887 = vunpack.c.l.b16 %v6850
    %v6888 = vunpack.c.l.b16 %v6851
    %v6889 = vunpack.c.l.b16 %v6852
    %v6890 = vunpack.c.l.b16 %v6853
    %v6891 = vunpack.c.l.b16 %v6854
    %v6892 = vunpack.c.l.b16 %v6855
    %v6893 = vpack.c.b16 %v6878, %v6877
    %v6894 = vpack.c.b16 %v6880, %v6879
    %v6895 = vpack.c.b16 %v6882, %v6881
    %v6896 = vpack.c.b16 %v6884, %v6883
    %v6897 = vpack.c.b16 %v6886, %v6885
    %v6898 = vpack.c.b16 %v6888, %v6887
    %v6899 = vpack.c.b16 %v6890, %v6889
    %v6900 = vpack.c.b16 %v6892, %v6891
    %6909 = vmatprep.subr.bf16.mxu0 0
    %6910 = vmatpush1.bf16.msra.mxu0 %v6893
    %6911 = vmatprep.subr.bf16.mxu0 0
    %6912 = vmatpush1.bf16.msra.mxu0 %v6894
    %6913 = vmatprep.subr.bf16.mxu0 0
    %6914 = vmatpush1.bf16.msra.mxu0 %v6895
    %6915 = vmatprep.subr.bf16.mxu0 0
    %6916 = vmatpush1.bf16.msra.mxu0 %v6896
    %6917 = vmatprep.subr.bf16.mxu0 0
    %6918 = vmatpush1.bf16.msra.mxu0 %v6897
    %6919 = vmatprep.subr.bf16.mxu0 0
    %6920 = vmatpush1.bf16.msra.mxu0 %v6898
    %6921 = vmatprep.subr.bf16.mxu0 0
    %6922 = vmatpush1.bf16.msra.mxu0 %v6899
    %6923 = vmatprep.subr.bf16.mxu0 0
    %6924 = vmatpush1.bf16.msra.mxu0 %v6900
    %6925 = vmatprep.subr.bf16.mxu0 0
    %6926 = vmatpush1.bf16.msra.mxu0 0
    %6927 = vmatprep.subr.bf16.mxu0 0
    %6928 = vmatpush1.bf16.msra.mxu0 0
    %6929 = vmatprep.subr.bf16.mxu0 0
    %6930 = vmatpush1.bf16.msra.mxu0 0
    %6931 = vmatprep.subr.bf16.mxu0 0
    %6932 = vmatpush1.bf16.msra.mxu0 0
    %6933 = vmatprep.subr.bf16.mxu0 0
    %6934 = vmatpush1.bf16.msra.mxu0 0
    %6935 = vmatprep.subr.bf16.mxu0 0
    %6936 = vmatpush1.bf16.msra.mxu0 0
    %6937 = vmatprep.subr.bf16.mxu0 0
    %6938 = vmatpush1.bf16.msra.mxu0 0
    %6939 = vmatprep.subr.bf16.mxu0 0
    %6940 = vmatpush1.bf16.msra.mxu0 0
    %6941 = vmatprep.mubr.bf16.mxu0 0
    %6942 = vmatmul.mubr.bf16.gmra.mrb[0].mxu0 %v6859
    %v6943 = vpop.f32.mrb[0].mxu0
    %v6944 = vadd.f32 0.0, %v6943
    %v6945 = vpop.f32.mrb[0].mxu0
    %v6946 = vpop.f32.mrb[0].mxu0
    %v6947 = vpop.f32.mrb[0].mxu0
    %6948 = vdwg.mxu0
    %v6949 = vadd.f32 %v6838, %v6944
    %s6950 = scalar_lea.vmem %s6, 384
    %v6951 = vld [vmem:[%s6950] sm:$0xf]
    %v6952 = vld [vmem:[%s6950 + $0x4] sm:$0xf]
    %v6953 = vld [vmem:[%s6950 + $0x8] sm:$0xf]
    %v6954 = vld [vmem:[%s6950 + $0xc] sm:$0xf]
    %v6955 = vld [vmem:[%s6950 + $0x10] sm:$0xf]
    %v6956 = vld [vmem:[%s6950 + $0x14] sm:$0xf]
    %v6957 = vld [vmem:[%s6950 + $0x18] sm:$0xf]
    %v6958 = vld [vmem:[%s6950 + $0x1c] sm:$0xf]
    %v6959 = vld [vmem:[%s6950 + $0x20] sm:$0xf]
    %v6960 = vld [vmem:[%s6950 + $0x24] sm:$0xf]
    %v6961 = vld [vmem:[%s6950 + $0x28] sm:$0xf]
    %v6962 = vld [vmem:[%s6950 + $0x2c] sm:$0xf]
    %v6963 = vld [vmem:[%s6950 + $0x30] sm:$0xf]
    %v6964 = vld [vmem:[%s6950 + $0x34] sm:$0xf]
    %v6965 = vld [vmem:[%s6950 + $0x38] sm:$0xf]
    %v6966 = vld [vmem:[%s6950 + $0x3c] sm:$0xf]
    %v6967 = vrot.slane %v6319, 6
    %v6968 = vrot.slane %v6320, 5
    %v6969 = vsel %vm6322, %v6968, %v6967
    %v6970 = vpack.c.b16 %v6969, %v6969
    %v6988 = vunpack.c.l.b16 %v6951
    %v6989 = vunpack.c.l.b16 %v6952
    %v6990 = vunpack.c.l.b16 %v6953
    %v6991 = vunpack.c.l.b16 %v6954
    %v6992 = vunpack.c.l.b16 %v6955
    %v6993 = vunpack.c.l.b16 %v6956
    %v6994 = vunpack.c.l.b16 %v6957
    %v6995 = vunpack.c.l.b16 %v6958
    %v6996 = vunpack.c.l.b16 %v6959
    %v6997 = vunpack.c.l.b16 %v6960
    %v6998 = vunpack.c.l.b16 %v6961
    %v6999 = vunpack.c.l.b16 %v6962
    %v7000 = vunpack.c.l.b16 %v6963
    %v7001 = vunpack.c.l.b16 %v6964
    %v7002 = vunpack.c.l.b16 %v6965
    %v7003 = vunpack.c.l.b16 %v6966
    %v7004 = vpack.c.b16 %v6989, %v6988
    %v7005 = vpack.c.b16 %v6991, %v6990
    %v7006 = vpack.c.b16 %v6993, %v6992
    %v7007 = vpack.c.b16 %v6995, %v6994
    %v7008 = vpack.c.b16 %v6997, %v6996
    %v7009 = vpack.c.b16 %v6999, %v6998
    %v7010 = vpack.c.b16 %v7001, %v7000
    %v7011 = vpack.c.b16 %v7003, %v7002
    %7020 = vmatprep.subr.bf16.mxu0 0
    %7021 = vmatpush1.bf16.msra.mxu0 %v7004
    %7022 = vmatprep.subr.bf16.mxu0 0
    %7023 = vmatpush1.bf16.msra.mxu0 %v7005
    %7024 = vmatprep.subr.bf16.mxu0 0
    %7025 = vmatpush1.bf16.msra.mxu0 %v7006
    %7026 = vmatprep.subr.bf16.mxu0 0
    %7027 = vmatpush1.bf16.msra.mxu0 %v7007
    %7028 = vmatprep.subr.bf16.mxu0 0
    %7029 = vmatpush1.bf16.msra.mxu0 %v7008
    %7030 = vmatprep.subr.bf16.mxu0 0
    %7031 = vmatpush1.bf16.msra.mxu0 %v7009
    %7032 = vmatprep.subr.bf16.mxu0 0
    %7033 = vmatpush1.bf16.msra.mxu0 %v7010
    %7034 = vmatprep.subr.bf16.mxu0 0
    %7035 = vmatpush1.bf16.msra.mxu0 %v7011
    %7036 = vmatprep.subr.bf16.mxu0 0
    %7037 = vmatpush1.bf16.msra.mxu0 0
    %7038 = vmatprep.subr.bf16.mxu0 0
    %7039 = vmatpush1.bf16.msra.mxu0 0
    %7040 = vmatprep.subr.bf16.mxu0 0
    %7041 = vmatpush1.bf16.msra.mxu0 0
    %7042 = vmatprep.subr.bf16.mxu0 0
    %7043 = vmatpush1.bf16.msra.mxu0 0
    %7044 = vmatprep.subr.bf16.mxu0 0
    %7045 = vmatpush1.bf16.msra.mxu0 0
    %7046 = vmatprep.subr.bf16.mxu0 0
    %7047 = vmatpush1.bf16.msra.mxu0 0
    %7048 = vmatprep.subr.bf16.mxu0 0
    %7049 = vmatpush1.bf16.msra.mxu0 0
    %7050 = vmatprep.subr.bf16.mxu0 0
    %7051 = vmatpush1.bf16.msra.mxu0 0
    %7052 = vmatprep.mubr.bf16.mxu0 0
    %7053 = vmatmul.mubr.bf16.gmra.mrb[0].mxu0 %v6970
    %v7054 = vpop.f32.mrb[0].mxu0
    %v7055 = vadd.f32 0.0, %v7054
    %v7056 = vpop.f32.mrb[0].mxu0
    %v7057 = vpop.f32.mrb[0].mxu0
    %v7058 = vpop.f32.mrb[0].mxu0
    %7059 = vdwg.mxu0
    %v7060 = vadd.f32 %v6949, %v7055
    %s7061 = scalar_lea.vmem %s6, 448
    %v7062 = vld [vmem:[%s7061] sm:$0xf]
    %v7063 = vld [vmem:[%s7061 + $0x4] sm:$0xf]
    %v7064 = vld [vmem:[%s7061 + $0x8] sm:$0xf]
    %v7065 = vld [vmem:[%s7061 + $0xc] sm:$0xf]
    %v7066 = vld [vmem:[%s7061 + $0x10] sm:$0xf]
    %v7067 = vld [vmem:[%s7061 + $0x14] sm:$0xf]
    %v7068 = vld [vmem:[%s7061 + $0x18] sm:$0xf]
    %v7069 = vld [vmem:[%s7061 + $0x1c] sm:$0xf]
    %v7070 = vld [vmem:[%s7061 + $0x20] sm:$0xf]
    %v7071 = vld [vmem:[%s7061 + $0x24] sm:$0xf]
    %v7072 = vld [vmem:[%s7061 + $0x28] sm:$0xf]
    %v7073 = vld [vmem:[%s7061 + $0x2c] sm:$0xf]
    %v7074 = vld [vmem:[%s7061 + $0x30] sm:$0xf]
    %v7075 = vld [vmem:[%s7061 + $0x34] sm:$0xf]
    %v7076 = vld [vmem:[%s7061 + $0x38] sm:$0xf]
    %v7077 = vld [vmem:[%s7061 + $0x3c] sm:$0xf]
    %v7078 = vrot.slane %v6319, 7
    %v7079 = vrot.slane %v6320, 6
    %v7080 = vsel %vm6322, %v7079, %v7078
    %v7081 = vpack.c.b16 %v7080, %v7080
    %v7099 = vunpack.c.l.b16 %v7062
    %v7100 = vunpack.c.l.b16 %v7063
    %v7101 = vunpack.c.l.b16 %v7064
    %v7102 = vunpack.c.l.b16 %v7065
    %v7103 = vunpack.c.l.b16 %v7066
    %v7104 = vunpack.c.l.b16 %v7067
    %v7105 = vunpack.c.l.b16 %v7068
    %v7106 = vunpack.c.l.b16 %v7069
    %v7107 = vunpack.c.l.b16 %v7070
    %v7108 = vunpack.c.l.b16 %v7071
    %v7109 = vunpack.c.l.b16 %v7072
    %v7110 = vunpack.c.l.b16 %v7073
    %v7111 = vunpack.c.l.b16 %v7074
    %v7112 = vunpack.c.l.b16 %v7075
    %v7113 = vunpack.c.l.b16 %v7076
    %v7114 = vunpack.c.l.b16 %v7077
    %v7115 = vpack.c.b16 %v7100, %v7099
    %v7116 = vpack.c.b16 %v7102, %v7101
    %v7117 = vpack.c.b16 %v7104, %v7103
    %v7118 = vpack.c.b16 %v7106, %v7105
    %v7119 = vpack.c.b16 %v7108, %v7107
    %v7120 = vpack.c.b16 %v7110, %v7109
    %v7121 = vpack.c.b16 %v7112, %v7111
    %v7122 = vpack.c.b16 %v7114, %v7113
    %7131 = vmatprep.subr.bf16.mxu0 0
    %7132 = vmatpush1.bf16.msra.mxu0 %v7115
    %7133 = vmatprep.subr.bf16.mxu0 0
    %7134 = vmatpush1.bf16.msra.mxu0 %v7116
    %7135 = vmatprep.subr.bf16.mxu0 0
    %7136 = vmatpush1.bf16.msra.mxu0 %v7117
    %7137 = vmatprep.subr.bf16.mxu0 0
    %7138 = vmatpush1.bf16.msra.mxu0 %v7118
    %7139 = vmatprep.subr.bf16.mxu0 0
    %7140 = vmatpush1.bf16.msra.mxu0 %v7119
    %7141 = vmatprep.subr.bf16.mxu0 0
    %7142 = vmatpush1.bf16.msra.mxu0 %v7120
    %7143 = vmatprep.subr.bf16.mxu0 0
    %7144 = vmatpush1.bf16.msra.mxu0 %v7121
    %7145 = vmatprep.subr.bf16.mxu0 0
    %7146 = vmatpush1.bf16.msra.mxu0 %v7122
    %7147 = vmatprep.subr.bf16.mxu0 0
    %7148 = vmatpush1.bf16.msra.mxu0 0
    %7149 = vmatprep.subr.bf16.mxu0 0
    %7150 = vmatpush1.bf16.msra.mxu0 0
    %7151 = vmatprep.subr.bf16.mxu0 0
    %7152 = vmatpush1.bf16.msra.mxu0 0
    %7153 = vmatprep.subr.bf16.mxu0 0
    %7154 = vmatpush1.bf16.msra.mxu0 0
    %7155 = vmatprep.subr.bf16.mxu0 0
    %7156 = vmatpush1.bf16.msra.mxu0 0
    %7157 = vmatprep.subr.bf16.mxu0 0
    %7158 = vmatpush1.bf16.msra.mxu0 0
    %7159 = vmatprep.subr.bf16.mxu0 0
    %7160 = vmatpush1.bf16.msra.mxu0 0
    %7161 = vmatprep.subr.bf16.mxu0 0
    %7162 = vmatpush1.bf16.msra.mxu0 0
    %7163 = vmatprep.mubr.bf16.mxu0 0
    %7164 = vmatmul.mubr.bf16.gmra.mrb[0].mxu0 %v7081
    %v7165 = vpop.f32.mrb[0].mxu0
    %v7166 = vadd.f32 0.0, %v7165
    %v7167 = vpop.f32.mrb[0].mxu0
    %v7168 = vpop.f32.mrb[0].mxu0
    %v7169 = vpop.f32.mrb[0].mxu0
    %7170 = vdwg.mxu0
    %v7171 = vadd.f32 %v7060, %v7166
    %s7172 = scalar_lea.vmem %s6, 512
    %v7173 = vld [vmem:[%s7172] sm:$0xf]
    %v7174 = vld [vmem:[%s7172 + $0x4] sm:$0xf]
    %v7175 = vld [vmem:[%s7172 + $0x8] sm:$0xf]
    %v7176 = vld [vmem:[%s7172 + $0xc] sm:$0xf]
    %v7177 = vld [vmem:[%s7172 + $0x10] sm:$0xf]
    %v7178 = vld [vmem:[%s7172 + $0x14] sm:$0xf]
    %v7179 = vld [vmem:[%s7172 + $0x18] sm:$0xf]
    %v7180 = vld [vmem:[%s7172 + $0x1c] sm:$0xf]
    %v7181 = vld [vmem:[%s7172 + $0x20] sm:$0xf]
    %v7182 = vld [vmem:[%s7172 + $0x24] sm:$0xf]
    %v7183 = vld [vmem:[%s7172 + $0x28] sm:$0xf]
    %v7184 = vld [vmem:[%s7172 + $0x2c] sm:$0xf]
    %v7185 = vld [vmem:[%s7172 + $0x30] sm:$0xf]
    %v7186 = vld [vmem:[%s7172 + $0x34] sm:$0xf]
    %v7187 = vld [vmem:[%s7172 + $0x38] sm:$0xf]
    %v7188 = vld [vmem:[%s7172 + $0x3c] sm:$0xf]
    %v7189 = vunpack.c.h.b16 %v6282
    %v7190 = vunpack.c.h.b16 %v6283
    %v7191 = vrot.slane %v7190, 7
    %v7192 = vsel %vm6322, %v7191, %v7189
    %v7193 = vpack.c.b16 %v7192, %v7192
    %v7211 = vunpack.c.l.b16 %v7173
    %v7212 = vunpack.c.l.b16 %v7174
    %v7213 = vunpack.c.l.b16 %v7175
    %v7214 = vunpack.c.l.b16 %v7176
    %v7215 = vunpack.c.l.b16 %v7177
    %v7216 = vunpack.c.l.b16 %v7178
    %v7217 = vunpack.c.l.b16 %v7179
    %v7218 = vunpack.c.l.b16 %v7180
    %v7219 = vunpack.c.l.b16 %v7181
    %v7220 = vunpack.c.l.b16 %v7182
    %v7221 = vunpack.c.l.b16 %v7183
    %v7222 = vunpack.c.l.b16 %v7184
    %v7223 = vunpack.c.l.b16 %v7185
    %v7224 = vunpack.c.l.b16 %v7186
    %v7225 = vunpack.c.l.b16 %v7187
    %v7226 = vunpack.c.l.b16 %v7188
    %v7227 = vpack.c.b16 %v7212, %v7211
    %v7228 = vpack.c.b16 %v7214, %v7213
    %v7229 = vpack.c.b16 %v7216, %v7215
    %v7230 = vpack.c.b16 %v7218, %v7217
    %v7231 = vpack.c.b16 %v7220, %v7219
    %v7232 = vpack.c.b16 %v7222, %v7221
    %v7233 = vpack.c.b16 %v7224, %v7223
    %v7234 = vpack.c.b16 %v7226, %v7225
    %7243 = vmatprep.subr.bf16.mxu0 0
    %7244 = vmatpush1.bf16.msra.mxu0 %v7227
    %7245 = vmatprep.subr.bf16.mxu0 0
    %7246 = vmatpush1.bf16.msra.mxu0 %v7228
    %7247 = vmatprep.subr.bf16.mxu0 0
    %7248 = vmatpush1.bf16.msra.mxu0 %v7229
    %7249 = vmatprep.subr.bf16.mxu0 0
    %7250 = vmatpush1.bf16.msra.mxu0 %v7230
    %7251 = vmatprep.subr.bf16.mxu0 0
    %7252 = vmatpush1.bf16.msra.mxu0 %v7231
    %7253 = vmatprep.subr.bf16.mxu0 0
    %7254 = vmatpush1.bf16.msra.mxu0 %v7232
    %7255 = vmatprep.subr.bf16.mxu0 0
    %7256 = vmatpush1.bf16.msra.mxu0 %v7233
    %7257 = vmatprep.subr.bf16.mxu0 0
    %7258 = vmatpush1.bf16.msra.mxu0 %v7234
    %7259 = vmatprep.subr.bf16.mxu0 0
    %7260 = vmatpush1.bf16.msra.mxu0 0
    %7261 = vmatprep.subr.bf16.mxu0 0
    %7262 = vmatpush1.bf16.msra.mxu0 0
    %7263 = vmatprep.subr.bf16.mxu0 0
    %7264 = vmatpush1.bf16.msra.mxu0 0
    %7265 = vmatprep.subr.bf16.mxu0 0
    %7266 = vmatpush1.bf16.msra.mxu0 0
    %7267 = vmatprep.subr.bf16.mxu0 0
    %7268 = vmatpush1.bf16.msra.mxu0 0
    %7269 = vmatprep.subr.bf16.mxu0 0
    %7270 = vmatpush1.bf16.msra.mxu0 0
    %7271 = vmatprep.subr.bf16.mxu0 0
    %7272 = vmatpush1.bf16.msra.mxu0 0
    %7273 = vmatprep.subr.bf16.mxu0 0
    %7274 = vmatpush1.bf16.msra.mxu0 0
    %7275 = vmatprep.mubr.bf16.mxu0 0
    %7276 = vmatmul.mubr.bf16.gmra.mrb[0].mxu0 %v7193
    %v7277 = vpop.f32.mrb[0].mxu0
    %v7278 = vadd.f32 0.0, %v7277
    %v7279 = vpop.f32.mrb[0].mxu0
    %v7280 = vpop.f32.mrb[0].mxu0
    %v7281 = vpop.f32.mrb[0].mxu0
    %7282 = vdwg.mxu0
    %v7283 = vadd.f32 %v7171, %v7278
    %s7284 = scalar_lea.vmem %s6, 576
    %v7285 = vld [vmem:[%s7284] sm:$0xf]
    %v7286 = vld [vmem:[%s7284 + $0x4] sm:$0xf]
    %v7287 = vld [vmem:[%s7284 + $0x8] sm:$0xf]
    %v7288 = vld [vmem:[%s7284 + $0xc] sm:$0xf]
    %v7289 = vld [vmem:[%s7284 + $0x10] sm:$0xf]
    %v7290 = vld [vmem:[%s7284 + $0x14] sm:$0xf]
    %v7291 = vld [vmem:[%s7284 + $0x18] sm:$0xf]
    %v7292 = vld [vmem:[%s7284 + $0x1c] sm:$0xf]
    %v7293 = vld [vmem:[%s7284 + $0x20] sm:$0xf]
    %v7294 = vld [vmem:[%s7284 + $0x24] sm:$0xf]
    %v7295 = vld [vmem:[%s7284 + $0x28] sm:$0xf]
    %v7296 = vld [vmem:[%s7284 + $0x2c] sm:$0xf]
    %v7297 = vld [vmem:[%s7284 + $0x30] sm:$0xf]
    %v7298 = vld [vmem:[%s7284 + $0x34] sm:$0xf]
    %v7299 = vld [vmem:[%s7284 + $0x38] sm:$0xf]
    %v7300 = vld [vmem:[%s7284 + $0x3c] sm:$0xf]
    %v7301 = vrot.slane %v7189, 1
    %v7302 = vsel %vm6322, %v7190, %v7301
    %v7303 = vpack.c.b16 %v7302, %v7302
    %v7321 = vunpack.c.l.b16 %v7285
    %v7322 = vunpack.c.l.b16 %v7286
    %v7323 = vunpack.c.l.b16 %v7287
    %v7324 = vunpack.c.l.b16 %v7288
    %v7325 = vunpack.c.l.b16 %v7289
    %v7326 = vunpack.c.l.b16 %v7290
    %v7327 = vunpack.c.l.b16 %v7291
    %v7328 = vunpack.c.l.b16 %v7292
    %v7329 = vunpack.c.l.b16 %v7293
    %v7330 = vunpack.c.l.b16 %v7294
    %v7331 = vunpack.c.l.b16 %v7295
    %v7332 = vunpack.c.l.b16 %v7296
    %v7333 = vunpack.c.l.b16 %v7297
    %v7334 = vunpack.c.l.b16 %v7298
    %v7335 = vunpack.c.l.b16 %v7299
    %v7336 = vunpack.c.l.b16 %v7300
    %v7337 = vpack.c.b16 %v7322, %v7321
    %v7338 = vpack.c.b16 %v7324, %v7323
    %v7339 = vpack.c.b16 %v7326, %v7325
    %v7340 = vpack.c.b16 %v7328, %v7327
    %v7341 = vpack.c.b16 %v7330, %v7329
    %v7342 = vpack.c.b16 %v7332, %v7331
    %v7343 = vpack.c.b16 %v7334, %v7333
    %v7344 = vpack.c.b16 %v7336, %v7335
    %7353 = vmatprep.subr.bf16.mxu0 0
    %7354 = vmatpush1.bf16.msra.mxu0 %v7337
    %7355 = vmatprep.subr.bf16.mxu0 0
    %7356 = vmatpush1.bf16.msra.mxu0 %v7338
    %7357 = vmatprep.subr.bf16.mxu0 0
    %7358 = vmatpush1.bf16.msra.mxu0 %v7339
    %7359 = vmatprep.subr.bf16.mxu0 0
    %7360 = vmatpush1.bf16.msra.mxu0 %v7340
    %7361 = vmatprep.subr.bf16.mxu0 0
    %7362 = vmatpush1.bf16.msra.mxu0 %v7341
    %7363 = vmatprep.subr.bf16.mxu0 0
    %7364 = vmatpush1.bf16.msra.mxu0 %v7342
    %7365 = vmatprep.subr.bf16.mxu0 0
    %7366 = vmatpush1.bf16.msra.mxu0 %v7343
    %7367 = vmatprep.subr.bf16.mxu0 0
    %7368 = vmatpush1.bf16.msra.mxu0 %v7344
    %7369 = vmatprep.subr.bf16.mxu0 0
    %7370 = vmatpush1.bf16.msra.mxu0 0
    %7371 = vmatprep.subr.bf16.mxu0 0
    %7372 = vmatpush1.bf16.msra.mxu0 0
    %7373 = vmatprep.subr.bf16.mxu0 0
    %7374 = vmatpush1.bf16.msra.mxu0 0
    %7375 = vmatprep.subr.bf16.mxu0 0
    %7376 = vmatpush1.bf16.msra.mxu0 0
    %7377 = vmatprep.subr.bf16.mxu0 0
    %7378 = vmatpush1.bf16.msra.mxu0 0
    %7379 = vmatprep.subr.bf16.mxu0 0
    %7380 = vmatpush1.bf16.msra.mxu0 0
    %7381 = vmatprep.subr.bf16.mxu0 0
    %7382 = vmatpush1.bf16.msra.mxu0 0
    %7383 = vmatprep.subr.bf16.mxu0 0
    %7384 = vmatpush1.bf16.msra.mxu0 0
    %7385 = vmatprep.mubr.bf16.mxu0 0
    %7386 = vmatmul.mubr.bf16.gmra.mrb[0].mxu0 %v7303
    %v7387 = vpop.f32.mrb[0].mxu0
    %v7388 = vadd.f32 0.0, %v7387
    %v7389 = vpop.f32.mrb[0].mxu0
    %v7390 = vpop.f32.mrb[0].mxu0
    %v7391 = vpop.f32.mrb[0].mxu0
    %7392 = vdwg.mxu0
    %v7393 = vadd.f32 %v7283, %v7388
    %s7394 = scalar_lea.vmem %s6, 640
    %v7395 = vld [vmem:[%s7394] sm:$0xf]
    %v7396 = vld [vmem:[%s7394 + $0x4] sm:$0xf]
    %v7397 = vld [vmem:[%s7394 + $0x8] sm:$0xf]
    %v7398 = vld [vmem:[%s7394 + $0xc] sm:$0xf]
    %v7399 = vld [vmem:[%s7394 + $0x10] sm:$0xf]
    %v7400 = vld [vmem:[%s7394 + $0x14] sm:$0xf]
    %v7401 = vld [vmem:[%s7394 + $0x18] sm:$0xf]
    %v7402 = vld [vmem:[%s7394 + $0x1c] sm:$0xf]
    %v7403 = vld [vmem:[%s7394 + $0x20] sm:$0xf]
    %v7404 = vld [vmem:[%s7394 + $0x24] sm:$0xf]
    %v7405 = vld [vmem:[%s7394 + $0x28] sm:$0xf]
    %v7406 = vld [vmem:[%s7394 + $0x2c] sm:$0xf]
    %v7407 = vld [vmem:[%s7394 + $0x30] sm:$0xf]
    %v7408 = vld [vmem:[%s7394 + $0x34] sm:$0xf]
    %v7409 = vld [vmem:[%s7394 + $0x38] sm:$0xf]
    %v7410 = vld [vmem:[%s7394 + $0x3c] sm:$0xf]
    %v7411 = vrot.slane %v7189, 2
    %v7412 = vrot.slane %v7190, 1
    %v7413 = vsel %vm6322, %v7412, %v7411
    %v7414 = vpack.c.b16 %v7413, %v7413
    %v7432 = vunpack.c.l.b16 %v7395
    %v7433 = vunpack.c.l.b16 %v7396
    %v7434 = vunpack.c.l.b16 %v7397
    %v7435 = vunpack.c.l.b16 %v7398
    %v7436 = vunpack.c.l.b16 %v7399
    %v7437 = vunpack.c.l.b16 %v7400
    %v7438 = vunpack.c.l.b16 %v7401
    %v7439 = vunpack.c.l.b16 %v7402
    %v7440 = vunpack.c.l.b16 %v7403
    %v7441 = vunpack.c.l.b16 %v7404
    %v7442 = vunpack.c.l.b16 %v7405
    %v7443 = vunpack.c.l.b16 %v7406
    %v7444 = vunpack.c.l.b16 %v7407
    %v7445 = vunpack.c.l.b16 %v7408
    %v7446 = vunpack.c.l.b16 %v7409
    %v7447 = vunpack.c.l.b16 %v7410
    %v7448 = vpack.c.b16 %v7433, %v7432
    %v7449 = vpack.c.b16 %v7435, %v7434
    %v7450 = vpack.c.b16 %v7437, %v7436
    %v7451 = vpack.c.b16 %v7439, %v7438
    %v7452 = vpack.c.b16 %v7441, %v7440
    %v7453 = vpack.c.b16 %v7443, %v7442
    %v7454 = vpack.c.b16 %v7445, %v7444
    %v7455 = vpack.c.b16 %v7447, %v7446
    %7464 = vmatprep.subr.bf16.mxu0 0
    %7465 = vmatpush1.bf16.msra.mxu0 %v7448
    %7466 = vmatprep.subr.bf16.mxu0 0
    %7467 = vmatpush1.bf16.msra.mxu0 %v7449
    %7468 = vmatprep.subr.bf16.mxu0 0
    %7469 = vmatpush1.bf16.msra.mxu0 %v7450
    %7470 = vmatprep.subr.bf16.mxu0 0
    %7471 = vmatpush1.bf16.msra.mxu0 %v7451
    %7472 = vmatprep.subr.bf16.mxu0 0
    %7473 = vmatpush1.bf16.msra.mxu0 %v7452
    %7474 = vmatprep.subr.bf16.mxu0 0
    %7475 = vmatpush1.bf16.msra.mxu0 %v7453
    %7476 = vmatprep.subr.bf16.mxu0 0
    %7477 = vmatpush1.bf16.msra.mxu0 %v7454
    %7478 = vmatprep.subr.bf16.mxu0 0
    %7479 = vmatpush1.bf16.msra.mxu0 %v7455
    %7480 = vmatprep.subr.bf16.mxu0 0
    %7481 = vmatpush1.bf16.msra.mxu0 0
    %7482 = vmatprep.subr.bf16.mxu0 0
    %7483 = vmatpush1.bf16.msra.mxu0 0
    %7484 = vmatprep.subr.bf16.mxu0 0
    %7485 = vmatpush1.bf16.msra.mxu0 0
    %7486 = vmatprep.subr.bf16.mxu0 0
    %7487 = vmatpush1.bf16.msra.mxu0 0
    %7488 = vmatprep.subr.bf16.mxu0 0
    %7489 = vmatpush1.bf16.msra.mxu0 0
    %7490 = vmatprep.subr.bf16.mxu0 0
    %7491 = vmatpush1.bf16.msra.mxu0 0
    %7492 = vmatprep.subr.bf16.mxu0 0
    %7493 = vmatpush1.bf16.msra.mxu0 0
    %7494 = vmatprep.subr.bf16.mxu0 0
    %7495 = vmatpush1.bf16.msra.mxu0 0
    %7496 = vmatprep.mubr.bf16.mxu0 0
    %7497 = vmatmul.mubr.bf16.gmra.mrb[0].mxu0 %v7414
    %v7498 = vpop.f32.mrb[0].mxu0
    %v7499 = vadd.f32 0.0, %v7498
    %v7500 = vpop.f32.mrb[0].mxu0
    %v7501 = vpop.f32.mrb[0].mxu0
    %v7502 = vpop.f32.mrb[0].mxu0
    %7503 = vdwg.mxu0
    %v7504 = vadd.f32 %v7393, %v7499
    %s7505 = scalar_lea.vmem %s6, 704
    %v7506 = vld [vmem:[%s7505] sm:$0xf]
    %v7507 = vld [vmem:[%s7505 + $0x4] sm:$0xf]
    %v7508 = vld [vmem:[%s7505 + $0x8] sm:$0xf]
    %v7509 = vld [vmem:[%s7505 + $0xc] sm:$0xf]
    %v7510 = vld [vmem:[%s7505 + $0x10] sm:$0xf]
    %v7511 = vld [vmem:[%s7505 + $0x14] sm:$0xf]
    %v7512 = vld [vmem:[%s7505 + $0x18] sm:$0xf]
    %v7513 = vld [vmem:[%s7505 + $0x1c] sm:$0xf]
    %v7514 = vld [vmem:[%s7505 + $0x20] sm:$0xf]
    %v7515 = vld [vmem:[%s7505 + $0x24] sm:$0xf]
    %v7516 = vld [vmem:[%s7505 + $0x28] sm:$0xf]
    %v7517 = vld [vmem:[%s7505 + $0x2c] sm:$0xf]
    %v7518 = vld [vmem:[%s7505 + $0x30] sm:$0xf]
    %v7519 = vld [vmem:[%s7505 + $0x34] sm:$0xf]
    %v7520 = vld [vmem:[%s7505 + $0x38] sm:$0xf]
    %v7521 = vld [vmem:[%s7505 + $0x3c] sm:$0xf]
    %v7522 = vrot.slane %v7189, 3
    %v7523 = vrot.slane %v7190, 2
    %v7524 = vsel %vm6322, %v7523, %v7522
    %v7525 = vpack.c.b16 %v7524, %v7524
    %v7543 = vunpack.c.l.b16 %v7506
    %v7544 = vunpack.c.l.b16 %v7507
    %v7545 = vunpack.c.l.b16 %v7508
    %v7546 = vunpack.c.l.b16 %v7509
    %v7547 = vunpack.c.l.b16 %v7510
    %v7548 = vunpack.c.l.b16 %v7511
    %v7549 = vunpack.c.l.b16 %v7512
    %v7550 = vunpack.c.l.b16 %v7513
    %v7551 = vunpack.c.l.b16 %v7514
    %v7552 = vunpack.c.l.b16 %v7515
    %v7553 = vunpack.c.l.b16 %v7516
    %v7554 = vunpack.c.l.b16 %v7517
    %v7555 = vunpack.c.l.b16 %v7518
    %v7556 = vunpack.c.l.b16 %v7519
    %v7557 = vunpack.c.l.b16 %v7520
    %v7558 = vunpack.c.l.b16 %v7521
    %v7559 = vpack.c.b16 %v7544, %v7543
    %v7560 = vpack.c.b16 %v7546, %v7545
    %v7561 = vpack.c.b16 %v7548, %v7547
    %v7562 = vpack.c.b16 %v7550, %v7549
    %v7563 = vpack.c.b16 %v7552, %v7551
    %v7564 = vpack.c.b16 %v7554, %v7553
    %v7565 = vpack.c.b16 %v7556, %v7555
    %v7566 = vpack.c.b16 %v7558, %v7557
    %7575 = vmatprep.subr.bf16.mxu0 0
    %7576 = vmatpush1.bf16.msra.mxu0 %v7559
    %7577 = vmatprep.subr.bf16.mxu0 0
    %7578 = vmatpush1.bf16.msra.mxu0 %v7560
    %7579 = vmatprep.subr.bf16.mxu0 0
    %7580 = vmatpush1.bf16.msra.mxu0 %v7561
    %7581 = vmatprep.subr.bf16.mxu0 0
    %7582 = vmatpush1.bf16.msra.mxu0 %v7562
    %7583 = vmatprep.subr.bf16.mxu0 0
    %7584 = vmatpush1.bf16.msra.mxu0 %v7563
    %7585 = vmatprep.subr.bf16.mxu0 0
    %7586 = vmatpush1.bf16.msra.mxu0 %v7564
    %7587 = vmatprep.subr.bf16.mxu0 0
    %7588 = vmatpush1.bf16.msra.mxu0 %v7565
    %7589 = vmatprep.subr.bf16.mxu0 0
    %7590 = vmatpush1.bf16.msra.mxu0 %v7566
    %7591 = vmatprep.subr.bf16.mxu0 0
    %7592 = vmatpush1.bf16.msra.mxu0 0
    %7593 = vmatprep.subr.bf16.mxu0 0
    %7594 = vmatpush1.bf16.msra.mxu0 0
    %7595 = vmatprep.subr.bf16.mxu0 0
    %7596 = vmatpush1.bf16.msra.mxu0 0
    %7597 = vmatprep.subr.bf16.mxu0 0
    %7598 = vmatpush1.bf16.msra.mxu0 0
    %7599 = vmatprep.subr.bf16.mxu0 0
    %7600 = vmatpush1.bf16.msra.mxu0 0
    %7601 = vmatprep.subr.bf16.mxu0 0
    %7602 = vmatpush1.bf16.msra.mxu0 0
    %7603 = vmatprep.subr.bf16.mxu0 0
    %7604 = vmatpush1.bf16.msra.mxu0 0
    %7605 = vmatprep.subr.bf16.mxu0 0
    %7606 = vmatpush1.bf16.msra.mxu0 0
    %7607 = vmatprep.mubr.bf16.mxu0 0
    %7608 = vmatmul.mubr.bf16.gmra.mrb[0].mxu0 %v7525
    %v7609 = vpop.f32.mrb[0].mxu0
    %v7610 = vadd.f32 0.0, %v7609
    %v7611 = vpop.f32.mrb[0].mxu0
    %v7612 = vpop.f32.mrb[0].mxu0
    %v7613 = vpop.f32.mrb[0].mxu0
    %7614 = vdwg.mxu0
    %v7615 = vadd.f32 %v7504, %v7610
    %s7616 = scalar_lea.vmem %s6, 768
    %v7617 = vld [vmem:[%s7616] sm:$0xf]
    %v7618 = vld [vmem:[%s7616 + $0x4] sm:$0xf]
    %v7619 = vld [vmem:[%s7616 + $0x8] sm:$0xf]
    %v7620 = vld [vmem:[%s7616 + $0xc] sm:$0xf]
    %v7621 = vld [vmem:[%s7616 + $0x10] sm:$0xf]
    %v7622 = vld [vmem:[%s7616 + $0x14] sm:$0xf]
    %v7623 = vld [vmem:[%s7616 + $0x18] sm:$0xf]
    %v7624 = vld [vmem:[%s7616 + $0x1c] sm:$0xf]
    %v7625 = vld [vmem:[%s7616 + $0x20] sm:$0xf]
    %v7626 = vld [vmem:[%s7616 + $0x24] sm:$0xf]
    %v7627 = vld [vmem:[%s7616 + $0x28] sm:$0xf]
    %v7628 = vld [vmem:[%s7616 + $0x2c] sm:$0xf]
    %v7629 = vld [vmem:[%s7616 + $0x30] sm:$0xf]
    %v7630 = vld [vmem:[%s7616 + $0x34] sm:$0xf]
    %v7631 = vld [vmem:[%s7616 + $0x38] sm:$0xf]
    %v7632 = vld [vmem:[%s7616 + $0x3c] sm:$0xf]
    %v7633 = vrot.slane %v7189, 4
    %v7634 = vrot.slane %v7190, 3
    %v7635 = vsel %vm6322, %v7634, %v7633
    %v7636 = vpack.c.b16 %v7635, %v7635
    %v7654 = vunpack.c.l.b16 %v7617
    %v7655 = vunpack.c.l.b16 %v7618
    %v7656 = vunpack.c.l.b16 %v7619
    %v7657 = vunpack.c.l.b16 %v7620
    %v7658 = vunpack.c.l.b16 %v7621
    %v7659 = vunpack.c.l.b16 %v7622
    %v7660 = vunpack.c.l.b16 %v7623
    %v7661 = vunpack.c.l.b16 %v7624
    %v7662 = vunpack.c.l.b16 %v7625
    %v7663 = vunpack.c.l.b16 %v7626
    %v7664 = vunpack.c.l.b16 %v7627
    %v7665 = vunpack.c.l.b16 %v7628
    %v7666 = vunpack.c.l.b16 %v7629
    %v7667 = vunpack.c.l.b16 %v7630
    %v7668 = vunpack.c.l.b16 %v7631
    %v7669 = vunpack.c.l.b16 %v7632
    %v7670 = vpack.c.b16 %v7655, %v7654
    %v7671 = vpack.c.b16 %v7657, %v7656
    %v7672 = vpack.c.b16 %v7659, %v7658
    %v7673 = vpack.c.b16 %v7661, %v7660
    %v7674 = vpack.c.b16 %v7663, %v7662
    %v7675 = vpack.c.b16 %v7665, %v7664
    %v7676 = vpack.c.b16 %v7667, %v7666
    %v7677 = vpack.c.b16 %v7669, %v7668
    %7686 = vmatprep.subr.bf16.mxu0 0
    %7687 = vmatpush1.bf16.msra.mxu0 %v7670
    %7688 = vmatprep.subr.bf16.mxu0 0
    %7689 = vmatpush1.bf16.msra.mxu0 %v7671
    %7690 = vmatprep.subr.bf16.mxu0 0
    %7691 = vmatpush1.bf16.msra.mxu0 %v7672
    %7692 = vmatprep.subr.bf16.mxu0 0
    %7693 = vmatpush1.bf16.msra.mxu0 %v7673
    %7694 = vmatprep.subr.bf16.mxu0 0
    %7695 = vmatpush1.bf16.msra.mxu0 %v7674
    %7696 = vmatprep.subr.bf16.mxu0 0
    %7697 = vmatpush1.bf16.msra.mxu0 %v7675
    %7698 = vmatprep.subr.bf16.mxu0 0
    %7699 = vmatpush1.bf16.msra.mxu0 %v7676
    %7700 = vmatprep.subr.bf16.mxu0 0
    %7701 = vmatpush1.bf16.msra.mxu0 %v7677
    %7702 = vmatprep.subr.bf16.mxu0 0
    %7703 = vmatpush1.bf16.msra.mxu0 0
    %7704 = vmatprep.subr.bf16.mxu0 0
    %7705 = vmatpush1.bf16.msra.mxu0 0
    %7706 = vmatprep.subr.bf16.mxu0 0
    %7707 = vmatpush1.bf16.msra.mxu0 0
    %7708 = vmatprep.subr.bf16.mxu0 0
    %7709 = vmatpush1.bf16.msra.mxu0 0
    %7710 = vmatprep.subr.bf16.mxu0 0
    %7711 = vmatpush1.bf16.msra.mxu0 0
    %7712 = vmatprep.subr.bf16.mxu0 0
    %7713 = vmatpush1.bf16.msra.mxu0 0
    %7714 = vmatprep.subr.bf16.mxu0 0
    %7715 = vmatpush1.bf16.msra.mxu0 0
    %7716 = vmatprep.subr.bf16.mxu0 0
    %7717 = vmatpush1.bf16.msra.mxu0 0
    %7718 = vmatprep.mubr.bf16.mxu0 0
    %7719 = vmatmul.mubr.bf16.gmra.mrb[0].mxu0 %v7636
    %v7720 = vpop.f32.mrb[0].mxu0
    %v7721 = vadd.f32 0.0, %v7720
    %v7722 = vpop.f32.mrb[0].mxu0
    %v7723 = vpop.f32.mrb[0].mxu0
    %v7724 = vpop.f32.mrb[0].mxu0
    %7725 = vdwg.mxu0
    %v7726 = vadd.f32 %v7615, %v7721
    %s7727 = scalar_lea.vmem %s6, 832
    %v7728 = vld [vmem:[%s7727] sm:$0xf]
    %v7729 = vld [vmem:[%s7727 + $0x4] sm:$0xf]
    %v7730 = vld [vmem:[%s7727 + $0x8] sm:$0xf]
    %v7731 = vld [vmem:[%s7727 + $0xc] sm:$0xf]
    %v7732 = vld [vmem:[%s7727 + $0x10] sm:$0xf]
    %v7733 = vld [vmem:[%s7727 + $0x14] sm:$0xf]
    %v7734 = vld [vmem:[%s7727 + $0x18] sm:$0xf]
    %v7735 = vld [vmem:[%s7727 + $0x1c] sm:$0xf]
    %v7736 = vld [vmem:[%s7727 + $0x20] sm:$0xf]
    %v7737 = vld [vmem:[%s7727 + $0x24] sm:$0xf]
    %v7738 = vld [vmem:[%s7727 + $0x28] sm:$0xf]
    %v7739 = vld [vmem:[%s7727 + $0x2c] sm:$0xf]
    %v7740 = vld [vmem:[%s7727 + $0x30] sm:$0xf]
    %v7741 = vld [vmem:[%s7727 + $0x34] sm:$0xf]
    %v7742 = vld [vmem:[%s7727 + $0x38] sm:$0xf]
    %v7743 = vld [vmem:[%s7727 + $0x3c] sm:$0xf]
    %v7744 = vrot.slane %v7189, 5
    %v7745 = vrot.slane %v7190, 4
    %v7746 = vsel %vm6322, %v7745, %v7744
    %v7747 = vpack.c.b16 %v7746, %v7746
    %v7765 = vunpack.c.l.b16 %v7728
    %v7766 = vunpack.c.l.b16 %v7729
    %v7767 = vunpack.c.l.b16 %v7730
    %v7768 = vunpack.c.l.b16 %v7731
    %v7769 = vunpack.c.l.b16 %v7732
    %v7770 = vunpack.c.l.b16 %v7733
    %v7771 = vunpack.c.l.b16 %v7734
    %v7772 = vunpack.c.l.b16 %v7735
    %v7773 = vunpack.c.l.b16 %v7736
    %v7774 = vunpack.c.l.b16 %v7737
    %v7775 = vunpack.c.l.b16 %v7738
    %v7776 = vunpack.c.l.b16 %v7739
    %v7777 = vunpack.c.l.b16 %v7740
    %v7778 = vunpack.c.l.b16 %v7741
    %v7779 = vunpack.c.l.b16 %v7742
    %v7780 = vunpack.c.l.b16 %v7743
    %v7781 = vpack.c.b16 %v7766, %v7765
    %v7782 = vpack.c.b16 %v7768, %v7767
    %v7783 = vpack.c.b16 %v7770, %v7769
    %v7784 = vpack.c.b16 %v7772, %v7771
    %v7785 = vpack.c.b16 %v7774, %v7773
    %v7786 = vpack.c.b16 %v7776, %v7775
    %v7787 = vpack.c.b16 %v7778, %v7777
    %v7788 = vpack.c.b16 %v7780, %v7779
    %7797 = vmatprep.subr.bf16.mxu0 0
    %7798 = vmatpush1.bf16.msra.mxu0 %v7781
    %7799 = vmatprep.subr.bf16.mxu0 0
    %7800 = vmatpush1.bf16.msra.mxu0 %v7782
    %7801 = vmatprep.subr.bf16.mxu0 0
    %7802 = vmatpush1.bf16.msra.mxu0 %v7783
    %7803 = vmatprep.subr.bf16.mxu0 0
    %7804 = vmatpush1.bf16.msra.mxu0 %v7784
    %7805 = vmatprep.subr.bf16.mxu0 0
    %7806 = vmatpush1.bf16.msra.mxu0 %v7785
    %7807 = vmatprep.subr.bf16.mxu0 0
    %7808 = vmatpush1.bf16.msra.mxu0 %v7786
    %7809 = vmatprep.subr.bf16.mxu0 0
    %7810 = vmatpush1.bf16.msra.mxu0 %v7787
    %7811 = vmatprep.subr.bf16.mxu0 0
    %7812 = vmatpush1.bf16.msra.mxu0 %v7788
    %7813 = vmatprep.subr.bf16.mxu0 0
    %7814 = vmatpush1.bf16.msra.mxu0 0
    %7815 = vmatprep.subr.bf16.mxu0 0
    %7816 = vmatpush1.bf16.msra.mxu0 0
    %7817 = vmatprep.subr.bf16.mxu0 0
    %7818 = vmatpush1.bf16.msra.mxu0 0
    %7819 = vmatprep.subr.bf16.mxu0 0
    %7820 = vmatpush1.bf16.msra.mxu0 0
    %7821 = vmatprep.subr.bf16.mxu0 0
    %7822 = vmatpush1.bf16.msra.mxu0 0
    %7823 = vmatprep.subr.bf16.mxu0 0
    %7824 = vmatpush1.bf16.msra.mxu0 0
    %7825 = vmatprep.subr.bf16.mxu0 0
    %7826 = vmatpush1.bf16.msra.mxu0 0
    %7827 = vmatprep.subr.bf16.mxu0 0
    %7828 = vmatpush1.bf16.msra.mxu0 0
    %7829 = vmatprep.mubr.bf16.mxu0 0
    %7830 = vmatmul.mubr.bf16.gmra.mrb[0].mxu0 %v7747
    %v7831 = vpop.f32.mrb[0].mxu0
    %v7832 = vadd.f32 0.0, %v7831
    %v7833 = vpop.f32.mrb[0].mxu0
    %v7834 = vpop.f32.mrb[0].mxu0
    %v7835 = vpop.f32.mrb[0].mxu0
    %7836 = vdwg.mxu0
    %v7837 = vadd.f32 %v7726, %v7832
    %s7838 = scalar_lea.vmem %s6, 896
    %v7839 = vld [vmem:[%s7838] sm:$0xf]
    %v7840 = vld [vmem:[%s7838 + $0x4] sm:$0xf]
    %v7841 = vld [vmem:[%s7838 + $0x8] sm:$0xf]
    %v7842 = vld [vmem:[%s7838 + $0xc] sm:$0xf]
    %v7843 = vld [vmem:[%s7838 + $0x10] sm:$0xf]
    %v7844 = vld [vmem:[%s7838 + $0x14] sm:$0xf]
    %v7845 = vld [vmem:[%s7838 + $0x18] sm:$0xf]
    %v7846 = vld [vmem:[%s7838 + $0x1c] sm:$0xf]
    %v7847 = vld [vmem:[%s7838 + $0x20] sm:$0xf]
    %v7848 = vld [vmem:[%s7838 + $0x24] sm:$0xf]
    %v7849 = vld [vmem:[%s7838 + $0x28] sm:$0xf]
    %v7850 = vld [vmem:[%s7838 + $0x2c] sm:$0xf]
    %v7851 = vld [vmem:[%s7838 + $0x30] sm:$0xf]
    %v7852 = vld [vmem:[%s7838 + $0x34] sm:$0xf]
    %v7853 = vld [vmem:[%s7838 + $0x38] sm:$0xf]
    %v7854 = vld [vmem:[%s7838 + $0x3c] sm:$0xf]
    %v7855 = vrot.slane %v7189, 6
    %v7856 = vrot.slane %v7190, 5
    %v7857 = vsel %vm6322, %v7856, %v7855
    %v7858 = vpack.c.b16 %v7857, %v7857
    %v7876 = vunpack.c.l.b16 %v7839
    %v7877 = vunpack.c.l.b16 %v7840
    %v7878 = vunpack.c.l.b16 %v7841
    %v7879 = vunpack.c.l.b16 %v7842
    %v7880 = vunpack.c.l.b16 %v7843
    %v7881 = vunpack.c.l.b16 %v7844
    %v7882 = vunpack.c.l.b16 %v7845
    %v7883 = vunpack.c.l.b16 %v7846
    %v7884 = vunpack.c.l.b16 %v7847
    %v7885 = vunpack.c.l.b16 %v7848
    %v7886 = vunpack.c.l.b16 %v7849
    %v7887 = vunpack.c.l.b16 %v7850
    %v7888 = vunpack.c.l.b16 %v7851
    %v7889 = vunpack.c.l.b16 %v7852
    %v7890 = vunpack.c.l.b16 %v7853
    %v7891 = vunpack.c.l.b16 %v7854
    %v7892 = vpack.c.b16 %v7877, %v7876
    %v7893 = vpack.c.b16 %v7879, %v7878
    %v7894 = vpack.c.b16 %v7881, %v7880
    %v7895 = vpack.c.b16 %v7883, %v7882
    %v7896 = vpack.c.b16 %v7885, %v7884
    %v7897 = vpack.c.b16 %v7887, %v7886
    %v7898 = vpack.c.b16 %v7889, %v7888
    %v7899 = vpack.c.b16 %v7891, %v7890
    %7908 = vmatprep.subr.bf16.mxu0 0
    %7909 = vmatpush1.bf16.msra.mxu0 %v7892
    %7910 = vmatprep.subr.bf16.mxu0 0
    %7911 = vmatpush1.bf16.msra.mxu0 %v7893
    %7912 = vmatprep.subr.bf16.mxu0 0
    %7913 = vmatpush1.bf16.msra.mxu0 %v7894
    %7914 = vmatprep.subr.bf16.mxu0 0
    %7915 = vmatpush1.bf16.msra.mxu0 %v7895
    %7916 = vmatprep.subr.bf16.mxu0 0
    %7917 = vmatpush1.bf16.msra.mxu0 %v7896
    %7918 = vmatprep.subr.bf16.mxu0 0
    %7919 = vmatpush1.bf16.msra.mxu0 %v7897
    %7920 = vmatprep.subr.bf16.mxu0 0
    %7921 = vmatpush1.bf16.msra.mxu0 %v7898
    %7922 = vmatprep.subr.bf16.mxu0 0
    %7923 = vmatpush1.bf16.msra.mxu0 %v7899
    %7924 = vmatprep.subr.bf16.mxu0 0
    %7925 = vmatpush1.bf16.msra.mxu0 0
    %7926 = vmatprep.subr.bf16.mxu0 0
    %7927 = vmatpush1.bf16.msra.mxu0 0
    %7928 = vmatprep.subr.bf16.mxu0 0
    %7929 = vmatpush1.bf16.msra.mxu0 0
    %7930 = vmatprep.subr.bf16.mxu0 0
    %7931 = vmatpush1.bf16.msra.mxu0 0
    %7932 = vmatprep.subr.bf16.mxu0 0
    %7933 = vmatpush1.bf16.msra.mxu0 0
    %7934 = vmatprep.subr.bf16.mxu0 0
    %7935 = vmatpush1.bf16.msra.mxu0 0
    %7936 = vmatprep.subr.bf16.mxu0 0
    %7937 = vmatpush1.bf16.msra.mxu0 0
    %7938 = vmatprep.subr.bf16.mxu0 0
    %7939 = vmatpush1.bf16.msra.mxu0 0
    %7940 = vmatprep.mubr.bf16.mxu0 0
    %7941 = vmatmul.mubr.bf16.gmra.mrb[0].mxu0 %v7858
    %v7942 = vpop.f32.mrb[0].mxu0
    %v7943 = vadd.f32 0.0, %v7942
    %v7944 = vpop.f32.mrb[0].mxu0
    %v7945 = vpop.f32.mrb[0].mxu0
    %v7946 = vpop.f32.mrb[0].mxu0
    %7947 = vdwg.mxu0
    %v7948 = vadd.f32 %v7837, %v7943
    %s7949 = scalar_lea.vmem %s6, 960
    %v7950 = vld [vmem:[%s7949] sm:$0xf]
    %v7951 = vld [vmem:[%s7949 + $0x4] sm:$0xf]
    %v7952 = vld [vmem:[%s7949 + $0x8] sm:$0xf]
    %v7953 = vld [vmem:[%s7949 + $0xc] sm:$0xf]
    %v7954 = vld [vmem:[%s7949 + $0x10] sm:$0xf]
    %v7955 = vld [vmem:[%s7949 + $0x14] sm:$0xf]
    %v7956 = vld [vmem:[%s7949 + $0x18] sm:$0xf]
    %v7957 = vld [vmem:[%s7949 + $0x1c] sm:$0xf]
    %v7958 = vld [vmem:[%s7949 + $0x20] sm:$0xf]
    %v7959 = vld [vmem:[%s7949 + $0x24] sm:$0xf]
    %v7960 = vld [vmem:[%s7949 + $0x28] sm:$0xf]
    %v7961 = vld [vmem:[%s7949 + $0x2c] sm:$0xf]
    %v7962 = vld [vmem:[%s7949 + $0x30] sm:$0xf]
    %v7963 = vld [vmem:[%s7949 + $0x34] sm:$0xf]
    %v7964 = vld [vmem:[%s7949 + $0x38] sm:$0xf]
    %v7965 = vld [vmem:[%s7949 + $0x3c] sm:$0xf]
    %v7966 = vrot.slane %v7189, 7
    %v7967 = vrot.slane %v7190, 6
    %v7968 = vsel %vm6322, %v7967, %v7966
    %v7969 = vpack.c.b16 %v7968, %v7968
    %v7987 = vunpack.c.l.b16 %v7950
    %v7988 = vunpack.c.l.b16 %v7951
    %v7989 = vunpack.c.l.b16 %v7952
    %v7990 = vunpack.c.l.b16 %v7953
    %v7991 = vunpack.c.l.b16 %v7954
    %v7992 = vunpack.c.l.b16 %v7955
    %v7993 = vunpack.c.l.b16 %v7956
    %v7994 = vunpack.c.l.b16 %v7957
    %v7995 = vunpack.c.l.b16 %v7958
    %v7996 = vunpack.c.l.b16 %v7959
    %v7997 = vunpack.c.l.b16 %v7960
    %v7998 = vunpack.c.l.b16 %v7961
    %v7999 = vunpack.c.l.b16 %v7962
    %v8000 = vunpack.c.l.b16 %v7963
    %v8001 = vunpack.c.l.b16 %v7964
    %v8002 = vunpack.c.l.b16 %v7965
    %v8003 = vpack.c.b16 %v7988, %v7987
    %v8004 = vpack.c.b16 %v7990, %v7989
    %v8005 = vpack.c.b16 %v7992, %v7991
    %v8006 = vpack.c.b16 %v7994, %v7993
    %v8007 = vpack.c.b16 %v7996, %v7995
    %v8008 = vpack.c.b16 %v7998, %v7997
    %v8009 = vpack.c.b16 %v8000, %v7999
    %v8010 = vpack.c.b16 %v8002, %v8001
    %8019 = vmatprep.subr.bf16.mxu0 0
    %8020 = vmatpush1.bf16.msra.mxu0 %v8003
    %8021 = vmatprep.subr.bf16.mxu0 0
    %8022 = vmatpush1.bf16.msra.mxu0 %v8004
    %8023 = vmatprep.subr.bf16.mxu0 0
    %8024 = vmatpush1.bf16.msra.mxu0 %v8005
    %8025 = vmatprep.subr.bf16.mxu0 0
    %8026 = vmatpush1.bf16.msra.mxu0 %v8006
    %8027 = vmatprep.subr.bf16.mxu0 0
    %8028 = vmatpush1.bf16.msra.mxu0 %v8007
    %8029 = vmatprep.subr.bf16.mxu0 0
    %8030 = vmatpush1.bf16.msra.mxu0 %v8008
    %8031 = vmatprep.subr.bf16.mxu0 0
    %8032 = vmatpush1.bf16.msra.mxu0 %v8009
    %8033 = vmatprep.subr.bf16.mxu0 0
    %8034 = vmatpush1.bf16.msra.mxu0 %v8010
    %8035 = vmatprep.subr.bf16.mxu0 0
    %8036 = vmatpush1.bf16.msra.mxu0 0
    %8037 = vmatprep.subr.bf16.mxu0 0
    %8038 = vmatpush1.bf16.msra.mxu0 0
    %8039 = vmatprep.subr.bf16.mxu0 0
    %8040 = vmatpush1.bf16.msra.mxu0 0
    %8041 = vmatprep.subr.bf16.mxu0 0
    %8042 = vmatpush1.bf16.msra.mxu0 0
    %8043 = vmatprep.subr.bf16.mxu0 0
    %8044 = vmatpush1.bf16.msra.mxu0 0
    %8045 = vmatprep.subr.bf16.mxu0 0
    %8046 = vmatpush1.bf16.msra.mxu0 0
    %8047 = vmatprep.subr.bf16.mxu0 0
    %8048 = vmatpush1.bf16.msra.mxu0 0
    %8049 = vmatprep.subr.bf16.mxu0 0
    %8050 = vmatpush1.bf16.msra.mxu0 0
    %8051 = vmatprep.mubr.bf16.mxu0 0
    %8052 = vmatmul.mubr.bf16.gmra.mrb[0].mxu0 %v7969
    %v8053 = vpop.f32.mrb[0].mxu0
    %v8054 = vadd.f32 0.0, %v8053
    %v8055 = vpop.f32.mrb[0].mxu0
    %v8056 = vpop.f32.mrb[0].mxu0
    %v8057 = vpop.f32.mrb[0].mxu0
    %8058 = vdwg.mxu0
    %v8059 = vadd.f32 %v7948, %v8054
    %v8060 = vld [vmem:[%s7] sm:$0x1]
    %v8062 = vlaneseq
    %v8063 = vshrl.u32 %v8062, 7
    %v8064 = vsub.s32 0, %v8063
    %v8065 = vrot.slane %v8060, %v8064
    %v8067 = vadd.f32 %v8059, %v8065
    %8068 = vst [vmem:[#allocation2] sm:$0x3] %v8067
    // Predicated region
    $region34: #{cnn_forward.3} parent=1 // pred_check
      _
    $region35: #{cnn_forward.3} parent=1 // pred_check_branch
      %8070 = sbr.rel (0) target = $region37
    $region36: #{cnn_forward.3} parent=1 // pred_region
      %s8072 = ssub.s32 32, 32
      %8073 = vsyncadd [#allocation3], %s8072
      %s8075 = sshll.u32 [#allocation2], 4
      %s8076 = int_to_ptr.vmem [resolvable:$true] %s8075
      %8078 = dma.vmem_to_hbm [thread:$0]  %s8076, 32, %s8, [#allocation3]
    $region37: #{cnn_forward.3} parent=1 // pred_fallthru
      _
    // Predicated region
    $region38: #{cnn_forward.3} parent=1 // pred_check
      _
    $region39: #{cnn_forward.3} parent=1 // pred_check_branch
      %8080 = sbr.rel (0) target = $region41
    $region40: #{cnn_forward.3} parent=1 // pred_region
      %8081 = dma.done [#allocation3], 32
    $region41: #{cnn_forward.3} parent=1 // pred_fallthru
      _
    %8082 = vsyncpa [#allocation3], 1

</llo_original>
